<compile_context>
chip_gen: v7x
topology: tpu7x:2x2x1
jax: 0.10.0
libtpu: 0.0.40
codegen_flags: <defaults>
</compile_context>

<pallas_src>
import functools

import numpy as np
import jax
import jax.numpy as jnp
from jax.experimental import pallas as pl
from jax.experimental.pallas import tpu as pltpu


_VMEM_LIMIT_BYTES = 48 * 1024 * 1024   # stays well under v7x's 64 MiB / TC
_NEG = -1e30


# -----------------------------------------------------------------------------
# Pallas kernels
# -----------------------------------------------------------------------------
def _grouped_mlp_max_kernel(xj_ref, rel_ref, nvalid_ref,
                            w1x_ref, w1p_ref, b1_ref,
                            w2_ref, b2_ref, w3_ref, b3_ref,
                            out_ref, *, k_chunk):
    """3-layer MLP per (point, neighbor) with K-chunked running masked max.

    xj_ref:  [tp, K, C]   bf16   gathered neighbor features
    rel_ref: [tp, K, 3]   bf16   relative positions (or absolute for global SA)
    nvalid:  [tp, 1]      int32  number of valid neighbors per center
    out_ref: [tp, Cout]   f32    max-aggregated features
    """
    tp, K, C = xj_ref.shape
    cout = out_ref.shape[-1]
    n_chunks = K // k_chunk

    # hoist weight / bias loads out of the (unrolled) chunk loop
    w1x = w1x_ref[...]
    w1p = w1p_ref[...]
    b1 = b1_ref[...]
    w2 = w2_ref[...]
    b2 = b2_ref[...]
    w3 = w3_ref[...]
    b3 = b3_ref[...]

    nvalid = nvalid_ref[...]                                   # [tp, 1] int32
    running = jnp.full((tp, cout), _NEG, jnp.float32)

    # static unrolled loop over K chunks keeps live intermediates to one chunk
    for c in range(n_chunks):
        k0 = c * k_chunk
        xj = xj_ref[:, k0:k0 + k_chunk, :].reshape(tp * k_chunk, C)
        rl = rel_ref[:, k0:k0 + k_chunk, :].reshape(tp * k_chunk, 3)

        # layer 1: split contraction (lane-aligned C for SA2/SA3, no concat copy)
        h = (jnp.dot(xj, w1x, preferred_element_type=jnp.float32)
             + jnp.dot(rl, w1p, preferred_element_type=jnp.float32)
             + b1)
        h = jnp.maximum(h, 0.0)
        h = jnp.dot(h.astype(w2.dtype), w2,
                    preferred_element_type=jnp.float32) + b2
        h = jnp.maximum(h, 0.0)
        h = jnp.dot(h.astype(w3.dtype), w3,
                    preferred_element_type=jnp.float32) + b3

        h = h.reshape(tp, k_chunk, cout)
        # validity: neighbor slot index < nvalid (valid neighbors sorted first)
        kk = jax.lax.broadcasted_iota(jnp.int32, (tp, k_chunk, 1), 1) + k0
        valid = kk < nvalid[:, :, None]                        # [tp, kc, 1]
        h = jnp.where(valid, h, _NEG)                          # lane-broadcast
        running = jnp.maximum(running, jnp.max(h, axis=1))

    out_ref[...] = running


def _choose_tile(P, K, C, Cout):
    """Pick point-tile tp (mult of 8), padded P, and K-chunk size kc."""
    lane = lambda c: -(-c // 128) * 128
    if K <= 32:
        kc = K
    elif K % 32 == 0:
        kc = 32
    elif K % 16 == 0:
        kc = 16
    elif K % 8 == 0:
        kc = 8
    else:
        kc = K
    # VMEM budget (leave room for double-buffered weights + compiler scratch)
    budget = _VMEM_LIMIT_BYTES - 16 * 1024 * 1024
    # per selected point: double-buffered bf16 inputs + f32 out + chunk intermediates
    per_row = 2 * (K * (lane(C) + lane(3)) * 2 + 128 * 4 + lane(Cout) * 4)
    per_row += kc * 2 * lane(Cout) * 4
    tp = budget // max(per_row, 1)
    tp = max(8, min(512, (int(tp) // 8) * 8))
    p8 = -(-P // 8) * 8
    tp = min(tp, p8)
    P_pad = -(-P // tp) * tp
    return int(tp), int(P_pad), int(kc)


def grouped_mlp_max(x_j, rel, nvalid, mlp_params):
    """x_j: [P, K, C] f32/bf16, rel: [P, K, 3], nvalid: [P, 1] int32 -> [P, Cout] f32."""
    P, K, C = x_j.shape
    (w1, b1), (w2, b2), (w3, b3) = mlp_params
    Cout = w3.shape[1]

    # split W1 for the (x_j, rel) split contraction; bf16 MXU operands
    w1x = w1[:C].astype(jnp.bfloat16)
    w1p = w1[C:].astype(jnp.bfloat16)
    w2b = w2.astype(jnp.bfloat16)
    w3b = w3.astype(jnp.bfloat16)
    x_j = x_j.astype(jnp.bfloat16)
    rel = rel.astype(jnp.bfloat16)
    nvalid = nvalid.astype(jnp.int32)

    tp, P_pad, kc = _choose_tile(P, K, C, Cout)
    if P_pad != P:
        pad = P_pad - P
        x_j = jnp.pad(x_j, ((0, pad), (0, 0), (0, 0)))
        rel = jnp.pad(rel, ((0, pad), (0, 0), (0, 0)))
        nvalid = jnp.pad(nvalid, ((0, pad), (0, 0)))           # pad rows -> 0 valid

    kernel = functools.partial(_grouped_mlp_max_kernel, k_chunk=kc)
    out = pl.pallas_call(
        kernel,
        out_shape=jax.ShapeDtypeStruct((P_pad, Cout), jnp.float32),
        grid=(P_pad // tp,),
        in_specs=[
            pl.BlockSpec((tp, K, C), lambda i: (i, 0, 0)),
            pl.BlockSpec((tp, K, 3), lambda i: (i, 0, 0)),
            pl.BlockSpec((tp, 1), lambda i: (i, 0)),
            pl.BlockSpec(w1x.shape, lambda i: (0, 0)),
            pl.BlockSpec(w1p.shape, lambda i: (0, 0)),
            pl.BlockSpec(b1.shape, lambda i: (0, 0)),
            pl.BlockSpec(w2b.shape, lambda i: (0, 0)),
            pl.BlockSpec(b2.shape, lambda i: (0, 0)),
            pl.BlockSpec(w3b.shape, lambda i: (0, 0)),
            pl.BlockSpec(b3.shape, lambda i: (0, 0)),
        ],
        out_specs=pl.BlockSpec((tp, Cout), lambda i: (i, 0)),
        compiler_params=pltpu.CompilerParams(
            dimension_semantics=("parallel",),
            vmem_limit_bytes=_VMEM_LIMIT_BYTES,
        ),
    )(x_j, rel, nvalid, w1x, w1p, b1, w2b, b2, w3b, b3)
    return out[:P]


def _classifier_kernel(x_ref, w1_ref, b1_ref, w2_ref, b2_ref, w3_ref, b3_ref,
                       out_ref):
    """1024 -> 512 -> 256 -> num_classes MLP (ReLU, eval dropout=id) + log_softmax."""
    h = jnp.dot(x_ref[...], w1_ref[...], preferred_element_type=jnp.float32) + b1_ref[...]
    h = jnp.maximum(h, 0.0)
    h = jnp.dot(h.astype(w2_ref.dtype), w2_ref[...],
                preferred_element_type=jnp.float32) + b2_ref[...]
    h = jnp.maximum(h, 0.0)
    logits = jnp.dot(h.astype(w3_ref.dtype), w3_ref[...],
                     preferred_element_type=jnp.float32) + b3_ref[...]
    m = jnp.max(logits, axis=-1, keepdims=True)
    z = logits - m
    lse = jnp.log(jnp.sum(jnp.exp(z), axis=-1, keepdims=True))
    out_ref[...] = z - lse


def classifier_log_softmax(x, w1, b1, w2, b2, w3, b3):
    B = x.shape[0]
    num_classes = w3.shape[1]
    return pl.pallas_call(
        _classifier_kernel,
        out_shape=jax.ShapeDtypeStruct((B, num_classes), jnp.float32),
        compiler_params=pltpu.CompilerParams(
            vmem_limit_bytes=_VMEM_LIMIT_BYTES,
        ),
    )(x.astype(jnp.bfloat16),
      w1.astype(jnp.bfloat16), b1,
      w2.astype(jnp.bfloat16), b2,
      w3.astype(jnp.bfloat16), b3)


# -----------------------------------------------------------------------------
# Plain-JAX glue: FPS sampling, radius neighbor search, gathers
# -----------------------------------------------------------------------------
def fps_single(pos, m):
    """Farthest point sampling on one graph. pos: [N, 3] -> indices [m]."""
    N = pos.shape[0]

    def body(i, carry):
        sel, mind, last = carry
        d = jnp.sum((pos - pos[last]) ** 2, axis=-1)
        mind = jnp.minimum(mind, d)
        nxt = jnp.argmax(mind).astype(jnp.int32)
        sel = sel.at[i].set(nxt)
        return sel, mind, nxt

    sel0 = jnp.zeros((m,), jnp.int32)  # first selected point = 0
    mind0 = jnp.full((N,), jnp.inf, jnp.float32)
    sel, _, _ = jax.lax.fori_loop(1, m, body, (sel0, mind0, jnp.int32(0)))
    return sel


def radius_group(pos, pos_c, r, K):
    """Per-center neighbor indices within radius r (first K by index) + count.

    Valid neighbors are packed first (in original index order), so validity is
    simply 'slot < count' inside the kernel.
    """
    N = pos.shape[0]
    d2 = jnp.sum((pos_c[:, None, :] - pos[None, :, :]) ** 2, axis=-1)  # [M, N]
    within = d2 <= r * r
    order = jnp.cumsum(within.astype(jnp.int32), axis=1) - 1
    keep = within & (order < K)                      # max_num_neighbors behaviour
    col = jnp.arange(N)[None, :]
    score = jnp.where(keep, col, N + col)            # valid cols first, in order
    idx = jnp.argsort(score, axis=1)[:, :K]          # [M, K]
    nvalid = jnp.sum(keep, axis=1).astype(jnp.int32)  # [M]
    nvalid = jnp.minimum(nvalid, K)
    return idx, nvalid


def set_abstraction(x, pos, ratio, r, mlp_params, max_neighbors=64):
    """Dense SetAbstraction: returns (x', pos') with x': [B, M, Cout]."""
    B, N, C = x.shape
    M = int(round(N * ratio))
    K = min(max_neighbors, N)

    sel = jax.vmap(lambda p: fps_single(p, M))(pos)                    # [B, M]
    pos_c = jax.vmap(lambda p, s: p[s])(pos, sel)                      # [B, M, 3]
    idx, nvalid = jax.vmap(lambda p, pc: radius_group(p, pc, r, K))(pos, pos_c)

    x_j = jax.vmap(lambda a, i: a[i])(x, idx)                          # [B, M, K, C]
    pos_j = jax.vmap(lambda a, i: a[i])(pos, idx)                      # [B, M, K, 3]
    rel = pos_j - pos_c[:, :, None, :]                                 # f32 subtract

    out = grouped_mlp_max(x_j.reshape(B * M, K, C),
                          rel.reshape(B * M, K, 3),
                          nvalid.reshape(B * M, 1),
                          mlp_params)                                  # [B*M, Cout]
    return out.reshape(B, M, -1), pos_c


def global_set_abstraction(x, pos, mlp_params):
    """Dense GlobalSetAbstraction: MLP(concat(x, pos)) + global max pool per graph."""
    B, M, C = x.shape
    nvalid = jnp.full((B, 1), M, jnp.int32)                            # all valid
    return grouped_mlp_max(x, pos, nvalid, mlp_params)                 # [B, 1024]


# -----------------------------------------------------------------------------
# Parameter initialization (deterministic, synthetic)
# -----------------------------------------------------------------------------
_BN_SCALE = 1.0 / np.sqrt(1.0 + 1e-5)   # eval-mode BatchNorm with fresh stats


def init_mlp(key, channels, fold_bn):
    params = []
    n_layers = len(channels) - 1
    for li in range(n_layers):
        key, kw, kb = jax.random.split(key, 3)
        cin, cout = channels[li], channels[li + 1]
        w = jax.random.normal(kw, (cin, cout), jnp.float32) / np.sqrt(cin)
        b = 0.01 * jax.random.normal(kb, (1, cout), jnp.float32)
        if fold_bn and li < n_layers - 1:    # hidden layers carry BatchNorm
            w = w * _BN_SCALE
            b = b * _BN_SCALE
        params.append((w, b))
    return key, params


def init_params(key, num_features, num_classes):
    key, sa1 = init_mlp(key, [3 + num_features, 64, 64, 128], fold_bn=True)
    key, sa2 = init_mlp(key, [128 + 3, 128, 128, 256], fold_bn=True)
    key, sa3 = init_mlp(key, [256 + 3, 256, 512, 1024], fold_bn=True)
    key, cls = init_mlp(key, [1024, 512, 256, num_classes], fold_bn=False)
    return {"sa1": sa1, "sa2": sa2, "sa3": sa3, "cls": cls}


# -----------------------------------------------------------------------------
# Full forward pass
# -----------------------------------------------------------------------------
def pointnet2_forward(params, x, pos):
    # sa0_out = (x, pos, batch)  -- batch implicit in the leading B axis
    x1, pos1 = set_abstraction(x, pos, ratio=0.5, r=0.2, mlp_params=params["sa1"])
    x2, pos2 = set_abstraction(x1, pos1, ratio=0.25, r=0.4, mlp_params=params["sa2"])
    x3 = global_set_abstraction(x2, pos2, params["sa3"])               # [B, 1024]
    (w1, b1), (w2, b2), (w3, b3) = params["cls"]
    return classifier_log_softmax(x3, w1, b1, w2, b2, w3, b3)          # [B, num_classes]


# -----------------------------------------------------------------------------
if __name__ == "__main__":
    B, N, F = 2, 32, 4
    NUM_CLASSES = 10

    key = jax.random.PRNGKey(0)
    k_pos, k_x, k_w = jax.random.split(key, 3)
    pos = jax.random.uniform(k_pos, (B, N, 3), dtype=jnp.float32)
    x = jax.random.normal(k_x, (B, N, F), dtype=jnp.float32)

    params = init_params(k_w, F, NUM_CLASSES)

    fwd = jax.jit(functools.partial(pointnet2_forward, params))
    out = fwd(x, pos)
    out = jax.block_until_ready(out)

    assert out.shape == (B, NUM_CLASSES)
    assert bool(jnp.all(jnp.isfinite(out)))
    # rows of log_softmax must (log-)sum to ~1
    assert bool(jnp.allclose(jnp.sum(jnp.exp(out), axis=-1), 1.0, atol=1e-2))
    print("KERNEL_OK")
</pallas_src>

<mosaic_0001>
module attributes {stable_mosaic.version = 11 : i64} {
  func.func @_grouped_mlp_max_kernel(%arg0: i32, %arg1: memref<32x32x4xbf16, #tpu.memory_space<vmem>>, %arg2: memref<32x32x3xbf16, #tpu.memory_space<vmem>>, %arg3: memref<32x1xi32, #tpu.memory_space<vmem>>, %arg4: memref<4x64xbf16, #tpu.memory_space<vmem>>, %arg5: memref<3x64xbf16, #tpu.memory_space<vmem>>, %arg6: memref<1x64xf32, #tpu.memory_space<vmem>>, %arg7: memref<64x64xbf16, #tpu.memory_space<vmem>>, %arg8: memref<1x64xf32, #tpu.memory_space<vmem>>, %arg9: memref<64x128xbf16, #tpu.memory_space<vmem>>, %arg10: memref<1x128xf32, #tpu.memory_space<vmem>>, %arg11: memref<32x128xf32, #tpu.memory_space<vmem>>) attributes {dimension_semantics = [#tpu.dimension_semantics<parallel>], iteration_bounds = array<i64: 1>, scalar_prefetch = 0 : i64, scratch_operands = 0 : i64, tpu.core_type = #tpu.core_type<tc>, window_params = [{transform_indices = @transform_0, window_bounds = array<i64: 32, 32, 4>}, {transform_indices = @transform_1, window_bounds = array<i64: 32, 32, 3>}, {transform_indices = @transform_2, window_bounds = array<i64: 32, 1>}, {pipeline_mode = #tpu.pipeline_mode<synchronous>, transform_indices = @transform_3, window_bounds = array<i64: 4, 64>}, {pipeline_mode = #tpu.pipeline_mode<synchronous>, transform_indices = @transform_4, window_bounds = array<i64: 3, 64>}, {pipeline_mode = #tpu.pipeline_mode<synchronous>, transform_indices = @transform_5, window_bounds = array<i64: 1, 64>}, {pipeline_mode = #tpu.pipeline_mode<synchronous>, transform_indices = @transform_6, window_bounds = array<i64: 64, 64>}, {pipeline_mode = #tpu.pipeline_mode<synchronous>, transform_indices = @transform_7, window_bounds = array<i64: 1, 64>}, {pipeline_mode = #tpu.pipeline_mode<synchronous>, transform_indices = @transform_8, window_bounds = array<i64: 64, 128>}, {pipeline_mode = #tpu.pipeline_mode<synchronous>, transform_indices = @transform_9, window_bounds = array<i64: 1, 128>}, {transform_indices = @transform_10, window_bounds = array<i64: 32, 128>}]} {
    %c0 = arith.constant 0 : index
    %c0_0 = arith.constant 0 : index
    %0 = vector.load %arg4[%c0, %c0_0] : memref<4x64xbf16, #tpu.memory_space<vmem>>, vector<4x64xbf16>
    %c0_1 = arith.constant 0 : index
    %c0_2 = arith.constant 0 : index
    %1 = vector.load %arg5[%c0_1, %c0_2] : memref<3x64xbf16, #tpu.memory_space<vmem>>, vector<3x64xbf16>
    %c0_3 = arith.constant 0 : index
    %c0_4 = arith.constant 0 : index
    %2 = vector.load %arg6[%c0_3, %c0_4] : memref<1x64xf32, #tpu.memory_space<vmem>>, vector<1x64xf32>
    %c0_5 = arith.constant 0 : index
    %c0_6 = arith.constant 0 : index
    %3 = vector.load %arg7[%c0_5, %c0_6] : memref<64x64xbf16, #tpu.memory_space<vmem>>, vector<64x64xbf16>
    %c0_7 = arith.constant 0 : index
    %c0_8 = arith.constant 0 : index
    %4 = vector.load %arg8[%c0_7, %c0_8] : memref<1x64xf32, #tpu.memory_space<vmem>>, vector<1x64xf32>
    %c0_9 = arith.constant 0 : index
    %c0_10 = arith.constant 0 : index
    %5 = vector.load %arg9[%c0_9, %c0_10] : memref<64x128xbf16, #tpu.memory_space<vmem>>, vector<64x128xbf16>
    %c0_11 = arith.constant 0 : index
    %c0_12 = arith.constant 0 : index
    %6 = vector.load %arg10[%c0_11, %c0_12] : memref<1x128xf32, #tpu.memory_space<vmem>>, vector<1x128xf32>
    %c0_13 = arith.constant 0 : index
    %c0_14 = arith.constant 0 : index
    %7 = vector.load %arg3[%c0_13, %c0_14] : memref<32x1xi32, #tpu.memory_space<vmem>>, vector<32x1xi32>
    %cst = arith.constant -1.000000e+30 : f32
    %8 = vector.broadcast %cst : f32 to vector<32x128xf32>
    %c0_15 = arith.constant 0 : index
    %c0_16 = arith.constant 0 : index
    %c0_17 = arith.constant 0 : index
    %9 = vector.load %arg1[%c0_15, %c0_16, %c0_17] : memref<32x32x4xbf16, #tpu.memory_space<vmem>>, vector<32x32x4xbf16>
    %10 = vector.shape_cast %9 : vector<32x32x4xbf16> to vector<1024x4xbf16>
    %c0_18 = arith.constant 0 : index
    %c0_19 = arith.constant 0 : index
    %c0_20 = arith.constant 0 : index
    %11 = vector.load %arg2[%c0_18, %c0_19, %c0_20] : memref<32x32x3xbf16, #tpu.memory_space<vmem>>, vector<32x32x3xbf16>
    %12 = vector.shape_cast %11 : vector<32x32x3xbf16> to vector<1024x3xbf16>
    %cst_21 = arith.constant dense<0.000000e+00> : vector<1024x64xf32>
    %13 = tpu.matmul %10, %0, %cst_21 {dimension_numbers = #tpu.dot_dimension_numbers<[1], [0], [0], [1], [0, 0, 1, 1], [], []>} : vector<1024x4xbf16>, vector<4x64xbf16>, vector<1024x64xf32> -> vector<1024x64xf32>
    %cst_22 = arith.constant dense<0.000000e+00> : vector<1024x64xf32>
    %14 = tpu.matmul %12, %1, %cst_22 {dimension_numbers = #tpu.dot_dimension_numbers<[1], [0], [0], [1], [0, 0, 1, 1], [], []>} : vector<1024x3xbf16>, vector<3x64xbf16>, vector<1024x64xf32> -> vector<1024x64xf32>
    %15 = arith.addf %13, %14 : vector<1024x64xf32>
    %16 = vector.broadcast %2 : vector<1x64xf32> to vector<1024x64xf32>
    %17 = arith.addf %15, %16 : vector<1024x64xf32>
    %cst_23 = arith.constant 0.000000e+00 : f32
    %18 = vector.broadcast %cst_23 : f32 to vector<1024x64xf32>
    %19 = arith.maximumf %17, %18 : vector<1024x64xf32>
    %20 = arith.truncf %19 : vector<1024x64xf32> to vector<1024x64xbf16>
    %cst_24 = arith.constant dense<0.000000e+00> : vector<1024x64xf32>
    %21 = tpu.matmul %20, %3, %cst_24 {dimension_numbers = #tpu.dot_dimension_numbers<[1], [0], [0], [1], [0, 0, 1, 1], [], []>} : vector<1024x64xbf16>, vector<64x64xbf16>, vector<1024x64xf32> -> vector<1024x64xf32>
    %22 = vector.broadcast %4 : vector<1x64xf32> to vector<1024x64xf32>
    %23 = arith.addf %21, %22 : vector<1024x64xf32>
    %cst_25 = arith.constant 0.000000e+00 : f32
    %24 = vector.broadcast %cst_25 : f32 to vector<1024x64xf32>
    %25 = arith.maximumf %23, %24 : vector<1024x64xf32>
    %26 = arith.truncf %25 : vector<1024x64xf32> to vector<1024x64xbf16>
    %cst_26 = arith.constant dense<0.000000e+00> : vector<1024x128xf32>
    %27 = tpu.matmul %26, %5, %cst_26 {dimension_numbers = #tpu.dot_dimension_numbers<[1], [0], [0], [1], [0, 0, 1, 1], [], []>} : vector<1024x64xbf16>, vector<64x128xbf16>, vector<1024x128xf32> -> vector<1024x128xf32>
    %28 = vector.broadcast %6 : vector<1x128xf32> to vector<1024x128xf32>
    %29 = arith.addf %27, %28 : vector<1024x128xf32>
    %30 = vector.shape_cast %29 : vector<1024x128xf32> to vector<32x32x128xf32>
    %31 = tpu.iota {dimensions = array<i32: 1>} : vector<32x32x1xi32>
    %c0_i32 = arith.constant 0 : i32
    %32 = vector.broadcast %c0_i32 : i32 to vector<32x32x1xi32>
    %33 = arith.addi %31, %32 : vector<32x32x1xi32>
    %34 = vector.shape_cast %7 : vector<32x1xi32> to vector<32x1x1xi32>
    %35 = vector.broadcast %34 : vector<32x1x1xi32> to vector<32x32x1xi32>
    %36 = arith.cmpi slt, %33, %35 : vector<32x32x1xi32>
    %cst_27 = arith.constant -1.000000e+30 : f32
    %37 = vector.shape_cast %36 : vector<32x32x1xi1> to vector<32x32x1xi1>
    %38 = vector.broadcast %37 : vector<32x32x1xi1> to vector<32x32x128xi1>
    %39 = vector.broadcast %cst_27 : f32 to vector<32x32x128xf32>
    %40 = arith.select %38, %30, %39 : vector<32x32x128xi1>, vector<32x32x128xf32>
    %cst_28 = arith.constant dense<0xFF800000> : vector<32x128xf32>
    %41 = vector.multi_reduction <maximumf>, %40, %cst_28 [1] : vector<32x32x128xf32> to vector<32x128xf32>
    %42 = arith.maximumf %8, %41 : vector<32x128xf32>
    %c0_29 = arith.constant 0 : index
    %c0_30 = arith.constant 0 : index
    %43 = vector.load %arg11[%c0_29, %c0_30] : memref<32x128xf32, #tpu.memory_space<vmem>>, vector<32x128xf32>
    tpu.vector_store %arg11[%c0_29, %c0_30], %42 {strides = array<i32>} : memref<32x128xf32, #tpu.memory_space<vmem>>, vector<32x128xf32>,
    return
  }
  func.func @transform_0(%arg0: i32) -> (i32, i32, i32) {
    %c0_i32 = arith.constant 0 : i32
    %c0_i32_0 = arith.constant 0 : i32
    %c0_i32_1 = arith.constant 0 : i32
    return %arg0, %c0_i32, %c0_i32_0 : i32, i32, i32
  }
  func.func @transform_1(%arg0: i32) -> (i32, i32, i32) {
    %c0_i32 = arith.constant 0 : i32
    %c0_i32_0 = arith.constant 0 : i32
    %c0_i32_1 = arith.constant 0 : i32
    return %arg0, %c0_i32, %c0_i32_0 : i32, i32, i32
  }
  func.func @transform_2(%arg0: i32) -> (i32, i32) {
    %c0_i32 = arith.constant 0 : i32
    %c0_i32_0 = arith.constant 0 : i32
    return %arg0, %c0_i32 : i32, i32
  }
  func.func @transform_3(%arg0: i32) -> (i32, i32) {
    %c0_i32 = arith.constant 0 : i32
    %c0_i32_0 = arith.constant 0 : i32
    %c0_i32_1 = arith.constant 0 : i32
    return %c0_i32, %c0_i32_0 : i32, i32
  }
  func.func @transform_4(%arg0: i32) -> (i32, i32) {
    %c0_i32 = arith.constant 0 : i32
    %c0_i32_0 = arith.constant 0 : i32
    %c0_i32_1 = arith.constant 0 : i32
    return %c0_i32, %c0_i32_0 : i32, i32
  }
  func.func @transform_5(%arg0: i32) -> (i32, i32) {
    %c0_i32 = arith.constant 0 : i32
    %c0_i32_0 = arith.constant 0 : i32
    %c0_i32_1 = arith.constant 0 : i32
    return %c0_i32, %c0_i32_0 : i32, i32
  }
  func.func @transform_6(%arg0: i32) -> (i32, i32) {
    %c0_i32 = arith.constant 0 : i32
    %c0_i32_0 = arith.constant 0 : i32
    %c0_i32_1 = arith.constant 0 : i32
    return %c0_i32, %c0_i32_0 : i32, i32
  }
  func.func @transform_7(%arg0: i32) -> (i32, i32) {
    %c0_i32 = arith.constant 0 : i32
    %c0_i32_0 = arith.constant 0 : i32
    %c0_i32_1 = arith.constant 0 : i32
    return %c0_i32, %c0_i32_0 : i32, i32
  }
  func.func @transform_8(%arg0: i32) -> (i32, i32) {
    %c0_i32 = arith.constant 0 : i32
    %c0_i32_0 = arith.constant 0 : i32
    %c0_i32_1 = arith.constant 0 : i32
    return %c0_i32, %c0_i32_0 : i32, i32
  }
  func.func @transform_9(%arg0: i32) -> (i32, i32) {
    %c0_i32 = arith.constant 0 : i32
    %c0_i32_0 = arith.constant 0 : i32
    %c0_i32_1 = arith.constant 0 : i32
    return %c0_i32, %c0_i32_0 : i32, i32
  }
  func.func @transform_10(%arg0: i32) -> (i32, i32) {
    %c0_i32 = arith.constant 0 : i32
    %c0_i32_0 = arith.constant 0 : i32
    return %arg0, %c0_i32 : i32, i32
  }
}

module attributes {stable_mosaic.version = 11 : i64} {
  func.func @_grouped_mlp_max_kernel(%arg0: i32, %arg1: memref<8x16x128xbf16, #tpu.memory_space<vmem>>, %arg2: memref<8x16x3xbf16, #tpu.memory_space<vmem>>, %arg3: memref<8x1xi32, #tpu.memory_space<vmem>>, %arg4: memref<128x128xbf16, #tpu.memory_space<vmem>>, %arg5: memref<3x128xbf16, #tpu.memory_space<vmem>>, %arg6: memref<1x128xf32, #tpu.memory_space<vmem>>, %arg7: memref<128x128xbf16, #tpu.memory_space<vmem>>, %arg8: memref<1x128xf32, #tpu.memory_space<vmem>>, %arg9: memref<128x256xbf16, #tpu.memory_space<vmem>>, %arg10: memref<1x256xf32, #tpu.memory_space<vmem>>, %arg11: memref<8x256xf32, #tpu.memory_space<vmem>>) attributes {dimension_semantics = [#tpu.dimension_semantics<parallel>], iteration_bounds = array<i64: 1>, scalar_prefetch = 0 : i64, scratch_operands = 0 : i64, tpu.core_type = #tpu.core_type<tc>, window_params = [{transform_indices = @transform_0, window_bounds = array<i64: 8, 16, 128>}, {transform_indices = @transform_1, window_bounds = array<i64: 8, 16, 3>}, {transform_indices = @transform_2, window_bounds = array<i64: 8, 1>}, {pipeline_mode = #tpu.pipeline_mode<synchronous>, transform_indices = @transform_3, window_bounds = array<i64: 128, 128>}, {pipeline_mode = #tpu.pipeline_mode<synchronous>, transform_indices = @transform_4, window_bounds = array<i64: 3, 128>}, {pipeline_mode = #tpu.pipeline_mode<synchronous>, transform_indices = @transform_5, window_bounds = array<i64: 1, 128>}, {pipeline_mode = #tpu.pipeline_mode<synchronous>, transform_indices = @transform_6, window_bounds = array<i64: 128, 128>}, {pipeline_mode = #tpu.pipeline_mode<synchronous>, transform_indices = @transform_7, window_bounds = array<i64: 1, 128>}, {pipeline_mode = #tpu.pipeline_mode<synchronous>, transform_indices = @transform_8, window_bounds = array<i64: 128, 256>}, {pipeline_mode = #tpu.pipeline_mode<synchronous>, transform_indices = @transform_9, window_bounds = array<i64: 1, 256>}, {transform_indices = @transform_10, window_bounds = array<i64: 8, 256>}]} {
    %c0 = arith.constant 0 : index
    %c0_0 = arith.constant 0 : index
    %0 = vector.load %arg4[%c0, %c0_0] : memref<128x128xbf16, #tpu.memory_space<vmem>>, vector<128x128xbf16>
    %c0_1 = arith.constant 0 : index
    %c0_2 = arith.constant 0 : index
    %1 = vector.load %arg5[%c0_1, %c0_2] : memref<3x128xbf16, #tpu.memory_space<vmem>>, vector<3x128xbf16>
    %c0_3 = arith.constant 0 : index
    %c0_4 = arith.constant 0 : index
    %2 = vector.load %arg6[%c0_3, %c0_4] : memref<1x128xf32, #tpu.memory_space<vmem>>, vector<1x128xf32>
    %c0_5 = arith.constant 0 : index
    %c0_6 = arith.constant 0 : index
    %3 = vector.load %arg7[%c0_5, %c0_6] : memref<128x128xbf16, #tpu.memory_space<vmem>>, vector<128x128xbf16>
    %c0_7 = arith.constant 0 : index
    %c0_8 = arith.constant 0 : index
    %4 = vector.load %arg8[%c0_7, %c0_8] : memref<1x128xf32, #tpu.memory_space<vmem>>, vector<1x128xf32>
    %c0_9 = arith.constant 0 : index
    %c0_10 = arith.constant 0 : index
    %5 = vector.load %arg9[%c0_9, %c0_10] : memref<128x256xbf16, #tpu.memory_space<vmem>>, vector<128x256xbf16>
    %c0_11 = arith.constant 0 : index
    %c0_12 = arith.constant 0 : index
    %6 = vector.load %arg10[%c0_11, %c0_12] : memref<1x256xf32, #tpu.memory_space<vmem>>, vector<1x256xf32>
    %c0_13 = arith.constant 0 : index
    %c0_14 = arith.constant 0 : index
    %7 = vector.load %arg3[%c0_13, %c0_14] : memref<8x1xi32, #tpu.memory_space<vmem>>, vector<8x1xi32>
    %cst = arith.constant -1.000000e+30 : f32
    %8 = vector.broadcast %cst : f32 to vector<8x256xf32>
    %c0_15 = arith.constant 0 : index
    %c0_16 = arith.constant 0 : index
    %c0_17 = arith.constant 0 : index
    %9 = vector.load %arg1[%c0_15, %c0_16, %c0_17] : memref<8x16x128xbf16, #tpu.memory_space<vmem>>, vector<8x16x128xbf16>
    %10 = vector.shape_cast %9 : vector<8x16x128xbf16> to vector<128x128xbf16>
    %c0_18 = arith.constant 0 : index
    %c0_19 = arith.constant 0 : index
    %c0_20 = arith.constant 0 : index
    %11 = vector.load %arg2[%c0_18, %c0_19, %c0_20] : memref<8x16x3xbf16, #tpu.memory_space<vmem>>, vector<8x16x3xbf16>
    %12 = vector.shape_cast %11 : vector<8x16x3xbf16> to vector<128x3xbf16>
    %cst_21 = arith.constant dense<0.000000e+00> : vector<128x128xf32>
    %13 = tpu.matmul %10, %0, %cst_21 {dimension_numbers = #tpu.dot_dimension_numbers<[1], [0], [0], [1], [0, 0, 1, 1], [], []>} : vector<128x128xbf16>, vector<128x128xbf16>, vector<128x128xf32> -> vector<128x128xf32>
    %cst_22 = arith.constant dense<0.000000e+00> : vector<128x128xf32>
    %14 = tpu.matmul %12, %1, %cst_22 {dimension_numbers = #tpu.dot_dimension_numbers<[1], [0], [0], [1], [0, 0, 1, 1], [], []>} : vector<128x3xbf16>, vector<3x128xbf16>, vector<128x128xf32> -> vector<128x128xf32>
    %15 = arith.addf %13, %14 : vector<128x128xf32>
    %16 = vector.broadcast %2 : vector<1x128xf32> to vector<128x128xf32>
    %17 = arith.addf %15, %16 : vector<128x128xf32>
    %cst_23 = arith.constant 0.000000e+00 : f32
    %18 = vector.broadcast %cst_23 : f32 to vector<128x128xf32>
    %19 = arith.maximumf %17, %18 : vector<128x128xf32>
    %20 = arith.truncf %19 : vector<128x128xf32> to vector<128x128xbf16>
    %cst_24 = arith.constant dense<0.000000e+00> : vector<128x128xf32>
    %21 = tpu.matmul %20, %3, %cst_24 {dimension_numbers = #tpu.dot_dimension_numbers<[1], [0], [0], [1], [0, 0, 1, 1], [], []>} : vector<128x128xbf16>, vector<128x128xbf16>, vector<128x128xf32> -> vector<128x128xf32>
    %22 = vector.broadcast %4 : vector<1x128xf32> to vector<128x128xf32>
    %23 = arith.addf %21, %22 : vector<128x128xf32>
    %cst_25 = arith.constant 0.000000e+00 : f32
    %24 = vector.broadcast %cst_25 : f32 to vector<128x128xf32>
    %25 = arith.maximumf %23, %24 : vector<128x128xf32>
    %26 = arith.truncf %25 : vector<128x128xf32> to vector<128x128xbf16>
    %cst_26 = arith.constant dense<0.000000e+00> : vector<128x256xf32>
    %27 = tpu.matmul %26, %5, %cst_26 {dimension_numbers = #tpu.dot_dimension_numbers<[1], [0], [0], [1], [0, 0, 1, 1], [], []>} : vector<128x128xbf16>, vector<128x256xbf16>, vector<128x256xf32> -> vector<128x256xf32>
    %28 = vector.broadcast %6 : vector<1x256xf32> to vector<128x256xf32>
    %29 = arith.addf %27, %28 : vector<128x256xf32>
    %30 = vector.shape_cast %29 : vector<128x256xf32> to vector<8x16x256xf32>
    %31 = tpu.iota {dimensions = array<i32: 1>} : vector<8x16x1xi32>
    %c0_i32 = arith.constant 0 : i32
    %32 = vector.broadcast %c0_i32 : i32 to vector<8x16x1xi32>
    %33 = arith.addi %31, %32 : vector<8x16x1xi32>
    %34 = vector.shape_cast %7 : vector<8x1xi32> to vector<8x1x1xi32>
    %35 = vector.broadcast %34 : vector<8x1x1xi32> to vector<8x16x1xi32>
    %36 = arith.cmpi slt, %33, %35 : vector<8x16x1xi32>
    %cst_27 = arith.constant -1.000000e+30 : f32
    %37 = vector.shape_cast %36 : vector<8x16x1xi1> to vector<8x16x1xi1>
    %38 = vector.broadcast %37 : vector<8x16x1xi1> to vector<8x16x256xi1>
    %39 = vector.broadcast %cst_27 : f32 to vector<8x16x256xf32>
    %40 = arith.select %38, %30, %39 : vector<8x16x256xi1>, vector<8x16x256xf32>
    %cst_28 = arith.constant dense<0xFF800000> : vector<8x256xf32>
    %41 = vector.multi_reduction <maximumf>, %40, %cst_28 [1] : vector<8x16x256xf32> to vector<8x256xf32>
    %42 = arith.maximumf %8, %41 : vector<8x256xf32>
    %c0_29 = arith.constant 0 : index
    %c0_30 = arith.constant 0 : index
    %43 = vector.load %arg11[%c0_29, %c0_30] : memref<8x256xf32, #tpu.memory_space<vmem>>, vector<8x256xf32>
    tpu.vector_store %arg11[%c0_29, %c0_30], %42 {strides = array<i32>} : memref<8x256xf32, #tpu.memory_space<vmem>>, vector<8x256xf32>,
    return
  }
  func.func @transform_0(%arg0: i32) -> (i32, i32, i32) {
    %c0_i32 = arith.constant 0 : i32
    %c0_i32_0 = arith.constant 0 : i32
    %c0_i32_1 = arith.constant 0 : i32
    return %arg0, %c0_i32, %c0_i32_0 : i32, i32, i32
  }
  func.func @transform_1(%arg0: i32) -> (i32, i32, i32) {
    %c0_i32 = arith.constant 0 : i32
    %c0_i32_0 = arith.constant 0 : i32
    %c0_i32_1 = arith.constant 0 : i32
    return %arg0, %c0_i32, %c0_i32_0 : i32, i32, i32
  }
  func.func @transform_2(%arg0: i32) -> (i32, i32) {
    %c0_i32 = arith.constant 0 : i32
    %c0_i32_0 = arith.constant 0 : i32
    return %arg0, %c0_i32 : i32, i32
  }
  func.func @transform_3(%arg0: i32) -> (i32, i32) {
    %c0_i32 = arith.constant 0 : i32
    %c0_i32_0 = arith.constant 0 : i32
    %c0_i32_1 = arith.constant 0 : i32
    return %c0_i32, %c0_i32_0 : i32, i32
  }
  func.func @transform_4(%arg0: i32) -> (i32, i32) {
    %c0_i32 = arith.constant 0 : i32
    %c0_i32_0 = arith.constant 0 : i32
    %c0_i32_1 = arith.constant 0 : i32
    return %c0_i32, %c0_i32_0 : i32, i32
  }
  func.func @transform_5(%arg0: i32) -> (i32, i32) {
    %c0_i32 = arith.constant 0 : i32
    %c0_i32_0 = arith.constant 0 : i32
    %c0_i32_1 = arith.constant 0 : i32
    return %c0_i32, %c0_i32_0 : i32, i32
  }
  func.func @transform_6(%arg0: i32) -> (i32, i32) {
    %c0_i32 = arith.constant 0 : i32
    %c0_i32_0 = arith.constant 0 : i32
    %c0_i32_1 = arith.constant 0 : i32
    return %c0_i32, %c0_i32_0 : i32, i32
  }
  func.func @transform_7(%arg0: i32) -> (i32, i32) {
    %c0_i32 = arith.constant 0 : i32
    %c0_i32_0 = arith.constant 0 : i32
    %c0_i32_1 = arith.constant 0 : i32
    return %c0_i32, %c0_i32_0 : i32, i32
  }
  func.func @transform_8(%arg0: i32) -> (i32, i32) {
    %c0_i32 = arith.constant 0 : i32
    %c0_i32_0 = arith.constant 0 : i32
    %c0_i32_1 = arith.constant 0 : i32
    return %c0_i32, %c0_i32_0 : i32, i32
  }
  func.func @transform_9(%arg0: i32) -> (i32, i32) {
    %c0_i32 = arith.constant 0 : i32
    %c0_i32_0 = arith.constant 0 : i32
    %c0_i32_1 = arith.constant 0 : i32
    return %c0_i32, %c0_i32_0 : i32, i32
  }
  func.func @transform_10(%arg0: i32) -> (i32, i32) {
    %c0_i32 = arith.constant 0 : i32
    %c0_i32_0 = arith.constant 0 : i32
    return %arg0, %c0_i32 : i32, i32
  }
}

module attributes {stable_mosaic.version = 11 : i64} {
  func.func @_grouped_mlp_max_kernel(%arg0: i32, %arg1: memref<8x4x256xbf16, #tpu.memory_space<vmem>>, %arg2: memref<8x4x3xbf16, #tpu.memory_space<vmem>>, %arg3: memref<8x1xi32, #tpu.memory_space<vmem>>, %arg4: memref<256x256xbf16, #tpu.memory_space<vmem>>, %arg5: memref<3x256xbf16, #tpu.memory_space<vmem>>, %arg6: memref<1x256xf32, #tpu.memory_space<vmem>>, %arg7: memref<256x512xbf16, #tpu.memory_space<vmem>>, %arg8: memref<1x512xf32, #tpu.memory_space<vmem>>, %arg9: memref<512x1024xbf16, #tpu.memory_space<vmem>>, %arg10: memref<1x1024xf32, #tpu.memory_space<vmem>>, %arg11: memref<8x1024xf32, #tpu.memory_space<vmem>>) attributes {dimension_semantics = [#tpu.dimension_semantics<parallel>], iteration_bounds = array<i64: 1>, scalar_prefetch = 0 : i64, scratch_operands = 0 : i64, tpu.core_type = #tpu.core_type<tc>, window_params = [{transform_indices = @transform_0, window_bounds = array<i64: 8, 4, 256>}, {transform_indices = @transform_1, window_bounds = array<i64: 8, 4, 3>}, {transform_indices = @transform_2, window_bounds = array<i64: 8, 1>}, {pipeline_mode = #tpu.pipeline_mode<synchronous>, transform_indices = @transform_3, window_bounds = array<i64: 256, 256>}, {pipeline_mode = #tpu.pipeline_mode<synchronous>, transform_indices = @transform_4, window_bounds = array<i64: 3, 256>}, {pipeline_mode = #tpu.pipeline_mode<synchronous>, transform_indices = @transform_5, window_bounds = array<i64: 1, 256>}, {pipeline_mode = #tpu.pipeline_mode<synchronous>, transform_indices = @transform_6, window_bounds = array<i64: 256, 512>}, {pipeline_mode = #tpu.pipeline_mode<synchronous>, transform_indices = @transform_7, window_bounds = array<i64: 1, 512>}, {pipeline_mode = #tpu.pipeline_mode<synchronous>, transform_indices = @transform_8, window_bounds = array<i64: 512, 1024>}, {pipeline_mode = #tpu.pipeline_mode<synchronous>, transform_indices = @transform_9, window_bounds = array<i64: 1, 1024>}, {transform_indices = @transform_10, window_bounds = array<i64: 8, 1024>}]} {
    %c0 = arith.constant 0 : index
    %c0_0 = arith.constant 0 : index
    %0 = vector.load %arg4[%c0, %c0_0] : memref<256x256xbf16, #tpu.memory_space<vmem>>, vector<256x256xbf16>
    %c0_1 = arith.constant 0 : index
    %c0_2 = arith.constant 0 : index
    %1 = vector.load %arg5[%c0_1, %c0_2] : memref<3x256xbf16, #tpu.memory_space<vmem>>, vector<3x256xbf16>
    %c0_3 = arith.constant 0 : index
    %c0_4 = arith.constant 0 : index
    %2 = vector.load %arg6[%c0_3, %c0_4] : memref<1x256xf32, #tpu.memory_space<vmem>>, vector<1x256xf32>
    %c0_5 = arith.constant 0 : index
    %c0_6 = arith.constant 0 : index
    %3 = vector.load %arg7[%c0_5, %c0_6] : memref<256x512xbf16, #tpu.memory_space<vmem>>, vector<256x512xbf16>
    %c0_7 = arith.constant 0 : index
    %c0_8 = arith.constant 0 : index
    %4 = vector.load %arg8[%c0_7, %c0_8] : memref<1x512xf32, #tpu.memory_space<vmem>>, vector<1x512xf32>
    %c0_9 = arith.constant 0 : index
    %c0_10 = arith.constant 0 : index
    %5 = vector.load %arg9[%c0_9, %c0_10] : memref<512x1024xbf16, #tpu.memory_space<vmem>>, vector<512x1024xbf16>
    %c0_11 = arith.constant 0 : index
    %c0_12 = arith.constant 0 : index
    %6 = vector.load %arg10[%c0_11, %c0_12] : memref<1x1024xf32, #tpu.memory_space<vmem>>, vector<1x1024xf32>
    %c0_13 = arith.constant 0 : index
    %c0_14 = arith.constant 0 : index
    %7 = vector.load %arg3[%c0_13, %c0_14] : memref<8x1xi32, #tpu.memory_space<vmem>>, vector<8x1xi32>
    %cst = arith.constant -1.000000e+30 : f32
    %8 = vector.broadcast %cst : f32 to vector<8x1024xf32>
    %c0_15 = arith.constant 0 : index
    %c0_16 = arith.constant 0 : index
    %c0_17 = arith.constant 0 : index
    %9 = vector.load %arg1[%c0_15, %c0_16, %c0_17] : memref<8x4x256xbf16, #tpu.memory_space<vmem>>, vector<8x4x256xbf16>
    %10 = vector.shape_cast %9 : vector<8x4x256xbf16> to vector<32x256xbf16>
    %c0_18 = arith.constant 0 : index
    %c0_19 = arith.constant 0 : index
    %c0_20 = arith.constant 0 : index
    %11 = vector.load %arg2[%c0_18, %c0_19, %c0_20] : memref<8x4x3xbf16, #tpu.memory_space<vmem>>, vector<8x4x3xbf16>
    %12 = vector.shape_cast %11 : vector<8x4x3xbf16> to vector<32x3xbf16>
    %cst_21 = arith.constant dense<0.000000e+00> : vector<32x256xf32>
    %13 = tpu.matmul %10, %0, %cst_21 {dimension_numbers = #tpu.dot_dimension_numbers<[1], [0], [0], [1], [0, 0, 1, 1], [], []>} : vector<32x256xbf16>, vector<256x256xbf16>, vector<32x256xf32> -> vector<32x256xf32>
    %cst_22 = arith.constant dense<0.000000e+00> : vector<32x256xf32>
    %14 = tpu.matmul %12, %1, %cst_22 {dimension_numbers = #tpu.dot_dimension_numbers<[1], [0], [0], [1], [0, 0, 1, 1], [], []>} : vector<32x3xbf16>, vector<3x256xbf16>, vector<32x256xf32> -> vector<32x256xf32>
    %15 = arith.addf %13, %14 : vector<32x256xf32>
    %16 = vector.broadcast %2 : vector<1x256xf32> to vector<32x256xf32>
    %17 = arith.addf %15, %16 : vector<32x256xf32>
    %cst_23 = arith.constant 0.000000e+00 : f32
    %18 = vector.broadcast %cst_23 : f32 to vector<32x256xf32>
    %19 = arith.maximumf %17, %18 : vector<32x256xf32>
    %20 = arith.truncf %19 : vector<32x256xf32> to vector<32x256xbf16>
    %cst_24 = arith.constant dense<0.000000e+00> : vector<32x512xf32>
    %21 = tpu.matmul %20, %3, %cst_24 {dimension_numbers = #tpu.dot_dimension_numbers<[1], [0], [0], [1], [0, 0, 1, 1], [], []>} : vector<32x256xbf16>, vector<256x512xbf16>, vector<32x512xf32> -> vector<32x512xf32>
    %22 = vector.broadcast %4 : vector<1x512xf32> to vector<32x512xf32>
    %23 = arith.addf %21, %22 : vector<32x512xf32>
    %cst_25 = arith.constant 0.000000e+00 : f32
    %24 = vector.broadcast %cst_25 : f32 to vector<32x512xf32>
    %25 = arith.maximumf %23, %24 : vector<32x512xf32>
    %26 = arith.truncf %25 : vector<32x512xf32> to vector<32x512xbf16>
    %cst_26 = arith.constant dense<0.000000e+00> : vector<32x1024xf32>
    %27 = tpu.matmul %26, %5, %cst_26 {dimension_numbers = #tpu.dot_dimension_numbers<[1], [0], [0], [1], [0, 0, 1, 1], [], []>} : vector<32x512xbf16>, vector<512x1024xbf16>, vector<32x1024xf32> -> vector<32x1024xf32>
    %28 = vector.broadcast %6 : vector<1x1024xf32> to vector<32x1024xf32>
    %29 = arith.addf %27, %28 : vector<32x1024xf32>
    %30 = vector.shape_cast %29 : vector<32x1024xf32> to vector<8x4x1024xf32>
    %31 = tpu.iota {dimensions = array<i32: 1>} : vector<8x4x1xi32>
    %c0_i32 = arith.constant 0 : i32
    %32 = vector.broadcast %c0_i32 : i32 to vector<8x4x1xi32>
    %33 = arith.addi %31, %32 : vector<8x4x1xi32>
    %34 = vector.shape_cast %7 : vector<8x1xi32> to vector<8x1x1xi32>
    %35 = vector.broadcast %34 : vector<8x1x1xi32> to vector<8x4x1xi32>
    %36 = arith.cmpi slt, %33, %35 : vector<8x4x1xi32>
    %cst_27 = arith.constant -1.000000e+30 : f32
    %37 = vector.shape_cast %36 : vector<8x4x1xi1> to vector<8x4x1xi1>
    %38 = vector.broadcast %37 : vector<8x4x1xi1> to vector<8x4x1024xi1>
    %39 = vector.broadcast %cst_27 : f32 to vector<8x4x1024xf32>
    %40 = arith.select %38, %30, %39 : vector<8x4x1024xi1>, vector<8x4x1024xf32>
    %cst_28 = arith.constant dense<0xFF800000> : vector<8x1024xf32>
    %41 = vector.multi_reduction <maximumf>, %40, %cst_28 [1] : vector<8x4x1024xf32> to vector<8x1024xf32>
    %42 = arith.maximumf %8, %41 : vector<8x1024xf32>
    %c0_29 = arith.constant 0 : index
    %c0_30 = arith.constant 0 : index
    %43 = vector.load %arg11[%c0_29, %c0_30] : memref<8x1024xf32, #tpu.memory_space<vmem>>, vector<8x1024xf32>
    tpu.vector_store %arg11[%c0_29, %c0_30], %42 {strides = array<i32>} : memref<8x1024xf32, #tpu.memory_space<vmem>>, vector<8x1024xf32>,
    return
  }
  func.func @transform_0(%arg0: i32) -> (i32, i32, i32) {
    %c0_i32 = arith.constant 0 : i32
    %c0_i32_0 = arith.constant 0 : i32
    %c0_i32_1 = arith.constant 0 : i32
    return %arg0, %c0_i32, %c0_i32_0 : i32, i32, i32
  }
  func.func @transform_1(%arg0: i32) -> (i32, i32, i32) {
    %c0_i32 = arith.constant 0 : i32
    %c0_i32_0 = arith.constant 0 : i32
    %c0_i32_1 = arith.constant 0 : i32
    return %arg0, %c0_i32, %c0_i32_0 : i32, i32, i32
  }
  func.func @transform_2(%arg0: i32) -> (i32, i32) {
    %c0_i32 = arith.constant 0 : i32
    %c0_i32_0 = arith.constant 0 : i32
    return %arg0, %c0_i32 : i32, i32
  }
  func.func @transform_3(%arg0: i32) -> (i32, i32) {
    %c0_i32 = arith.constant 0 : i32
    %c0_i32_0 = arith.constant 0 : i32
    %c0_i32_1 = arith.constant 0 : i32
    return %c0_i32, %c0_i32_0 : i32, i32
  }
  func.func @transform_4(%arg0: i32) -> (i32, i32) {
    %c0_i32 = arith.constant 0 : i32
    %c0_i32_0 = arith.constant 0 : i32
    %c0_i32_1 = arith.constant 0 : i32
    return %c0_i32, %c0_i32_0 : i32, i32
  }
  func.func @transform_5(%arg0: i32) -> (i32, i32) {
    %c0_i32 = arith.constant 0 : i32
    %c0_i32_0 = arith.constant 0 : i32
    %c0_i32_1 = arith.constant 0 : i32
    return %c0_i32, %c0_i32_0 : i32, i32
  }
  func.func @transform_6(%arg0: i32) -> (i32, i32) {
    %c0_i32 = arith.constant 0 : i32
    %c0_i32_0 = arith.constant 0 : i32
    %c0_i32_1 = arith.constant 0 : i32
    return %c0_i32, %c0_i32_0 : i32, i32
  }
  func.func @transform_7(%arg0: i32) -> (i32, i32) {
    %c0_i32 = arith.constant 0 : i32
    %c0_i32_0 = arith.constant 0 : i32
    %c0_i32_1 = arith.constant 0 : i32
    return %c0_i32, %c0_i32_0 : i32, i32
  }
  func.func @transform_8(%arg0: i32) -> (i32, i32) {
    %c0_i32 = arith.constant 0 : i32
    %c0_i32_0 = arith.constant 0 : i32
    %c0_i32_1 = arith.constant 0 : i32
    return %c0_i32, %c0_i32_0 : i32, i32
  }
  func.func @transform_9(%arg0: i32) -> (i32, i32) {
    %c0_i32 = arith.constant 0 : i32
    %c0_i32_0 = arith.constant 0 : i32
    %c0_i32_1 = arith.constant 0 : i32
    return %c0_i32, %c0_i32_0 : i32, i32
  }
  func.func @transform_10(%arg0: i32) -> (i32, i32) {
    %c0_i32 = arith.constant 0 : i32
    %c0_i32_0 = arith.constant 0 : i32
    return %arg0, %c0_i32 : i32, i32
  }
}

module attributes {stable_mosaic.version = 11 : i64} {
  func.func @_classifier_kernel(%arg0: memref<2x1024xbf16, #tpu.memory_space<vmem>>, %arg1: memref<1024x512xbf16, #tpu.memory_space<vmem>>, %arg2: memref<1x512xf32, #tpu.memory_space<vmem>>, %arg3: memref<512x256xbf16, #tpu.memory_space<vmem>>, %arg4: memref<1x256xf32, #tpu.memory_space<vmem>>, %arg5: memref<256x10xbf16, #tpu.memory_space<vmem>>, %arg6: memref<1x10xf32, #tpu.memory_space<vmem>>, %arg7: memref<2x10xf32, #tpu.memory_space<vmem>>) attributes {dimension_semantics = [], scalar_prefetch = 0 : i64, scratch_operands = 0 : i64, tpu.core_type = #tpu.core_type<tc>} {
    %c0 = arith.constant 0 : index
    %c0_0 = arith.constant 0 : index
    %0 = vector.load %arg0[%c0, %c0_0] : memref<2x1024xbf16, #tpu.memory_space<vmem>>, vector<2x1024xbf16>
    %c0_1 = arith.constant 0 : index
    %c0_2 = arith.constant 0 : index
    %1 = vector.load %arg1[%c0_1, %c0_2] : memref<1024x512xbf16, #tpu.memory_space<vmem>>, vector<1024x512xbf16>
    %cst = arith.constant dense<0.000000e+00> : vector<2x512xf32>
    %2 = tpu.matmul %0, %1, %cst {dimension_numbers = #tpu.dot_dimension_numbers<[1], [0], [0], [1], [0, 0, 1, 1], [], []>} : vector<2x1024xbf16>, vector<1024x512xbf16>, vector<2x512xf32> -> vector<2x512xf32>
    %c0_3 = arith.constant 0 : index
    %c0_4 = arith.constant 0 : index
    %3 = vector.load %arg2[%c0_3, %c0_4] : memref<1x512xf32, #tpu.memory_space<vmem>>, vector<1x512xf32>
    %4 = vector.broadcast %3 : vector<1x512xf32> to vector<2x512xf32>
    %5 = arith.addf %2, %4 : vector<2x512xf32>
    %cst_5 = arith.constant 0.000000e+00 : f32
    %6 = vector.broadcast %cst_5 : f32 to vector<2x512xf32>
    %7 = arith.maximumf %5, %6 : vector<2x512xf32>
    %8 = arith.truncf %7 : vector<2x512xf32> to vector<2x512xbf16>
    %c0_6 = arith.constant 0 : index
    %c0_7 = arith.constant 0 : index
    %9 = vector.load %arg3[%c0_6, %c0_7] : memref<512x256xbf16, #tpu.memory_space<vmem>>, vector<512x256xbf16>
    %cst_8 = arith.constant dense<0.000000e+00> : vector<2x256xf32>
    %10 = tpu.matmul %8, %9, %cst_8 {dimension_numbers = #tpu.dot_dimension_numbers<[1], [0], [0], [1], [0, 0, 1, 1], [], []>} : vector<2x512xbf16>, vector<512x256xbf16>, vector<2x256xf32> -> vector<2x256xf32>
    %c0_9 = arith.constant 0 : index
    %c0_10 = arith.constant 0 : index
    %11 = vector.load %arg4[%c0_9, %c0_10] : memref<1x256xf32, #tpu.memory_space<vmem>>, vector<1x256xf32>
    %12 = vector.broadcast %11 : vector<1x256xf32> to vector<2x256xf32>
    %13 = arith.addf %10, %12 : vector<2x256xf32>
    %cst_11 = arith.constant 0.000000e+00 : f32
    %14 = vector.broadcast %cst_11 : f32 to vector<2x256xf32>
    %15 = arith.maximumf %13, %14 : vector<2x256xf32>
    %16 = arith.truncf %15 : vector<2x256xf32> to vector<2x256xbf16>
    %c0_12 = arith.constant 0 : index
    %c0_13 = arith.constant 0 : index
    %17 = vector.load %arg5[%c0_12, %c0_13] : memref<256x10xbf16, #tpu.memory_space<vmem>>, vector<256x10xbf16>
    %cst_14 = arith.constant dense<0.000000e+00> : vector<2x10xf32>
    %18 = tpu.matmul %16, %17, %cst_14 {dimension_numbers = #tpu.dot_dimension_numbers<[1], [0], [0], [1], [0, 0, 1, 1], [], []>} : vector<2x256xbf16>, vector<256x10xbf16>, vector<2x10xf32> -> vector<2x10xf32>
    %c0_15 = arith.constant 0 : index
    %c0_16 = arith.constant 0 : index
    %19 = vector.load %arg6[%c0_15, %c0_16] : memref<1x10xf32, #tpu.memory_space<vmem>>, vector<1x10xf32>
    %20 = vector.broadcast %19 : vector<1x10xf32> to vector<2x10xf32>
    %21 = arith.addf %18, %20 : vector<2x10xf32>
    %cst_17 = arith.constant dense<0xFF800000> : vector<2xf32>
    %22 = vector.multi_reduction <maximumf>, %21, %cst_17 [1] : vector<2x10xf32> to vector<2xf32>
    %23 = vector.shape_cast %22 : vector<2xf32> to vector<2x1xf32>
    %24 = vector.broadcast %23 : vector<2x1xf32> to vector<2x10xf32>
    %25 = arith.subf %21, %24 : vector<2x10xf32>
    %26 = math.exp %25 : vector<2x10xf32>
    %cst_18 = arith.constant dense<0.000000e+00> : vector<2xf32>
    %27 = vector.multi_reduction <add>, %26, %cst_18 [1] : vector<2x10xf32> to vector<2xf32>
    %28 = vector.shape_cast %27 : vector<2xf32> to vector<2x1xf32>
    %29 = math.log %28 : vector<2x1xf32>
    %30 = vector.broadcast %29 : vector<2x1xf32> to vector<2x10xf32>
    %31 = arith.subf %25, %30 : vector<2x10xf32>
    %c0_19 = arith.constant 0 : index
    %c0_20 = arith.constant 0 : index
    %32 = vector.load %arg7[%c0_19, %c0_20] : memref<2x10xf32, #tpu.memory_space<vmem>>, vector<2x10xf32>
    tpu.vector_store %arg7[%c0_19, %c0_20], %31 {strides = array<i32>} : memref<2x10xf32, #tpu.memory_space<vmem>>, vector<2x10xf32>,
    return
  }
}

</mosaic_0001>

<llo_original>
// kernel: custom-call.16
$region0: #{custom-call.16}
  %s0 = inlined_call_operand.vmem [shape: f32[2,32], index: 0, kind: output, shape index: {}]

// kernel: custom-call.17
$region0: #{custom-call.17}
  %s0 = inlined_call_operand.vmem [shape: f32[2,16], index: 0, kind: output, shape index: {}]

// kernel: pointnet2_forward.5
$region0: #{pointnet2_forward.5}
  #allocation0 [shape = 'u32[]', space=smem, size = 0x4, offset = 0x4, fixed_abs, tag = 'smem constant byte address 0x4 - core index']
  #allocation1 [shape = 'u32[144,128]{1,0:T(1,128)}', space=vmem, size = 0x12000, scoped, tag = 'internal scratch']
  %s0 = inlined_call_operand.vmem [shape: bf16[8,16,128], index: 0, kind: input, shape index: {}]
  %s1 = inlined_call_operand.vmem [shape: bf16[8,16,3], index: 1, kind: input, shape index: {}]
  %s2 = inlined_call_operand.vmem [shape: s32[8,1], index: 2, kind: input, shape index: {}]
  %s3 = inlined_call_operand.vmem [shape: bf16[128,128], index: 3, kind: input, shape index: {}]
  %s4 = inlined_call_operand.vmem [shape: bf16[3,128], index: 4, kind: input, shape index: {}]
  %s5 = inlined_call_operand.vmem [shape: f32[1,128], index: 5, kind: input, shape index: {}]
  %s6 = inlined_call_operand.vmem [shape: bf16[128,128], index: 6, kind: input, shape index: {}]
  %s7 = inlined_call_operand.vmem [shape: f32[1,128], index: 7, kind: input, shape index: {}]
  %s8 = inlined_call_operand.vmem [shape: bf16[128,256], index: 8, kind: input, shape index: {}]
  %s9 = inlined_call_operand.vmem [shape: f32[1,256], index: 9, kind: input, shape index: {}]
  %s10 = inlined_call_operand.vmem [shape: f32[8,256], index: 10, kind: output, shape index: {}]
  %s11 = sld [smem:[#allocation0]]
  $region50: #{pointnet2_forward.5} parent=0
    _
  %s13 = ssub.s32 1, %s11
  %s14 = scalar_select 0, %s13, %s11
  // Predicated region
  $region2: #{pointnet2_forward.5} parent=0 // pred_check
    _
  $region3: #{pointnet2_forward.5} parent=0 // pred_check_branch
    %16 = sbr.rel (0) target = $region5
  $region4: #{pointnet2_forward.5} parent=0 // pred_region
    _
  $region5: #{pointnet2_forward.5} parent=0 // pred_fallthru
    _
  // Predicated region
  $region6: #{pointnet2_forward.5} parent=0 // pred_check
    _
  $region7: #{pointnet2_forward.5} parent=0 // pred_check_branch
    %18 = sbr.rel (0) target = $region9
  $region8: #{pointnet2_forward.5} parent=0 // pred_region
    _
  $region9: #{pointnet2_forward.5} parent=0 // pred_fallthru
    _
  // Predicated region
  $region10: #{pointnet2_forward.5} parent=0 // pred_check
    _
  $region11: #{pointnet2_forward.5} parent=0 // pred_check_branch
    %20 = sbr.rel (0) target = $region13
  $region12: #{pointnet2_forward.5} parent=0 // pred_region
    _
  $region13: #{pointnet2_forward.5} parent=0 // pred_fallthru
    _
  // Predicated region
  $region14: #{pointnet2_forward.5} parent=0 // pred_check
    _
  $region15: #{pointnet2_forward.5} parent=0 // pred_check_branch
    %22 = sbr.rel (0) target = $region17
  $region16: #{pointnet2_forward.5} parent=0 // pred_region
    _
  $region17: #{pointnet2_forward.5} parent=0 // pred_fallthru
    _
  // Predicated region
  $region18: #{pointnet2_forward.5} parent=0 // pred_check
    _
  $region19: #{pointnet2_forward.5} parent=0 // pred_check_branch
    %24 = sbr.rel (0) target = $region21
  $region20: #{pointnet2_forward.5} parent=0 // pred_region
    _
  $region21: #{pointnet2_forward.5} parent=0 // pred_fallthru
    _
  // Predicated region
  $region22: #{pointnet2_forward.5} parent=0 // pred_check
    _
  $region23: #{pointnet2_forward.5} parent=0 // pred_check_branch
    %26 = sbr.rel (0) target = $region25
  $region24: #{pointnet2_forward.5} parent=0 // pred_region
    _
  $region25: #{pointnet2_forward.5} parent=0 // pred_fallthru
    _
  // Predicated region
  $region26: #{pointnet2_forward.5} parent=0 // pred_check
    _
  $region27: #{pointnet2_forward.5} parent=0 // pred_check_branch
    %28 = sbr.rel (0) target = $region29
  $region28: #{pointnet2_forward.5} parent=0 // pred_region
    _
  $region29: #{pointnet2_forward.5} parent=0 // pred_fallthru
    _
  // Predicated region
  $region30: #{pointnet2_forward.5} parent=0 // pred_check
    _
  $region31: #{pointnet2_forward.5} parent=0 // pred_check_branch
    %30 = sbr.rel (0) target = $region33
  $region32: #{pointnet2_forward.5} parent=0 // pred_region
    _
  $region33: #{pointnet2_forward.5} parent=0 // pred_fallthru
    _
  // Predicated region
  $region34: #{pointnet2_forward.5} parent=0 // pred_check
    _
  $region35: #{pointnet2_forward.5} parent=0 // pred_check_branch
    %32 = sbr.rel (0) target = $region37
  $region36: #{pointnet2_forward.5} parent=0 // pred_region
    _
  $region37: #{pointnet2_forward.5} parent=0 // pred_fallthru
    _
  // Predicated region
  $region38: #{pointnet2_forward.5} parent=0 // pred_check
    _
  $region39: #{pointnet2_forward.5} parent=0 // pred_check_branch
    %34 = sbr.rel (0) target = $region41
  $region40: #{pointnet2_forward.5} parent=0 // pred_region
    _
  $region41: #{pointnet2_forward.5} parent=0 // pred_fallthru
    _
  %v36 = vld [vmem:[%s3] sm:$0xf]
  %v37 = vld [vmem:[%s3 + $0x4] sm:$0xf]
  %v38 = vld [vmem:[%s3 + $0x8] sm:$0xf]
  %v39 = vld [vmem:[%s3 + $0xc] sm:$0xf]
  %v40 = vld [vmem:[%s3 + $0x10] sm:$0xf]
  %v41 = vld [vmem:[%s3 + $0x14] sm:$0xf]
  %v42 = vld [vmem:[%s3 + $0x18] sm:$0xf]
  %v43 = vld [vmem:[%s3 + $0x1c] sm:$0xf]
  %v44 = vld [vmem:[%s3 + $0x20] sm:$0xf]
  %v45 = vld [vmem:[%s3 + $0x24] sm:$0xf]
  %v46 = vld [vmem:[%s3 + $0x28] sm:$0xf]
  %v47 = vld [vmem:[%s3 + $0x2c] sm:$0xf]
  %v48 = vld [vmem:[%s3 + $0x30] sm:$0xf]
  %v49 = vld [vmem:[%s3 + $0x34] sm:$0xf]
  %v50 = vld [vmem:[%s3 + $0x38] sm:$0xf]
  %v51 = vld [vmem:[%s3 + $0x3c] sm:$0xf]
  %v52 = vld [vmem:[%s4] sm:$0x3]
  %v53 = vld [vmem:[%s5] sm:$0x1]
  %v54 = vld [vmem:[%s6] sm:$0xf]
  %v55 = vld [vmem:[%s6 + $0x4] sm:$0xf]
  %v56 = vld [vmem:[%s6 + $0x8] sm:$0xf]
  %v57 = vld [vmem:[%s6 + $0xc] sm:$0xf]
  %v58 = vld [vmem:[%s6 + $0x10] sm:$0xf]
  %v59 = vld [vmem:[%s6 + $0x14] sm:$0xf]
  %v60 = vld [vmem:[%s6 + $0x18] sm:$0xf]
  %v61 = vld [vmem:[%s6 + $0x1c] sm:$0xf]
  %v62 = vld [vmem:[%s6 + $0x20] sm:$0xf]
  %v63 = vld [vmem:[%s6 + $0x24] sm:$0xf]
  %v64 = vld [vmem:[%s6 + $0x28] sm:$0xf]
  %v65 = vld [vmem:[%s6 + $0x2c] sm:$0xf]
  %v66 = vld [vmem:[%s6 + $0x30] sm:$0xf]
  %v67 = vld [vmem:[%s6 + $0x34] sm:$0xf]
  %v68 = vld [vmem:[%s6 + $0x38] sm:$0xf]
  %v69 = vld [vmem:[%s6 + $0x3c] sm:$0xf]
  %v70 = vld [vmem:[%s7] sm:$0x1]
  %v71 = vld [vmem:[%s8] sm:$0xff]
  %v72 = vld [vmem:[%s8 + $0x8] sm:$0xff]
  %v73 = vld [vmem:[%s8 + $0x10] sm:$0xff]
  %v74 = vld [vmem:[%s8 + $0x18] sm:$0xff]
  %v75 = vld [vmem:[%s8 + $0x20] sm:$0xff]
  %v76 = vld [vmem:[%s8 + $0x28] sm:$0xff]
  %v77 = vld [vmem:[%s8 + $0x30] sm:$0xff]
  %v78 = vld [vmem:[%s8 + $0x38] sm:$0xff]
  %v79 = vld [vmem:[%s8 + $0x40] sm:$0xff]
  %v80 = vld [vmem:[%s8 + $0x48] sm:$0xff]
  %v81 = vld [vmem:[%s8 + $0x50] sm:$0xff]
  %v82 = vld [vmem:[%s8 + $0x58] sm:$0xff]
  %v83 = vld [vmem:[%s8 + $0x60] sm:$0xff]
  %v84 = vld [vmem:[%s8 + $0x68] sm:$0xff]
  %v85 = vld [vmem:[%s8 + $0x70] sm:$0xff]
  %v86 = vld [vmem:[%s8 + $0x78] sm:$0xff]
  %v87 = vld [vmem:[%s9] sm:$0x3]
  %v88 = vld [vmem:[%s2] sm:$0xff]
  %v89 = vld [vmem:[%s0] sm:$0xf]
  %v90 = vld [vmem:[%s0 + $0x4] sm:$0xf]
  %v91 = vld [vmem:[%s0 + $0x8] sm:$0xf]
  %v92 = vld [vmem:[%s0 + $0xc] sm:$0xf]
  %v93 = vld [vmem:[%s0 + $0x10] sm:$0xf]
  %v94 = vld [vmem:[%s0 + $0x14] sm:$0xf]
  %v95 = vld [vmem:[%s0 + $0x18] sm:$0xf]
  %v96 = vld [vmem:[%s0 + $0x1c] sm:$0xf]
  %v97 = vld [vmem:[%s0 + $0x20] sm:$0xf]
  %v98 = vld [vmem:[%s0 + $0x24] sm:$0xf]
  %v99 = vld [vmem:[%s0 + $0x28] sm:$0xf]
  %v100 = vld [vmem:[%s0 + $0x2c] sm:$0xf]
  %v101 = vld [vmem:[%s0 + $0x30] sm:$0xf]
  %v102 = vld [vmem:[%s0 + $0x34] sm:$0xf]
  %v103 = vld [vmem:[%s0 + $0x38] sm:$0xf]
  %v104 = vld [vmem:[%s0 + $0x3c] sm:$0xf]
  %v105 = vld [vmem:[%s1] sm:$0xf]
  %v106 = vld [vmem:[%s1 + $0x4] sm:$0xf]
  %v107 = vld [vmem:[%s1 + $0x8] sm:$0xf]
  %v108 = vld [vmem:[%s1 + $0xc] sm:$0xf]
  %v109 = vld [vmem:[%s1 + $0x10] sm:$0xf]
  %v110 = vld [vmem:[%s1 + $0x14] sm:$0xf]
  %v111 = vld [vmem:[%s1 + $0x18] sm:$0xf]
  %v112 = vld [vmem:[%s1 + $0x1c] sm:$0xf]
  %v113 = vld [vmem:[%s1 + $0x20] sm:$0xf]
  %v114 = vld [vmem:[%s1 + $0x24] sm:$0xf]
  %v115 = vld [vmem:[%s1 + $0x28] sm:$0xf]
  %v116 = vld [vmem:[%s1 + $0x2c] sm:$0xf]
  %v117 = vld [vmem:[%s1 + $0x30] sm:$0xf]
  %v118 = vld [vmem:[%s1 + $0x34] sm:$0xf]
  %v119 = vld [vmem:[%s1 + $0x38] sm:$0xf]
  %v120 = vld [vmem:[%s1 + $0x3c] sm:$0xf]
  %v137 = vunpack.c.l.b16 %v105
  %v138 = vunpack.c.l.b16 %v106
  %v139 = vunpack.c.l.b16 %v107
  %v140 = vunpack.c.l.b16 %v108
  %v141 = vunpack.c.l.b16 %v109
  %v142 = vunpack.c.l.b16 %v110
  %v143 = vunpack.c.l.b16 %v111
  %v144 = vunpack.c.l.b16 %v112
  %v145 = vunpack.c.l.b16 %v113
  %v146 = vunpack.c.l.b16 %v114
  %v147 = vunpack.c.l.b16 %v115
  %v148 = vunpack.c.l.b16 %v116
  %v149 = vunpack.c.l.b16 %v117
  %v150 = vunpack.c.l.b16 %v118
  %v151 = vunpack.c.l.b16 %v119
  %v152 = vunpack.c.l.b16 %v120
  %v153 = vpack.c.b16 %v138, %v137
  %v154 = vpack.c.b16 %v140, %v139
  %v155 = vpack.c.b16 %v142, %v141
  %v156 = vpack.c.b16 %v144, %v143
  %v157 = vpack.c.b16 %v146, %v145
  %v158 = vpack.c.b16 %v148, %v147
  %v159 = vpack.c.b16 %v150, %v149
  %v160 = vpack.c.b16 %v152, %v151
  %vm161 = vcmask 23552
  %v163 = vsel %vm161, %v153, 0
  %v166 = vsel %vm161, %v154, 0
  %v169 = vsel %vm161, %v155, 0
  %v172 = vsel %vm161, %v156, 0
  %v175 = vsel %vm161, %v157, 0
  %v178 = vsel %vm161, %v158, 0
  %v181 = vsel %vm161, %v159, 0
  %v184 = vsel %vm161, %v160, 0
  %vm186 = vcmask 1040384
  %vm187 = vcmask 1041408
  %v188 = vsel %vm186, 4294967295, 65535
  %v189 = vsel %vm187, %v188, 0
  %v191 = vand.u32 %v52, %v189
  %193 = vmatprep.subr.bf16.mxu0 0
  %194 = vmatpush1.bf16.msra.mxu0 %v191
  %195 = vmatprep.subr.bf16.mxu0 0
  %196 = vmatpush1.bf16.msra.mxu0 0
  %197 = vmatprep.subr.bf16.mxu0 0
  %198 = vmatpush1.bf16.msra.mxu0 0
  %199 = vmatprep.subr.bf16.mxu0 0
  %200 = vmatpush1.bf16.msra.mxu0 0
  %201 = vmatprep.subr.bf16.mxu0 0
  %202 = vmatpush1.bf16.msra.mxu0 0
  %203 = vmatprep.subr.bf16.mxu0 0
  %204 = vmatpush1.bf16.msra.mxu0 0
  %205 = vmatprep.subr.bf16.mxu0 0
  %206 = vmatpush1.bf16.msra.mxu0 0
  %207 = vmatprep.subr.bf16.mxu0 0
  %208 = vmatpush1.bf16.msra.mxu0 0
  %209 = vmatprep.subr.bf16.mxu0 0
  %210 = vmatpush1.bf16.msra.mxu0 0
  %211 = vmatprep.subr.bf16.mxu0 0
  %212 = vmatpush1.bf16.msra.mxu0 0
  %213 = vmatprep.subr.bf16.mxu0 0
  %214 = vmatpush1.bf16.msra.mxu0 0
  %215 = vmatprep.subr.bf16.mxu0 0
  %216 = vmatpush1.bf16.msra.mxu0 0
  %217 = vmatprep.subr.bf16.mxu0 0
  %218 = vmatpush1.bf16.msra.mxu0 0
  %219 = vmatprep.subr.bf16.mxu0 0
  %220 = vmatpush1.bf16.msra.mxu0 0
  %221 = vmatprep.subr.bf16.mxu0 0
  %222 = vmatpush1.bf16.msra.mxu0 0
  %223 = vmatprep.subr.bf16.mxu0 0
  %224 = vmatpush1.bf16.msra.mxu0 0
  %225 = vmatprep.mubr.bf16.mxu0 0
  %226 = vmatmul.mubr.bf16.gmra.mrb[0].mxu0 %v163
  %v227 = vpop.f32.mrb[0].mxu0
  %v228 = vadd.f32 0.0, %v227
  %v229 = vpop.f32.mrb[0].mxu0
  %v230 = vpop.f32.mrb[0].mxu0
  %v231 = vadd.f32 0.0, %v230
  %v232 = vpop.f32.mrb[0].mxu0
  %233 = vmatprep.mubr.bf16.mxu0 0
  %234 = vmatmul.mubr.bf16.gmra.mrb[0].mxu0 %v166
  %v235 = vpop.f32.mrb[0].mxu0
  %v236 = vadd.f32 0.0, %v235
  %v237 = vpop.f32.mrb[0].mxu0
  %v238 = vpop.f32.mrb[0].mxu0
  %v239 = vadd.f32 0.0, %v238
  %v240 = vpop.f32.mrb[0].mxu0
  %241 = vmatprep.mubr.bf16.mxu0 0
  %242 = vmatmul.mubr.bf16.gmra.mrb[0].mxu0 %v169
  %v243 = vpop.f32.mrb[0].mxu0
  %v244 = vadd.f32 0.0, %v243
  %v245 = vpop.f32.mrb[0].mxu0
  %v246 = vpop.f32.mrb[0].mxu0
  %v247 = vadd.f32 0.0, %v246
  %v248 = vpop.f32.mrb[0].mxu0
  %249 = vmatprep.mubr.bf16.mxu0 0
  %250 = vmatmul.mubr.bf16.gmra.mrb[0].mxu0 %v172
  %v251 = vpop.f32.mrb[0].mxu0
  %v252 = vadd.f32 0.0, %v251
  %v253 = vpop.f32.mrb[0].mxu0
  %v254 = vpop.f32.mrb[0].mxu0
  %v255 = vadd.f32 0.0, %v254
  %v256 = vpop.f32.mrb[0].mxu0
  %257 = vmatprep.mubr.bf16.mxu0 0
  %258 = vmatmul.mubr.bf16.gmra.mrb[0].mxu0 %v175
  %v259 = vpop.f32.mrb[0].mxu0
  %v260 = vadd.f32 0.0, %v259
  %v261 = vpop.f32.mrb[0].mxu0
  %v262 = vpop.f32.mrb[0].mxu0
  %v263 = vadd.f32 0.0, %v262
  %v264 = vpop.f32.mrb[0].mxu0
  %265 = vmatprep.mubr.bf16.mxu0 0
  %266 = vmatmul.mubr.bf16.gmra.mrb[0].mxu0 %v178
  %v267 = vpop.f32.mrb[0].mxu0
  %v268 = vadd.f32 0.0, %v267
  %v269 = vpop.f32.mrb[0].mxu0
  %v270 = vpop.f32.mrb[0].mxu0
  %v271 = vadd.f32 0.0, %v270
  %v272 = vpop.f32.mrb[0].mxu0
  %273 = vmatprep.mubr.bf16.mxu0 0
  %274 = vmatmul.mubr.bf16.gmra.mrb[0].mxu0 %v181
  %v275 = vpop.f32.mrb[0].mxu0
  %v276 = vadd.f32 0.0, %v275
  %v277 = vpop.f32.mrb[0].mxu0
  %v278 = vpop.f32.mrb[0].mxu0
  %v279 = vadd.f32 0.0, %v278
  %v280 = vpop.f32.mrb[0].mxu0
  %281 = vmatprep.mubr.bf16.mxu0 0
  %282 = vmatmul.mubr.bf16.gmra.mrb[0].mxu0 %v184
  %v283 = vpop.f32.mrb[0].mxu0
  %v284 = vadd.f32 0.0, %v283
  %v285 = vpop.f32.mrb[0].mxu0
  %v286 = vpop.f32.mrb[0].mxu0
  %v287 = vadd.f32 0.0, %v286
  %v288 = vpop.f32.mrb[0].mxu0
  %289 = vdwg.mxu0
  %v306 = vunpack.c.l.b16 %v89
  %v307 = vunpack.c.l.b16 %v90
  %v308 = vunpack.c.l.b16 %v91
  %v309 = vunpack.c.l.b16 %v92
  %v310 = vunpack.c.l.b16 %v93
  %v311 = vunpack.c.l.b16 %v94
  %v312 = vunpack.c.l.b16 %v95
  %v313 = vunpack.c.l.b16 %v96
  %v314 = vunpack.c.l.b16 %v97
  %v315 = vunpack.c.l.b16 %v98
  %v316 = vunpack.c.l.b16 %v99
  %v317 = vunpack.c.l.b16 %v100
  %v318 = vunpack.c.l.b16 %v101
  %v319 = vunpack.c.l.b16 %v102
  %v320 = vunpack.c.l.b16 %v103
  %v321 = vunpack.c.l.b16 %v104
  %v322 = vpack.c.b16 %v307, %v306
  %v323 = vpack.c.b16 %v309, %v308
  %v324 = vpack.c.b16 %v311, %v310
  %v325 = vpack.c.b16 %v313, %v312
  %v326 = vpack.c.b16 %v315, %v314
  %v327 = vpack.c.b16 %v317, %v316
  %v328 = vpack.c.b16 %v319, %v318
  %v329 = vpack.c.b16 %v321, %v320
  %v354 = vunpack.c.l.b16 %v36
  %v355 = vunpack.c.l.b16 %v37
  %v356 = vunpack.c.l.b16 %v38
  %v357 = vunpack.c.l.b16 %v39
  %v358 = vunpack.c.l.b16 %v40
  %v359 = vunpack.c.l.b16 %v41
  %v360 = vunpack.c.l.b16 %v42
  %v361 = vunpack.c.l.b16 %v43
  %v362 = vunpack.c.l.b16 %v44
  %v363 = vunpack.c.l.b16 %v45
  %v364 = vunpack.c.l.b16 %v46
  %v365 = vunpack.c.l.b16 %v47
  %v366 = vunpack.c.l.b16 %v48
  %v367 = vunpack.c.l.b16 %v49
  %v368 = vunpack.c.l.b16 %v50
  %v369 = vunpack.c.l.b16 %v51
  %v370 = vpack.c.b16 %v355, %v354
  %v371 = vpack.c.b16 %v357, %v356
  %v372 = vpack.c.b16 %v359, %v358
  %v373 = vpack.c.b16 %v361, %v360
  %v374 = vpack.c.b16 %v363, %v362
  %v375 = vpack.c.b16 %v365, %v364
  %v376 = vpack.c.b16 %v367, %v366
  %v377 = vpack.c.b16 %v369, %v368
  %386 = vmatprep.subr.bf16.mxu0 0
  %387 = vmatpush1.bf16.msra.mxu0 %v370
  %388 = vmatprep.subr.bf16.mxu0 0
  %389 = vmatpush1.bf16.msra.mxu0 %v371
  %390 = vmatprep.subr.bf16.mxu0 0
  %391 = vmatpush1.bf16.msra.mxu0 %v372
  %392 = vmatprep.subr.bf16.mxu0 0
  %393 = vmatpush1.bf16.msra.mxu0 %v373
  %394 = vmatprep.subr.bf16.mxu0 0
  %395 = vmatpush1.bf16.msra.mxu0 %v374
  %396 = vmatprep.subr.bf16.mxu0 0
  %397 = vmatpush1.bf16.msra.mxu0 %v375
  %398 = vmatprep.subr.bf16.mxu0 0
  %399 = vmatpush1.bf16.msra.mxu0 %v376
  %400 = vmatprep.subr.bf16.mxu0 0
  %401 = vmatpush1.bf16.msra.mxu0 %v377
  %402 = vmatprep.subr.bf16.mxu0 0
  %403 = vmatpush1.bf16.msra.mxu0 0
  %404 = vmatprep.subr.bf16.mxu0 0
  %405 = vmatpush1.bf16.msra.mxu0 0
  %406 = vmatprep.subr.bf16.mxu0 0
  %407 = vmatpush1.bf16.msra.mxu0 0
  %408 = vmatprep.subr.bf16.mxu0 0
  %409 = vmatpush1.bf16.msra.mxu0 0
  %410 = vmatprep.subr.bf16.mxu0 0
  %411 = vmatpush1.bf16.msra.mxu0 0
  %412 = vmatprep.subr.bf16.mxu0 0
  %413 = vmatpush1.bf16.msra.mxu0 0
  %414 = vmatprep.subr.bf16.mxu0 0
  %415 = vmatpush1.bf16.msra.mxu0 0
  %416 = vmatprep.subr.bf16.mxu0 0
  %417 = vmatpush1.bf16.msra.mxu0 0
  %418 = vmatprep.mubr.bf16.mxu0 0
  %419 = vmatmul.mubr.bf16.gmra.mrb[0].mxu0 %v322
  %v420 = vpop.f32.mrb[0].mxu0
  %v421 = vadd.f32 %v228, %v420
  %v422 = vpop.f32.mrb[0].mxu0
  %v423 = vpop.f32.mrb[0].mxu0
  %v424 = vadd.f32 %v231, %v423
  %v425 = vpop.f32.mrb[0].mxu0
  %426 = vmatprep.mubr.bf16.mxu0 0
  %427 = vmatmul.mubr.bf16.gmra.mrb[0].mxu0 %v323
  %v428 = vpop.f32.mrb[0].mxu0
  %v429 = vadd.f32 %v236, %v428
  %v430 = vpop.f32.mrb[0].mxu0
  %v431 = vpop.f32.mrb[0].mxu0
  %v432 = vadd.f32 %v239, %v431
  %v433 = vpop.f32.mrb[0].mxu0
  %434 = vmatprep.mubr.bf16.mxu0 0
  %435 = vmatmul.mubr.bf16.gmra.mrb[0].mxu0 %v324
  %v436 = vpop.f32.mrb[0].mxu0
  %v437 = vadd.f32 %v244, %v436
  %v438 = vpop.f32.mrb[0].mxu0
  %v439 = vpop.f32.mrb[0].mxu0
  %v440 = vadd.f32 %v247, %v439
  %v441 = vpop.f32.mrb[0].mxu0
  %442 = vmatprep.mubr.bf16.mxu0 0
  %443 = vmatmul.mubr.bf16.gmra.mrb[0].mxu0 %v325
  %v444 = vpop.f32.mrb[0].mxu0
  %v445 = vadd.f32 %v252, %v444
  %v446 = vpop.f32.mrb[0].mxu0
  %v447 = vpop.f32.mrb[0].mxu0
  %v448 = vadd.f32 %v255, %v447
  %v449 = vpop.f32.mrb[0].mxu0
  %450 = vmatprep.mubr.bf16.mxu0 0
  %451 = vmatmul.mubr.bf16.gmra.mrb[0].mxu0 %v326
  %v452 = vpop.f32.mrb[0].mxu0
  %v453 = vadd.f32 %v260, %v452
  %v454 = vpop.f32.mrb[0].mxu0
  %v455 = vpop.f32.mrb[0].mxu0
  %v456 = vadd.f32 %v263, %v455
  %v457 = vpop.f32.mrb[0].mxu0
  %458 = vmatprep.mubr.bf16.mxu0 0
  %459 = vmatmul.mubr.bf16.gmra.mrb[0].mxu0 %v327
  %v460 = vpop.f32.mrb[0].mxu0
  %v461 = vadd.f32 %v268, %v460
  %v462 = vpop.f32.mrb[0].mxu0
  %v463 = vpop.f32.mrb[0].mxu0
  %v464 = vadd.f32 %v271, %v463
  %v465 = vpop.f32.mrb[0].mxu0
  %466 = vmatprep.mubr.bf16.mxu0 0
  %467 = vmatmul.mubr.bf16.gmra.mrb[0].mxu0 %v328
  %v468 = vpop.f32.mrb[0].mxu0
  %v469 = vadd.f32 %v276, %v468
  %v470 = vpop.f32.mrb[0].mxu0
  %v471 = vpop.f32.mrb[0].mxu0
  %v472 = vadd.f32 %v279, %v471
  %v473 = vpop.f32.mrb[0].mxu0
  %474 = vmatprep.mubr.bf16.mxu0 0
  %475 = vmatmul.mubr.bf16.gmra.mrb[0].mxu0 %v329
  %v476 = vpop.f32.mrb[0].mxu0
  %v477 = vadd.f32 %v284, %v476
  %v478 = vpop.f32.mrb[0].mxu0
  %v479 = vpop.f32.mrb[0].mxu0
  %v480 = vadd.f32 %v287, %v479
  %v481 = vpop.f32.mrb[0].mxu0
  %482 = vdwg.mxu0
  %v484 = vlaneseq
  %v485 = vshrl.u32 %v484, 7
  %v486 = vsub.s32 0, %v485
  %v487 = vrot.slane %v53, %v486
  %v489 = vadd.f32 %v421, %v487
  %v490 = vadd.f32 %v424, %v487
  %v491 = vadd.f32 %v429, %v487
  %v492 = vadd.f32 %v432, %v487
  %v493 = vadd.f32 %v437, %v487
  %v494 = vadd.f32 %v440, %v487
  %v495 = vadd.f32 %v445, %v487
  %v496 = vadd.f32 %v448, %v487
  %v497 = vadd.f32 %v453, %v487
  %v498 = vadd.f32 %v456, %v487
  %v499 = vadd.f32 %v461, %v487
  %v500 = vadd.f32 %v464, %v487
  %v501 = vadd.f32 %v469, %v487
  %v502 = vadd.f32 %v472, %v487
  %v503 = vadd.f32 %v477, %v487
  %v504 = vadd.f32 %v480, %v487
  %v505 = vmax.f32 %v489, 0.0
  %v506 = vmax.f32 %v490, 0.0
  %v507 = vmax.f32 %v491, 0.0
  %v508 = vmax.f32 %v492, 0.0
  %v509 = vmax.f32 %v493, 0.0
  %v510 = vmax.f32 %v494, 0.0
  %v511 = vmax.f32 %v495, 0.0
  %v512 = vmax.f32 %v496, 0.0
  %v513 = vmax.f32 %v497, 0.0
  %v514 = vmax.f32 %v498, 0.0
  %v515 = vmax.f32 %v499, 0.0
  %v516 = vmax.f32 %v500, 0.0
  %v517 = vmax.f32 %v501, 0.0
  %v518 = vmax.f32 %v502, 0.0
  %v519 = vmax.f32 %v503, 0.0
  %v520 = vmax.f32 %v504, 0.0
  %v521 = vpack.c.bf16 %v506, %v505
  %v522 = vpack.c.bf16 %v508, %v507
  %v523 = vpack.c.bf16 %v510, %v509
  %v524 = vpack.c.bf16 %v512, %v511
  %v525 = vpack.c.bf16 %v514, %v513
  %v526 = vpack.c.bf16 %v516, %v515
  %v527 = vpack.c.bf16 %v518, %v517
  %v528 = vpack.c.bf16 %v520, %v519
  %v530 = vlaneseq
  %v531 = vshrl.u32 %v530, 7
  %v532 = vsub.s32 0, %v531
  %v533 = vrot.slane %v70, %v532
  %v551 = vunpack.c.l.b16 %v54
  %v552 = vunpack.c.l.b16 %v55
  %v553 = vunpack.c.l.b16 %v56
  %v554 = vunpack.c.l.b16 %v57
  %v555 = vunpack.c.l.b16 %v58
  %v556 = vunpack.c.l.b16 %v59
  %v557 = vunpack.c.l.b16 %v60
  %v558 = vunpack.c.l.b16 %v61
  %v559 = vunpack.c.l.b16 %v62
  %v560 = vunpack.c.l.b16 %v63
  %v561 = vunpack.c.l.b16 %v64
  %v562 = vunpack.c.l.b16 %v65
  %v563 = vunpack.c.l.b16 %v66
  %v564 = vunpack.c.l.b16 %v67
  %v565 = vunpack.c.l.b16 %v68
  %v566 = vunpack.c.l.b16 %v69
  %v567 = vpack.c.b16 %v552, %v551
  %v568 = vpack.c.b16 %v554, %v553
  %v569 = vpack.c.b16 %v556, %v555
  %v570 = vpack.c.b16 %v558, %v557
  %v571 = vpack.c.b16 %v560, %v559
  %v572 = vpack.c.b16 %v562, %v561
  %v573 = vpack.c.b16 %v564, %v563
  %v574 = vpack.c.b16 %v566, %v565
  %583 = vmatprep.subr.bf16.mxu0 0
  %584 = vmatpush1.bf16.msra.mxu0 %v567
  %585 = vmatprep.subr.bf16.mxu0 0
  %586 = vmatpush1.bf16.msra.mxu0 %v568
  %587 = vmatprep.subr.bf16.mxu0 0
  %588 = vmatpush1.bf16.msra.mxu0 %v569
  %589 = vmatprep.subr.bf16.mxu0 0
  %590 = vmatpush1.bf16.msra.mxu0 %v570
  %591 = vmatprep.subr.bf16.mxu0 0
  %592 = vmatpush1.bf16.msra.mxu0 %v571
  %593 = vmatprep.subr.bf16.mxu0 0
  %594 = vmatpush1.bf16.msra.mxu0 %v572
  %595 = vmatprep.subr.bf16.mxu0 0
  %596 = vmatpush1.bf16.msra.mxu0 %v573
  %597 = vmatprep.subr.bf16.mxu0 0
  %598 = vmatpush1.bf16.msra.mxu0 %v574
  %599 = vmatprep.subr.bf16.mxu0 0
  %600 = vmatpush1.bf16.msra.mxu0 0
  %601 = vmatprep.subr.bf16.mxu0 0
  %602 = vmatpush1.bf16.msra.mxu0 0
  %603 = vmatprep.subr.bf16.mxu0 0
  %604 = vmatpush1.bf16.msra.mxu0 0
  %605 = vmatprep.subr.bf16.mxu0 0
  %606 = vmatpush1.bf16.msra.mxu0 0
  %607 = vmatprep.subr.bf16.mxu0 0
  %608 = vmatpush1.bf16.msra.mxu0 0
  %609 = vmatprep.subr.bf16.mxu0 0
  %610 = vmatpush1.bf16.msra.mxu0 0
  %611 = vmatprep.subr.bf16.mxu0 0
  %612 = vmatpush1.bf16.msra.mxu0 0
  %613 = vmatprep.subr.bf16.mxu0 0
  %614 = vmatpush1.bf16.msra.mxu0 0
  %615 = vmatprep.mubr.bf16.mxu0 0
  %616 = vmatmul.mubr.bf16.gmra.mrb[0].mxu0 %v521
  %v617 = vpop.f32.mrb[0].mxu0
  %v618 = vadd.f32 %v533, %v617
  %v619 = vpop.f32.mrb[0].mxu0
  %v620 = vpop.f32.mrb[0].mxu0
  %v621 = vadd.f32 %v533, %v620
  %v622 = vpop.f32.mrb[0].mxu0
  %623 = vmatprep.mubr.bf16.mxu0 0
  %624 = vmatmul.mubr.bf16.gmra.mrb[0].mxu0 %v522
  %v625 = vpop.f32.mrb[0].mxu0
  %v626 = vadd.f32 %v533, %v625
  %v627 = vpop.f32.mrb[0].mxu0
  %v628 = vpop.f32.mrb[0].mxu0
  %v629 = vadd.f32 %v533, %v628
  %v630 = vpop.f32.mrb[0].mxu0
  %631 = vmatprep.mubr.bf16.mxu0 0
  %632 = vmatmul.mubr.bf16.gmra.mrb[0].mxu0 %v523
  %v633 = vpop.f32.mrb[0].mxu0
  %v634 = vadd.f32 %v533, %v633
  %v635 = vpop.f32.mrb[0].mxu0
  %v636 = vpop.f32.mrb[0].mxu0
  %v637 = vadd.f32 %v533, %v636
  %v638 = vpop.f32.mrb[0].mxu0
  %639 = vmatprep.mubr.bf16.mxu0 0
  %640 = vmatmul.mubr.bf16.gmra.mrb[0].mxu0 %v524
  %v641 = vpop.f32.mrb[0].mxu0
  %v642 = vadd.f32 %v533, %v641
  %v643 = vpop.f32.mrb[0].mxu0
  %v644 = vpop.f32.mrb[0].mxu0
  %v645 = vadd.f32 %v533, %v644
  %v646 = vpop.f32.mrb[0].mxu0
  %647 = vmatprep.mubr.bf16.mxu0 0
  %648 = vmatmul.mubr.bf16.gmra.mrb[0].mxu0 %v525
  %v649 = vpop.f32.mrb[0].mxu0
  %v650 = vadd.f32 %v533, %v649
  %v651 = vpop.f32.mrb[0].mxu0
  %v652 = vpop.f32.mrb[0].mxu0
  %v653 = vadd.f32 %v533, %v652
  %v654 = vpop.f32.mrb[0].mxu0
  %655 = vmatprep.mubr.bf16.mxu0 0
  %656 = vmatmul.mubr.bf16.gmra.mrb[0].mxu0 %v526
  %v657 = vpop.f32.mrb[0].mxu0
  %v658 = vadd.f32 %v533, %v657
  %v659 = vpop.f32.mrb[0].mxu0
  %v660 = vpop.f32.mrb[0].mxu0
  %v661 = vadd.f32 %v533, %v660
  %v662 = vpop.f32.mrb[0].mxu0
  %663 = vmatprep.mubr.bf16.mxu0 0
  %664 = vmatmul.mubr.bf16.gmra.mrb[0].mxu0 %v527
  %v665 = vpop.f32.mrb[0].mxu0
  %v666 = vadd.f32 %v533, %v665
  %v667 = vpop.f32.mrb[0].mxu0
  %v668 = vpop.f32.mrb[0].mxu0
  %v669 = vadd.f32 %v533, %v668
  %v670 = vpop.f32.mrb[0].mxu0
  %671 = vmatprep.mubr.bf16.mxu0 0
  %672 = vmatmul.mubr.bf16.gmra.mrb[0].mxu0 %v528
  %v673 = vpop.f32.mrb[0].mxu0
  %v674 = vadd.f32 %v533, %v673
  %v675 = vpop.f32.mrb[0].mxu0
  %v676 = vpop.f32.mrb[0].mxu0
  %v677 = vadd.f32 %v533, %v676
  %v678 = vpop.f32.mrb[0].mxu0
  %679 = vdwg.mxu0
  %v680 = vmax.f32 %v618, 0.0
  %v681 = vmax.f32 %v621, 0.0
  %v682 = vmax.f32 %v626, 0.0
  %v683 = vmax.f32 %v629, 0.0
  %v684 = vmax.f32 %v634, 0.0
  %v685 = vmax.f32 %v637, 0.0
  %v686 = vmax.f32 %v642, 0.0
  %v687 = vmax.f32 %v645, 0.0
  %v688 = vmax.f32 %v650, 0.0
  %v689 = vmax.f32 %v653, 0.0
  %v690 = vmax.f32 %v658, 0.0
  %v691 = vmax.f32 %v661, 0.0
  %v692 = vmax.f32 %v666, 0.0
  %v693 = vmax.f32 %v669, 0.0
  %v694 = vmax.f32 %v674, 0.0
  %v695 = vmax.f32 %v677, 0.0
  %v696 = vpack.c.bf16 %v681, %v680
  %v697 = vpack.c.bf16 %v683, %v682
  %v698 = vpack.c.bf16 %v685, %v684
  %v699 = vpack.c.bf16 %v687, %v686
  %v700 = vpack.c.bf16 %v689, %v688
  %v701 = vpack.c.bf16 %v691, %v690
  %v702 = vpack.c.bf16 %v693, %v692
  %v703 = vpack.c.bf16 %v695, %v694
  %v705 = vlaneseq
  %v706 = vshrl.u32 %v705, 7
  %v707 = vsub.s32 0, %v706
  %v708 = vrot.slane %v87, %v707
  %v709 = vlaneseq
  %v710 = vshrl.u32 %v709, 7
  %v711 = vsub.s32 1, %v710
  %v712 = vrot.slane %v87, %v711
  %v731 = vunpack.c.l.b16 %v71
  %v732 = vunpack.c.h.b16 %v71
  %v733 = vunpack.c.l.b16 %v72
  %v734 = vunpack.c.h.b16 %v72
  %v735 = vunpack.c.l.b16 %v73
  %v736 = vunpack.c.h.b16 %v73
  %v737 = vunpack.c.l.b16 %v74
  %v738 = vunpack.c.h.b16 %v74
  %v739 = vunpack.c.l.b16 %v75
  %v740 = vunpack.c.h.b16 %v75
  %v741 = vunpack.c.l.b16 %v76
  %v742 = vunpack.c.h.b16 %v76
  %v743 = vunpack.c.l.b16 %v77
  %v744 = vunpack.c.h.b16 %v77
  %v745 = vunpack.c.l.b16 %v78
  %v746 = vunpack.c.h.b16 %v78
  %v747 = vunpack.c.l.b16 %v79
  %v748 = vunpack.c.h.b16 %v79
  %v749 = vunpack.c.l.b16 %v80
  %v750 = vunpack.c.h.b16 %v80
  %v751 = vunpack.c.l.b16 %v81
  %v752 = vunpack.c.h.b16 %v81
  %v753 = vunpack.c.l.b16 %v82
  %v754 = vunpack.c.h.b16 %v82
  %v755 = vunpack.c.l.b16 %v83
  %v756 = vunpack.c.h.b16 %v83
  %v757 = vunpack.c.l.b16 %v84
  %v758 = vunpack.c.h.b16 %v84
  %v759 = vunpack.c.l.b16 %v85
  %v760 = vunpack.c.h.b16 %v85
  %v761 = vunpack.c.l.b16 %v86
  %v762 = vunpack.c.h.b16 %v86
  %v763 = vpack.c.b16 %v733, %v731
  %v764 = vpack.c.b16 %v734, %v732
  %v765 = vpack.c.b16 %v737, %v735
  %v766 = vpack.c.b16 %v738, %v736
  %v767 = vpack.c.b16 %v741, %v739
  %v768 = vpack.c.b16 %v742, %v740
  %v769 = vpack.c.b16 %v745, %v743
  %v770 = vpack.c.b16 %v746, %v744
  %v771 = vpack.c.b16 %v749, %v747
  %v772 = vpack.c.b16 %v750, %v748
  %v773 = vpack.c.b16 %v753, %v751
  %v774 = vpack.c.b16 %v754, %v752
  %v775 = vpack.c.b16 %v757, %v755
  %v776 = vpack.c.b16 %v758, %v756
  %v777 = vpack.c.b16 %v761, %v759
  %v778 = vpack.c.b16 %v762, %v760
  %795 = vmatprep.subr.bf16.mxu0 %v764
  %796 = vmatpush1.bf16.msra.mxu0 %v763
  %797 = vmatprep.subr.bf16.mxu0 %v766
  %798 = vmatpush1.bf16.msra.mxu0 %v765
  %799 = vmatprep.subr.bf16.mxu0 %v768
  %800 = vmatpush1.bf16.msra.mxu0 %v767
  %801 = vmatprep.subr.bf16.mxu0 %v770
  %802 = vmatpush1.bf16.msra.mxu0 %v769
  %803 = vmatprep.subr.bf16.mxu0 %v772
  %804 = vmatpush1.bf16.msra.mxu0 %v771
  %805 = vmatprep.subr.bf16.mxu0 %v774
  %806 = vmatpush1.bf16.msra.mxu0 %v773
  %807 = vmatprep.subr.bf16.mxu0 %v776
  %808 = vmatpush1.bf16.msra.mxu0 %v775
  %809 = vmatprep.subr.bf16.mxu0 %v778
  %810 = vmatpush1.bf16.msra.mxu0 %v777
  %811 = vmatprep.subr.bf16.mxu0 0
  %812 = vmatpush1.bf16.msra.mxu0 0
  %813 = vmatprep.subr.bf16.mxu0 0
  %814 = vmatpush1.bf16.msra.mxu0 0
  %815 = vmatprep.subr.bf16.mxu0 0
  %816 = vmatpush1.bf16.msra.mxu0 0
  %817 = vmatprep.subr.bf16.mxu0 0
  %818 = vmatpush1.bf16.msra.mxu0 0
  %819 = vmatprep.subr.bf16.mxu0 0
  %820 = vmatpush1.bf16.msra.mxu0 0
  %821 = vmatprep.subr.bf16.mxu0 0
  %822 = vmatpush1.bf16.msra.mxu0 0
  %823 = vmatprep.subr.bf16.mxu0 0
  %824 = vmatpush1.bf16.msra.mxu0 0
  %825 = vmatprep.subr.bf16.mxu0 0
  %826 = vmatpush1.bf16.msra.mxu0 0
  %827 = vmatprep.mubr.bf16.mxu0 0
  %828 = vmatmul.mubr.bf16.gmra.mrb[0].mxu0 %v696
  %v829 = vpop.f32.mrb[0].mxu0
  %v830 = vadd.f32 %v708, %v829
  %v831 = vpop.f32.mrb[0].mxu0
  %v832 = vadd.f32 %v712, %v831
  %v833 = vpop.f32.mrb[0].mxu0
  %v834 = vadd.f32 %v708, %v833
  %v835 = vpop.f32.mrb[0].mxu0
  %v836 = vadd.f32 %v712, %v835
  %837 = vmatprep.mubr.bf16.mxu0 0
  %838 = vmatmul.mubr.bf16.gmra.mrb[0].mxu0 %v697
  %v839 = vpop.f32.mrb[0].mxu0
  %v840 = vadd.f32 %v708, %v839
  %v841 = vpop.f32.mrb[0].mxu0
  %v842 = vadd.f32 %v712, %v841
  %v843 = vpop.f32.mrb[0].mxu0
  %v844 = vadd.f32 %v708, %v843
  %v845 = vpop.f32.mrb[0].mxu0
  %v846 = vadd.f32 %v712, %v845
  %847 = vmatprep.mubr.bf16.mxu0 0
  %848 = vmatmul.mubr.bf16.gmra.mrb[0].mxu0 %v698
  %v849 = vpop.f32.mrb[0].mxu0
  %v850 = vadd.f32 %v708, %v849
  %v851 = vpop.f32.mrb[0].mxu0
  %v852 = vadd.f32 %v712, %v851
  %v853 = vpop.f32.mrb[0].mxu0
  %v854 = vadd.f32 %v708, %v853
  %v855 = vpop.f32.mrb[0].mxu0
  %v856 = vadd.f32 %v712, %v855
  %857 = vmatprep.mubr.bf16.mxu0 0
  %858 = vmatmul.mubr.bf16.gmra.mrb[0].mxu0 %v699
  %v859 = vpop.f32.mrb[0].mxu0
  %v860 = vadd.f32 %v708, %v859
  %v861 = vpop.f32.mrb[0].mxu0
  %v862 = vadd.f32 %v712, %v861
  %v863 = vpop.f32.mrb[0].mxu0
  %v864 = vadd.f32 %v708, %v863
  %v865 = vpop.f32.mrb[0].mxu0
  %v866 = vadd.f32 %v712, %v865
  %867 = vmatprep.mubr.bf16.mxu0 0
  %868 = vmatmul.mubr.bf16.gmra.mrb[0].mxu0 %v700
  %v869 = vpop.f32.mrb[0].mxu0
  %v870 = vadd.f32 %v708, %v869
  %v871 = vpop.f32.mrb[0].mxu0
  %v872 = vadd.f32 %v712, %v871
  %v873 = vpop.f32.mrb[0].mxu0
  %v874 = vadd.f32 %v708, %v873
  %v875 = vpop.f32.mrb[0].mxu0
  %v876 = vadd.f32 %v712, %v875
  %877 = vmatprep.mubr.bf16.mxu0 0
  %878 = vmatmul.mubr.bf16.gmra.mrb[0].mxu0 %v701
  %v879 = vpop.f32.mrb[0].mxu0
  %v880 = vadd.f32 %v708, %v879
  %v881 = vpop.f32.mrb[0].mxu0
  %v882 = vadd.f32 %v712, %v881
  %v883 = vpop.f32.mrb[0].mxu0
  %v884 = vadd.f32 %v708, %v883
  %v885 = vpop.f32.mrb[0].mxu0
  %v886 = vadd.f32 %v712, %v885
  %887 = vmatprep.mubr.bf16.mxu0 0
  %888 = vmatmul.mubr.bf16.gmra.mrb[0].mxu0 %v702
  %v889 = vpop.f32.mrb[0].mxu0
  %v890 = vadd.f32 %v708, %v889
  %v891 = vpop.f32.mrb[0].mxu0
  %v892 = vadd.f32 %v712, %v891
  %v893 = vpop.f32.mrb[0].mxu0
  %v894 = vadd.f32 %v708, %v893
  %v895 = vpop.f32.mrb[0].mxu0
  %v896 = vadd.f32 %v712, %v895
  %897 = vmatprep.mubr.bf16.mxu0 0
  %898 = vmatmul.mubr.bf16.gmra.mrb[0].mxu0 %v703
  %v899 = vpop.f32.mrb[0].mxu0
  %v900 = vadd.f32 %v708, %v899
  %v901 = vpop.f32.mrb[0].mxu0
  %v902 = vadd.f32 %v712, %v901
  %v903 = vpop.f32.mrb[0].mxu0
  %v904 = vadd.f32 %v708, %v903
  %v905 = vpop.f32.mrb[0].mxu0
  %v906 = vadd.f32 %v712, %v905
  %907 = vdwg.mxu0
  %v908 = vlaneseq
  %v909 = vshrl.u32 %v908, 7
  %v910 = vadd.s32 %v909, 8
  %v911 = vcombine.high %v88, %v88
  %v913 = vunpack.c.l.s4 1966171168
  %v914 = vunpack.c.0.s8 %v913
  %v915 = vlaneseq
  %v916 = vshrl.u32 %v915, 7
  %v917 = vsub.s32 %v914, %v916
  %v918 = vrot.slane %v88, %v917
  %v920 = vunpack.c.l.s4 1966171168
  %v921 = vunpack.c.0.s8 %v920
  %v922 = vlaneseq
  %v923 = vshrl.u32 %v922, 7
  %v924 = vsub.s32 %v921, %v923
  %v925 = vrot.slane %v911, %v924
  %v926 = vcombine.high %v918, %v918
  %v927 = vcombine.high %v925, %v925
  %v929 = vunpack.c.l.s4 1966171168
  %v930 = vunpack.c.0.s8 %v929
  %v931 = vlaneseq
  %v932 = vshrl.u32 %v931, 7
  %v933 = vsub.s32 %v930, %v932
  %v934 = vrot.slane %v918, %v933
  %v936 = vunpack.c.l.s4 1966171168
  %v937 = vunpack.c.0.s8 %v936
  %v938 = vlaneseq
  %v939 = vshrl.u32 %v938, 7
  %v940 = vsub.s32 %v937, %v939
  %v941 = vrot.slane %v925, %v940
  %v943 = vunpack.c.l.s4 1966171168
  %v944 = vunpack.c.0.s8 %v943
  %v945 = vlaneseq
  %v946 = vshrl.u32 %v945, 7
  %v947 = vsub.s32 %v944, %v946
  %v948 = vrot.slane %v926, %v947
  %v950 = vunpack.c.l.s4 1966171168
  %v951 = vunpack.c.0.s8 %v950
  %v952 = vlaneseq
  %v953 = vshrl.u32 %v952, 7
  %v954 = vsub.s32 %v951, %v953
  %v955 = vrot.slane %v927, %v954
  %v956 = vcombine.high %v934, %v934
  %v957 = vcombine.high %v941, %v941
  %v958 = vcombine.high %v948, %v948
  %v959 = vcombine.high %v955, %v955
  %v960 = vlaneseq
  %v961 = vshrl.u32 %v960, 7
  %v962 = vsub.s32 0, %v961
  %v963 = vrot.slane %v934, %v962
  %v964 = vlaneseq
  %v965 = vshrl.u32 %v964, 7
  %v966 = vsub.s32 0, %v965
  %v967 = vrot.slane %v948, %v966
  %v968 = vlaneseq
  %v969 = vshrl.u32 %v968, 7
  %v970 = vsub.s32 0, %v969
  %v971 = vrot.slane %v956, %v970
  %v972 = vlaneseq
  %v973 = vshrl.u32 %v972, 7
  %v974 = vsub.s32 0, %v973
  %v975 = vrot.slane %v958, %v974
  %v976 = vlaneseq
  %v977 = vshrl.u32 %v976, 7
  %v978 = vsub.s32 0, %v977
  %v979 = vrot.slane %v941, %v978
  %v980 = vlaneseq
  %v981 = vshrl.u32 %v980, 7
  %v982 = vsub.s32 0, %v981
  %v983 = vrot.slane %v955, %v982
  %v984 = vlaneseq
  %v985 = vshrl.u32 %v984, 7
  %v986 = vsub.s32 0, %v985
  %v987 = vrot.slane %v957, %v986
  %v988 = vlaneseq
  %v989 = vshrl.u32 %v988, 7
  %v990 = vsub.s32 0, %v989
  %v991 = vrot.slane %v959, %v990
  %vm992 = vcmp.lt.s32.totalorder %v909, %v963
  %vm993 = vcmp.lt.s32.totalorder %v910, %v963
  %vm994 = vcmp.lt.s32.totalorder %v909, %v967
  %vm995 = vcmp.lt.s32.totalorder %v910, %v967
  %vm996 = vcmp.lt.s32.totalorder %v909, %v971
  %vm997 = vcmp.lt.s32.totalorder %v910, %v971
  %vm998 = vcmp.lt.s32.totalorder %v909, %v975
  %vm999 = vcmp.lt.s32.totalorder %v910, %v975
  %vm1000 = vcmp.lt.s32.totalorder %v909, %v979
  %vm1001 = vcmp.lt.s32.totalorder %v910, %v979
  %vm1002 = vcmp.lt.s32.totalorder %v909, %v983
  %vm1003 = vcmp.lt.s32.totalorder %v910, %v983
  %vm1004 = vcmp.lt.s32.totalorder %v909, %v987
  %vm1005 = vcmp.lt.s32.totalorder %v910, %v987
  %vm1006 = vcmp.lt.s32.totalorder %v909, %v991
  %vm1007 = vcmp.lt.s32.totalorder %v910, %v991
  %v1008 = vsel %vm992, 1, 0
  %v1009 = vsel %vm993, 1, 0
  %v1010 = vsel %vm994, 1, 0
  %v1011 = vsel %vm995, 1, 0
  %v1012 = vsel %vm996, 1, 0
  %v1013 = vsel %vm997, 1, 0
  %v1014 = vsel %vm998, 1, 0
  %v1015 = vsel %vm999, 1, 0
  %v1016 = vsel %vm1000, 1, 0
  %v1017 = vsel %vm1001, 1, 0
  %v1018 = vsel %vm1002, 1, 0
  %v1019 = vsel %vm1003, 1, 0
  %v1020 = vsel %vm1004, 1, 0
  %v1021 = vsel %vm1005, 1, 0
  %v1022 = vsel %vm1006, 1, 0
  %v1023 = vsel %vm1007, 1, 0
  %1024 = vset.pattern.permute.xlu0 0
  %1025 = vperm.xlu0 %1024, %v1008
  %v1026 = vpop.permute.xlu0 %1025
  %1027 = vset.pattern.permute.xlu0 0
  %1028 = vperm.xlu0 %1027, %v1009
  %v1029 = vpop.permute.xlu0 %1028
  %1030 = vset.pattern.permute.xlu0 0
  %1031 = vperm.xlu0 %1030, %v1010
  %v1032 = vpop.permute.xlu0 %1031
  %1033 = vset.pattern.permute.xlu0 0
  %1034 = vperm.xlu0 %1033, %v1011
  %v1035 = vpop.permute.xlu0 %1034
  %1036 = vset.pattern.permute.xlu0 0
  %1037 = vperm.xlu0 %1036, %v1012
  %v1038 = vpop.permute.xlu0 %1037
  %1039 = vset.pattern.permute.xlu0 0
  %1040 = vperm.xlu0 %1039, %v1013
  %v1041 = vpop.permute.xlu0 %1040
  %1042 = vset.pattern.permute.xlu0 0
  %1043 = vperm.xlu0 %1042, %v1014
  %v1044 = vpop.permute.xlu0 %1043
  %1045 = vset.pattern.permute.xlu0 0
  %1046 = vperm.xlu0 %1045, %v1015
  %v1047 = vpop.permute.xlu0 %1046
  %1048 = vset.pattern.permute.xlu0 0
  %1049 = vperm.xlu0 %1048, %v1016
  %v1050 = vpop.permute.xlu0 %1049
  %1051 = vset.pattern.permute.xlu0 0
  %1052 = vperm.xlu0 %1051, %v1017
  %v1053 = vpop.permute.xlu0 %1052
  %1054 = vset.pattern.permute.xlu0 0
  %1055 = vperm.xlu0 %1054, %v1018
  %v1056 = vpop.permute.xlu0 %1055
  %1057 = vset.pattern.permute.xlu0 0
  %1058 = vperm.xlu0 %1057, %v1019
  %v1059 = vpop.permute.xlu0 %1058
  %1060 = vset.pattern.permute.xlu0 0
  %1061 = vperm.xlu0 %1060, %v1020
  %v1062 = vpop.permute.xlu0 %1061
  %1063 = vset.pattern.permute.xlu0 0
  %1064 = vperm.xlu0 %1063, %v1021
  %v1065 = vpop.permute.xlu0 %1064
  %1066 = vset.pattern.permute.xlu0 0
  %1067 = vperm.xlu0 %1066, %v1022
  %v1068 = vpop.permute.xlu0 %1067
  %1069 = vset.pattern.permute.xlu0 0
  %1070 = vperm.xlu0 %1069, %v1023
  %v1071 = vpop.permute.xlu0 %1070
  %vm1072 = vcmp.eq.s32.totalorder %v1026, 1
  %vm1073 = vcmp.eq.s32.totalorder %v1029, 1
  %vm1074 = vcmp.eq.s32.totalorder %v1032, 1
  %vm1075 = vcmp.eq.s32.totalorder %v1035, 1
  %vm1076 = vcmp.eq.s32.totalorder %v1038, 1
  %vm1077 = vcmp.eq.s32.totalorder %v1041, 1
  %vm1078 = vcmp.eq.s32.totalorder %v1044, 1
  %vm1079 = vcmp.eq.s32.totalorder %v1047, 1
  %vm1080 = vcmp.eq.s32.totalorder %v1050, 1
  %vm1081 = vcmp.eq.s32.totalorder %v1053, 1
  %vm1082 = vcmp.eq.s32.totalorder %v1056, 1
  %vm1083 = vcmp.eq.s32.totalorder %v1059, 1
  %vm1084 = vcmp.eq.s32.totalorder %v1062, 1
  %vm1085 = vcmp.eq.s32.totalorder %v1065, 1
  %vm1086 = vcmp.eq.s32.totalorder %v1068, 1
  %vm1087 = vcmp.eq.s32.totalorder %v1071, 1
  %v1088 = vsel %vm1072, %v830, -1e+30
  %v1089 = vsel %vm1072, %v832, -1e+30
  %v1090 = vsel %vm1073, %v834, -1e+30
  %v1091 = vsel %vm1073, %v836, -1e+30
  %v1092 = vsel %vm1074, %v840, -1e+30
  %v1093 = vsel %vm1074, %v842, -1e+30
  %v1094 = vsel %vm1075, %v844, -1e+30
  %v1095 = vsel %vm1075, %v846, -1e+30
  %v1096 = vsel %vm1076, %v850, -1e+30
  %v1097 = vsel %vm1076, %v852, -1e+30
  %v1098 = vsel %vm1077, %v854, -1e+30
  %v1099 = vsel %vm1077, %v856, -1e+30
  %v1100 = vsel %vm1078, %v860, -1e+30
  %v1101 = vsel %vm1078, %v862, -1e+30
  %v1102 = vsel %vm1079, %v864, -1e+30
  %v1103 = vsel %vm1079, %v866, -1e+30
  %v1104 = vsel %vm1080, %v870, -1e+30
  %v1105 = vsel %vm1080, %v872, -1e+30
  %v1106 = vsel %vm1081, %v874, -1e+30
  %v1107 = vsel %vm1081, %v876, -1e+30
  %v1108 = vsel %vm1082, %v880, -1e+30
  %v1109 = vsel %vm1082, %v882, -1e+30
  %v1110 = vsel %vm1083, %v884, -1e+30
  %v1111 = vsel %vm1083, %v886, -1e+30
  %v1112 = vsel %vm1084, %v890, -1e+30
  %v1113 = vsel %vm1084, %v892, -1e+30
  %v1114 = vsel %vm1085, %v894, -1e+30
  %v1115 = vsel %vm1085, %v896, -1e+30
  %v1116 = vsel %vm1086, %v900, -1e+30
  %v1117 = vsel %vm1086, %v902, -1e+30
  %v1118 = vsel %vm1087, %v904, -1e+30
  %v1119 = vsel %vm1087, %v906, -1e+30
  %v1120 = vmax.f32 %v1088, %v1090
  %v1121 = vrot.slane %v1120, 4
  %v1122 = vmax.f32 %v1120, %v1121
  %v1123 = vrot.slane %v1122, 2
  %v1124 = vmax.f32 %v1122, %v1123
  %v1125 = vrot.slane %v1124, 1
  %v1126 = vmax.f32 %v1124, %v1125
  %v1127 = vmax.f32 %v1089, %v1091
  %v1128 = vrot.slane %v1127, 4
  %v1129 = vmax.f32 %v1127, %v1128
  %v1130 = vrot.slane %v1129, 2
  %v1131 = vmax.f32 %v1129, %v1130
  %v1132 = vrot.slane %v1131, 1
  %v1133 = vmax.f32 %v1131, %v1132
  %v1134 = vmax.f32 %v1092, %v1094
  %v1135 = vrot.slane %v1134, 4
  %v1136 = vmax.f32 %v1134, %v1135
  %v1137 = vrot.slane %v1136, 2
  %v1138 = vmax.f32 %v1136, %v1137
  %v1139 = vrot.slane %v1138, 1
  %v1140 = vmax.f32 %v1138, %v1139
  %v1141 = vmax.f32 %v1093, %v1095
  %v1142 = vrot.slane %v1141, 4
  %v1143 = vmax.f32 %v1141, %v1142
  %v1144 = vrot.slane %v1143, 2
  %v1145 = vmax.f32 %v1143, %v1144
  %v1146 = vrot.slane %v1145, 1
  %v1147 = vmax.f32 %v1145, %v1146
  %v1148 = vmax.f32 %v1096, %v1098
  %v1149 = vrot.slane %v1148, 4
  %v1150 = vmax.f32 %v1148, %v1149
  %v1151 = vrot.slane %v1150, 2
  %v1152 = vmax.f32 %v1150, %v1151
  %v1153 = vrot.slane %v1152, 1
  %v1154 = vmax.f32 %v1152, %v1153
  %v1155 = vmax.f32 %v1097, %v1099
  %v1156 = vrot.slane %v1155, 4
  %v1157 = vmax.f32 %v1155, %v1156
  %v1158 = vrot.slane %v1157, 2
  %v1159 = vmax.f32 %v1157, %v1158
  %v1160 = vrot.slane %v1159, 1
  %v1161 = vmax.f32 %v1159, %v1160
  %v1162 = vmax.f32 %v1100, %v1102
  %v1163 = vrot.slane %v1162, 4
  %v1164 = vmax.f32 %v1162, %v1163
  %v1165 = vrot.slane %v1164, 2
  %v1166 = vmax.f32 %v1164, %v1165
  %v1167 = vrot.slane %v1166, 1
  %v1168 = vmax.f32 %v1166, %v1167
  %v1169 = vmax.f32 %v1101, %v1103
  %v1170 = vrot.slane %v1169, 4
  %v1171 = vmax.f32 %v1169, %v1170
  %v1172 = vrot.slane %v1171, 2
  %v1173 = vmax.f32 %v1171, %v1172
  %v1174 = vrot.slane %v1173, 1
  %v1175 = vmax.f32 %v1173, %v1174
  %v1176 = vmax.f32 %v1104, %v1106
  %v1177 = vrot.slane %v1176, 4
  %v1178 = vmax.f32 %v1176, %v1177
  %v1179 = vrot.slane %v1178, 2
  %v1180 = vmax.f32 %v1178, %v1179
  %v1181 = vrot.slane %v1180, 1
  %v1182 = vmax.f32 %v1180, %v1181
  %v1183 = vmax.f32 %v1105, %v1107
  %v1184 = vrot.slane %v1183, 4
  %v1185 = vmax.f32 %v1183, %v1184
  %v1186 = vrot.slane %v1185, 2
  %v1187 = vmax.f32 %v1185, %v1186
  %v1188 = vrot.slane %v1187, 1
  %v1189 = vmax.f32 %v1187, %v1188
  %v1190 = vmax.f32 %v1108, %v1110
  %v1191 = vrot.slane %v1190, 4
  %v1192 = vmax.f32 %v1190, %v1191
  %v1193 = vrot.slane %v1192, 2
  %v1194 = vmax.f32 %v1192, %v1193
  %v1195 = vrot.slane %v1194, 1
  %v1196 = vmax.f32 %v1194, %v1195
  %v1197 = vmax.f32 %v1109, %v1111
  %v1198 = vrot.slane %v1197, 4
  %v1199 = vmax.f32 %v1197, %v1198
  %v1200 = vrot.slane %v1199, 2
  %v1201 = vmax.f32 %v1199, %v1200
  %v1202 = vrot.slane %v1201, 1
  %v1203 = vmax.f32 %v1201, %v1202
  %v1204 = vmax.f32 %v1112, %v1114
  %v1205 = vrot.slane %v1204, 4
  %v1206 = vmax.f32 %v1204, %v1205
  %v1207 = vrot.slane %v1206, 2
  %v1208 = vmax.f32 %v1206, %v1207
  %v1209 = vrot.slane %v1208, 1
  %v1210 = vmax.f32 %v1208, %v1209
  %v1211 = vmax.f32 %v1113, %v1115
  %v1212 = vrot.slane %v1211, 4
  %v1213 = vmax.f32 %v1211, %v1212
  %v1214 = vrot.slane %v1213, 2
  %v1215 = vmax.f32 %v1213, %v1214
  %v1216 = vrot.slane %v1215, 1
  %v1217 = vmax.f32 %v1215, %v1216
  %v1218 = vmax.f32 %v1116, %v1118
  %v1219 = vrot.slane %v1218, 4
  %v1220 = vmax.f32 %v1218, %v1219
  %v1221 = vrot.slane %v1220, 2
  %v1222 = vmax.f32 %v1220, %v1221
  %v1223 = vrot.slane %v1222, 1
  %v1224 = vmax.f32 %v1222, %v1223
  %v1225 = vmax.f32 %v1117, %v1119
  %v1226 = vrot.slane %v1225, 4
  %v1227 = vmax.f32 %v1225, %v1226
  %v1228 = vrot.slane %v1227, 2
  %v1229 = vmax.f32 %v1227, %v1228
  %v1230 = vrot.slane %v1229, 1
  %v1231 = vmax.f32 %v1229, %v1230
  %v1232 = vmax.f32 %v1126, -1e+30
  %v1233 = vmax.f32 %v1133, -1e+30
  %v1234 = vmax.f32 %v1140, -1e+30
  %v1235 = vmax.f32 %v1147, -1e+30
  %v1236 = vmax.f32 %v1154, -1e+30
  %v1237 = vmax.f32 %v1161, -1e+30
  %v1238 = vmax.f32 %v1168, -1e+30
  %v1239 = vmax.f32 %v1175, -1e+30
  %v1240 = vmax.f32 %v1182, -1e+30
  %v1241 = vmax.f32 %v1189, -1e+30
  %v1242 = vmax.f32 %v1196, -1e+30
  %v1243 = vmax.f32 %v1203, -1e+30
  %v1244 = vmax.f32 %v1210, -1e+30
  %v1245 = vmax.f32 %v1217, -1e+30
  %v1246 = vmax.f32 %v1224, -1e+30
  %v1247 = vmax.f32 %v1231, -1e+30
  %vm1264 = vcmask 1041409
  %v1265 = vsel %vm1264, %v1234, %v1232
  %vm1266 = vcmask 1042434
  %v1267 = vsel %vm1266, %v1236, %v1265
  %vm1268 = vcmask 1043459
  %v1269 = vsel %vm1268, %v1238, %v1267
  %vm1270 = vcmask 1044484
  %v1271 = vsel %vm1270, %v1240, %v1269
  %vm1272 = vcmask 1045509
  %v1273 = vsel %vm1272, %v1242, %v1271
  %vm1274 = vcmask 1046534
  %v1275 = vsel %vm1274, %v1244, %v1273
  %vm1276 = vcmask 1047559
  %v1277 = vsel %vm1276, %v1246, %v1275
  %v1278 = vsel %vm1264, %v1235, %v1233
  %v1279 = vsel %vm1266, %v1237, %v1278
  %v1280 = vsel %vm1268, %v1239, %v1279
  %v1281 = vsel %vm1270, %v1241, %v1280
  %v1282 = vsel %vm1272, %v1243, %v1281
  %v1283 = vsel %vm1274, %v1245, %v1282
  %v1284 = vsel %vm1276, %v1247, %v1283
  %1287 = vst [vmem:[%s10] sm:$0xff] %v1277
  %1288 = vst [vmem:[%s10 + $0x8] sm:$0xff] %v1284
  // Predicated region
  $region42: #{pointnet2_forward.5} parent=0 // pred_check
    _
  $region43: #{pointnet2_forward.5} parent=0 // pred_check_branch
    %1290 = sbr.rel (0) target = $region45
  $region44: #{pointnet2_forward.5} parent=0 // pred_region
    _
  $region45: #{pointnet2_forward.5} parent=0 // pred_fallthru
    _
  // Predicated region
  $region46: #{pointnet2_forward.5} parent=0 // pred_check
    _
  $region47: #{pointnet2_forward.5} parent=0 // pred_check_branch
    %1292 = sbr.rel (0) target = $region49
  $region48: #{pointnet2_forward.5} parent=0 // pred_region
    _
  $region49: #{pointnet2_forward.5} parent=0 // pred_fallthru
    _

// kernel: pointnet2_forward.4
$region0: #{pointnet2_forward.4}
  #allocation0 [shape = 'u32[]', space=smem, size = 0x4, offset = 0x4, fixed_abs, tag = 'smem constant byte address 0x4 - core index']
  #allocation1 [shape = 'u32[144,128]{1,0:T(1,128)}', space=vmem, size = 0x12000, scoped, tag = 'internal scratch']
  %s0 = inlined_call_operand.vmem [shape: bf16[32,32,4], index: 0, kind: input, shape index: {}]
  %s1 = inlined_call_operand.vmem [shape: bf16[32,32,3], index: 1, kind: input, shape index: {}]
  %s2 = inlined_call_operand.vmem [shape: s32[32,1], index: 2, kind: input, shape index: {}]
  %s3 = inlined_call_operand.vmem [shape: bf16[4,64], index: 3, kind: input, shape index: {}]
  %s4 = inlined_call_operand.vmem [shape: bf16[3,64], index: 4, kind: input, shape index: {}]
  %s5 = inlined_call_operand.vmem [shape: f32[1,64], index: 5, kind: input, shape index: {}]
  %s6 = inlined_call_operand.vmem [shape: bf16[64,64], index: 6, kind: input, shape index: {}]
  %s7 = inlined_call_operand.vmem [shape: f32[1,64], index: 7, kind: input, shape index: {}]
  %s8 = inlined_call_operand.vmem [shape: bf16[64,128], index: 8, kind: input, shape index: {}]
  %s9 = inlined_call_operand.vmem [shape: f32[1,128], index: 9, kind: input, shape index: {}]
  %s10 = inlined_call_operand.vmem [shape: f32[32,128], index: 10, kind: output, shape index: {}]
  %s11 = sld [smem:[#allocation0]]
  $region50: #{pointnet2_forward.4} parent=0
    _
  %s13 = ssub.s32 1, %s11
  %s14 = scalar_select 0, %s13, %s11
  // Predicated region
  $region2: #{pointnet2_forward.4} parent=0 // pred_check
    _
  $region3: #{pointnet2_forward.4} parent=0 // pred_check_branch
    %16 = sbr.rel (0) target = $region5
  $region4: #{pointnet2_forward.4} parent=0 // pred_region
    _
  $region5: #{pointnet2_forward.4} parent=0 // pred_fallthru
    _
  // Predicated region
  $region6: #{pointnet2_forward.4} parent=0 // pred_check
    _
  $region7: #{pointnet2_forward.4} parent=0 // pred_check_branch
    %18 = sbr.rel (0) target = $region9
  $region8: #{pointnet2_forward.4} parent=0 // pred_region
    _
  $region9: #{pointnet2_forward.4} parent=0 // pred_fallthru
    _
  // Predicated region
  $region10: #{pointnet2_forward.4} parent=0 // pred_check
    _
  $region11: #{pointnet2_forward.4} parent=0 // pred_check_branch
    %20 = sbr.rel (0) target = $region13
  $region12: #{pointnet2_forward.4} parent=0 // pred_region
    _
  $region13: #{pointnet2_forward.4} parent=0 // pred_fallthru
    _
  // Predicated region
  $region14: #{pointnet2_forward.4} parent=0 // pred_check
    _
  $region15: #{pointnet2_forward.4} parent=0 // pred_check_branch
    %22 = sbr.rel (0) target = $region17
  $region16: #{pointnet2_forward.4} parent=0 // pred_region
    _
  $region17: #{pointnet2_forward.4} parent=0 // pred_fallthru
    _
  // Predicated region
  $region18: #{pointnet2_forward.4} parent=0 // pred_check
    _
  $region19: #{pointnet2_forward.4} parent=0 // pred_check_branch
    %24 = sbr.rel (0) target = $region21
  $region20: #{pointnet2_forward.4} parent=0 // pred_region
    _
  $region21: #{pointnet2_forward.4} parent=0 // pred_fallthru
    _
  // Predicated region
  $region22: #{pointnet2_forward.4} parent=0 // pred_check
    _
  $region23: #{pointnet2_forward.4} parent=0 // pred_check_branch
    %26 = sbr.rel (0) target = $region25
  $region24: #{pointnet2_forward.4} parent=0 // pred_region
    _
  $region25: #{pointnet2_forward.4} parent=0 // pred_fallthru
    _
  // Predicated region
  $region26: #{pointnet2_forward.4} parent=0 // pred_check
    _
  $region27: #{pointnet2_forward.4} parent=0 // pred_check_branch
    %28 = sbr.rel (0) target = $region29
  $region28: #{pointnet2_forward.4} parent=0 // pred_region
    _
  $region29: #{pointnet2_forward.4} parent=0 // pred_fallthru
    _
  // Predicated region
  $region30: #{pointnet2_forward.4} parent=0 // pred_check
    _
  $region31: #{pointnet2_forward.4} parent=0 // pred_check_branch
    %30 = sbr.rel (0) target = $region33
  $region32: #{pointnet2_forward.4} parent=0 // pred_region
    _
  $region33: #{pointnet2_forward.4} parent=0 // pred_fallthru
    _
  // Predicated region
  $region34: #{pointnet2_forward.4} parent=0 // pred_check
    _
  $region35: #{pointnet2_forward.4} parent=0 // pred_check_branch
    %32 = sbr.rel (0) target = $region37
  $region36: #{pointnet2_forward.4} parent=0 // pred_region
    _
  $region37: #{pointnet2_forward.4} parent=0 // pred_fallthru
    _
  // Predicated region
  $region38: #{pointnet2_forward.4} parent=0 // pred_check
    _
  $region39: #{pointnet2_forward.4} parent=0 // pred_check_branch
    %34 = sbr.rel (0) target = $region41
  $region40: #{pointnet2_forward.4} parent=0 // pred_region
    _
  $region41: #{pointnet2_forward.4} parent=0 // pred_fallthru
    _
  %v36 = vld [vmem:[%s3] sm:$0x3]
  %v37 = vld [vmem:[%s4] sm:$0x3]
  %v38 = vld [vmem:[%s5] sm:$0x1]
  %v39 = vld [vmem:[%s6] sm:$0xf]
  %v40 = vld [vmem:[%s6 + $0x4] sm:$0xf]
  %v41 = vld [vmem:[%s6 + $0x8] sm:$0xf]
  %v42 = vld [vmem:[%s6 + $0xc] sm:$0xf]
  %v43 = vld [vmem:[%s6 + $0x10] sm:$0xf]
  %v44 = vld [vmem:[%s6 + $0x14] sm:$0xf]
  %v45 = vld [vmem:[%s6 + $0x18] sm:$0xf]
  %v46 = vld [vmem:[%s6 + $0x1c] sm:$0xf]
  %v47 = vld [vmem:[%s7] sm:$0x1]
  %v48 = vld [vmem:[%s8] sm:$0xf]
  %v49 = vld [vmem:[%s8 + $0x4] sm:$0xf]
  %v50 = vld [vmem:[%s8 + $0x8] sm:$0xf]
  %v51 = vld [vmem:[%s8 + $0xc] sm:$0xf]
  %v52 = vld [vmem:[%s8 + $0x10] sm:$0xf]
  %v53 = vld [vmem:[%s8 + $0x14] sm:$0xf]
  %v54 = vld [vmem:[%s8 + $0x18] sm:$0xf]
  %v55 = vld [vmem:[%s8 + $0x1c] sm:$0xf]
  %v56 = vld [vmem:[%s9] sm:$0x1]
  %v57 = vld [vmem:[%s2] sm:$0xff]
  %v58 = vld [vmem:[%s2 + $0x8] sm:$0xff]
  %v59 = vld [vmem:[%s2 + $0x10] sm:$0xff]
  %v60 = vld [vmem:[%s2 + $0x18] sm:$0xff]
  %v61 = vld [vmem:[%s0] sm:$0xf]
  %v62 = vld [vmem:[%s0 + $0x4] sm:$0xf]
  %v63 = vld [vmem:[%s0 + $0x8] sm:$0xf]
  %v64 = vld [vmem:[%s0 + $0xc] sm:$0xf]
  %v65 = vld [vmem:[%s0 + $0x10] sm:$0xf]
  %v66 = vld [vmem:[%s0 + $0x14] sm:$0xf]
  %v67 = vld [vmem:[%s0 + $0x18] sm:$0xf]
  %v68 = vld [vmem:[%s0 + $0x1c] sm:$0xf]
  %v69 = vld [vmem:[%s0 + $0x20] sm:$0xf]
  %v70 = vld [vmem:[%s0 + $0x24] sm:$0xf]
  %v71 = vld [vmem:[%s0 + $0x28] sm:$0xf]
  %v72 = vld [vmem:[%s0 + $0x2c] sm:$0xf]
  %v73 = vld [vmem:[%s0 + $0x30] sm:$0xf]
  %v74 = vld [vmem:[%s0 + $0x34] sm:$0xf]
  %v75 = vld [vmem:[%s0 + $0x38] sm:$0xf]
  %v76 = vld [vmem:[%s0 + $0x3c] sm:$0xf]
  %v77 = vld [vmem:[%s0 + $0x40] sm:$0xf]
  %v78 = vld [vmem:[%s0 + $0x44] sm:$0xf]
  %v79 = vld [vmem:[%s0 + $0x48] sm:$0xf]
  %v80 = vld [vmem:[%s0 + $0x4c] sm:$0xf]
  %v81 = vld [vmem:[%s0 + $0x50] sm:$0xf]
  %v82 = vld [vmem:[%s0 + $0x54] sm:$0xf]
  %v83 = vld [vmem:[%s0 + $0x58] sm:$0xf]
  %v84 = vld [vmem:[%s0 + $0x5c] sm:$0xf]
  %v85 = vld [vmem:[%s0 + $0x60] sm:$0xf]
  %v86 = vld [vmem:[%s0 + $0x64] sm:$0xf]
  %v87 = vld [vmem:[%s0 + $0x68] sm:$0xf]
  %v88 = vld [vmem:[%s0 + $0x6c] sm:$0xf]
  %v89 = vld [vmem:[%s0 + $0x70] sm:$0xf]
  %v90 = vld [vmem:[%s0 + $0x74] sm:$0xf]
  %v91 = vld [vmem:[%s0 + $0x78] sm:$0xf]
  %v92 = vld [vmem:[%s0 + $0x7c] sm:$0xf]
  %v93 = vld [vmem:[%s0 + $0x80] sm:$0xf]
  %v94 = vld [vmem:[%s0 + $0x84] sm:$0xf]
  %v95 = vld [vmem:[%s0 + $0x88] sm:$0xf]
  %v96 = vld [vmem:[%s0 + $0x8c] sm:$0xf]
  %v97 = vld [vmem:[%s0 + $0x90] sm:$0xf]
  %v98 = vld [vmem:[%s0 + $0x94] sm:$0xf]
  %v99 = vld [vmem:[%s0 + $0x98] sm:$0xf]
  %v100 = vld [vmem:[%s0 + $0x9c] sm:$0xf]
  %v101 = vld [vmem:[%s0 + $0xa0] sm:$0xf]
  %v102 = vld [vmem:[%s0 + $0xa4] sm:$0xf]
  %v103 = vld [vmem:[%s0 + $0xa8] sm:$0xf]
  %v104 = vld [vmem:[%s0 + $0xac] sm:$0xf]
  %v105 = vld [vmem:[%s0 + $0xb0] sm:$0xf]
  %v106 = vld [vmem:[%s0 + $0xb4] sm:$0xf]
  %v107 = vld [vmem:[%s0 + $0xb8] sm:$0xf]
  %v108 = vld [vmem:[%s0 + $0xbc] sm:$0xf]
  %v109 = vld [vmem:[%s0 + $0xc0] sm:$0xf]
  %v110 = vld [vmem:[%s0 + $0xc4] sm:$0xf]
  %v111 = vld [vmem:[%s0 + $0xc8] sm:$0xf]
  %v112 = vld [vmem:[%s0 + $0xcc] sm:$0xf]
  %v113 = vld [vmem:[%s0 + $0xd0] sm:$0xf]
  %v114 = vld [vmem:[%s0 + $0xd4] sm:$0xf]
  %v115 = vld [vmem:[%s0 + $0xd8] sm:$0xf]
  %v116 = vld [vmem:[%s0 + $0xdc] sm:$0xf]
  %v117 = vld [vmem:[%s0 + $0xe0] sm:$0xf]
  %v118 = vld [vmem:[%s0 + $0xe4] sm:$0xf]
  %v119 = vld [vmem:[%s0 + $0xe8] sm:$0xf]
  %v120 = vld [vmem:[%s0 + $0xec] sm:$0xf]
  %v121 = vld [vmem:[%s0 + $0xf0] sm:$0xf]
  %v122 = vld [vmem:[%s0 + $0xf4] sm:$0xf]
  %v123 = vld [vmem:[%s0 + $0xf8] sm:$0xf]
  %v124 = vld [vmem:[%s0 + $0xfc] sm:$0xf]
  %v125 = vld [vmem:[%s0 + $0x100] sm:$0xf]
  %v126 = vld [vmem:[%s0 + $0x104] sm:$0xf]
  %v127 = vld [vmem:[%s0 + $0x108] sm:$0xf]
  %v128 = vld [vmem:[%s0 + $0x10c] sm:$0xf]
  %v129 = vld [vmem:[%s0 + $0x110] sm:$0xf]
  %v130 = vld [vmem:[%s0 + $0x114] sm:$0xf]
  %v131 = vld [vmem:[%s0 + $0x118] sm:$0xf]
  %v132 = vld [vmem:[%s0 + $0x11c] sm:$0xf]
  %v133 = vld [vmem:[%s0 + $0x120] sm:$0xf]
  %v134 = vld [vmem:[%s0 + $0x124] sm:$0xf]
  %v135 = vld [vmem:[%s0 + $0x128] sm:$0xf]
  %v136 = vld [vmem:[%s0 + $0x12c] sm:$0xf]
  %v137 = vld [vmem:[%s0 + $0x130] sm:$0xf]
  %v138 = vld [vmem:[%s0 + $0x134] sm:$0xf]
  %v139 = vld [vmem:[%s0 + $0x138] sm:$0xf]
  %v140 = vld [vmem:[%s0 + $0x13c] sm:$0xf]
  %v141 = vld [vmem:[%s0 + $0x140] sm:$0xf]
  %v142 = vld [vmem:[%s0 + $0x144] sm:$0xf]
  %v143 = vld [vmem:[%s0 + $0x148] sm:$0xf]
  %v144 = vld [vmem:[%s0 + $0x14c] sm:$0xf]
  %v145 = vld [vmem:[%s0 + $0x150] sm:$0xf]
  %v146 = vld [vmem:[%s0 + $0x154] sm:$0xf]
  %v147 = vld [vmem:[%s0 + $0x158] sm:$0xf]
  %v148 = vld [vmem:[%s0 + $0x15c] sm:$0xf]
  %v149 = vld [vmem:[%s0 + $0x160] sm:$0xf]
  %v150 = vld [vmem:[%s0 + $0x164] sm:$0xf]
  %v151 = vld [vmem:[%s0 + $0x168] sm:$0xf]
  %v152 = vld [vmem:[%s0 + $0x16c] sm:$0xf]
  %v153 = vld [vmem:[%s0 + $0x170] sm:$0xf]
  %v154 = vld [vmem:[%s0 + $0x174] sm:$0xf]
  %v155 = vld [vmem:[%s0 + $0x178] sm:$0xf]
  %v156 = vld [vmem:[%s0 + $0x17c] sm:$0xf]
  %v157 = vld [vmem:[%s0 + $0x180] sm:$0xf]
  %v158 = vld [vmem:[%s0 + $0x184] sm:$0xf]
  %v159 = vld [vmem:[%s0 + $0x188] sm:$0xf]
  %v160 = vld [vmem:[%s0 + $0x18c] sm:$0xf]
  %v161 = vld [vmem:[%s0 + $0x190] sm:$0xf]
  %v162 = vld [vmem:[%s0 + $0x194] sm:$0xf]
  %v163 = vld [vmem:[%s0 + $0x198] sm:$0xf]
  %v164 = vld [vmem:[%s0 + $0x19c] sm:$0xf]
  %v165 = vld [vmem:[%s0 + $0x1a0] sm:$0xf]
  %v166 = vld [vmem:[%s0 + $0x1a4] sm:$0xf]
  %v167 = vld [vmem:[%s0 + $0x1a8] sm:$0xf]
  %v168 = vld [vmem:[%s0 + $0x1ac] sm:$0xf]
  %v169 = vld [vmem:[%s0 + $0x1b0] sm:$0xf]
  %v170 = vld [vmem:[%s0 + $0x1b4] sm:$0xf]
  %v171 = vld [vmem:[%s0 + $0x1b8] sm:$0xf]
  %v172 = vld [vmem:[%s0 + $0x1bc] sm:$0xf]
  %v173 = vld [vmem:[%s0 + $0x1c0] sm:$0xf]
  %v174 = vld [vmem:[%s0 + $0x1c4] sm:$0xf]
  %v175 = vld [vmem:[%s0 + $0x1c8] sm:$0xf]
  %v176 = vld [vmem:[%s0 + $0x1cc] sm:$0xf]
  %v177 = vld [vmem:[%s0 + $0x1d0] sm:$0xf]
  %v178 = vld [vmem:[%s0 + $0x1d4] sm:$0xf]
  %v179 = vld [vmem:[%s0 + $0x1d8] sm:$0xf]
  %v180 = vld [vmem:[%s0 + $0x1dc] sm:$0xf]
  %v181 = vld [vmem:[%s0 + $0x1e0] sm:$0xf]
  %v182 = vld [vmem:[%s0 + $0x1e4] sm:$0xf]
  %v183 = vld [vmem:[%s0 + $0x1e8] sm:$0xf]
  %v184 = vld [vmem:[%s0 + $0x1ec] sm:$0xf]
  %v185 = vld [vmem:[%s0 + $0x1f0] sm:$0xf]
  %v186 = vld [vmem:[%s0 + $0x1f4] sm:$0xf]
  %v187 = vld [vmem:[%s0 + $0x1f8] sm:$0xf]
  %v188 = vld [vmem:[%s0 + $0x1fc] sm:$0xf]
  %v189 = vld [vmem:[%s1] sm:$0xf]
  %v190 = vld [vmem:[%s1 + $0x4] sm:$0xf]
  %v191 = vld [vmem:[%s1 + $0x8] sm:$0xf]
  %v192 = vld [vmem:[%s1 + $0xc] sm:$0xf]
  %v193 = vld [vmem:[%s1 + $0x10] sm:$0xf]
  %v194 = vld [vmem:[%s1 + $0x14] sm:$0xf]
  %v195 = vld [vmem:[%s1 + $0x18] sm:$0xf]
  %v196 = vld [vmem:[%s1 + $0x1c] sm:$0xf]
  %v197 = vld [vmem:[%s1 + $0x20] sm:$0xf]
  %v198 = vld [vmem:[%s1 + $0x24] sm:$0xf]
  %v199 = vld [vmem:[%s1 + $0x28] sm:$0xf]
  %v200 = vld [vmem:[%s1 + $0x2c] sm:$0xf]
  %v201 = vld [vmem:[%s1 + $0x30] sm:$0xf]
  %v202 = vld [vmem:[%s1 + $0x34] sm:$0xf]
  %v203 = vld [vmem:[%s1 + $0x38] sm:$0xf]
  %v204 = vld [vmem:[%s1 + $0x3c] sm:$0xf]
  %v205 = vld [vmem:[%s1 + $0x40] sm:$0xf]
  %v206 = vld [vmem:[%s1 + $0x44] sm:$0xf]
  %v207 = vld [vmem:[%s1 + $0x48] sm:$0xf]
  %v208 = vld [vmem:[%s1 + $0x4c] sm:$0xf]
  %v209 = vld [vmem:[%s1 + $0x50] sm:$0xf]
  %v210 = vld [vmem:[%s1 + $0x54] sm:$0xf]
  %v211 = vld [vmem:[%s1 + $0x58] sm:$0xf]
  %v212 = vld [vmem:[%s1 + $0x5c] sm:$0xf]
  %v213 = vld [vmem:[%s1 + $0x60] sm:$0xf]
  %v214 = vld [vmem:[%s1 + $0x64] sm:$0xf]
  %v215 = vld [vmem:[%s1 + $0x68] sm:$0xf]
  %v216 = vld [vmem:[%s1 + $0x6c] sm:$0xf]
  %v217 = vld [vmem:[%s1 + $0x70] sm:$0xf]
  %v218 = vld [vmem:[%s1 + $0x74] sm:$0xf]
  %v219 = vld [vmem:[%s1 + $0x78] sm:$0xf]
  %v220 = vld [vmem:[%s1 + $0x7c] sm:$0xf]
  %v221 = vld [vmem:[%s1 + $0x80] sm:$0xf]
  %v222 = vld [vmem:[%s1 + $0x84] sm:$0xf]
  %v223 = vld [vmem:[%s1 + $0x88] sm:$0xf]
  %v224 = vld [vmem:[%s1 + $0x8c] sm:$0xf]
  %v225 = vld [vmem:[%s1 + $0x90] sm:$0xf]
  %v226 = vld [vmem:[%s1 + $0x94] sm:$0xf]
  %v227 = vld [vmem:[%s1 + $0x98] sm:$0xf]
  %v228 = vld [vmem:[%s1 + $0x9c] sm:$0xf]
  %v229 = vld [vmem:[%s1 + $0xa0] sm:$0xf]
  %v230 = vld [vmem:[%s1 + $0xa4] sm:$0xf]
  %v231 = vld [vmem:[%s1 + $0xa8] sm:$0xf]
  %v232 = vld [vmem:[%s1 + $0xac] sm:$0xf]
  %v233 = vld [vmem:[%s1 + $0xb0] sm:$0xf]
  %v234 = vld [vmem:[%s1 + $0xb4] sm:$0xf]
  %v235 = vld [vmem:[%s1 + $0xb8] sm:$0xf]
  %v236 = vld [vmem:[%s1 + $0xbc] sm:$0xf]
  %v237 = vld [vmem:[%s1 + $0xc0] sm:$0xf]
  %v238 = vld [vmem:[%s1 + $0xc4] sm:$0xf]
  %v239 = vld [vmem:[%s1 + $0xc8] sm:$0xf]
  %v240 = vld [vmem:[%s1 + $0xcc] sm:$0xf]
  %v241 = vld [vmem:[%s1 + $0xd0] sm:$0xf]
  %v242 = vld [vmem:[%s1 + $0xd4] sm:$0xf]
  %v243 = vld [vmem:[%s1 + $0xd8] sm:$0xf]
  %v244 = vld [vmem:[%s1 + $0xdc] sm:$0xf]
  %v245 = vld [vmem:[%s1 + $0xe0] sm:$0xf]
  %v246 = vld [vmem:[%s1 + $0xe4] sm:$0xf]
  %v247 = vld [vmem:[%s1 + $0xe8] sm:$0xf]
  %v248 = vld [vmem:[%s1 + $0xec] sm:$0xf]
  %v249 = vld [vmem:[%s1 + $0xf0] sm:$0xf]
  %v250 = vld [vmem:[%s1 + $0xf4] sm:$0xf]
  %v251 = vld [vmem:[%s1 + $0xf8] sm:$0xf]
  %v252 = vld [vmem:[%s1 + $0xfc] sm:$0xf]
  %v253 = vld [vmem:[%s1 + $0x100] sm:$0xf]
  %v254 = vld [vmem:[%s1 + $0x104] sm:$0xf]
  %v255 = vld [vmem:[%s1 + $0x108] sm:$0xf]
  %v256 = vld [vmem:[%s1 + $0x10c] sm:$0xf]
  %v257 = vld [vmem:[%s1 + $0x110] sm:$0xf]
  %v258 = vld [vmem:[%s1 + $0x114] sm:$0xf]
  %v259 = vld [vmem:[%s1 + $0x118] sm:$0xf]
  %v260 = vld [vmem:[%s1 + $0x11c] sm:$0xf]
  %v261 = vld [vmem:[%s1 + $0x120] sm:$0xf]
  %v262 = vld [vmem:[%s1 + $0x124] sm:$0xf]
  %v263 = vld [vmem:[%s1 + $0x128] sm:$0xf]
  %v264 = vld [vmem:[%s1 + $0x12c] sm:$0xf]
  %v265 = vld [vmem:[%s1 + $0x130] sm:$0xf]
  %v266 = vld [vmem:[%s1 + $0x134] sm:$0xf]
  %v267 = vld [vmem:[%s1 + $0x138] sm:$0xf]
  %v268 = vld [vmem:[%s1 + $0x13c] sm:$0xf]
  %v269 = vld [vmem:[%s1 + $0x140] sm:$0xf]
  %v270 = vld [vmem:[%s1 + $0x144] sm:$0xf]
  %v271 = vld [vmem:[%s1 + $0x148] sm:$0xf]
  %v272 = vld [vmem:[%s1 + $0x14c] sm:$0xf]
  %v273 = vld [vmem:[%s1 + $0x150] sm:$0xf]
  %v274 = vld [vmem:[%s1 + $0x154] sm:$0xf]
  %v275 = vld [vmem:[%s1 + $0x158] sm:$0xf]
  %v276 = vld [vmem:[%s1 + $0x15c] sm:$0xf]
  %v277 = vld [vmem:[%s1 + $0x160] sm:$0xf]
  %v278 = vld [vmem:[%s1 + $0x164] sm:$0xf]
  %v279 = vld [vmem:[%s1 + $0x168] sm:$0xf]
  %v280 = vld [vmem:[%s1 + $0x16c] sm:$0xf]
  %v281 = vld [vmem:[%s1 + $0x170] sm:$0xf]
  %v282 = vld [vmem:[%s1 + $0x174] sm:$0xf]
  %v283 = vld [vmem:[%s1 + $0x178] sm:$0xf]
  %v284 = vld [vmem:[%s1 + $0x17c] sm:$0xf]
  %v285 = vld [vmem:[%s1 + $0x180] sm:$0xf]
  %v286 = vld [vmem:[%s1 + $0x184] sm:$0xf]
  %v287 = vld [vmem:[%s1 + $0x188] sm:$0xf]
  %v288 = vld [vmem:[%s1 + $0x18c] sm:$0xf]
  %v289 = vld [vmem:[%s1 + $0x190] sm:$0xf]
  %v290 = vld [vmem:[%s1 + $0x194] sm:$0xf]
  %v291 = vld [vmem:[%s1 + $0x198] sm:$0xf]
  %v292 = vld [vmem:[%s1 + $0x19c] sm:$0xf]
  %v293 = vld [vmem:[%s1 + $0x1a0] sm:$0xf]
  %v294 = vld [vmem:[%s1 + $0x1a4] sm:$0xf]
  %v295 = vld [vmem:[%s1 + $0x1a8] sm:$0xf]
  %v296 = vld [vmem:[%s1 + $0x1ac] sm:$0xf]
  %v297 = vld [vmem:[%s1 + $0x1b0] sm:$0xf]
  %v298 = vld [vmem:[%s1 + $0x1b4] sm:$0xf]
  %v299 = vld [vmem:[%s1 + $0x1b8] sm:$0xf]
  %v300 = vld [vmem:[%s1 + $0x1bc] sm:$0xf]
  %v301 = vld [vmem:[%s1 + $0x1c0] sm:$0xf]
  %v302 = vld [vmem:[%s1 + $0x1c4] sm:$0xf]
  %v303 = vld [vmem:[%s1 + $0x1c8] sm:$0xf]
  %v304 = vld [vmem:[%s1 + $0x1cc] sm:$0xf]
  %v305 = vld [vmem:[%s1 + $0x1d0] sm:$0xf]
  %v306 = vld [vmem:[%s1 + $0x1d4] sm:$0xf]
  %v307 = vld [vmem:[%s1 + $0x1d8] sm:$0xf]
  %v308 = vld [vmem:[%s1 + $0x1dc] sm:$0xf]
  %v309 = vld [vmem:[%s1 + $0x1e0] sm:$0xf]
  %v310 = vld [vmem:[%s1 + $0x1e4] sm:$0xf]
  %v311 = vld [vmem:[%s1 + $0x1e8] sm:$0xf]
  %v312 = vld [vmem:[%s1 + $0x1ec] sm:$0xf]
  %v313 = vld [vmem:[%s1 + $0x1f0] sm:$0xf]
  %v314 = vld [vmem:[%s1 + $0x1f4] sm:$0xf]
  %v315 = vld [vmem:[%s1 + $0x1f8] sm:$0xf]
  %v316 = vld [vmem:[%s1 + $0x1fc] sm:$0xf]
  %v445 = vunpack.c.l.b16 %v189
  %v446 = vunpack.c.l.b16 %v190
  %v447 = vunpack.c.l.b16 %v191
  %v448 = vunpack.c.l.b16 %v192
  %v449 = vunpack.c.l.b16 %v193
  %v450 = vunpack.c.l.b16 %v194
  %v451 = vunpack.c.l.b16 %v195
  %v452 = vunpack.c.l.b16 %v196
  %v453 = vunpack.c.l.b16 %v197
  %v454 = vunpack.c.l.b16 %v198
  %v455 = vunpack.c.l.b16 %v199
  %v456 = vunpack.c.l.b16 %v200
  %v457 = vunpack.c.l.b16 %v201
  %v458 = vunpack.c.l.b16 %v202
  %v459 = vunpack.c.l.b16 %v203
  %v460 = vunpack.c.l.b16 %v204
  %v461 = vunpack.c.l.b16 %v205
  %v462 = vunpack.c.l.b16 %v206
  %v463 = vunpack.c.l.b16 %v207
  %v464 = vunpack.c.l.b16 %v208
  %v465 = vunpack.c.l.b16 %v209
  %v466 = vunpack.c.l.b16 %v210
  %v467 = vunpack.c.l.b16 %v211
  %v468 = vunpack.c.l.b16 %v212
  %v469 = vunpack.c.l.b16 %v213
  %v470 = vunpack.c.l.b16 %v214
  %v471 = vunpack.c.l.b16 %v215
  %v472 = vunpack.c.l.b16 %v216
  %v473 = vunpack.c.l.b16 %v217
  %v474 = vunpack.c.l.b16 %v218
  %v475 = vunpack.c.l.b16 %v219
  %v476 = vunpack.c.l.b16 %v220
  %v477 = vunpack.c.l.b16 %v221
  %v478 = vunpack.c.l.b16 %v222
  %v479 = vunpack.c.l.b16 %v223
  %v480 = vunpack.c.l.b16 %v224
  %v481 = vunpack.c.l.b16 %v225
  %v482 = vunpack.c.l.b16 %v226
  %v483 = vunpack.c.l.b16 %v227
  %v484 = vunpack.c.l.b16 %v228
  %v485 = vunpack.c.l.b16 %v229
  %v486 = vunpack.c.l.b16 %v230
  %v487 = vunpack.c.l.b16 %v231
  %v488 = vunpack.c.l.b16 %v232
  %v489 = vunpack.c.l.b16 %v233
  %v490 = vunpack.c.l.b16 %v234
  %v491 = vunpack.c.l.b16 %v235
  %v492 = vunpack.c.l.b16 %v236
  %v493 = vunpack.c.l.b16 %v237
  %v494 = vunpack.c.l.b16 %v238
  %v495 = vunpack.c.l.b16 %v239
  %v496 = vunpack.c.l.b16 %v240
  %v497 = vunpack.c.l.b16 %v241
  %v498 = vunpack.c.l.b16 %v242
  %v499 = vunpack.c.l.b16 %v243
  %v500 = vunpack.c.l.b16 %v244
  %v501 = vunpack.c.l.b16 %v245
  %v502 = vunpack.c.l.b16 %v246
  %v503 = vunpack.c.l.b16 %v247
  %v504 = vunpack.c.l.b16 %v248
  %v505 = vunpack.c.l.b16 %v249
  %v506 = vunpack.c.l.b16 %v250
  %v507 = vunpack.c.l.b16 %v251
  %v508 = vunpack.c.l.b16 %v252
  %v509 = vunpack.c.l.b16 %v253
  %v510 = vunpack.c.l.b16 %v254
  %v511 = vunpack.c.l.b16 %v255
  %v512 = vunpack.c.l.b16 %v256
  %v513 = vunpack.c.l.b16 %v257
  %v514 = vunpack.c.l.b16 %v258
  %v515 = vunpack.c.l.b16 %v259
  %v516 = vunpack.c.l.b16 %v260
  %v517 = vunpack.c.l.b16 %v261
  %v518 = vunpack.c.l.b16 %v262
  %v519 = vunpack.c.l.b16 %v263
  %v520 = vunpack.c.l.b16 %v264
  %v521 = vunpack.c.l.b16 %v265
  %v522 = vunpack.c.l.b16 %v266
  %v523 = vunpack.c.l.b16 %v267
  %v524 = vunpack.c.l.b16 %v268
  %v525 = vunpack.c.l.b16 %v269
  %v526 = vunpack.c.l.b16 %v270
  %v527 = vunpack.c.l.b16 %v271
  %v528 = vunpack.c.l.b16 %v272
  %v529 = vunpack.c.l.b16 %v273
  %v530 = vunpack.c.l.b16 %v274
  %v531 = vunpack.c.l.b16 %v275
  %v532 = vunpack.c.l.b16 %v276
  %v533 = vunpack.c.l.b16 %v277
  %v534 = vunpack.c.l.b16 %v278
  %v535 = vunpack.c.l.b16 %v279
  %v536 = vunpack.c.l.b16 %v280
  %v537 = vunpack.c.l.b16 %v281
  %v538 = vunpack.c.l.b16 %v282
  %v539 = vunpack.c.l.b16 %v283
  %v540 = vunpack.c.l.b16 %v284
  %v541 = vunpack.c.l.b16 %v285
  %v542 = vunpack.c.l.b16 %v286
  %v543 = vunpack.c.l.b16 %v287
  %v544 = vunpack.c.l.b16 %v288
  %v545 = vunpack.c.l.b16 %v289
  %v546 = vunpack.c.l.b16 %v290
  %v547 = vunpack.c.l.b16 %v291
  %v548 = vunpack.c.l.b16 %v292
  %v549 = vunpack.c.l.b16 %v293
  %v550 = vunpack.c.l.b16 %v294
  %v551 = vunpack.c.l.b16 %v295
  %v552 = vunpack.c.l.b16 %v296
  %v553 = vunpack.c.l.b16 %v297
  %v554 = vunpack.c.l.b16 %v298
  %v555 = vunpack.c.l.b16 %v299
  %v556 = vunpack.c.l.b16 %v300
  %v557 = vunpack.c.l.b16 %v301
  %v558 = vunpack.c.l.b16 %v302
  %v559 = vunpack.c.l.b16 %v303
  %v560 = vunpack.c.l.b16 %v304
  %v561 = vunpack.c.l.b16 %v305
  %v562 = vunpack.c.l.b16 %v306
  %v563 = vunpack.c.l.b16 %v307
  %v564 = vunpack.c.l.b16 %v308
  %v565 = vunpack.c.l.b16 %v309
  %v566 = vunpack.c.l.b16 %v310
  %v567 = vunpack.c.l.b16 %v311
  %v568 = vunpack.c.l.b16 %v312
  %v569 = vunpack.c.l.b16 %v313
  %v570 = vunpack.c.l.b16 %v314
  %v571 = vunpack.c.l.b16 %v315
  %v572 = vunpack.c.l.b16 %v316
  %v573 = vpack.c.b16 %v446, %v445
  %v574 = vpack.c.b16 %v448, %v447
  %v575 = vpack.c.b16 %v450, %v449
  %v576 = vpack.c.b16 %v452, %v451
  %v577 = vpack.c.b16 %v454, %v453
  %v578 = vpack.c.b16 %v456, %v455
  %v579 = vpack.c.b16 %v458, %v457
  %v580 = vpack.c.b16 %v460, %v459
  %v581 = vpack.c.b16 %v462, %v461
  %v582 = vpack.c.b16 %v464, %v463
  %v583 = vpack.c.b16 %v466, %v465
  %v584 = vpack.c.b16 %v468, %v467
  %v585 = vpack.c.b16 %v470, %v469
  %v586 = vpack.c.b16 %v472, %v471
  %v587 = vpack.c.b16 %v474, %v473
  %v588 = vpack.c.b16 %v476, %v475
  %v589 = vpack.c.b16 %v478, %v477
  %v590 = vpack.c.b16 %v480, %v479
  %v591 = vpack.c.b16 %v482, %v481
  %v592 = vpack.c.b16 %v484, %v483
  %v593 = vpack.c.b16 %v486, %v485
  %v594 = vpack.c.b16 %v488, %v487
  %v595 = vpack.c.b16 %v490, %v489
  %v596 = vpack.c.b16 %v492, %v491
  %v597 = vpack.c.b16 %v494, %v493
  %v598 = vpack.c.b16 %v496, %v495
  %v599 = vpack.c.b16 %v498, %v497
  %v600 = vpack.c.b16 %v500, %v499
  %v601 = vpack.c.b16 %v502, %v501
  %v602 = vpack.c.b16 %v504, %v503
  %v603 = vpack.c.b16 %v506, %v505
  %v604 = vpack.c.b16 %v508, %v507
  %v605 = vpack.c.b16 %v510, %v509
  %v606 = vpack.c.b16 %v512, %v511
  %v607 = vpack.c.b16 %v514, %v513
  %v608 = vpack.c.b16 %v516, %v515
  %v609 = vpack.c.b16 %v518, %v517
  %v610 = vpack.c.b16 %v520, %v519
  %v611 = vpack.c.b16 %v522, %v521
  %v612 = vpack.c.b16 %v524, %v523
  %v613 = vpack.c.b16 %v526, %v525
  %v614 = vpack.c.b16 %v528, %v527
  %v615 = vpack.c.b16 %v530, %v529
  %v616 = vpack.c.b16 %v532, %v531
  %v617 = vpack.c.b16 %v534, %v533
  %v618 = vpack.c.b16 %v536, %v535
  %v619 = vpack.c.b16 %v538, %v537
  %v620 = vpack.c.b16 %v540, %v539
  %v621 = vpack.c.b16 %v542, %v541
  %v622 = vpack.c.b16 %v544, %v543
  %v623 = vpack.c.b16 %v546, %v545
  %v624 = vpack.c.b16 %v548, %v547
  %v625 = vpack.c.b16 %v550, %v549
  %v626 = vpack.c.b16 %v552, %v551
  %v627 = vpack.c.b16 %v554, %v553
  %v628 = vpack.c.b16 %v556, %v555
  %v629 = vpack.c.b16 %v558, %v557
  %v630 = vpack.c.b16 %v560, %v559
  %v631 = vpack.c.b16 %v562, %v561
  %v632 = vpack.c.b16 %v564, %v563
  %v633 = vpack.c.b16 %v566, %v565
  %v634 = vpack.c.b16 %v568, %v567
  %v635 = vpack.c.b16 %v570, %v569
  %v636 = vpack.c.b16 %v572, %v571
  %vm637 = vcmask 23552
  %v639 = vsel %vm637, %v573, 0
  %v642 = vsel %vm637, %v574, 0
  %v645 = vsel %vm637, %v575, 0
  %v648 = vsel %vm637, %v576, 0
  %v651 = vsel %vm637, %v577, 0
  %v654 = vsel %vm637, %v578, 0
  %v657 = vsel %vm637, %v579, 0
  %v660 = vsel %vm637, %v580, 0
  %v663 = vsel %vm637, %v581, 0
  %v666 = vsel %vm637, %v582, 0
  %v669 = vsel %vm637, %v583, 0
  %v672 = vsel %vm637, %v584, 0
  %v675 = vsel %vm637, %v585, 0
  %v678 = vsel %vm637, %v586, 0
  %v681 = vsel %vm637, %v587, 0
  %v684 = vsel %vm637, %v588, 0
  %v687 = vsel %vm637, %v589, 0
  %v690 = vsel %vm637, %v590, 0
  %v693 = vsel %vm637, %v591, 0
  %v696 = vsel %vm637, %v592, 0
  %v699 = vsel %vm637, %v593, 0
  %v702 = vsel %vm637, %v594, 0
  %v705 = vsel %vm637, %v595, 0
  %v708 = vsel %vm637, %v596, 0
  %v711 = vsel %vm637, %v597, 0
  %v714 = vsel %vm637, %v598, 0
  %v717 = vsel %vm637, %v599, 0
  %v720 = vsel %vm637, %v600, 0
  %v723 = vsel %vm637, %v601, 0
  %v726 = vsel %vm637, %v602, 0
  %v729 = vsel %vm637, %v603, 0
  %v732 = vsel %vm637, %v604, 0
  %v735 = vsel %vm637, %v605, 0
  %v738 = vsel %vm637, %v606, 0
  %v741 = vsel %vm637, %v607, 0
  %v744 = vsel %vm637, %v608, 0
  %v747 = vsel %vm637, %v609, 0
  %v750 = vsel %vm637, %v610, 0
  %v753 = vsel %vm637, %v611, 0
  %v756 = vsel %vm637, %v612, 0
  %v759 = vsel %vm637, %v613, 0
  %v762 = vsel %vm637, %v614, 0
  %v765 = vsel %vm637, %v615, 0
  %v768 = vsel %vm637, %v616, 0
  %v771 = vsel %vm637, %v617, 0
  %v774 = vsel %vm637, %v618, 0
  %v777 = vsel %vm637, %v619, 0
  %v780 = vsel %vm637, %v620, 0
  %v783 = vsel %vm637, %v621, 0
  %v786 = vsel %vm637, %v622, 0
  %v789 = vsel %vm637, %v623, 0
  %v792 = vsel %vm637, %v624, 0
  %v795 = vsel %vm637, %v625, 0
  %v798 = vsel %vm637, %v626, 0
  %v801 = vsel %vm637, %v627, 0
  %v804 = vsel %vm637, %v628, 0
  %v807 = vsel %vm637, %v629, 0
  %v810 = vsel %vm637, %v630, 0
  %v813 = vsel %vm637, %v631, 0
  %v816 = vsel %vm637, %v632, 0
  %v819 = vsel %vm637, %v633, 0
  %v822 = vsel %vm637, %v634, 0
  %v825 = vsel %vm637, %v635, 0
  %v828 = vsel %vm637, %v636, 0
  %vm830 = vcmask 1040384
  %vm831 = vcmask 1041408
  %v832 = vsel %vm830, 4294967295, 65535
  %v833 = vsel %vm831, %v832, 0
  %v835 = vand.u32 %v37, %v833
  %837 = vmatprep.subr.bf16.mxu0 0
  %838 = vmatpush1.bf16.msra.mxu0 %v835
  %839 = vmatprep.subr.bf16.mxu0 0
  %840 = vmatpush1.bf16.msra.mxu0 0
  %841 = vmatprep.subr.bf16.mxu0 0
  %842 = vmatpush1.bf16.msra.mxu0 0
  %843 = vmatprep.subr.bf16.mxu0 0
  %844 = vmatpush1.bf16.msra.mxu0 0
  %845 = vmatprep.subr.bf16.mxu0 0
  %846 = vmatpush1.bf16.msra.mxu0 0
  %847 = vmatprep.subr.bf16.mxu0 0
  %848 = vmatpush1.bf16.msra.mxu0 0
  %849 = vmatprep.subr.bf16.mxu0 0
  %850 = vmatpush1.bf16.msra.mxu0 0
  %851 = vmatprep.subr.bf16.mxu0 0
  %852 = vmatpush1.bf16.msra.mxu0 0
  %853 = vmatprep.subr.bf16.mxu0 0
  %854 = vmatpush1.bf16.msra.mxu0 0
  %855 = vmatprep.subr.bf16.mxu0 0
  %856 = vmatpush1.bf16.msra.mxu0 0
  %857 = vmatprep.subr.bf16.mxu0 0
  %858 = vmatpush1.bf16.msra.mxu0 0
  %859 = vmatprep.subr.bf16.mxu0 0
  %860 = vmatpush1.bf16.msra.mxu0 0
  %861 = vmatprep.subr.bf16.mxu0 0
  %862 = vmatpush1.bf16.msra.mxu0 0
  %863 = vmatprep.subr.bf16.mxu0 0
  %864 = vmatpush1.bf16.msra.mxu0 0
  %865 = vmatprep.subr.bf16.mxu0 0
  %866 = vmatpush1.bf16.msra.mxu0 0
  %867 = vmatprep.subr.bf16.mxu0 0
  %868 = vmatpush1.bf16.msra.mxu0 0
  %869 = vmatprep.mubr.bf16.mxu0 0
  %870 = vmatmul.mubr.bf16.gmra.mrb[0].mxu0 %v639
  %v871 = vpop.f32.mrb[0].mxu0
  %v872 = vadd.f32 0.0, %v871
  %v873 = vpop.f32.mrb[0].mxu0
  %v874 = vpop.f32.mrb[0].mxu0
  %v875 = vadd.f32 0.0, %v874
  %v876 = vpop.f32.mrb[0].mxu0
  %877 = vmatprep.mubr.bf16.mxu0 0
  %878 = vmatmul.mubr.bf16.gmra.mrb[0].mxu0 %v642
  %v879 = vpop.f32.mrb[0].mxu0
  %v880 = vadd.f32 0.0, %v879
  %v881 = vpop.f32.mrb[0].mxu0
  %v882 = vpop.f32.mrb[0].mxu0
  %v883 = vadd.f32 0.0, %v882
  %v884 = vpop.f32.mrb[0].mxu0
  %885 = vmatprep.mubr.bf16.mxu0 0
  %886 = vmatmul.mubr.bf16.gmra.mrb[0].mxu0 %v645
  %v887 = vpop.f32.mrb[0].mxu0
  %v888 = vadd.f32 0.0, %v887
  %v889 = vpop.f32.mrb[0].mxu0
  %v890 = vpop.f32.mrb[0].mxu0
  %v891 = vadd.f32 0.0, %v890
  %v892 = vpop.f32.mrb[0].mxu0
  %893 = vmatprep.mubr.bf16.mxu0 0
  %894 = vmatmul.mubr.bf16.gmra.mrb[0].mxu0 %v648
  %v895 = vpop.f32.mrb[0].mxu0
  %v896 = vadd.f32 0.0, %v895
  %v897 = vpop.f32.mrb[0].mxu0
  %v898 = vpop.f32.mrb[0].mxu0
  %v899 = vadd.f32 0.0, %v898
  %v900 = vpop.f32.mrb[0].mxu0
  %901 = vmatprep.mubr.bf16.mxu0 0
  %902 = vmatmul.mubr.bf16.gmra.mrb[0].mxu0 %v651
  %v903 = vpop.f32.mrb[0].mxu0
  %v904 = vadd.f32 0.0, %v903
  %v905 = vpop.f32.mrb[0].mxu0
  %v906 = vpop.f32.mrb[0].mxu0
  %v907 = vadd.f32 0.0, %v906
  %v908 = vpop.f32.mrb[0].mxu0
  %909 = vmatprep.mubr.bf16.mxu0 0
  %910 = vmatmul.mubr.bf16.gmra.mrb[0].mxu0 %v654
  %v911 = vpop.f32.mrb[0].mxu0
  %v912 = vadd.f32 0.0, %v911
  %v913 = vpop.f32.mrb[0].mxu0
  %v914 = vpop.f32.mrb[0].mxu0
  %v915 = vadd.f32 0.0, %v914
  %v916 = vpop.f32.mrb[0].mxu0
  %917 = vmatprep.mubr.bf16.mxu0 0
  %918 = vmatmul.mubr.bf16.gmra.mrb[0].mxu0 %v657
  %v919 = vpop.f32.mrb[0].mxu0
  %v920 = vadd.f32 0.0, %v919
  %v921 = vpop.f32.mrb[0].mxu0
  %v922 = vpop.f32.mrb[0].mxu0
  %v923 = vadd.f32 0.0, %v922
  %v924 = vpop.f32.mrb[0].mxu0
  %925 = vmatprep.mubr.bf16.mxu0 0
  %926 = vmatmul.mubr.bf16.gmra.mrb[0].mxu0 %v660
  %v927 = vpop.f32.mrb[0].mxu0
  %v928 = vadd.f32 0.0, %v927
  %v929 = vpop.f32.mrb[0].mxu0
  %v930 = vpop.f32.mrb[0].mxu0
  %v931 = vadd.f32 0.0, %v930
  %v932 = vpop.f32.mrb[0].mxu0
  %933 = vmatprep.mubr.bf16.mxu0 0
  %934 = vmatmul.mubr.bf16.gmra.mrb[0].mxu0 %v663
  %v935 = vpop.f32.mrb[0].mxu0
  %v936 = vadd.f32 0.0, %v935
  %v937 = vpop.f32.mrb[0].mxu0
  %v938 = vpop.f32.mrb[0].mxu0
  %v939 = vadd.f32 0.0, %v938
  %v940 = vpop.f32.mrb[0].mxu0
  %941 = vmatprep.mubr.bf16.mxu0 0
  %942 = vmatmul.mubr.bf16.gmra.mrb[0].mxu0 %v666
  %v943 = vpop.f32.mrb[0].mxu0
  %v944 = vadd.f32 0.0, %v943
  %v945 = vpop.f32.mrb[0].mxu0
  %v946 = vpop.f32.mrb[0].mxu0
  %v947 = vadd.f32 0.0, %v946
  %v948 = vpop.f32.mrb[0].mxu0
  %949 = vmatprep.mubr.bf16.mxu0 0
  %950 = vmatmul.mubr.bf16.gmra.mrb[0].mxu0 %v669
  %v951 = vpop.f32.mrb[0].mxu0
  %v952 = vadd.f32 0.0, %v951
  %v953 = vpop.f32.mrb[0].mxu0
  %v954 = vpop.f32.mrb[0].mxu0
  %v955 = vadd.f32 0.0, %v954
  %v956 = vpop.f32.mrb[0].mxu0
  %957 = vmatprep.mubr.bf16.mxu0 0
  %958 = vmatmul.mubr.bf16.gmra.mrb[0].mxu0 %v672
  %v959 = vpop.f32.mrb[0].mxu0
  %v960 = vadd.f32 0.0, %v959
  %v961 = vpop.f32.mrb[0].mxu0
  %v962 = vpop.f32.mrb[0].mxu0
  %v963 = vadd.f32 0.0, %v962
  %v964 = vpop.f32.mrb[0].mxu0
  %965 = vmatprep.mubr.bf16.mxu0 0
  %966 = vmatmul.mubr.bf16.gmra.mrb[0].mxu0 %v675
  %v967 = vpop.f32.mrb[0].mxu0
  %v968 = vadd.f32 0.0, %v967
  %v969 = vpop.f32.mrb[0].mxu0
  %v970 = vpop.f32.mrb[0].mxu0
  %v971 = vadd.f32 0.0, %v970
  %v972 = vpop.f32.mrb[0].mxu0
  %973 = vmatprep.mubr.bf16.mxu0 0
  %974 = vmatmul.mubr.bf16.gmra.mrb[0].mxu0 %v678
  %v975 = vpop.f32.mrb[0].mxu0
  %v976 = vadd.f32 0.0, %v975
  %v977 = vpop.f32.mrb[0].mxu0
  %v978 = vpop.f32.mrb[0].mxu0
  %v979 = vadd.f32 0.0, %v978
  %v980 = vpop.f32.mrb[0].mxu0
  %981 = vmatprep.mubr.bf16.mxu0 0
  %982 = vmatmul.mubr.bf16.gmra.mrb[0].mxu0 %v681
  %v983 = vpop.f32.mrb[0].mxu0
  %v984 = vadd.f32 0.0, %v983
  %v985 = vpop.f32.mrb[0].mxu0
  %v986 = vpop.f32.mrb[0].mxu0
  %v987 = vadd.f32 0.0, %v986
  %v988 = vpop.f32.mrb[0].mxu0
  %989 = vmatprep.mubr.bf16.mxu0 0
  %990 = vmatmul.mubr.bf16.gmra.mrb[0].mxu0 %v684
  %v991 = vpop.f32.mrb[0].mxu0
  %v992 = vadd.f32 0.0, %v991
  %v993 = vpop.f32.mrb[0].mxu0
  %v994 = vpop.f32.mrb[0].mxu0
  %v995 = vadd.f32 0.0, %v994
  %v996 = vpop.f32.mrb[0].mxu0
  %997 = vmatprep.mubr.bf16.mxu0 0
  %998 = vmatmul.mubr.bf16.gmra.mrb[0].mxu0 %v687
  %v999 = vpop.f32.mrb[0].mxu0
  %v1000 = vadd.f32 0.0, %v999
  %v1001 = vpop.f32.mrb[0].mxu0
  %v1002 = vpop.f32.mrb[0].mxu0
  %v1003 = vadd.f32 0.0, %v1002
  %v1004 = vpop.f32.mrb[0].mxu0
  %1005 = vmatprep.mubr.bf16.mxu0 0
  %1006 = vmatmul.mubr.bf16.gmra.mrb[0].mxu0 %v690
  %v1007 = vpop.f32.mrb[0].mxu0
  %v1008 = vadd.f32 0.0, %v1007
  %v1009 = vpop.f32.mrb[0].mxu0
  %v1010 = vpop.f32.mrb[0].mxu0
  %v1011 = vadd.f32 0.0, %v1010
  %v1012 = vpop.f32.mrb[0].mxu0
  %1013 = vmatprep.mubr.bf16.mxu0 0
  %1014 = vmatmul.mubr.bf16.gmra.mrb[0].mxu0 %v693
  %v1015 = vpop.f32.mrb[0].mxu0
  %v1016 = vadd.f32 0.0, %v1015
  %v1017 = vpop.f32.mrb[0].mxu0
  %v1018 = vpop.f32.mrb[0].mxu0
  %v1019 = vadd.f32 0.0, %v1018
  %v1020 = vpop.f32.mrb[0].mxu0
  %1021 = vmatprep.mubr.bf16.mxu0 0
  %1022 = vmatmul.mubr.bf16.gmra.mrb[0].mxu0 %v696
  %v1023 = vpop.f32.mrb[0].mxu0
  %v1024 = vadd.f32 0.0, %v1023
  %v1025 = vpop.f32.mrb[0].mxu0
  %v1026 = vpop.f32.mrb[0].mxu0
  %v1027 = vadd.f32 0.0, %v1026
  %v1028 = vpop.f32.mrb[0].mxu0
  %1029 = vmatprep.mubr.bf16.mxu0 0
  %1030 = vmatmul.mubr.bf16.gmra.mrb[0].mxu0 %v699
  %v1031 = vpop.f32.mrb[0].mxu0
  %v1032 = vadd.f32 0.0, %v1031
  %v1033 = vpop.f32.mrb[0].mxu0
  %v1034 = vpop.f32.mrb[0].mxu0
  %v1035 = vadd.f32 0.0, %v1034
  %v1036 = vpop.f32.mrb[0].mxu0
  %1037 = vmatprep.mubr.bf16.mxu0 0
  %1038 = vmatmul.mubr.bf16.gmra.mrb[0].mxu0 %v702
  %v1039 = vpop.f32.mrb[0].mxu0
  %v1040 = vadd.f32 0.0, %v1039
  %v1041 = vpop.f32.mrb[0].mxu0
  %v1042 = vpop.f32.mrb[0].mxu0
  %v1043 = vadd.f32 0.0, %v1042
  %v1044 = vpop.f32.mrb[0].mxu0
  %1045 = vmatprep.mubr.bf16.mxu0 0
  %1046 = vmatmul.mubr.bf16.gmra.mrb[0].mxu0 %v705
  %v1047 = vpop.f32.mrb[0].mxu0
  %v1048 = vadd.f32 0.0, %v1047
  %v1049 = vpop.f32.mrb[0].mxu0
  %v1050 = vpop.f32.mrb[0].mxu0
  %v1051 = vadd.f32 0.0, %v1050
  %v1052 = vpop.f32.mrb[0].mxu0
  %1053 = vmatprep.mubr.bf16.mxu0 0
  %1054 = vmatmul.mubr.bf16.gmra.mrb[0].mxu0 %v708
  %v1055 = vpop.f32.mrb[0].mxu0
  %v1056 = vadd.f32 0.0, %v1055
  %v1057 = vpop.f32.mrb[0].mxu0
  %v1058 = vpop.f32.mrb[0].mxu0
  %v1059 = vadd.f32 0.0, %v1058
  %v1060 = vpop.f32.mrb[0].mxu0
  %1061 = vmatprep.mubr.bf16.mxu0 0
  %1062 = vmatmul.mubr.bf16.gmra.mrb[0].mxu0 %v711
  %v1063 = vpop.f32.mrb[0].mxu0
  %v1064 = vadd.f32 0.0, %v1063
  %v1065 = vpop.f32.mrb[0].mxu0
  %v1066 = vpop.f32.mrb[0].mxu0
  %v1067 = vadd.f32 0.0, %v1066
  %v1068 = vpop.f32.mrb[0].mxu0
  %1069 = vmatprep.mubr.bf16.mxu0 0
  %1070 = vmatmul.mubr.bf16.gmra.mrb[0].mxu0 %v714
  %v1071 = vpop.f32.mrb[0].mxu0
  %v1072 = vadd.f32 0.0, %v1071
  %v1073 = vpop.f32.mrb[0].mxu0
  %v1074 = vpop.f32.mrb[0].mxu0
  %v1075 = vadd.f32 0.0, %v1074
  %v1076 = vpop.f32.mrb[0].mxu0
  %1077 = vmatprep.mubr.bf16.mxu0 0
  %1078 = vmatmul.mubr.bf16.gmra.mrb[0].mxu0 %v717
  %v1079 = vpop.f32.mrb[0].mxu0
  %v1080 = vadd.f32 0.0, %v1079
  %v1081 = vpop.f32.mrb[0].mxu0
  %v1082 = vpop.f32.mrb[0].mxu0
  %v1083 = vadd.f32 0.0, %v1082
  %v1084 = vpop.f32.mrb[0].mxu0
  %1085 = vmatprep.mubr.bf16.mxu0 0
  %1086 = vmatmul.mubr.bf16.gmra.mrb[0].mxu0 %v720
  %v1087 = vpop.f32.mrb[0].mxu0
  %v1088 = vadd.f32 0.0, %v1087
  %v1089 = vpop.f32.mrb[0].mxu0
  %v1090 = vpop.f32.mrb[0].mxu0
  %v1091 = vadd.f32 0.0, %v1090
  %v1092 = vpop.f32.mrb[0].mxu0
  %1093 = vmatprep.mubr.bf16.mxu0 0
  %1094 = vmatmul.mubr.bf16.gmra.mrb[0].mxu0 %v723
  %v1095 = vpop.f32.mrb[0].mxu0
  %v1096 = vadd.f32 0.0, %v1095
  %v1097 = vpop.f32.mrb[0].mxu0
  %v1098 = vpop.f32.mrb[0].mxu0
  %v1099 = vadd.f32 0.0, %v1098
  %v1100 = vpop.f32.mrb[0].mxu0
  %1101 = vmatprep.mubr.bf16.mxu0 0
  %1102 = vmatmul.mubr.bf16.gmra.mrb[0].mxu0 %v726
  %v1103 = vpop.f32.mrb[0].mxu0
  %v1104 = vadd.f32 0.0, %v1103
  %v1105 = vpop.f32.mrb[0].mxu0
  %v1106 = vpop.f32.mrb[0].mxu0
  %v1107 = vadd.f32 0.0, %v1106
  %v1108 = vpop.f32.mrb[0].mxu0
  %1109 = vmatprep.mubr.bf16.mxu0 0
  %1110 = vmatmul.mubr.bf16.gmra.mrb[0].mxu0 %v729
  %v1111 = vpop.f32.mrb[0].mxu0
  %v1112 = vadd.f32 0.0, %v1111
  %v1113 = vpop.f32.mrb[0].mxu0
  %v1114 = vpop.f32.mrb[0].mxu0
  %v1115 = vadd.f32 0.0, %v1114
  %v1116 = vpop.f32.mrb[0].mxu0
  %1117 = vmatprep.mubr.bf16.mxu0 0
  %1118 = vmatmul.mubr.bf16.gmra.mrb[0].mxu0 %v732
  %v1119 = vpop.f32.mrb[0].mxu0
  %v1120 = vadd.f32 0.0, %v1119
  %v1121 = vpop.f32.mrb[0].mxu0
  %v1122 = vpop.f32.mrb[0].mxu0
  %v1123 = vadd.f32 0.0, %v1122
  %v1124 = vpop.f32.mrb[0].mxu0
  %1125 = vmatprep.mubr.bf16.mxu0 0
  %1126 = vmatmul.mubr.bf16.gmra.mrb[0].mxu0 %v735
  %v1127 = vpop.f32.mrb[0].mxu0
  %v1128 = vadd.f32 0.0, %v1127
  %v1129 = vpop.f32.mrb[0].mxu0
  %v1130 = vpop.f32.mrb[0].mxu0
  %v1131 = vadd.f32 0.0, %v1130
  %v1132 = vpop.f32.mrb[0].mxu0
  %1133 = vmatprep.mubr.bf16.mxu0 0
  %1134 = vmatmul.mubr.bf16.gmra.mrb[0].mxu0 %v738
  %v1135 = vpop.f32.mrb[0].mxu0
  %v1136 = vadd.f32 0.0, %v1135
  %v1137 = vpop.f32.mrb[0].mxu0
  %v1138 = vpop.f32.mrb[0].mxu0
  %v1139 = vadd.f32 0.0, %v1138
  %v1140 = vpop.f32.mrb[0].mxu0
  %1141 = vmatprep.mubr.bf16.mxu0 0
  %1142 = vmatmul.mubr.bf16.gmra.mrb[0].mxu0 %v741
  %v1143 = vpop.f32.mrb[0].mxu0
  %v1144 = vadd.f32 0.0, %v1143
  %v1145 = vpop.f32.mrb[0].mxu0
  %v1146 = vpop.f32.mrb[0].mxu0
  %v1147 = vadd.f32 0.0, %v1146
  %v1148 = vpop.f32.mrb[0].mxu0
  %1149 = vmatprep.mubr.bf16.mxu0 0
  %1150 = vmatmul.mubr.bf16.gmra.mrb[0].mxu0 %v744
  %v1151 = vpop.f32.mrb[0].mxu0
  %v1152 = vadd.f32 0.0, %v1151
  %v1153 = vpop.f32.mrb[0].mxu0
  %v1154 = vpop.f32.mrb[0].mxu0
  %v1155 = vadd.f32 0.0, %v1154
  %v1156 = vpop.f32.mrb[0].mxu0
  %1157 = vmatprep.mubr.bf16.mxu0 0
  %1158 = vmatmul.mubr.bf16.gmra.mrb[0].mxu0 %v747
  %v1159 = vpop.f32.mrb[0].mxu0
  %v1160 = vadd.f32 0.0, %v1159
  %v1161 = vpop.f32.mrb[0].mxu0
  %v1162 = vpop.f32.mrb[0].mxu0
  %v1163 = vadd.f32 0.0, %v1162
  %v1164 = vpop.f32.mrb[0].mxu0
  %1165 = vmatprep.mubr.bf16.mxu0 0
  %1166 = vmatmul.mubr.bf16.gmra.mrb[0].mxu0 %v750
  %v1167 = vpop.f32.mrb[0].mxu0
  %v1168 = vadd.f32 0.0, %v1167
  %v1169 = vpop.f32.mrb[0].mxu0
  %v1170 = vpop.f32.mrb[0].mxu0
  %v1171 = vadd.f32 0.0, %v1170
  %v1172 = vpop.f32.mrb[0].mxu0
  %1173 = vmatprep.mubr.bf16.mxu0 0
  %1174 = vmatmul.mubr.bf16.gmra.mrb[0].mxu0 %v753
  %v1175 = vpop.f32.mrb[0].mxu0
  %v1176 = vadd.f32 0.0, %v1175
  %v1177 = vpop.f32.mrb[0].mxu0
  %v1178 = vpop.f32.mrb[0].mxu0
  %v1179 = vadd.f32 0.0, %v1178
  %v1180 = vpop.f32.mrb[0].mxu0
  %1181 = vmatprep.mubr.bf16.mxu0 0
  %1182 = vmatmul.mubr.bf16.gmra.mrb[0].mxu0 %v756
  %v1183 = vpop.f32.mrb[0].mxu0
  %v1184 = vadd.f32 0.0, %v1183
  %v1185 = vpop.f32.mrb[0].mxu0
  %v1186 = vpop.f32.mrb[0].mxu0
  %v1187 = vadd.f32 0.0, %v1186
  %v1188 = vpop.f32.mrb[0].mxu0
  %1189 = vmatprep.mubr.bf16.mxu0 0
  %1190 = vmatmul.mubr.bf16.gmra.mrb[0].mxu0 %v759
  %v1191 = vpop.f32.mrb[0].mxu0
  %v1192 = vadd.f32 0.0, %v1191
  %v1193 = vpop.f32.mrb[0].mxu0
  %v1194 = vpop.f32.mrb[0].mxu0
  %v1195 = vadd.f32 0.0, %v1194
  %v1196 = vpop.f32.mrb[0].mxu0
  %1197 = vmatprep.mubr.bf16.mxu0 0
  %1198 = vmatmul.mubr.bf16.gmra.mrb[0].mxu0 %v762
  %v1199 = vpop.f32.mrb[0].mxu0
  %v1200 = vadd.f32 0.0, %v1199
  %v1201 = vpop.f32.mrb[0].mxu0
  %v1202 = vpop.f32.mrb[0].mxu0
  %v1203 = vadd.f32 0.0, %v1202
  %v1204 = vpop.f32.mrb[0].mxu0
  %1205 = vmatprep.mubr.bf16.mxu0 0
  %1206 = vmatmul.mubr.bf16.gmra.mrb[0].mxu0 %v765
  %v1207 = vpop.f32.mrb[0].mxu0
  %v1208 = vadd.f32 0.0, %v1207
  %v1209 = vpop.f32.mrb[0].mxu0
  %v1210 = vpop.f32.mrb[0].mxu0
  %v1211 = vadd.f32 0.0, %v1210
  %v1212 = vpop.f32.mrb[0].mxu0
  %1213 = vmatprep.mubr.bf16.mxu0 0
  %1214 = vmatmul.mubr.bf16.gmra.mrb[0].mxu0 %v768
  %v1215 = vpop.f32.mrb[0].mxu0
  %v1216 = vadd.f32 0.0, %v1215
  %v1217 = vpop.f32.mrb[0].mxu0
  %v1218 = vpop.f32.mrb[0].mxu0
  %v1219 = vadd.f32 0.0, %v1218
  %v1220 = vpop.f32.mrb[0].mxu0
  %1221 = vmatprep.mubr.bf16.mxu0 0
  %1222 = vmatmul.mubr.bf16.gmra.mrb[0].mxu0 %v771
  %v1223 = vpop.f32.mrb[0].mxu0
  %v1224 = vadd.f32 0.0, %v1223
  %v1225 = vpop.f32.mrb[0].mxu0
  %v1226 = vpop.f32.mrb[0].mxu0
  %v1227 = vadd.f32 0.0, %v1226
  %v1228 = vpop.f32.mrb[0].mxu0
  %1229 = vmatprep.mubr.bf16.mxu0 0
  %1230 = vmatmul.mubr.bf16.gmra.mrb[0].mxu0 %v774
  %v1231 = vpop.f32.mrb[0].mxu0
  %v1232 = vadd.f32 0.0, %v1231
  %v1233 = vpop.f32.mrb[0].mxu0
  %v1234 = vpop.f32.mrb[0].mxu0
  %v1235 = vadd.f32 0.0, %v1234
  %v1236 = vpop.f32.mrb[0].mxu0
  %1237 = vmatprep.mubr.bf16.mxu0 0
  %1238 = vmatmul.mubr.bf16.gmra.mrb[0].mxu0 %v777
  %v1239 = vpop.f32.mrb[0].mxu0
  %v1240 = vadd.f32 0.0, %v1239
  %v1241 = vpop.f32.mrb[0].mxu0
  %v1242 = vpop.f32.mrb[0].mxu0
  %v1243 = vadd.f32 0.0, %v1242
  %v1244 = vpop.f32.mrb[0].mxu0
  %1245 = vmatprep.mubr.bf16.mxu0 0
  %1246 = vmatmul.mubr.bf16.gmra.mrb[0].mxu0 %v780
  %v1247 = vpop.f32.mrb[0].mxu0
  %v1248 = vadd.f32 0.0, %v1247
  %v1249 = vpop.f32.mrb[0].mxu0
  %v1250 = vpop.f32.mrb[0].mxu0
  %v1251 = vadd.f32 0.0, %v1250
  %v1252 = vpop.f32.mrb[0].mxu0
  %1253 = vmatprep.mubr.bf16.mxu0 0
  %1254 = vmatmul.mubr.bf16.gmra.mrb[0].mxu0 %v783
  %v1255 = vpop.f32.mrb[0].mxu0
  %v1256 = vadd.f32 0.0, %v1255
  %v1257 = vpop.f32.mrb[0].mxu0
  %v1258 = vpop.f32.mrb[0].mxu0
  %v1259 = vadd.f32 0.0, %v1258
  %v1260 = vpop.f32.mrb[0].mxu0
  %1261 = vmatprep.mubr.bf16.mxu0 0
  %1262 = vmatmul.mubr.bf16.gmra.mrb[0].mxu0 %v786
  %v1263 = vpop.f32.mrb[0].mxu0
  %v1264 = vadd.f32 0.0, %v1263
  %v1265 = vpop.f32.mrb[0].mxu0
  %v1266 = vpop.f32.mrb[0].mxu0
  %v1267 = vadd.f32 0.0, %v1266
  %v1268 = vpop.f32.mrb[0].mxu0
  %1269 = vmatprep.mubr.bf16.mxu0 0
  %1270 = vmatmul.mubr.bf16.gmra.mrb[0].mxu0 %v789
  %v1271 = vpop.f32.mrb[0].mxu0
  %v1272 = vadd.f32 0.0, %v1271
  %v1273 = vpop.f32.mrb[0].mxu0
  %v1274 = vpop.f32.mrb[0].mxu0
  %v1275 = vadd.f32 0.0, %v1274
  %v1276 = vpop.f32.mrb[0].mxu0
  %1277 = vmatprep.mubr.bf16.mxu0 0
  %1278 = vmatmul.mubr.bf16.gmra.mrb[0].mxu0 %v792
  %v1279 = vpop.f32.mrb[0].mxu0
  %v1280 = vadd.f32 0.0, %v1279
  %v1281 = vpop.f32.mrb[0].mxu0
  %v1282 = vpop.f32.mrb[0].mxu0
  %v1283 = vadd.f32 0.0, %v1282
  %v1284 = vpop.f32.mrb[0].mxu0
  %1285 = vmatprep.mubr.bf16.mxu0 0
  %1286 = vmatmul.mubr.bf16.gmra.mrb[0].mxu0 %v795
  %v1287 = vpop.f32.mrb[0].mxu0
  %v1288 = vadd.f32 0.0, %v1287
  %v1289 = vpop.f32.mrb[0].mxu0
  %v1290 = vpop.f32.mrb[0].mxu0
  %v1291 = vadd.f32 0.0, %v1290
  %v1292 = vpop.f32.mrb[0].mxu0
  %1293 = vmatprep.mubr.bf16.mxu0 0
  %1294 = vmatmul.mubr.bf16.gmra.mrb[0].mxu0 %v798
  %v1295 = vpop.f32.mrb[0].mxu0
  %v1296 = vadd.f32 0.0, %v1295
  %v1297 = vpop.f32.mrb[0].mxu0
  %v1298 = vpop.f32.mrb[0].mxu0
  %v1299 = vadd.f32 0.0, %v1298
  %v1300 = vpop.f32.mrb[0].mxu0
  %1301 = vmatprep.mubr.bf16.mxu0 0
  %1302 = vmatmul.mubr.bf16.gmra.mrb[0].mxu0 %v801
  %v1303 = vpop.f32.mrb[0].mxu0
  %v1304 = vadd.f32 0.0, %v1303
  %v1305 = vpop.f32.mrb[0].mxu0
  %v1306 = vpop.f32.mrb[0].mxu0
  %v1307 = vadd.f32 0.0, %v1306
  %v1308 = vpop.f32.mrb[0].mxu0
  %1309 = vmatprep.mubr.bf16.mxu0 0
  %1310 = vmatmul.mubr.bf16.gmra.mrb[0].mxu0 %v804
  %v1311 = vpop.f32.mrb[0].mxu0
  %v1312 = vadd.f32 0.0, %v1311
  %v1313 = vpop.f32.mrb[0].mxu0
  %v1314 = vpop.f32.mrb[0].mxu0
  %v1315 = vadd.f32 0.0, %v1314
  %v1316 = vpop.f32.mrb[0].mxu0
  %1317 = vmatprep.mubr.bf16.mxu0 0
  %1318 = vmatmul.mubr.bf16.gmra.mrb[0].mxu0 %v807
  %v1319 = vpop.f32.mrb[0].mxu0
  %v1320 = vadd.f32 0.0, %v1319
  %v1321 = vpop.f32.mrb[0].mxu0
  %v1322 = vpop.f32.mrb[0].mxu0
  %v1323 = vadd.f32 0.0, %v1322
  %v1324 = vpop.f32.mrb[0].mxu0
  %1325 = vmatprep.mubr.bf16.mxu0 0
  %1326 = vmatmul.mubr.bf16.gmra.mrb[0].mxu0 %v810
  %v1327 = vpop.f32.mrb[0].mxu0
  %v1328 = vadd.f32 0.0, %v1327
  %v1329 = vpop.f32.mrb[0].mxu0
  %v1330 = vpop.f32.mrb[0].mxu0
  %v1331 = vadd.f32 0.0, %v1330
  %v1332 = vpop.f32.mrb[0].mxu0
  %1333 = vmatprep.mubr.bf16.mxu0 0
  %1334 = vmatmul.mubr.bf16.gmra.mrb[0].mxu0 %v813
  %v1335 = vpop.f32.mrb[0].mxu0
  %v1336 = vadd.f32 0.0, %v1335
  %v1337 = vpop.f32.mrb[0].mxu0
  %v1338 = vpop.f32.mrb[0].mxu0
  %v1339 = vadd.f32 0.0, %v1338
  %v1340 = vpop.f32.mrb[0].mxu0
  %1341 = vmatprep.mubr.bf16.mxu0 0
  %1342 = vmatmul.mubr.bf16.gmra.mrb[0].mxu0 %v816
  %v1343 = vpop.f32.mrb[0].mxu0
  %v1344 = vadd.f32 0.0, %v1343
  %v1345 = vpop.f32.mrb[0].mxu0
  %v1346 = vpop.f32.mrb[0].mxu0
  %v1347 = vadd.f32 0.0, %v1346
  %v1348 = vpop.f32.mrb[0].mxu0
  %1349 = vmatprep.mubr.bf16.mxu0 0
  %1350 = vmatmul.mubr.bf16.gmra.mrb[0].mxu0 %v819
  %v1351 = vpop.f32.mrb[0].mxu0
  %v1352 = vadd.f32 0.0, %v1351
  %v1353 = vpop.f32.mrb[0].mxu0
  %v1354 = vpop.f32.mrb[0].mxu0
  %v1355 = vadd.f32 0.0, %v1354
  %v1356 = vpop.f32.mrb[0].mxu0
  %1357 = vmatprep.mubr.bf16.mxu0 0
  %1358 = vmatmul.mubr.bf16.gmra.mrb[0].mxu0 %v822
  %v1359 = vpop.f32.mrb[0].mxu0
  %v1360 = vadd.f32 0.0, %v1359
  %v1361 = vpop.f32.mrb[0].mxu0
  %v1362 = vpop.f32.mrb[0].mxu0
  %v1363 = vadd.f32 0.0, %v1362
  %v1364 = vpop.f32.mrb[0].mxu0
  %1365 = vmatprep.mubr.bf16.mxu0 0
  %1366 = vmatmul.mubr.bf16.gmra.mrb[0].mxu0 %v825
  %v1367 = vpop.f32.mrb[0].mxu0
  %v1368 = vadd.f32 0.0, %v1367
  %v1369 = vpop.f32.mrb[0].mxu0
  %v1370 = vpop.f32.mrb[0].mxu0
  %v1371 = vadd.f32 0.0, %v1370
  %v1372 = vpop.f32.mrb[0].mxu0
  %1373 = vmatprep.mubr.bf16.mxu0 0
  %1374 = vmatmul.mubr.bf16.gmra.mrb[0].mxu0 %v828
  %v1375 = vpop.f32.mrb[0].mxu0
  %v1376 = vadd.f32 0.0, %v1375
  %v1377 = vpop.f32.mrb[0].mxu0
  %v1378 = vpop.f32.mrb[0].mxu0
  %v1379 = vadd.f32 0.0, %v1378
  %v1380 = vpop.f32.mrb[0].mxu0
  %1381 = vdwg.mxu0
  %v1510 = vunpack.c.l.b16 %v61
  %v1511 = vunpack.c.l.b16 %v62
  %v1512 = vunpack.c.l.b16 %v63
  %v1513 = vunpack.c.l.b16 %v64
  %v1514 = vunpack.c.l.b16 %v65
  %v1515 = vunpack.c.l.b16 %v66
  %v1516 = vunpack.c.l.b16 %v67
  %v1517 = vunpack.c.l.b16 %v68
  %v1518 = vunpack.c.l.b16 %v69
  %v1519 = vunpack.c.l.b16 %v70
  %v1520 = vunpack.c.l.b16 %v71
  %v1521 = vunpack.c.l.b16 %v72
  %v1522 = vunpack.c.l.b16 %v73
  %v1523 = vunpack.c.l.b16 %v74
  %v1524 = vunpack.c.l.b16 %v75
  %v1525 = vunpack.c.l.b16 %v76
  %v1526 = vunpack.c.l.b16 %v77
  %v1527 = vunpack.c.l.b16 %v78
  %v1528 = vunpack.c.l.b16 %v79
  %v1529 = vunpack.c.l.b16 %v80
  %v1530 = vunpack.c.l.b16 %v81
  %v1531 = vunpack.c.l.b16 %v82
  %v1532 = vunpack.c.l.b16 %v83
  %v1533 = vunpack.c.l.b16 %v84
  %v1534 = vunpack.c.l.b16 %v85
  %v1535 = vunpack.c.l.b16 %v86
  %v1536 = vunpack.c.l.b16 %v87
  %v1537 = vunpack.c.l.b16 %v88
  %v1538 = vunpack.c.l.b16 %v89
  %v1539 = vunpack.c.l.b16 %v90
  %v1540 = vunpack.c.l.b16 %v91
  %v1541 = vunpack.c.l.b16 %v92
  %v1542 = vunpack.c.l.b16 %v93
  %v1543 = vunpack.c.l.b16 %v94
  %v1544 = vunpack.c.l.b16 %v95
  %v1545 = vunpack.c.l.b16 %v96
  %v1546 = vunpack.c.l.b16 %v97
  %v1547 = vunpack.c.l.b16 %v98
  %v1548 = vunpack.c.l.b16 %v99
  %v1549 = vunpack.c.l.b16 %v100
  %v1550 = vunpack.c.l.b16 %v101
  %v1551 = vunpack.c.l.b16 %v102
  %v1552 = vunpack.c.l.b16 %v103
  %v1553 = vunpack.c.l.b16 %v104
  %v1554 = vunpack.c.l.b16 %v105
  %v1555 = vunpack.c.l.b16 %v106
  %v1556 = vunpack.c.l.b16 %v107
  %v1557 = vunpack.c.l.b16 %v108
  %v1558 = vunpack.c.l.b16 %v109
  %v1559 = vunpack.c.l.b16 %v110
  %v1560 = vunpack.c.l.b16 %v111
  %v1561 = vunpack.c.l.b16 %v112
  %v1562 = vunpack.c.l.b16 %v113
  %v1563 = vunpack.c.l.b16 %v114
  %v1564 = vunpack.c.l.b16 %v115
  %v1565 = vunpack.c.l.b16 %v116
  %v1566 = vunpack.c.l.b16 %v117
  %v1567 = vunpack.c.l.b16 %v118
  %v1568 = vunpack.c.l.b16 %v119
  %v1569 = vunpack.c.l.b16 %v120
  %v1570 = vunpack.c.l.b16 %v121
  %v1571 = vunpack.c.l.b16 %v122
  %v1572 = vunpack.c.l.b16 %v123
  %v1573 = vunpack.c.l.b16 %v124
  %v1574 = vunpack.c.l.b16 %v125
  %v1575 = vunpack.c.l.b16 %v126
  %v1576 = vunpack.c.l.b16 %v127
  %v1577 = vunpack.c.l.b16 %v128
  %v1578 = vunpack.c.l.b16 %v129
  %v1579 = vunpack.c.l.b16 %v130
  %v1580 = vunpack.c.l.b16 %v131
  %v1581 = vunpack.c.l.b16 %v132
  %v1582 = vunpack.c.l.b16 %v133
  %v1583 = vunpack.c.l.b16 %v134
  %v1584 = vunpack.c.l.b16 %v135
  %v1585 = vunpack.c.l.b16 %v136
  %v1586 = vunpack.c.l.b16 %v137
  %v1587 = vunpack.c.l.b16 %v138
  %v1588 = vunpack.c.l.b16 %v139
  %v1589 = vunpack.c.l.b16 %v140
  %v1590 = vunpack.c.l.b16 %v141
  %v1591 = vunpack.c.l.b16 %v142
  %v1592 = vunpack.c.l.b16 %v143
  %v1593 = vunpack.c.l.b16 %v144
  %v1594 = vunpack.c.l.b16 %v145
  %v1595 = vunpack.c.l.b16 %v146
  %v1596 = vunpack.c.l.b16 %v147
  %v1597 = vunpack.c.l.b16 %v148
  %v1598 = vunpack.c.l.b16 %v149
  %v1599 = vunpack.c.l.b16 %v150
  %v1600 = vunpack.c.l.b16 %v151
  %v1601 = vunpack.c.l.b16 %v152
  %v1602 = vunpack.c.l.b16 %v153
  %v1603 = vunpack.c.l.b16 %v154
  %v1604 = vunpack.c.l.b16 %v155
  %v1605 = vunpack.c.l.b16 %v156
  %v1606 = vunpack.c.l.b16 %v157
  %v1607 = vunpack.c.l.b16 %v158
  %v1608 = vunpack.c.l.b16 %v159
  %v1609 = vunpack.c.l.b16 %v160
  %v1610 = vunpack.c.l.b16 %v161
  %v1611 = vunpack.c.l.b16 %v162
  %v1612 = vunpack.c.l.b16 %v163
  %v1613 = vunpack.c.l.b16 %v164
  %v1614 = vunpack.c.l.b16 %v165
  %v1615 = vunpack.c.l.b16 %v166
  %v1616 = vunpack.c.l.b16 %v167
  %v1617 = vunpack.c.l.b16 %v168
  %v1618 = vunpack.c.l.b16 %v169
  %v1619 = vunpack.c.l.b16 %v170
  %v1620 = vunpack.c.l.b16 %v171
  %v1621 = vunpack.c.l.b16 %v172
  %v1622 = vunpack.c.l.b16 %v173
  %v1623 = vunpack.c.l.b16 %v174
  %v1624 = vunpack.c.l.b16 %v175
  %v1625 = vunpack.c.l.b16 %v176
  %v1626 = vunpack.c.l.b16 %v177
  %v1627 = vunpack.c.l.b16 %v178
  %v1628 = vunpack.c.l.b16 %v179
  %v1629 = vunpack.c.l.b16 %v180
  %v1630 = vunpack.c.l.b16 %v181
  %v1631 = vunpack.c.l.b16 %v182
  %v1632 = vunpack.c.l.b16 %v183
  %v1633 = vunpack.c.l.b16 %v184
  %v1634 = vunpack.c.l.b16 %v185
  %v1635 = vunpack.c.l.b16 %v186
  %v1636 = vunpack.c.l.b16 %v187
  %v1637 = vunpack.c.l.b16 %v188
  %v1638 = vpack.c.b16 %v1511, %v1510
  %v1639 = vpack.c.b16 %v1513, %v1512
  %v1640 = vpack.c.b16 %v1515, %v1514
  %v1641 = vpack.c.b16 %v1517, %v1516
  %v1642 = vpack.c.b16 %v1519, %v1518
  %v1643 = vpack.c.b16 %v1521, %v1520
  %v1644 = vpack.c.b16 %v1523, %v1522
  %v1645 = vpack.c.b16 %v1525, %v1524
  %v1646 = vpack.c.b16 %v1527, %v1526
  %v1647 = vpack.c.b16 %v1529, %v1528
  %v1648 = vpack.c.b16 %v1531, %v1530
  %v1649 = vpack.c.b16 %v1533, %v1532
  %v1650 = vpack.c.b16 %v1535, %v1534
  %v1651 = vpack.c.b16 %v1537, %v1536
  %v1652 = vpack.c.b16 %v1539, %v1538
  %v1653 = vpack.c.b16 %v1541, %v1540
  %v1654 = vpack.c.b16 %v1543, %v1542
  %v1655 = vpack.c.b16 %v1545, %v1544
  %v1656 = vpack.c.b16 %v1547, %v1546
  %v1657 = vpack.c.b16 %v1549, %v1548
  %v1658 = vpack.c.b16 %v1551, %v1550
  %v1659 = vpack.c.b16 %v1553, %v1552
  %v1660 = vpack.c.b16 %v1555, %v1554
  %v1661 = vpack.c.b16 %v1557, %v1556
  %v1662 = vpack.c.b16 %v1559, %v1558
  %v1663 = vpack.c.b16 %v1561, %v1560
  %v1664 = vpack.c.b16 %v1563, %v1562
  %v1665 = vpack.c.b16 %v1565, %v1564
  %v1666 = vpack.c.b16 %v1567, %v1566
  %v1667 = vpack.c.b16 %v1569, %v1568
  %v1668 = vpack.c.b16 %v1571, %v1570
  %v1669 = vpack.c.b16 %v1573, %v1572
  %v1670 = vpack.c.b16 %v1575, %v1574
  %v1671 = vpack.c.b16 %v1577, %v1576
  %v1672 = vpack.c.b16 %v1579, %v1578
  %v1673 = vpack.c.b16 %v1581, %v1580
  %v1674 = vpack.c.b16 %v1583, %v1582
  %v1675 = vpack.c.b16 %v1585, %v1584
  %v1676 = vpack.c.b16 %v1587, %v1586
  %v1677 = vpack.c.b16 %v1589, %v1588
  %v1678 = vpack.c.b16 %v1591, %v1590
  %v1679 = vpack.c.b16 %v1593, %v1592
  %v1680 = vpack.c.b16 %v1595, %v1594
  %v1681 = vpack.c.b16 %v1597, %v1596
  %v1682 = vpack.c.b16 %v1599, %v1598
  %v1683 = vpack.c.b16 %v1601, %v1600
  %v1684 = vpack.c.b16 %v1603, %v1602
  %v1685 = vpack.c.b16 %v1605, %v1604
  %v1686 = vpack.c.b16 %v1607, %v1606
  %v1687 = vpack.c.b16 %v1609, %v1608
  %v1688 = vpack.c.b16 %v1611, %v1610
  %v1689 = vpack.c.b16 %v1613, %v1612
  %v1690 = vpack.c.b16 %v1615, %v1614
  %v1691 = vpack.c.b16 %v1617, %v1616
  %v1692 = vpack.c.b16 %v1619, %v1618
  %v1693 = vpack.c.b16 %v1621, %v1620
  %v1694 = vpack.c.b16 %v1623, %v1622
  %v1695 = vpack.c.b16 %v1625, %v1624
  %v1696 = vpack.c.b16 %v1627, %v1626
  %v1697 = vpack.c.b16 %v1629, %v1628
  %v1698 = vpack.c.b16 %v1631, %v1630
  %v1699 = vpack.c.b16 %v1633, %v1632
  %v1700 = vpack.c.b16 %v1635, %v1634
  %v1701 = vpack.c.b16 %v1637, %v1636
  %vm1702 = vcmask 31744
  %v1704 = vsel %vm1702, %v1638, 0
  %v1707 = vsel %vm1702, %v1639, 0
  %v1710 = vsel %vm1702, %v1640, 0
  %v1713 = vsel %vm1702, %v1641, 0
  %v1716 = vsel %vm1702, %v1642, 0
  %v1719 = vsel %vm1702, %v1643, 0
  %v1722 = vsel %vm1702, %v1644, 0
  %v1725 = vsel %vm1702, %v1645, 0
  %v1728 = vsel %vm1702, %v1646, 0
  %v1731 = vsel %vm1702, %v1647, 0
  %v1734 = vsel %vm1702, %v1648, 0
  %v1737 = vsel %vm1702, %v1649, 0
  %v1740 = vsel %vm1702, %v1650, 0
  %v1743 = vsel %vm1702, %v1651, 0
  %v1746 = vsel %vm1702, %v1652, 0
  %v1749 = vsel %vm1702, %v1653, 0
  %v1752 = vsel %vm1702, %v1654, 0
  %v1755 = vsel %vm1702, %v1655, 0
  %v1758 = vsel %vm1702, %v1656, 0
  %v1761 = vsel %vm1702, %v1657, 0
  %v1764 = vsel %vm1702, %v1658, 0
  %v1767 = vsel %vm1702, %v1659, 0
  %v1770 = vsel %vm1702, %v1660, 0
  %v1773 = vsel %vm1702, %v1661, 0
  %v1776 = vsel %vm1702, %v1662, 0
  %v1779 = vsel %vm1702, %v1663, 0
  %v1782 = vsel %vm1702, %v1664, 0
  %v1785 = vsel %vm1702, %v1665, 0
  %v1788 = vsel %vm1702, %v1666, 0
  %v1791 = vsel %vm1702, %v1667, 0
  %v1794 = vsel %vm1702, %v1668, 0
  %v1797 = vsel %vm1702, %v1669, 0
  %v1800 = vsel %vm1702, %v1670, 0
  %v1803 = vsel %vm1702, %v1671, 0
  %v1806 = vsel %vm1702, %v1672, 0
  %v1809 = vsel %vm1702, %v1673, 0
  %v1812 = vsel %vm1702, %v1674, 0
  %v1815 = vsel %vm1702, %v1675, 0
  %v1818 = vsel %vm1702, %v1676, 0
  %v1821 = vsel %vm1702, %v1677, 0
  %v1824 = vsel %vm1702, %v1678, 0
  %v1827 = vsel %vm1702, %v1679, 0
  %v1830 = vsel %vm1702, %v1680, 0
  %v1833 = vsel %vm1702, %v1681, 0
  %v1836 = vsel %vm1702, %v1682, 0
  %v1839 = vsel %vm1702, %v1683, 0
  %v1842 = vsel %vm1702, %v1684, 0
  %v1845 = vsel %vm1702, %v1685, 0
  %v1848 = vsel %vm1702, %v1686, 0
  %v1851 = vsel %vm1702, %v1687, 0
  %v1854 = vsel %vm1702, %v1688, 0
  %v1857 = vsel %vm1702, %v1689, 0
  %v1860 = vsel %vm1702, %v1690, 0
  %v1863 = vsel %vm1702, %v1691, 0
  %v1866 = vsel %vm1702, %v1692, 0
  %v1869 = vsel %vm1702, %v1693, 0
  %v1872 = vsel %vm1702, %v1694, 0
  %v1875 = vsel %vm1702, %v1695, 0
  %v1878 = vsel %vm1702, %v1696, 0
  %v1881 = vsel %vm1702, %v1697, 0
  %v1884 = vsel %vm1702, %v1698, 0
  %v1887 = vsel %vm1702, %v1699, 0
  %v1890 = vsel %vm1702, %v1700, 0
  %v1893 = vsel %vm1702, %v1701, 0
  %v1896 = vsel %vm831, %v36, 0
  %1898 = vmatprep.subr.bf16.mxu0 0
  %1899 = vmatpush1.bf16.msra.mxu0 %v1896
  %1900 = vmatprep.subr.bf16.mxu0 0
  %1901 = vmatpush1.bf16.msra.mxu0 0
  %1902 = vmatprep.subr.bf16.mxu0 0
  %1903 = vmatpush1.bf16.msra.mxu0 0
  %1904 = vmatprep.subr.bf16.mxu0 0
  %1905 = vmatpush1.bf16.msra.mxu0 0
  %1906 = vmatprep.subr.bf16.mxu0 0
  %1907 = vmatpush1.bf16.msra.mxu0 0
  %1908 = vmatprep.subr.bf16.mxu0 0
  %1909 = vmatpush1.bf16.msra.mxu0 0
  %1910 = vmatprep.subr.bf16.mxu0 0
  %1911 = vmatpush1.bf16.msra.mxu0 0
  %1912 = vmatprep.subr.bf16.mxu0 0
  %1913 = vmatpush1.bf16.msra.mxu0 0
  %1914 = vmatprep.subr.bf16.mxu0 0
  %1915 = vmatpush1.bf16.msra.mxu0 0
  %1916 = vmatprep.subr.bf16.mxu0 0
  %1917 = vmatpush1.bf16.msra.mxu0 0
  %1918 = vmatprep.subr.bf16.mxu0 0
  %1919 = vmatpush1.bf16.msra.mxu0 0
  %1920 = vmatprep.subr.bf16.mxu0 0
  %1921 = vmatpush1.bf16.msra.mxu0 0
  %1922 = vmatprep.subr.bf16.mxu0 0
  %1923 = vmatpush1.bf16.msra.mxu0 0
  %1924 = vmatprep.subr.bf16.mxu0 0
  %1925 = vmatpush1.bf16.msra.mxu0 0
  %1926 = vmatprep.subr.bf16.mxu0 0
  %1927 = vmatpush1.bf16.msra.mxu0 0
  %1928 = vmatprep.subr.bf16.mxu0 0
  %1929 = vmatpush1.bf16.msra.mxu0 0
  %1930 = vmatprep.mubr.bf16.mxu0 0
  %1931 = vmatmul.mubr.bf16.gmra.mrb[0].mxu0 %v1704
  %v1932 = vpop.f32.mrb[0].mxu0
  %v1933 = vadd.f32 %v872, %v1932
  %v1934 = vpop.f32.mrb[0].mxu0
  %v1935 = vpop.f32.mrb[0].mxu0
  %v1936 = vadd.f32 %v875, %v1935
  %v1937 = vpop.f32.mrb[0].mxu0
  %1938 = vmatprep.mubr.bf16.mxu0 0
  %1939 = vmatmul.mubr.bf16.gmra.mrb[0].mxu0 %v1707
  %v1940 = vpop.f32.mrb[0].mxu0
  %v1941 = vadd.f32 %v880, %v1940
  %v1942 = vpop.f32.mrb[0].mxu0
  %v1943 = vpop.f32.mrb[0].mxu0
  %v1944 = vadd.f32 %v883, %v1943
  %v1945 = vpop.f32.mrb[0].mxu0
  %1946 = vmatprep.mubr.bf16.mxu0 0
  %1947 = vmatmul.mubr.bf16.gmra.mrb[0].mxu0 %v1710
  %v1948 = vpop.f32.mrb[0].mxu0
  %v1949 = vadd.f32 %v888, %v1948
  %v1950 = vpop.f32.mrb[0].mxu0
  %v1951 = vpop.f32.mrb[0].mxu0
  %v1952 = vadd.f32 %v891, %v1951
  %v1953 = vpop.f32.mrb[0].mxu0
  %1954 = vmatprep.mubr.bf16.mxu0 0
  %1955 = vmatmul.mubr.bf16.gmra.mrb[0].mxu0 %v1713
  %v1956 = vpop.f32.mrb[0].mxu0
  %v1957 = vadd.f32 %v896, %v1956
  %v1958 = vpop.f32.mrb[0].mxu0
  %v1959 = vpop.f32.mrb[0].mxu0
  %v1960 = vadd.f32 %v899, %v1959
  %v1961 = vpop.f32.mrb[0].mxu0
  %1962 = vmatprep.mubr.bf16.mxu0 0
  %1963 = vmatmul.mubr.bf16.gmra.mrb[0].mxu0 %v1716
  %v1964 = vpop.f32.mrb[0].mxu0
  %v1965 = vadd.f32 %v904, %v1964
  %v1966 = vpop.f32.mrb[0].mxu0
  %v1967 = vpop.f32.mrb[0].mxu0
  %v1968 = vadd.f32 %v907, %v1967
  %v1969 = vpop.f32.mrb[0].mxu0
  %1970 = vmatprep.mubr.bf16.mxu0 0
  %1971 = vmatmul.mubr.bf16.gmra.mrb[0].mxu0 %v1719
  %v1972 = vpop.f32.mrb[0].mxu0
  %v1973 = vadd.f32 %v912, %v1972
  %v1974 = vpop.f32.mrb[0].mxu0
  %v1975 = vpop.f32.mrb[0].mxu0
  %v1976 = vadd.f32 %v915, %v1975
  %v1977 = vpop.f32.mrb[0].mxu0
  %1978 = vmatprep.mubr.bf16.mxu0 0
  %1979 = vmatmul.mubr.bf16.gmra.mrb[0].mxu0 %v1722
  %v1980 = vpop.f32.mrb[0].mxu0
  %v1981 = vadd.f32 %v920, %v1980
  %v1982 = vpop.f32.mrb[0].mxu0
  %v1983 = vpop.f32.mrb[0].mxu0
  %v1984 = vadd.f32 %v923, %v1983
  %v1985 = vpop.f32.mrb[0].mxu0
  %1986 = vmatprep.mubr.bf16.mxu0 0
  %1987 = vmatmul.mubr.bf16.gmra.mrb[0].mxu0 %v1725
  %v1988 = vpop.f32.mrb[0].mxu0
  %v1989 = vadd.f32 %v928, %v1988
  %v1990 = vpop.f32.mrb[0].mxu0
  %v1991 = vpop.f32.mrb[0].mxu0
  %v1992 = vadd.f32 %v931, %v1991
  %v1993 = vpop.f32.mrb[0].mxu0
  %1994 = vmatprep.mubr.bf16.mxu0 0
  %1995 = vmatmul.mubr.bf16.gmra.mrb[0].mxu0 %v1728
  %v1996 = vpop.f32.mrb[0].mxu0
  %v1997 = vadd.f32 %v936, %v1996
  %v1998 = vpop.f32.mrb[0].mxu0
  %v1999 = vpop.f32.mrb[0].mxu0
  %v2000 = vadd.f32 %v939, %v1999
  %v2001 = vpop.f32.mrb[0].mxu0
  %2002 = vmatprep.mubr.bf16.mxu0 0
  %2003 = vmatmul.mubr.bf16.gmra.mrb[0].mxu0 %v1731
  %v2004 = vpop.f32.mrb[0].mxu0
  %v2005 = vadd.f32 %v944, %v2004
  %v2006 = vpop.f32.mrb[0].mxu0
  %v2007 = vpop.f32.mrb[0].mxu0
  %v2008 = vadd.f32 %v947, %v2007
  %v2009 = vpop.f32.mrb[0].mxu0
  %2010 = vmatprep.mubr.bf16.mxu0 0
  %2011 = vmatmul.mubr.bf16.gmra.mrb[0].mxu0 %v1734
  %v2012 = vpop.f32.mrb[0].mxu0
  %v2013 = vadd.f32 %v952, %v2012
  %v2014 = vpop.f32.mrb[0].mxu0
  %v2015 = vpop.f32.mrb[0].mxu0
  %v2016 = vadd.f32 %v955, %v2015
  %v2017 = vpop.f32.mrb[0].mxu0
  %2018 = vmatprep.mubr.bf16.mxu0 0
  %2019 = vmatmul.mubr.bf16.gmra.mrb[0].mxu0 %v1737
  %v2020 = vpop.f32.mrb[0].mxu0
  %v2021 = vadd.f32 %v960, %v2020
  %v2022 = vpop.f32.mrb[0].mxu0
  %v2023 = vpop.f32.mrb[0].mxu0
  %v2024 = vadd.f32 %v963, %v2023
  %v2025 = vpop.f32.mrb[0].mxu0
  %2026 = vmatprep.mubr.bf16.mxu0 0
  %2027 = vmatmul.mubr.bf16.gmra.mrb[0].mxu0 %v1740
  %v2028 = vpop.f32.mrb[0].mxu0
  %v2029 = vadd.f32 %v968, %v2028
  %v2030 = vpop.f32.mrb[0].mxu0
  %v2031 = vpop.f32.mrb[0].mxu0
  %v2032 = vadd.f32 %v971, %v2031
  %v2033 = vpop.f32.mrb[0].mxu0
  %2034 = vmatprep.mubr.bf16.mxu0 0
  %2035 = vmatmul.mubr.bf16.gmra.mrb[0].mxu0 %v1743
  %v2036 = vpop.f32.mrb[0].mxu0
  %v2037 = vadd.f32 %v976, %v2036
  %v2038 = vpop.f32.mrb[0].mxu0
  %v2039 = vpop.f32.mrb[0].mxu0
  %v2040 = vadd.f32 %v979, %v2039
  %v2041 = vpop.f32.mrb[0].mxu0
  %2042 = vmatprep.mubr.bf16.mxu0 0
  %2043 = vmatmul.mubr.bf16.gmra.mrb[0].mxu0 %v1746
  %v2044 = vpop.f32.mrb[0].mxu0
  %v2045 = vadd.f32 %v984, %v2044
  %v2046 = vpop.f32.mrb[0].mxu0
  %v2047 = vpop.f32.mrb[0].mxu0
  %v2048 = vadd.f32 %v987, %v2047
  %v2049 = vpop.f32.mrb[0].mxu0
  %2050 = vmatprep.mubr.bf16.mxu0 0
  %2051 = vmatmul.mubr.bf16.gmra.mrb[0].mxu0 %v1749
  %v2052 = vpop.f32.mrb[0].mxu0
  %v2053 = vadd.f32 %v992, %v2052
  %v2054 = vpop.f32.mrb[0].mxu0
  %v2055 = vpop.f32.mrb[0].mxu0
  %v2056 = vadd.f32 %v995, %v2055
  %v2057 = vpop.f32.mrb[0].mxu0
  %2058 = vmatprep.mubr.bf16.mxu0 0
  %2059 = vmatmul.mubr.bf16.gmra.mrb[0].mxu0 %v1752
  %v2060 = vpop.f32.mrb[0].mxu0
  %v2061 = vadd.f32 %v1000, %v2060
  %v2062 = vpop.f32.mrb[0].mxu0
  %v2063 = vpop.f32.mrb[0].mxu0
  %v2064 = vadd.f32 %v1003, %v2063
  %v2065 = vpop.f32.mrb[0].mxu0
  %2066 = vmatprep.mubr.bf16.mxu0 0
  %2067 = vmatmul.mubr.bf16.gmra.mrb[0].mxu0 %v1755
  %v2068 = vpop.f32.mrb[0].mxu0
  %v2069 = vadd.f32 %v1008, %v2068
  %v2070 = vpop.f32.mrb[0].mxu0
  %v2071 = vpop.f32.mrb[0].mxu0
  %v2072 = vadd.f32 %v1011, %v2071
  %v2073 = vpop.f32.mrb[0].mxu0
  %2074 = vmatprep.mubr.bf16.mxu0 0
  %2075 = vmatmul.mubr.bf16.gmra.mrb[0].mxu0 %v1758
  %v2076 = vpop.f32.mrb[0].mxu0
  %v2077 = vadd.f32 %v1016, %v2076
  %v2078 = vpop.f32.mrb[0].mxu0
  %v2079 = vpop.f32.mrb[0].mxu0
  %v2080 = vadd.f32 %v1019, %v2079
  %v2081 = vpop.f32.mrb[0].mxu0
  %2082 = vmatprep.mubr.bf16.mxu0 0
  %2083 = vmatmul.mubr.bf16.gmra.mrb[0].mxu0 %v1761
  %v2084 = vpop.f32.mrb[0].mxu0
  %v2085 = vadd.f32 %v1024, %v2084
  %v2086 = vpop.f32.mrb[0].mxu0
  %v2087 = vpop.f32.mrb[0].mxu0
  %v2088 = vadd.f32 %v1027, %v2087
  %v2089 = vpop.f32.mrb[0].mxu0
  %2090 = vmatprep.mubr.bf16.mxu0 0
  %2091 = vmatmul.mubr.bf16.gmra.mrb[0].mxu0 %v1764
  %v2092 = vpop.f32.mrb[0].mxu0
  %v2093 = vadd.f32 %v1032, %v2092
  %v2094 = vpop.f32.mrb[0].mxu0
  %v2095 = vpop.f32.mrb[0].mxu0
  %v2096 = vadd.f32 %v1035, %v2095
  %v2097 = vpop.f32.mrb[0].mxu0
  %2098 = vmatprep.mubr.bf16.mxu0 0
  %2099 = vmatmul.mubr.bf16.gmra.mrb[0].mxu0 %v1767
  %v2100 = vpop.f32.mrb[0].mxu0
  %v2101 = vadd.f32 %v1040, %v2100
  %v2102 = vpop.f32.mrb[0].mxu0
  %v2103 = vpop.f32.mrb[0].mxu0
  %v2104 = vadd.f32 %v1043, %v2103
  %v2105 = vpop.f32.mrb[0].mxu0
  %2106 = vmatprep.mubr.bf16.mxu0 0
  %2107 = vmatmul.mubr.bf16.gmra.mrb[0].mxu0 %v1770
  %v2108 = vpop.f32.mrb[0].mxu0
  %v2109 = vadd.f32 %v1048, %v2108
  %v2110 = vpop.f32.mrb[0].mxu0
  %v2111 = vpop.f32.mrb[0].mxu0
  %v2112 = vadd.f32 %v1051, %v2111
  %v2113 = vpop.f32.mrb[0].mxu0
  %2114 = vmatprep.mubr.bf16.mxu0 0
  %2115 = vmatmul.mubr.bf16.gmra.mrb[0].mxu0 %v1773
  %v2116 = vpop.f32.mrb[0].mxu0
  %v2117 = vadd.f32 %v1056, %v2116
  %v2118 = vpop.f32.mrb[0].mxu0
  %v2119 = vpop.f32.mrb[0].mxu0
  %v2120 = vadd.f32 %v1059, %v2119
  %v2121 = vpop.f32.mrb[0].mxu0
  %2122 = vmatprep.mubr.bf16.mxu0 0
  %2123 = vmatmul.mubr.bf16.gmra.mrb[0].mxu0 %v1776
  %v2124 = vpop.f32.mrb[0].mxu0
  %v2125 = vadd.f32 %v1064, %v2124
  %v2126 = vpop.f32.mrb[0].mxu0
  %v2127 = vpop.f32.mrb[0].mxu0
  %v2128 = vadd.f32 %v1067, %v2127
  %v2129 = vpop.f32.mrb[0].mxu0
  %2130 = vmatprep.mubr.bf16.mxu0 0
  %2131 = vmatmul.mubr.bf16.gmra.mrb[0].mxu0 %v1779
  %v2132 = vpop.f32.mrb[0].mxu0
  %v2133 = vadd.f32 %v1072, %v2132
  %v2134 = vpop.f32.mrb[0].mxu0
  %v2135 = vpop.f32.mrb[0].mxu0
  %v2136 = vadd.f32 %v1075, %v2135
  %v2137 = vpop.f32.mrb[0].mxu0
  %2138 = vmatprep.mubr.bf16.mxu0 0
  %2139 = vmatmul.mubr.bf16.gmra.mrb[0].mxu0 %v1782
  %v2140 = vpop.f32.mrb[0].mxu0
  %v2141 = vadd.f32 %v1080, %v2140
  %v2142 = vpop.f32.mrb[0].mxu0
  %v2143 = vpop.f32.mrb[0].mxu0
  %v2144 = vadd.f32 %v1083, %v2143
  %v2145 = vpop.f32.mrb[0].mxu0
  %2146 = vmatprep.mubr.bf16.mxu0 0
  %2147 = vmatmul.mubr.bf16.gmra.mrb[0].mxu0 %v1785
  %v2148 = vpop.f32.mrb[0].mxu0
  %v2149 = vadd.f32 %v1088, %v2148
  %v2150 = vpop.f32.mrb[0].mxu0
  %v2151 = vpop.f32.mrb[0].mxu0
  %v2152 = vadd.f32 %v1091, %v2151
  %v2153 = vpop.f32.mrb[0].mxu0
  %2154 = vmatprep.mubr.bf16.mxu0 0
  %2155 = vmatmul.mubr.bf16.gmra.mrb[0].mxu0 %v1788
  %v2156 = vpop.f32.mrb[0].mxu0
  %v2157 = vadd.f32 %v1096, %v2156
  %v2158 = vpop.f32.mrb[0].mxu0
  %v2159 = vpop.f32.mrb[0].mxu0
  %v2160 = vadd.f32 %v1099, %v2159
  %v2161 = vpop.f32.mrb[0].mxu0
  %2162 = vmatprep.mubr.bf16.mxu0 0
  %2163 = vmatmul.mubr.bf16.gmra.mrb[0].mxu0 %v1791
  %v2164 = vpop.f32.mrb[0].mxu0
  %v2165 = vadd.f32 %v1104, %v2164
  %v2166 = vpop.f32.mrb[0].mxu0
  %v2167 = vpop.f32.mrb[0].mxu0
  %v2168 = vadd.f32 %v1107, %v2167
  %v2169 = vpop.f32.mrb[0].mxu0
  %2170 = vmatprep.mubr.bf16.mxu0 0
  %2171 = vmatmul.mubr.bf16.gmra.mrb[0].mxu0 %v1794
  %v2172 = vpop.f32.mrb[0].mxu0
  %v2173 = vadd.f32 %v1112, %v2172
  %v2174 = vpop.f32.mrb[0].mxu0
  %v2175 = vpop.f32.mrb[0].mxu0
  %v2176 = vadd.f32 %v1115, %v2175
  %v2177 = vpop.f32.mrb[0].mxu0
  %2178 = vmatprep.mubr.bf16.mxu0 0
  %2179 = vmatmul.mubr.bf16.gmra.mrb[0].mxu0 %v1797
  %v2180 = vpop.f32.mrb[0].mxu0
  %v2181 = vadd.f32 %v1120, %v2180
  %v2182 = vpop.f32.mrb[0].mxu0
  %v2183 = vpop.f32.mrb[0].mxu0
  %v2184 = vadd.f32 %v1123, %v2183
  %v2185 = vpop.f32.mrb[0].mxu0
  %2186 = vmatprep.mubr.bf16.mxu0 0
  %2187 = vmatmul.mubr.bf16.gmra.mrb[0].mxu0 %v1800
  %v2188 = vpop.f32.mrb[0].mxu0
  %v2189 = vadd.f32 %v1128, %v2188
  %v2190 = vpop.f32.mrb[0].mxu0
  %v2191 = vpop.f32.mrb[0].mxu0
  %v2192 = vadd.f32 %v1131, %v2191
  %v2193 = vpop.f32.mrb[0].mxu0
  %2194 = vmatprep.mubr.bf16.mxu0 0
  %2195 = vmatmul.mubr.bf16.gmra.mrb[0].mxu0 %v1803
  %v2196 = vpop.f32.mrb[0].mxu0
  %v2197 = vadd.f32 %v1136, %v2196
  %v2198 = vpop.f32.mrb[0].mxu0
  %v2199 = vpop.f32.mrb[0].mxu0
  %v2200 = vadd.f32 %v1139, %v2199
  %v2201 = vpop.f32.mrb[0].mxu0
  %2202 = vmatprep.mubr.bf16.mxu0 0
  %2203 = vmatmul.mubr.bf16.gmra.mrb[0].mxu0 %v1806
  %v2204 = vpop.f32.mrb[0].mxu0
  %v2205 = vadd.f32 %v1144, %v2204
  %v2206 = vpop.f32.mrb[0].mxu0
  %v2207 = vpop.f32.mrb[0].mxu0
  %v2208 = vadd.f32 %v1147, %v2207
  %v2209 = vpop.f32.mrb[0].mxu0
  %2210 = vmatprep.mubr.bf16.mxu0 0
  %2211 = vmatmul.mubr.bf16.gmra.mrb[0].mxu0 %v1809
  %v2212 = vpop.f32.mrb[0].mxu0
  %v2213 = vadd.f32 %v1152, %v2212
  %v2214 = vpop.f32.mrb[0].mxu0
  %v2215 = vpop.f32.mrb[0].mxu0
  %v2216 = vadd.f32 %v1155, %v2215
  %v2217 = vpop.f32.mrb[0].mxu0
  %2218 = vmatprep.mubr.bf16.mxu0 0
  %2219 = vmatmul.mubr.bf16.gmra.mrb[0].mxu0 %v1812
  %v2220 = vpop.f32.mrb[0].mxu0
  %v2221 = vadd.f32 %v1160, %v2220
  %v2222 = vpop.f32.mrb[0].mxu0
  %v2223 = vpop.f32.mrb[0].mxu0
  %v2224 = vadd.f32 %v1163, %v2223
  %v2225 = vpop.f32.mrb[0].mxu0
  %2226 = vmatprep.mubr.bf16.mxu0 0
  %2227 = vmatmul.mubr.bf16.gmra.mrb[0].mxu0 %v1815
  %v2228 = vpop.f32.mrb[0].mxu0
  %v2229 = vadd.f32 %v1168, %v2228
  %v2230 = vpop.f32.mrb[0].mxu0
  %v2231 = vpop.f32.mrb[0].mxu0
  %v2232 = vadd.f32 %v1171, %v2231
  %v2233 = vpop.f32.mrb[0].mxu0
  %2234 = vmatprep.mubr.bf16.mxu0 0
  %2235 = vmatmul.mubr.bf16.gmra.mrb[0].mxu0 %v1818
  %v2236 = vpop.f32.mrb[0].mxu0
  %v2237 = vadd.f32 %v1176, %v2236
  %v2238 = vpop.f32.mrb[0].mxu0
  %v2239 = vpop.f32.mrb[0].mxu0
  %v2240 = vadd.f32 %v1179, %v2239
  %v2241 = vpop.f32.mrb[0].mxu0
  %2242 = vmatprep.mubr.bf16.mxu0 0
  %2243 = vmatmul.mubr.bf16.gmra.mrb[0].mxu0 %v1821
  %v2244 = vpop.f32.mrb[0].mxu0
  %v2245 = vadd.f32 %v1184, %v2244
  %v2246 = vpop.f32.mrb[0].mxu0
  %v2247 = vpop.f32.mrb[0].mxu0
  %v2248 = vadd.f32 %v1187, %v2247
  %v2249 = vpop.f32.mrb[0].mxu0
  %2250 = vmatprep.mubr.bf16.mxu0 0
  %2251 = vmatmul.mubr.bf16.gmra.mrb[0].mxu0 %v1824
  %v2252 = vpop.f32.mrb[0].mxu0
  %v2253 = vadd.f32 %v1192, %v2252
  %v2254 = vpop.f32.mrb[0].mxu0
  %v2255 = vpop.f32.mrb[0].mxu0
  %v2256 = vadd.f32 %v1195, %v2255
  %v2257 = vpop.f32.mrb[0].mxu0
  %2258 = vmatprep.mubr.bf16.mxu0 0
  %2259 = vmatmul.mubr.bf16.gmra.mrb[0].mxu0 %v1827
  %v2260 = vpop.f32.mrb[0].mxu0
  %v2261 = vadd.f32 %v1200, %v2260
  %v2262 = vpop.f32.mrb[0].mxu0
  %v2263 = vpop.f32.mrb[0].mxu0
  %v2264 = vadd.f32 %v1203, %v2263
  %v2265 = vpop.f32.mrb[0].mxu0
  %2266 = vmatprep.mubr.bf16.mxu0 0
  %2267 = vmatmul.mubr.bf16.gmra.mrb[0].mxu0 %v1830
  %v2268 = vpop.f32.mrb[0].mxu0
  %v2269 = vadd.f32 %v1208, %v2268
  %v2270 = vpop.f32.mrb[0].mxu0
  %v2271 = vpop.f32.mrb[0].mxu0
  %v2272 = vadd.f32 %v1211, %v2271
  %v2273 = vpop.f32.mrb[0].mxu0
  %2274 = vmatprep.mubr.bf16.mxu0 0
  %2275 = vmatmul.mubr.bf16.gmra.mrb[0].mxu0 %v1833
  %v2276 = vpop.f32.mrb[0].mxu0
  %v2277 = vadd.f32 %v1216, %v2276
  %v2278 = vpop.f32.mrb[0].mxu0
  %v2279 = vpop.f32.mrb[0].mxu0
  %v2280 = vadd.f32 %v1219, %v2279
  %v2281 = vpop.f32.mrb[0].mxu0
  %2282 = vmatprep.mubr.bf16.mxu0 0
  %2283 = vmatmul.mubr.bf16.gmra.mrb[0].mxu0 %v1836
  %v2284 = vpop.f32.mrb[0].mxu0
  %v2285 = vadd.f32 %v1224, %v2284
  %v2286 = vpop.f32.mrb[0].mxu0
  %v2287 = vpop.f32.mrb[0].mxu0
  %v2288 = vadd.f32 %v1227, %v2287
  %v2289 = vpop.f32.mrb[0].mxu0
  %2290 = vmatprep.mubr.bf16.mxu0 0
  %2291 = vmatmul.mubr.bf16.gmra.mrb[0].mxu0 %v1839
  %v2292 = vpop.f32.mrb[0].mxu0
  %v2293 = vadd.f32 %v1232, %v2292
  %v2294 = vpop.f32.mrb[0].mxu0
  %v2295 = vpop.f32.mrb[0].mxu0
  %v2296 = vadd.f32 %v1235, %v2295
  %v2297 = vpop.f32.mrb[0].mxu0
  %2298 = vmatprep.mubr.bf16.mxu0 0
  %2299 = vmatmul.mubr.bf16.gmra.mrb[0].mxu0 %v1842
  %v2300 = vpop.f32.mrb[0].mxu0
  %v2301 = vadd.f32 %v1240, %v2300
  %v2302 = vpop.f32.mrb[0].mxu0
  %v2303 = vpop.f32.mrb[0].mxu0
  %v2304 = vadd.f32 %v1243, %v2303
  %v2305 = vpop.f32.mrb[0].mxu0
  %2306 = vmatprep.mubr.bf16.mxu0 0
  %2307 = vmatmul.mubr.bf16.gmra.mrb[0].mxu0 %v1845
  %v2308 = vpop.f32.mrb[0].mxu0
  %v2309 = vadd.f32 %v1248, %v2308
  %v2310 = vpop.f32.mrb[0].mxu0
  %v2311 = vpop.f32.mrb[0].mxu0
  %v2312 = vadd.f32 %v1251, %v2311
  %v2313 = vpop.f32.mrb[0].mxu0
  %2314 = vmatprep.mubr.bf16.mxu0 0
  %2315 = vmatmul.mubr.bf16.gmra.mrb[0].mxu0 %v1848
  %v2316 = vpop.f32.mrb[0].mxu0
  %v2317 = vadd.f32 %v1256, %v2316
  %v2318 = vpop.f32.mrb[0].mxu0
  %v2319 = vpop.f32.mrb[0].mxu0
  %v2320 = vadd.f32 %v1259, %v2319
  %v2321 = vpop.f32.mrb[0].mxu0
  %2322 = vmatprep.mubr.bf16.mxu0 0
  %2323 = vmatmul.mubr.bf16.gmra.mrb[0].mxu0 %v1851
  %v2324 = vpop.f32.mrb[0].mxu0
  %v2325 = vadd.f32 %v1264, %v2324
  %v2326 = vpop.f32.mrb[0].mxu0
  %v2327 = vpop.f32.mrb[0].mxu0
  %v2328 = vadd.f32 %v1267, %v2327
  %v2329 = vpop.f32.mrb[0].mxu0
  %2330 = vmatprep.mubr.bf16.mxu0 0
  %2331 = vmatmul.mubr.bf16.gmra.mrb[0].mxu0 %v1854
  %v2332 = vpop.f32.mrb[0].mxu0
  %v2333 = vadd.f32 %v1272, %v2332
  %v2334 = vpop.f32.mrb[0].mxu0
  %v2335 = vpop.f32.mrb[0].mxu0
  %v2336 = vadd.f32 %v1275, %v2335
  %v2337 = vpop.f32.mrb[0].mxu0
  %2338 = vmatprep.mubr.bf16.mxu0 0
  %2339 = vmatmul.mubr.bf16.gmra.mrb[0].mxu0 %v1857
  %v2340 = vpop.f32.mrb[0].mxu0
  %v2341 = vadd.f32 %v1280, %v2340
  %v2342 = vpop.f32.mrb[0].mxu0
  %v2343 = vpop.f32.mrb[0].mxu0
  %v2344 = vadd.f32 %v1283, %v2343
  %v2345 = vpop.f32.mrb[0].mxu0
  %2346 = vmatprep.mubr.bf16.mxu0 0
  %2347 = vmatmul.mubr.bf16.gmra.mrb[0].mxu0 %v1860
  %v2348 = vpop.f32.mrb[0].mxu0
  %v2349 = vadd.f32 %v1288, %v2348
  %v2350 = vpop.f32.mrb[0].mxu0
  %v2351 = vpop.f32.mrb[0].mxu0
  %v2352 = vadd.f32 %v1291, %v2351
  %v2353 = vpop.f32.mrb[0].mxu0
  %2354 = vmatprep.mubr.bf16.mxu0 0
  %2355 = vmatmul.mubr.bf16.gmra.mrb[0].mxu0 %v1863
  %v2356 = vpop.f32.mrb[0].mxu0
  %v2357 = vadd.f32 %v1296, %v2356
  %v2358 = vpop.f32.mrb[0].mxu0
  %v2359 = vpop.f32.mrb[0].mxu0
  %v2360 = vadd.f32 %v1299, %v2359
  %v2361 = vpop.f32.mrb[0].mxu0
  %2362 = vmatprep.mubr.bf16.mxu0 0
  %2363 = vmatmul.mubr.bf16.gmra.mrb[0].mxu0 %v1866
  %v2364 = vpop.f32.mrb[0].mxu0
  %v2365 = vadd.f32 %v1304, %v2364
  %v2366 = vpop.f32.mrb[0].mxu0
  %v2367 = vpop.f32.mrb[0].mxu0
  %v2368 = vadd.f32 %v1307, %v2367
  %v2369 = vpop.f32.mrb[0].mxu0
  %2370 = vmatprep.mubr.bf16.mxu0 0
  %2371 = vmatmul.mubr.bf16.gmra.mrb[0].mxu0 %v1869
  %v2372 = vpop.f32.mrb[0].mxu0
  %v2373 = vadd.f32 %v1312, %v2372
  %v2374 = vpop.f32.mrb[0].mxu0
  %v2375 = vpop.f32.mrb[0].mxu0
  %v2376 = vadd.f32 %v1315, %v2375
  %v2377 = vpop.f32.mrb[0].mxu0
  %2378 = vmatprep.mubr.bf16.mxu0 0
  %2379 = vmatmul.mubr.bf16.gmra.mrb[0].mxu0 %v1872
  %v2380 = vpop.f32.mrb[0].mxu0
  %v2381 = vadd.f32 %v1320, %v2380
  %v2382 = vpop.f32.mrb[0].mxu0
  %v2383 = vpop.f32.mrb[0].mxu0
  %v2384 = vadd.f32 %v1323, %v2383
  %v2385 = vpop.f32.mrb[0].mxu0
  %2386 = vmatprep.mubr.bf16.mxu0 0
  %2387 = vmatmul.mubr.bf16.gmra.mrb[0].mxu0 %v1875
  %v2388 = vpop.f32.mrb[0].mxu0
  %v2389 = vadd.f32 %v1328, %v2388
  %v2390 = vpop.f32.mrb[0].mxu0
  %v2391 = vpop.f32.mrb[0].mxu0
  %v2392 = vadd.f32 %v1331, %v2391
  %v2393 = vpop.f32.mrb[0].mxu0
  %2394 = vmatprep.mubr.bf16.mxu0 0
  %2395 = vmatmul.mubr.bf16.gmra.mrb[0].mxu0 %v1878
  %v2396 = vpop.f32.mrb[0].mxu0
  %v2397 = vadd.f32 %v1336, %v2396
  %v2398 = vpop.f32.mrb[0].mxu0
  %v2399 = vpop.f32.mrb[0].mxu0
  %v2400 = vadd.f32 %v1339, %v2399
  %v2401 = vpop.f32.mrb[0].mxu0
  %2402 = vmatprep.mubr.bf16.mxu0 0
  %2403 = vmatmul.mubr.bf16.gmra.mrb[0].mxu0 %v1881
  %v2404 = vpop.f32.mrb[0].mxu0
  %v2405 = vadd.f32 %v1344, %v2404
  %v2406 = vpop.f32.mrb[0].mxu0
  %v2407 = vpop.f32.mrb[0].mxu0
  %v2408 = vadd.f32 %v1347, %v2407
  %v2409 = vpop.f32.mrb[0].mxu0
  %2410 = vmatprep.mubr.bf16.mxu0 0
  %2411 = vmatmul.mubr.bf16.gmra.mrb[0].mxu0 %v1884
  %v2412 = vpop.f32.mrb[0].mxu0
  %v2413 = vadd.f32 %v1352, %v2412
  %v2414 = vpop.f32.mrb[0].mxu0
  %v2415 = vpop.f32.mrb[0].mxu0
  %v2416 = vadd.f32 %v1355, %v2415
  %v2417 = vpop.f32.mrb[0].mxu0
  %2418 = vmatprep.mubr.bf16.mxu0 0
  %2419 = vmatmul.mubr.bf16.gmra.mrb[0].mxu0 %v1887
  %v2420 = vpop.f32.mrb[0].mxu0
  %v2421 = vadd.f32 %v1360, %v2420
  %v2422 = vpop.f32.mrb[0].mxu0
  %v2423 = vpop.f32.mrb[0].mxu0
  %v2424 = vadd.f32 %v1363, %v2423
  %v2425 = vpop.f32.mrb[0].mxu0
  %2426 = vmatprep.mubr.bf16.mxu0 0
  %2427 = vmatmul.mubr.bf16.gmra.mrb[0].mxu0 %v1890
  %v2428 = vpop.f32.mrb[0].mxu0
  %v2429 = vadd.f32 %v1368, %v2428
  %v2430 = vpop.f32.mrb[0].mxu0
  %v2431 = vpop.f32.mrb[0].mxu0
  %v2432 = vadd.f32 %v1371, %v2431
  %v2433 = vpop.f32.mrb[0].mxu0
  %2434 = vmatprep.mubr.bf16.mxu0 0
  %2435 = vmatmul.mubr.bf16.gmra.mrb[0].mxu0 %v1893
  %v2436 = vpop.f32.mrb[0].mxu0
  %v2437 = vadd.f32 %v1376, %v2436
  %v2438 = vpop.f32.mrb[0].mxu0
  %v2439 = vpop.f32.mrb[0].mxu0
  %v2440 = vadd.f32 %v1379, %v2439
  %v2441 = vpop.f32.mrb[0].mxu0
  %2442 = vdwg.mxu0
  %v2444 = vlaneseq
  %v2445 = vshrl.u32 %v2444, 7
  %v2446 = vsub.s32 0, %v2445
  %v2447 = vrot.slane %v38, %v2446
  %v2449 = vadd.f32 %v1933, %v2447
  %v2450 = vadd.f32 %v1936, %v2447
  %v2451 = vadd.f32 %v1941, %v2447
  %v2452 = vadd.f32 %v1944, %v2447
  %v2453 = vadd.f32 %v1949, %v2447
  %v2454 = vadd.f32 %v1952, %v2447
  %v2455 = vadd.f32 %v1957, %v2447
  %v2456 = vadd.f32 %v1960, %v2447
  %v2457 = vadd.f32 %v1965, %v2447
  %v2458 = vadd.f32 %v1968, %v2447
  %v2459 = vadd.f32 %v1973, %v2447
  %v2460 = vadd.f32 %v1976, %v2447
  %v2461 = vadd.f32 %v1981, %v2447
  %v2462 = vadd.f32 %v1984, %v2447
  %v2463 = vadd.f32 %v1989, %v2447
  %v2464 = vadd.f32 %v1992, %v2447
  %v2465 = vadd.f32 %v1997, %v2447
  %v2466 = vadd.f32 %v2000, %v2447
  %v2467 = vadd.f32 %v2005, %v2447
  %v2468 = vadd.f32 %v2008, %v2447
  %v2469 = vadd.f32 %v2013, %v2447
  %v2470 = vadd.f32 %v2016, %v2447
  %v2471 = vadd.f32 %v2021, %v2447
  %v2472 = vadd.f32 %v2024, %v2447
  %v2473 = vadd.f32 %v2029, %v2447
  %v2474 = vadd.f32 %v2032, %v2447
  %v2475 = vadd.f32 %v2037, %v2447
  %v2476 = vadd.f32 %v2040, %v2447
  %v2477 = vadd.f32 %v2045, %v2447
  %v2478 = vadd.f32 %v2048, %v2447
  %v2479 = vadd.f32 %v2053, %v2447
  %v2480 = vadd.f32 %v2056, %v2447
  %v2481 = vadd.f32 %v2061, %v2447
  %v2482 = vadd.f32 %v2064, %v2447
  %v2483 = vadd.f32 %v2069, %v2447
  %v2484 = vadd.f32 %v2072, %v2447
  %v2485 = vadd.f32 %v2077, %v2447
  %v2486 = vadd.f32 %v2080, %v2447
  %v2487 = vadd.f32 %v2085, %v2447
  %v2488 = vadd.f32 %v2088, %v2447
  %v2489 = vadd.f32 %v2093, %v2447
  %v2490 = vadd.f32 %v2096, %v2447
  %v2491 = vadd.f32 %v2101, %v2447
  %v2492 = vadd.f32 %v2104, %v2447
  %v2493 = vadd.f32 %v2109, %v2447
  %v2494 = vadd.f32 %v2112, %v2447
  %v2495 = vadd.f32 %v2117, %v2447
  %v2496 = vadd.f32 %v2120, %v2447
  %v2497 = vadd.f32 %v2125, %v2447
  %v2498 = vadd.f32 %v2128, %v2447
  %v2499 = vadd.f32 %v2133, %v2447
  %v2500 = vadd.f32 %v2136, %v2447
  %v2501 = vadd.f32 %v2141, %v2447
  %v2502 = vadd.f32 %v2144, %v2447
  %v2503 = vadd.f32 %v2149, %v2447
  %v2504 = vadd.f32 %v2152, %v2447
  %v2505 = vadd.f32 %v2157, %v2447
  %v2506 = vadd.f32 %v2160, %v2447
  %v2507 = vadd.f32 %v2165, %v2447
  %v2508 = vadd.f32 %v2168, %v2447
  %v2509 = vadd.f32 %v2173, %v2447
  %v2510 = vadd.f32 %v2176, %v2447
  %v2511 = vadd.f32 %v2181, %v2447
  %v2512 = vadd.f32 %v2184, %v2447
  %v2513 = vadd.f32 %v2189, %v2447
  %v2514 = vadd.f32 %v2192, %v2447
  %v2515 = vadd.f32 %v2197, %v2447
  %v2516 = vadd.f32 %v2200, %v2447
  %v2517 = vadd.f32 %v2205, %v2447
  %v2518 = vadd.f32 %v2208, %v2447
  %v2519 = vadd.f32 %v2213, %v2447
  %v2520 = vadd.f32 %v2216, %v2447
  %v2521 = vadd.f32 %v2221, %v2447
  %v2522 = vadd.f32 %v2224, %v2447
  %v2523 = vadd.f32 %v2229, %v2447
  %v2524 = vadd.f32 %v2232, %v2447
  %v2525 = vadd.f32 %v2237, %v2447
  %v2526 = vadd.f32 %v2240, %v2447
  %v2527 = vadd.f32 %v2245, %v2447
  %v2528 = vadd.f32 %v2248, %v2447
  %v2529 = vadd.f32 %v2253, %v2447
  %v2530 = vadd.f32 %v2256, %v2447
  %v2531 = vadd.f32 %v2261, %v2447
  %v2532 = vadd.f32 %v2264, %v2447
  %v2533 = vadd.f32 %v2269, %v2447
  %v2534 = vadd.f32 %v2272, %v2447
  %v2535 = vadd.f32 %v2277, %v2447
  %v2536 = vadd.f32 %v2280, %v2447
  %v2537 = vadd.f32 %v2285, %v2447
  %v2538 = vadd.f32 %v2288, %v2447
  %v2539 = vadd.f32 %v2293, %v2447
  %v2540 = vadd.f32 %v2296, %v2447
  %v2541 = vadd.f32 %v2301, %v2447
  %v2542 = vadd.f32 %v2304, %v2447
  %v2543 = vadd.f32 %v2309, %v2447
  %v2544 = vadd.f32 %v2312, %v2447
  %v2545 = vadd.f32 %v2317, %v2447
  %v2546 = vadd.f32 %v2320, %v2447
  %v2547 = vadd.f32 %v2325, %v2447
  %v2548 = vadd.f32 %v2328, %v2447
  %v2549 = vadd.f32 %v2333, %v2447
  %v2550 = vadd.f32 %v2336, %v2447
  %v2551 = vadd.f32 %v2341, %v2447
  %v2552 = vadd.f32 %v2344, %v2447
  %v2553 = vadd.f32 %v2349, %v2447
  %v2554 = vadd.f32 %v2352, %v2447
  %v2555 = vadd.f32 %v2357, %v2447
  %v2556 = vadd.f32 %v2360, %v2447
  %v2557 = vadd.f32 %v2365, %v2447
  %v2558 = vadd.f32 %v2368, %v2447
  %v2559 = vadd.f32 %v2373, %v2447
  %v2560 = vadd.f32 %v2376, %v2447
  %v2561 = vadd.f32 %v2381, %v2447
  %v2562 = vadd.f32 %v2384, %v2447
  %v2563 = vadd.f32 %v2389, %v2447
  %v2564 = vadd.f32 %v2392, %v2447
  %v2565 = vadd.f32 %v2397, %v2447
  %v2566 = vadd.f32 %v2400, %v2447
  %v2567 = vadd.f32 %v2405, %v2447
  %v2568 = vadd.f32 %v2408, %v2447
  %v2569 = vadd.f32 %v2413, %v2447
  %v2570 = vadd.f32 %v2416, %v2447
  %v2571 = vadd.f32 %v2421, %v2447
  %v2572 = vadd.f32 %v2424, %v2447
  %v2573 = vadd.f32 %v2429, %v2447
  %v2574 = vadd.f32 %v2432, %v2447
  %v2575 = vadd.f32 %v2437, %v2447
  %v2576 = vadd.f32 %v2440, %v2447
  %v2577 = vmax.f32 %v2449, 0.0
  %v2578 = vmax.f32 %v2450, 0.0
  %v2579 = vmax.f32 %v2451, 0.0
  %v2580 = vmax.f32 %v2452, 0.0
  %v2581 = vmax.f32 %v2453, 0.0
  %v2582 = vmax.f32 %v2454, 0.0
  %v2583 = vmax.f32 %v2455, 0.0
  %v2584 = vmax.f32 %v2456, 0.0
  %v2585 = vmax.f32 %v2457, 0.0
  %v2586 = vmax.f32 %v2458, 0.0
  %v2587 = vmax.f32 %v2459, 0.0
  %v2588 = vmax.f32 %v2460, 0.0
  %v2589 = vmax.f32 %v2461, 0.0
  %v2590 = vmax.f32 %v2462, 0.0
  %v2591 = vmax.f32 %v2463, 0.0
  %v2592 = vmax.f32 %v2464, 0.0
  %v2593 = vmax.f32 %v2465, 0.0
  %v2594 = vmax.f32 %v2466, 0.0
  %v2595 = vmax.f32 %v2467, 0.0
  %v2596 = vmax.f32 %v2468, 0.0
  %v2597 = vmax.f32 %v2469, 0.0
  %v2598 = vmax.f32 %v2470, 0.0
  %v2599 = vmax.f32 %v2471, 0.0
  %v2600 = vmax.f32 %v2472, 0.0
  %v2601 = vmax.f32 %v2473, 0.0
  %v2602 = vmax.f32 %v2474, 0.0
  %v2603 = vmax.f32 %v2475, 0.0
  %v2604 = vmax.f32 %v2476, 0.0
  %v2605 = vmax.f32 %v2477, 0.0
  %v2606 = vmax.f32 %v2478, 0.0
  %v2607 = vmax.f32 %v2479, 0.0
  %v2608 = vmax.f32 %v2480, 0.0
  %v2609 = vmax.f32 %v2481, 0.0
  %v2610 = vmax.f32 %v2482, 0.0
  %v2611 = vmax.f32 %v2483, 0.0
  %v2612 = vmax.f32 %v2484, 0.0
  %v2613 = vmax.f32 %v2485, 0.0
  %v2614 = vmax.f32 %v2486, 0.0
  %v2615 = vmax.f32 %v2487, 0.0
  %v2616 = vmax.f32 %v2488, 0.0
  %v2617 = vmax.f32 %v2489, 0.0
  %v2618 = vmax.f32 %v2490, 0.0
  %v2619 = vmax.f32 %v2491, 0.0
  %v2620 = vmax.f32 %v2492, 0.0
  %v2621 = vmax.f32 %v2493, 0.0
  %v2622 = vmax.f32 %v2494, 0.0
  %v2623 = vmax.f32 %v2495, 0.0
  %v2624 = vmax.f32 %v2496, 0.0
  %v2625 = vmax.f32 %v2497, 0.0
  %v2626 = vmax.f32 %v2498, 0.0
  %v2627 = vmax.f32 %v2499, 0.0
  %v2628 = vmax.f32 %v2500, 0.0
  %v2629 = vmax.f32 %v2501, 0.0
  %v2630 = vmax.f32 %v2502, 0.0
  %v2631 = vmax.f32 %v2503, 0.0
  %v2632 = vmax.f32 %v2504, 0.0
  %v2633 = vmax.f32 %v2505, 0.0
  %v2634 = vmax.f32 %v2506, 0.0
  %v2635 = vmax.f32 %v2507, 0.0
  %v2636 = vmax.f32 %v2508, 0.0
  %v2637 = vmax.f32 %v2509, 0.0
  %v2638 = vmax.f32 %v2510, 0.0
  %v2639 = vmax.f32 %v2511, 0.0
  %v2640 = vmax.f32 %v2512, 0.0
  %v2641 = vmax.f32 %v2513, 0.0
  %v2642 = vmax.f32 %v2514, 0.0
  %v2643 = vmax.f32 %v2515, 0.0
  %v2644 = vmax.f32 %v2516, 0.0
  %v2645 = vmax.f32 %v2517, 0.0
  %v2646 = vmax.f32 %v2518, 0.0
  %v2647 = vmax.f32 %v2519, 0.0
  %v2648 = vmax.f32 %v2520, 0.0
  %v2649 = vmax.f32 %v2521, 0.0
  %v2650 = vmax.f32 %v2522, 0.0
  %v2651 = vmax.f32 %v2523, 0.0
  %v2652 = vmax.f32 %v2524, 0.0
  %v2653 = vmax.f32 %v2525, 0.0
  %v2654 = vmax.f32 %v2526, 0.0
  %v2655 = vmax.f32 %v2527, 0.0
  %v2656 = vmax.f32 %v2528, 0.0
  %v2657 = vmax.f32 %v2529, 0.0
  %v2658 = vmax.f32 %v2530, 0.0
  %v2659 = vmax.f32 %v2531, 0.0
  %v2660 = vmax.f32 %v2532, 0.0
  %v2661 = vmax.f32 %v2533, 0.0
  %v2662 = vmax.f32 %v2534, 0.0
  %v2663 = vmax.f32 %v2535, 0.0
  %v2664 = vmax.f32 %v2536, 0.0
  %v2665 = vmax.f32 %v2537, 0.0
  %v2666 = vmax.f32 %v2538, 0.0
  %v2667 = vmax.f32 %v2539, 0.0
  %v2668 = vmax.f32 %v2540, 0.0
  %v2669 = vmax.f32 %v2541, 0.0
  %v2670 = vmax.f32 %v2542, 0.0
  %v2671 = vmax.f32 %v2543, 0.0
  %v2672 = vmax.f32 %v2544, 0.0
  %v2673 = vmax.f32 %v2545, 0.0
  %v2674 = vmax.f32 %v2546, 0.0
  %v2675 = vmax.f32 %v2547, 0.0
  %v2676 = vmax.f32 %v2548, 0.0
  %v2677 = vmax.f32 %v2549, 0.0
  %v2678 = vmax.f32 %v2550, 0.0
  %v2679 = vmax.f32 %v2551, 0.0
  %v2680 = vmax.f32 %v2552, 0.0
  %v2681 = vmax.f32 %v2553, 0.0
  %v2682 = vmax.f32 %v2554, 0.0
  %v2683 = vmax.f32 %v2555, 0.0
  %v2684 = vmax.f32 %v2556, 0.0
  %v2685 = vmax.f32 %v2557, 0.0
  %v2686 = vmax.f32 %v2558, 0.0
  %v2687 = vmax.f32 %v2559, 0.0
  %v2688 = vmax.f32 %v2560, 0.0
  %v2689 = vmax.f32 %v2561, 0.0
  %v2690 = vmax.f32 %v2562, 0.0
  %v2691 = vmax.f32 %v2563, 0.0
  %v2692 = vmax.f32 %v2564, 0.0
  %v2693 = vmax.f32 %v2565, 0.0
  %v2694 = vmax.f32 %v2566, 0.0
  %v2695 = vmax.f32 %v2567, 0.0
  %v2696 = vmax.f32 %v2568, 0.0
  %v2697 = vmax.f32 %v2569, 0.0
  %v2698 = vmax.f32 %v2570, 0.0
  %v2699 = vmax.f32 %v2571, 0.0
  %v2700 = vmax.f32 %v2572, 0.0
  %v2701 = vmax.f32 %v2573, 0.0
  %v2702 = vmax.f32 %v2574, 0.0
  %v2703 = vmax.f32 %v2575, 0.0
  %v2704 = vmax.f32 %v2576, 0.0
  %v2705 = vpack.c.bf16 %v2578, %v2577
  %v2706 = vpack.c.bf16 %v2580, %v2579
  %v2707 = vpack.c.bf16 %v2582, %v2581
  %v2708 = vpack.c.bf16 %v2584, %v2583
  %v2709 = vpack.c.bf16 %v2586, %v2585
  %v2710 = vpack.c.bf16 %v2588, %v2587
  %v2711 = vpack.c.bf16 %v2590, %v2589
  %v2712 = vpack.c.bf16 %v2592, %v2591
  %v2713 = vpack.c.bf16 %v2594, %v2593
  %v2714 = vpack.c.bf16 %v2596, %v2595
  %v2715 = vpack.c.bf16 %v2598, %v2597
  %v2716 = vpack.c.bf16 %v2600, %v2599
  %v2717 = vpack.c.bf16 %v2602, %v2601
  %v2718 = vpack.c.bf16 %v2604, %v2603
  %v2719 = vpack.c.bf16 %v2606, %v2605
  %v2720 = vpack.c.bf16 %v2608, %v2607
  %v2721 = vpack.c.bf16 %v2610, %v2609
  %v2722 = vpack.c.bf16 %v2612, %v2611
  %v2723 = vpack.c.bf16 %v2614, %v2613
  %v2724 = vpack.c.bf16 %v2616, %v2615
  %v2725 = vpack.c.bf16 %v2618, %v2617
  %v2726 = vpack.c.bf16 %v2620, %v2619
  %v2727 = vpack.c.bf16 %v2622, %v2621
  %v2728 = vpack.c.bf16 %v2624, %v2623
  %v2729 = vpack.c.bf16 %v2626, %v2625
  %v2730 = vpack.c.bf16 %v2628, %v2627
  %v2731 = vpack.c.bf16 %v2630, %v2629
  %v2732 = vpack.c.bf16 %v2632, %v2631
  %v2733 = vpack.c.bf16 %v2634, %v2633
  %v2734 = vpack.c.bf16 %v2636, %v2635
  %v2735 = vpack.c.bf16 %v2638, %v2637
  %v2736 = vpack.c.bf16 %v2640, %v2639
  %v2737 = vpack.c.bf16 %v2642, %v2641
  %v2738 = vpack.c.bf16 %v2644, %v2643
  %v2739 = vpack.c.bf16 %v2646, %v2645
  %v2740 = vpack.c.bf16 %v2648, %v2647
  %v2741 = vpack.c.bf16 %v2650, %v2649
  %v2742 = vpack.c.bf16 %v2652, %v2651
  %v2743 = vpack.c.bf16 %v2654, %v2653
  %v2744 = vpack.c.bf16 %v2656, %v2655
  %v2745 = vpack.c.bf16 %v2658, %v2657
  %v2746 = vpack.c.bf16 %v2660, %v2659
  %v2747 = vpack.c.bf16 %v2662, %v2661
  %v2748 = vpack.c.bf16 %v2664, %v2663
  %v2749 = vpack.c.bf16 %v2666, %v2665
  %v2750 = vpack.c.bf16 %v2668, %v2667
  %v2751 = vpack.c.bf16 %v2670, %v2669
  %v2752 = vpack.c.bf16 %v2672, %v2671
  %v2753 = vpack.c.bf16 %v2674, %v2673
  %v2754 = vpack.c.bf16 %v2676, %v2675
  %v2755 = vpack.c.bf16 %v2678, %v2677
  %v2756 = vpack.c.bf16 %v2680, %v2679
  %v2757 = vpack.c.bf16 %v2682, %v2681
  %v2758 = vpack.c.bf16 %v2684, %v2683
  %v2759 = vpack.c.bf16 %v2686, %v2685
  %v2760 = vpack.c.bf16 %v2688, %v2687
  %v2761 = vpack.c.bf16 %v2690, %v2689
  %v2762 = vpack.c.bf16 %v2692, %v2691
  %v2763 = vpack.c.bf16 %v2694, %v2693
  %v2764 = vpack.c.bf16 %v2696, %v2695
  %v2765 = vpack.c.bf16 %v2698, %v2697
  %v2766 = vpack.c.bf16 %v2700, %v2699
  %v2767 = vpack.c.bf16 %v2702, %v2701
  %v2768 = vpack.c.bf16 %v2704, %v2703
  %v2770 = vlaneseq
  %v2771 = vshrl.u32 %v2770, 7
  %v2772 = vsub.s32 0, %v2771
  %v2773 = vrot.slane %v47, %v2772
  %v2783 = vunpack.c.l.b16 %v39
  %v2784 = vunpack.c.l.b16 %v40
  %v2785 = vunpack.c.l.b16 %v41
  %v2786 = vunpack.c.l.b16 %v42
  %v2787 = vunpack.c.l.b16 %v43
  %v2788 = vunpack.c.l.b16 %v44
  %v2789 = vunpack.c.l.b16 %v45
  %v2790 = vunpack.c.l.b16 %v46
  %v2791 = vpack.c.b16 %v2784, %v2783
  %v2792 = vpack.c.b16 %v2786, %v2785
  %v2793 = vpack.c.b16 %v2788, %v2787
  %v2794 = vpack.c.b16 %v2790, %v2789
  %vm2799 = vcmask 523264
  %v2801 = vsel %vm2799, %v2705, 0
  %v2804 = vsel %vm2799, %v2706, 0
  %v2807 = vsel %vm2799, %v2707, 0
  %v2810 = vsel %vm2799, %v2708, 0
  %v2813 = vsel %vm2799, %v2709, 0
  %v2816 = vsel %vm2799, %v2710, 0
  %v2819 = vsel %vm2799, %v2711, 0
  %v2822 = vsel %vm2799, %v2712, 0
  %v2825 = vsel %vm2799, %v2713, 0
  %v2828 = vsel %vm2799, %v2714, 0
  %v2831 = vsel %vm2799, %v2715, 0
  %v2834 = vsel %vm2799, %v2716, 0
  %v2837 = vsel %vm2799, %v2717, 0
  %v2840 = vsel %vm2799, %v2718, 0
  %v2843 = vsel %vm2799, %v2719, 0
  %v2846 = vsel %vm2799, %v2720, 0
  %v2849 = vsel %vm2799, %v2721, 0
  %v2852 = vsel %vm2799, %v2722, 0
  %v2855 = vsel %vm2799, %v2723, 0
  %v2858 = vsel %vm2799, %v2724, 0
  %v2861 = vsel %vm2799, %v2725, 0
  %v2864 = vsel %vm2799, %v2726, 0
  %v2867 = vsel %vm2799, %v2727, 0
  %v2870 = vsel %vm2799, %v2728, 0
  %v2873 = vsel %vm2799, %v2729, 0
  %v2876 = vsel %vm2799, %v2730, 0
  %v2879 = vsel %vm2799, %v2731, 0
  %v2882 = vsel %vm2799, %v2732, 0
  %v2885 = vsel %vm2799, %v2733, 0
  %v2888 = vsel %vm2799, %v2734, 0
  %v2891 = vsel %vm2799, %v2735, 0
  %v2894 = vsel %vm2799, %v2736, 0
  %v2897 = vsel %vm2799, %v2737, 0
  %v2900 = vsel %vm2799, %v2738, 0
  %v2903 = vsel %vm2799, %v2739, 0
  %v2906 = vsel %vm2799, %v2740, 0
  %v2909 = vsel %vm2799, %v2741, 0
  %v2912 = vsel %vm2799, %v2742, 0
  %v2915 = vsel %vm2799, %v2743, 0
  %v2918 = vsel %vm2799, %v2744, 0
  %v2921 = vsel %vm2799, %v2745, 0
  %v2924 = vsel %vm2799, %v2746, 0
  %v2927 = vsel %vm2799, %v2747, 0
  %v2930 = vsel %vm2799, %v2748, 0
  %v2933 = vsel %vm2799, %v2749, 0
  %v2936 = vsel %vm2799, %v2750, 0
  %v2939 = vsel %vm2799, %v2751, 0
  %v2942 = vsel %vm2799, %v2752, 0
  %v2945 = vsel %vm2799, %v2753, 0
  %v2948 = vsel %vm2799, %v2754, 0
  %v2951 = vsel %vm2799, %v2755, 0
  %v2954 = vsel %vm2799, %v2756, 0
  %v2957 = vsel %vm2799, %v2757, 0
  %v2960 = vsel %vm2799, %v2758, 0
  %v2963 = vsel %vm2799, %v2759, 0
  %v2966 = vsel %vm2799, %v2760, 0
  %v2969 = vsel %vm2799, %v2761, 0
  %v2972 = vsel %vm2799, %v2762, 0
  %v2975 = vsel %vm2799, %v2763, 0
  %v2978 = vsel %vm2799, %v2764, 0
  %v2981 = vsel %vm2799, %v2765, 0
  %v2984 = vsel %vm2799, %v2766, 0
  %v2987 = vsel %vm2799, %v2767, 0
  %v2990 = vsel %vm2799, %v2768, 0
  %2992 = vmatprep.subr.bf16.mxu0 0
  %2993 = vmatpush1.bf16.msra.mxu0 %v2791
  %2994 = vmatprep.subr.bf16.mxu0 0
  %2995 = vmatpush1.bf16.msra.mxu0 %v2792
  %2996 = vmatprep.subr.bf16.mxu0 0
  %2997 = vmatpush1.bf16.msra.mxu0 %v2793
  %2998 = vmatprep.subr.bf16.mxu0 0
  %2999 = vmatpush1.bf16.msra.mxu0 %v2794
  %3000 = vmatprep.subr.bf16.mxu0 0
  %3001 = vmatpush1.bf16.msra.mxu0 0
  %3002 = vmatprep.subr.bf16.mxu0 0
  %3003 = vmatpush1.bf16.msra.mxu0 0
  %3004 = vmatprep.subr.bf16.mxu0 0
  %3005 = vmatpush1.bf16.msra.mxu0 0
  %3006 = vmatprep.subr.bf16.mxu0 0
  %3007 = vmatpush1.bf16.msra.mxu0 0
  %3008 = vmatprep.subr.bf16.mxu0 0
  %3009 = vmatpush1.bf16.msra.mxu0 0
  %3010 = vmatprep.subr.bf16.mxu0 0
  %3011 = vmatpush1.bf16.msra.mxu0 0
  %3012 = vmatprep.subr.bf16.mxu0 0
  %3013 = vmatpush1.bf16.msra.mxu0 0
  %3014 = vmatprep.subr.bf16.mxu0 0
  %3015 = vmatpush1.bf16.msra.mxu0 0
  %3016 = vmatprep.subr.bf16.mxu0 0
  %3017 = vmatpush1.bf16.msra.mxu0 0
  %3018 = vmatprep.subr.bf16.mxu0 0
  %3019 = vmatpush1.bf16.msra.mxu0 0
  %3020 = vmatprep.subr.bf16.mxu0 0
  %3021 = vmatpush1.bf16.msra.mxu0 0
  %3022 = vmatprep.subr.bf16.mxu0 0
  %3023 = vmatpush1.bf16.msra.mxu0 0
  %3024 = vmatprep.mubr.bf16.mxu0 0
  %3025 = vmatmul.mubr.bf16.gmra.mrb[0].mxu0 %v2801
  %v3026 = vpop.f32.mrb[0].mxu0
  %v3027 = vadd.f32 %v2773, %v3026
  %v3028 = vpop.f32.mrb[0].mxu0
  %v3029 = vpop.f32.mrb[0].mxu0
  %v3030 = vadd.f32 %v2773, %v3029
  %v3031 = vpop.f32.mrb[0].mxu0
  %3032 = vmatprep.mubr.bf16.mxu0 0
  %3033 = vmatmul.mubr.bf16.gmra.mrb[0].mxu0 %v2804
  %v3034 = vpop.f32.mrb[0].mxu0
  %v3035 = vadd.f32 %v2773, %v3034
  %v3036 = vpop.f32.mrb[0].mxu0
  %v3037 = vpop.f32.mrb[0].mxu0
  %v3038 = vadd.f32 %v2773, %v3037
  %v3039 = vpop.f32.mrb[0].mxu0
  %3040 = vmatprep.mubr.bf16.mxu0 0
  %3041 = vmatmul.mubr.bf16.gmra.mrb[0].mxu0 %v2807
  %v3042 = vpop.f32.mrb[0].mxu0
  %v3043 = vadd.f32 %v2773, %v3042
  %v3044 = vpop.f32.mrb[0].mxu0
  %v3045 = vpop.f32.mrb[0].mxu0
  %v3046 = vadd.f32 %v2773, %v3045
  %v3047 = vpop.f32.mrb[0].mxu0
  %3048 = vmatprep.mubr.bf16.mxu0 0
  %3049 = vmatmul.mubr.bf16.gmra.mrb[0].mxu0 %v2810
  %v3050 = vpop.f32.mrb[0].mxu0
  %v3051 = vadd.f32 %v2773, %v3050
  %v3052 = vpop.f32.mrb[0].mxu0
  %v3053 = vpop.f32.mrb[0].mxu0
  %v3054 = vadd.f32 %v2773, %v3053
  %v3055 = vpop.f32.mrb[0].mxu0
  %3056 = vmatprep.mubr.bf16.mxu0 0
  %3057 = vmatmul.mubr.bf16.gmra.mrb[0].mxu0 %v2813
  %v3058 = vpop.f32.mrb[0].mxu0
  %v3059 = vadd.f32 %v2773, %v3058
  %v3060 = vpop.f32.mrb[0].mxu0
  %v3061 = vpop.f32.mrb[0].mxu0
  %v3062 = vadd.f32 %v2773, %v3061
  %v3063 = vpop.f32.mrb[0].mxu0
  %3064 = vmatprep.mubr.bf16.mxu0 0
  %3065 = vmatmul.mubr.bf16.gmra.mrb[0].mxu0 %v2816
  %v3066 = vpop.f32.mrb[0].mxu0
  %v3067 = vadd.f32 %v2773, %v3066
  %v3068 = vpop.f32.mrb[0].mxu0
  %v3069 = vpop.f32.mrb[0].mxu0
  %v3070 = vadd.f32 %v2773, %v3069
  %v3071 = vpop.f32.mrb[0].mxu0
  %3072 = vmatprep.mubr.bf16.mxu0 0
  %3073 = vmatmul.mubr.bf16.gmra.mrb[0].mxu0 %v2819
  %v3074 = vpop.f32.mrb[0].mxu0
  %v3075 = vadd.f32 %v2773, %v3074
  %v3076 = vpop.f32.mrb[0].mxu0
  %v3077 = vpop.f32.mrb[0].mxu0
  %v3078 = vadd.f32 %v2773, %v3077
  %v3079 = vpop.f32.mrb[0].mxu0
  %3080 = vmatprep.mubr.bf16.mxu0 0
  %3081 = vmatmul.mubr.bf16.gmra.mrb[0].mxu0 %v2822
  %v3082 = vpop.f32.mrb[0].mxu0
  %v3083 = vadd.f32 %v2773, %v3082
  %v3084 = vpop.f32.mrb[0].mxu0
  %v3085 = vpop.f32.mrb[0].mxu0
  %v3086 = vadd.f32 %v2773, %v3085
  %v3087 = vpop.f32.mrb[0].mxu0
  %3088 = vmatprep.mubr.bf16.mxu0 0
  %3089 = vmatmul.mubr.bf16.gmra.mrb[0].mxu0 %v2825
  %v3090 = vpop.f32.mrb[0].mxu0
  %v3091 = vadd.f32 %v2773, %v3090
  %v3092 = vpop.f32.mrb[0].mxu0
  %v3093 = vpop.f32.mrb[0].mxu0
  %v3094 = vadd.f32 %v2773, %v3093
  %v3095 = vpop.f32.mrb[0].mxu0
  %3096 = vmatprep.mubr.bf16.mxu0 0
  %3097 = vmatmul.mubr.bf16.gmra.mrb[0].mxu0 %v2828
  %v3098 = vpop.f32.mrb[0].mxu0
  %v3099 = vadd.f32 %v2773, %v3098
  %v3100 = vpop.f32.mrb[0].mxu0
  %v3101 = vpop.f32.mrb[0].mxu0
  %v3102 = vadd.f32 %v2773, %v3101
  %v3103 = vpop.f32.mrb[0].mxu0
  %3104 = vmatprep.mubr.bf16.mxu0 0
  %3105 = vmatmul.mubr.bf16.gmra.mrb[0].mxu0 %v2831
  %v3106 = vpop.f32.mrb[0].mxu0
  %v3107 = vadd.f32 %v2773, %v3106
  %v3108 = vpop.f32.mrb[0].mxu0
  %v3109 = vpop.f32.mrb[0].mxu0
  %v3110 = vadd.f32 %v2773, %v3109
  %v3111 = vpop.f32.mrb[0].mxu0
  %3112 = vmatprep.mubr.bf16.mxu0 0
  %3113 = vmatmul.mubr.bf16.gmra.mrb[0].mxu0 %v2834
  %v3114 = vpop.f32.mrb[0].mxu0
  %v3115 = vadd.f32 %v2773, %v3114
  %v3116 = vpop.f32.mrb[0].mxu0
  %v3117 = vpop.f32.mrb[0].mxu0
  %v3118 = vadd.f32 %v2773, %v3117
  %v3119 = vpop.f32.mrb[0].mxu0
  %3120 = vmatprep.mubr.bf16.mxu0 0
  %3121 = vmatmul.mubr.bf16.gmra.mrb[0].mxu0 %v2837
  %v3122 = vpop.f32.mrb[0].mxu0
  %v3123 = vadd.f32 %v2773, %v3122
  %v3124 = vpop.f32.mrb[0].mxu0
  %v3125 = vpop.f32.mrb[0].mxu0
  %v3126 = vadd.f32 %v2773, %v3125
  %v3127 = vpop.f32.mrb[0].mxu0
  %3128 = vmatprep.mubr.bf16.mxu0 0
  %3129 = vmatmul.mubr.bf16.gmra.mrb[0].mxu0 %v2840
  %v3130 = vpop.f32.mrb[0].mxu0
  %v3131 = vadd.f32 %v2773, %v3130
  %v3132 = vpop.f32.mrb[0].mxu0
  %v3133 = vpop.f32.mrb[0].mxu0
  %v3134 = vadd.f32 %v2773, %v3133
  %v3135 = vpop.f32.mrb[0].mxu0
  %3136 = vmatprep.mubr.bf16.mxu0 0
  %3137 = vmatmul.mubr.bf16.gmra.mrb[0].mxu0 %v2843
  %v3138 = vpop.f32.mrb[0].mxu0
  %v3139 = vadd.f32 %v2773, %v3138
  %v3140 = vpop.f32.mrb[0].mxu0
  %v3141 = vpop.f32.mrb[0].mxu0
  %v3142 = vadd.f32 %v2773, %v3141
  %v3143 = vpop.f32.mrb[0].mxu0
  %3144 = vmatprep.mubr.bf16.mxu0 0
  %3145 = vmatmul.mubr.bf16.gmra.mrb[0].mxu0 %v2846
  %v3146 = vpop.f32.mrb[0].mxu0
  %v3147 = vadd.f32 %v2773, %v3146
  %v3148 = vpop.f32.mrb[0].mxu0
  %v3149 = vpop.f32.mrb[0].mxu0
  %v3150 = vadd.f32 %v2773, %v3149
  %v3151 = vpop.f32.mrb[0].mxu0
  %3152 = vmatprep.mubr.bf16.mxu0 0
  %3153 = vmatmul.mubr.bf16.gmra.mrb[0].mxu0 %v2849
  %v3154 = vpop.f32.mrb[0].mxu0
  %v3155 = vadd.f32 %v2773, %v3154
  %v3156 = vpop.f32.mrb[0].mxu0
  %v3157 = vpop.f32.mrb[0].mxu0
  %v3158 = vadd.f32 %v2773, %v3157
  %v3159 = vpop.f32.mrb[0].mxu0
  %3160 = vmatprep.mubr.bf16.mxu0 0
  %3161 = vmatmul.mubr.bf16.gmra.mrb[0].mxu0 %v2852
  %v3162 = vpop.f32.mrb[0].mxu0
  %v3163 = vadd.f32 %v2773, %v3162
  %v3164 = vpop.f32.mrb[0].mxu0
  %v3165 = vpop.f32.mrb[0].mxu0
  %v3166 = vadd.f32 %v2773, %v3165
  %v3167 = vpop.f32.mrb[0].mxu0
  %3168 = vmatprep.mubr.bf16.mxu0 0
  %3169 = vmatmul.mubr.bf16.gmra.mrb[0].mxu0 %v2855
  %v3170 = vpop.f32.mrb[0].mxu0
  %v3171 = vadd.f32 %v2773, %v3170
  %v3172 = vpop.f32.mrb[0].mxu0
  %v3173 = vpop.f32.mrb[0].mxu0
  %v3174 = vadd.f32 %v2773, %v3173
  %v3175 = vpop.f32.mrb[0].mxu0
  %3176 = vmatprep.mubr.bf16.mxu0 0
  %3177 = vmatmul.mubr.bf16.gmra.mrb[0].mxu0 %v2858
  %v3178 = vpop.f32.mrb[0].mxu0
  %v3179 = vadd.f32 %v2773, %v3178
  %v3180 = vpop.f32.mrb[0].mxu0
  %v3181 = vpop.f32.mrb[0].mxu0
  %v3182 = vadd.f32 %v2773, %v3181
  %v3183 = vpop.f32.mrb[0].mxu0
  %3184 = vmatprep.mubr.bf16.mxu0 0
  %3185 = vmatmul.mubr.bf16.gmra.mrb[0].mxu0 %v2861
  %v3186 = vpop.f32.mrb[0].mxu0
  %v3187 = vadd.f32 %v2773, %v3186
  %v3188 = vpop.f32.mrb[0].mxu0
  %v3189 = vpop.f32.mrb[0].mxu0
  %v3190 = vadd.f32 %v2773, %v3189
  %v3191 = vpop.f32.mrb[0].mxu0
  %3192 = vmatprep.mubr.bf16.mxu0 0
  %3193 = vmatmul.mubr.bf16.gmra.mrb[0].mxu0 %v2864
  %v3194 = vpop.f32.mrb[0].mxu0
  %v3195 = vadd.f32 %v2773, %v3194
  %v3196 = vpop.f32.mrb[0].mxu0
  %v3197 = vpop.f32.mrb[0].mxu0
  %v3198 = vadd.f32 %v2773, %v3197
  %v3199 = vpop.f32.mrb[0].mxu0
  %3200 = vmatprep.mubr.bf16.mxu0 0
  %3201 = vmatmul.mubr.bf16.gmra.mrb[0].mxu0 %v2867
  %v3202 = vpop.f32.mrb[0].mxu0
  %v3203 = vadd.f32 %v2773, %v3202
  %v3204 = vpop.f32.mrb[0].mxu0
  %v3205 = vpop.f32.mrb[0].mxu0
  %v3206 = vadd.f32 %v2773, %v3205
  %v3207 = vpop.f32.mrb[0].mxu0
  %3208 = vmatprep.mubr.bf16.mxu0 0
  %3209 = vmatmul.mubr.bf16.gmra.mrb[0].mxu0 %v2870
  %v3210 = vpop.f32.mrb[0].mxu0
  %v3211 = vadd.f32 %v2773, %v3210
  %v3212 = vpop.f32.mrb[0].mxu0
  %v3213 = vpop.f32.mrb[0].mxu0
  %v3214 = vadd.f32 %v2773, %v3213
  %v3215 = vpop.f32.mrb[0].mxu0
  %3216 = vmatprep.mubr.bf16.mxu0 0
  %3217 = vmatmul.mubr.bf16.gmra.mrb[0].mxu0 %v2873
  %v3218 = vpop.f32.mrb[0].mxu0
  %v3219 = vadd.f32 %v2773, %v3218
  %v3220 = vpop.f32.mrb[0].mxu0
  %v3221 = vpop.f32.mrb[0].mxu0
  %v3222 = vadd.f32 %v2773, %v3221
  %v3223 = vpop.f32.mrb[0].mxu0
  %3224 = vmatprep.mubr.bf16.mxu0 0
  %3225 = vmatmul.mubr.bf16.gmra.mrb[0].mxu0 %v2876
  %v3226 = vpop.f32.mrb[0].mxu0
  %v3227 = vadd.f32 %v2773, %v3226
  %v3228 = vpop.f32.mrb[0].mxu0
  %v3229 = vpop.f32.mrb[0].mxu0
  %v3230 = vadd.f32 %v2773, %v3229
  %v3231 = vpop.f32.mrb[0].mxu0
  %3232 = vmatprep.mubr.bf16.mxu0 0
  %3233 = vmatmul.mubr.bf16.gmra.mrb[0].mxu0 %v2879
  %v3234 = vpop.f32.mrb[0].mxu0
  %v3235 = vadd.f32 %v2773, %v3234
  %v3236 = vpop.f32.mrb[0].mxu0
  %v3237 = vpop.f32.mrb[0].mxu0
  %v3238 = vadd.f32 %v2773, %v3237
  %v3239 = vpop.f32.mrb[0].mxu0
  %3240 = vmatprep.mubr.bf16.mxu0 0
  %3241 = vmatmul.mubr.bf16.gmra.mrb[0].mxu0 %v2882
  %v3242 = vpop.f32.mrb[0].mxu0
  %v3243 = vadd.f32 %v2773, %v3242
  %v3244 = vpop.f32.mrb[0].mxu0
  %v3245 = vpop.f32.mrb[0].mxu0
  %v3246 = vadd.f32 %v2773, %v3245
  %v3247 = vpop.f32.mrb[0].mxu0
  %3248 = vmatprep.mubr.bf16.mxu0 0
  %3249 = vmatmul.mubr.bf16.gmra.mrb[0].mxu0 %v2885
  %v3250 = vpop.f32.mrb[0].mxu0
  %v3251 = vadd.f32 %v2773, %v3250
  %v3252 = vpop.f32.mrb[0].mxu0
  %v3253 = vpop.f32.mrb[0].mxu0
  %v3254 = vadd.f32 %v2773, %v3253
  %v3255 = vpop.f32.mrb[0].mxu0
  %3256 = vmatprep.mubr.bf16.mxu0 0
  %3257 = vmatmul.mubr.bf16.gmra.mrb[0].mxu0 %v2888
  %v3258 = vpop.f32.mrb[0].mxu0
  %v3259 = vadd.f32 %v2773, %v3258
  %v3260 = vpop.f32.mrb[0].mxu0
  %v3261 = vpop.f32.mrb[0].mxu0
  %v3262 = vadd.f32 %v2773, %v3261
  %v3263 = vpop.f32.mrb[0].mxu0
  %3264 = vmatprep.mubr.bf16.mxu0 0
  %3265 = vmatmul.mubr.bf16.gmra.mrb[0].mxu0 %v2891
  %v3266 = vpop.f32.mrb[0].mxu0
  %v3267 = vadd.f32 %v2773, %v3266
  %v3268 = vpop.f32.mrb[0].mxu0
  %v3269 = vpop.f32.mrb[0].mxu0
  %v3270 = vadd.f32 %v2773, %v3269
  %v3271 = vpop.f32.mrb[0].mxu0
  %3272 = vmatprep.mubr.bf16.mxu0 0
  %3273 = vmatmul.mubr.bf16.gmra.mrb[0].mxu0 %v2894
  %v3274 = vpop.f32.mrb[0].mxu0
  %v3275 = vadd.f32 %v2773, %v3274
  %v3276 = vpop.f32.mrb[0].mxu0
  %v3277 = vpop.f32.mrb[0].mxu0
  %v3278 = vadd.f32 %v2773, %v3277
  %v3279 = vpop.f32.mrb[0].mxu0
  %3280 = vmatprep.mubr.bf16.mxu0 0
  %3281 = vmatmul.mubr.bf16.gmra.mrb[0].mxu0 %v2897
  %v3282 = vpop.f32.mrb[0].mxu0
  %v3283 = vadd.f32 %v2773, %v3282
  %v3284 = vpop.f32.mrb[0].mxu0
  %v3285 = vpop.f32.mrb[0].mxu0
  %v3286 = vadd.f32 %v2773, %v3285
  %v3287 = vpop.f32.mrb[0].mxu0
  %3288 = vmatprep.mubr.bf16.mxu0 0
  %3289 = vmatmul.mubr.bf16.gmra.mrb[0].mxu0 %v2900
  %v3290 = vpop.f32.mrb[0].mxu0
  %v3291 = vadd.f32 %v2773, %v3290
  %v3292 = vpop.f32.mrb[0].mxu0
  %v3293 = vpop.f32.mrb[0].mxu0
  %v3294 = vadd.f32 %v2773, %v3293
  %v3295 = vpop.f32.mrb[0].mxu0
  %3296 = vmatprep.mubr.bf16.mxu0 0
  %3297 = vmatmul.mubr.bf16.gmra.mrb[0].mxu0 %v2903
  %v3298 = vpop.f32.mrb[0].mxu0
  %v3299 = vadd.f32 %v2773, %v3298
  %v3300 = vpop.f32.mrb[0].mxu0
  %v3301 = vpop.f32.mrb[0].mxu0
  %v3302 = vadd.f32 %v2773, %v3301
  %v3303 = vpop.f32.mrb[0].mxu0
  %3304 = vmatprep.mubr.bf16.mxu0 0
  %3305 = vmatmul.mubr.bf16.gmra.mrb[0].mxu0 %v2906
  %v3306 = vpop.f32.mrb[0].mxu0
  %v3307 = vadd.f32 %v2773, %v3306
  %v3308 = vpop.f32.mrb[0].mxu0
  %v3309 = vpop.f32.mrb[0].mxu0
  %v3310 = vadd.f32 %v2773, %v3309
  %v3311 = vpop.f32.mrb[0].mxu0
  %3312 = vmatprep.mubr.bf16.mxu0 0
  %3313 = vmatmul.mubr.bf16.gmra.mrb[0].mxu0 %v2909
  %v3314 = vpop.f32.mrb[0].mxu0
  %v3315 = vadd.f32 %v2773, %v3314
  %v3316 = vpop.f32.mrb[0].mxu0
  %v3317 = vpop.f32.mrb[0].mxu0
  %v3318 = vadd.f32 %v2773, %v3317
  %v3319 = vpop.f32.mrb[0].mxu0
  %3320 = vmatprep.mubr.bf16.mxu0 0
  %3321 = vmatmul.mubr.bf16.gmra.mrb[0].mxu0 %v2912
  %v3322 = vpop.f32.mrb[0].mxu0
  %v3323 = vadd.f32 %v2773, %v3322
  %v3324 = vpop.f32.mrb[0].mxu0
  %v3325 = vpop.f32.mrb[0].mxu0
  %v3326 = vadd.f32 %v2773, %v3325
  %v3327 = vpop.f32.mrb[0].mxu0
  %3328 = vmatprep.mubr.bf16.mxu0 0
  %3329 = vmatmul.mubr.bf16.gmra.mrb[0].mxu0 %v2915
  %v3330 = vpop.f32.mrb[0].mxu0
  %v3331 = vadd.f32 %v2773, %v3330
  %v3332 = vpop.f32.mrb[0].mxu0
  %v3333 = vpop.f32.mrb[0].mxu0
  %v3334 = vadd.f32 %v2773, %v3333
  %v3335 = vpop.f32.mrb[0].mxu0
  %3336 = vmatprep.mubr.bf16.mxu0 0
  %3337 = vmatmul.mubr.bf16.gmra.mrb[0].mxu0 %v2918
  %v3338 = vpop.f32.mrb[0].mxu0
  %v3339 = vadd.f32 %v2773, %v3338
  %v3340 = vpop.f32.mrb[0].mxu0
  %v3341 = vpop.f32.mrb[0].mxu0
  %v3342 = vadd.f32 %v2773, %v3341
  %v3343 = vpop.f32.mrb[0].mxu0
  %3344 = vmatprep.mubr.bf16.mxu0 0
  %3345 = vmatmul.mubr.bf16.gmra.mrb[0].mxu0 %v2921
  %v3346 = vpop.f32.mrb[0].mxu0
  %v3347 = vadd.f32 %v2773, %v3346
  %v3348 = vpop.f32.mrb[0].mxu0
  %v3349 = vpop.f32.mrb[0].mxu0
  %v3350 = vadd.f32 %v2773, %v3349
  %v3351 = vpop.f32.mrb[0].mxu0
  %3352 = vmatprep.mubr.bf16.mxu0 0
  %3353 = vmatmul.mubr.bf16.gmra.mrb[0].mxu0 %v2924
  %v3354 = vpop.f32.mrb[0].mxu0
  %v3355 = vadd.f32 %v2773, %v3354
  %v3356 = vpop.f32.mrb[0].mxu0
  %v3357 = vpop.f32.mrb[0].mxu0
  %v3358 = vadd.f32 %v2773, %v3357
  %v3359 = vpop.f32.mrb[0].mxu0
  %3360 = vmatprep.mubr.bf16.mxu0 0
  %3361 = vmatmul.mubr.bf16.gmra.mrb[0].mxu0 %v2927
  %v3362 = vpop.f32.mrb[0].mxu0
  %v3363 = vadd.f32 %v2773, %v3362
  %v3364 = vpop.f32.mrb[0].mxu0
  %v3365 = vpop.f32.mrb[0].mxu0
  %v3366 = vadd.f32 %v2773, %v3365
  %v3367 = vpop.f32.mrb[0].mxu0
  %3368 = vmatprep.mubr.bf16.mxu0 0
  %3369 = vmatmul.mubr.bf16.gmra.mrb[0].mxu0 %v2930
  %v3370 = vpop.f32.mrb[0].mxu0
  %v3371 = vadd.f32 %v2773, %v3370
  %v3372 = vpop.f32.mrb[0].mxu0
  %v3373 = vpop.f32.mrb[0].mxu0
  %v3374 = vadd.f32 %v2773, %v3373
  %v3375 = vpop.f32.mrb[0].mxu0
  %3376 = vmatprep.mubr.bf16.mxu0 0
  %3377 = vmatmul.mubr.bf16.gmra.mrb[0].mxu0 %v2933
  %v3378 = vpop.f32.mrb[0].mxu0
  %v3379 = vadd.f32 %v2773, %v3378
  %v3380 = vpop.f32.mrb[0].mxu0
  %v3381 = vpop.f32.mrb[0].mxu0
  %v3382 = vadd.f32 %v2773, %v3381
  %v3383 = vpop.f32.mrb[0].mxu0
  %3384 = vmatprep.mubr.bf16.mxu0 0
  %3385 = vmatmul.mubr.bf16.gmra.mrb[0].mxu0 %v2936
  %v3386 = vpop.f32.mrb[0].mxu0
  %v3387 = vadd.f32 %v2773, %v3386
  %v3388 = vpop.f32.mrb[0].mxu0
  %v3389 = vpop.f32.mrb[0].mxu0
  %v3390 = vadd.f32 %v2773, %v3389
  %v3391 = vpop.f32.mrb[0].mxu0
  %3392 = vmatprep.mubr.bf16.mxu0 0
  %3393 = vmatmul.mubr.bf16.gmra.mrb[0].mxu0 %v2939
  %v3394 = vpop.f32.mrb[0].mxu0
  %v3395 = vadd.f32 %v2773, %v3394
  %v3396 = vpop.f32.mrb[0].mxu0
  %v3397 = vpop.f32.mrb[0].mxu0
  %v3398 = vadd.f32 %v2773, %v3397
  %v3399 = vpop.f32.mrb[0].mxu0
  %3400 = vmatprep.mubr.bf16.mxu0 0
  %3401 = vmatmul.mubr.bf16.gmra.mrb[0].mxu0 %v2942
  %v3402 = vpop.f32.mrb[0].mxu0
  %v3403 = vadd.f32 %v2773, %v3402
  %v3404 = vpop.f32.mrb[0].mxu0
  %v3405 = vpop.f32.mrb[0].mxu0
  %v3406 = vadd.f32 %v2773, %v3405
  %v3407 = vpop.f32.mrb[0].mxu0
  %3408 = vmatprep.mubr.bf16.mxu0 0
  %3409 = vmatmul.mubr.bf16.gmra.mrb[0].mxu0 %v2945
  %v3410 = vpop.f32.mrb[0].mxu0
  %v3411 = vadd.f32 %v2773, %v3410
  %v3412 = vpop.f32.mrb[0].mxu0
  %v3413 = vpop.f32.mrb[0].mxu0
  %v3414 = vadd.f32 %v2773, %v3413
  %v3415 = vpop.f32.mrb[0].mxu0
  %3416 = vmatprep.mubr.bf16.mxu0 0
  %3417 = vmatmul.mubr.bf16.gmra.mrb[0].mxu0 %v2948
  %v3418 = vpop.f32.mrb[0].mxu0
  %v3419 = vadd.f32 %v2773, %v3418
  %v3420 = vpop.f32.mrb[0].mxu0
  %v3421 = vpop.f32.mrb[0].mxu0
  %v3422 = vadd.f32 %v2773, %v3421
  %v3423 = vpop.f32.mrb[0].mxu0
  %3424 = vmatprep.mubr.bf16.mxu0 0
  %3425 = vmatmul.mubr.bf16.gmra.mrb[0].mxu0 %v2951
  %v3426 = vpop.f32.mrb[0].mxu0
  %v3427 = vadd.f32 %v2773, %v3426
  %v3428 = vpop.f32.mrb[0].mxu0
  %v3429 = vpop.f32.mrb[0].mxu0
  %v3430 = vadd.f32 %v2773, %v3429
  %v3431 = vpop.f32.mrb[0].mxu0
  %3432 = vmatprep.mubr.bf16.mxu0 0
  %3433 = vmatmul.mubr.bf16.gmra.mrb[0].mxu0 %v2954
  %v3434 = vpop.f32.mrb[0].mxu0
  %v3435 = vadd.f32 %v2773, %v3434
  %v3436 = vpop.f32.mrb[0].mxu0
  %v3437 = vpop.f32.mrb[0].mxu0
  %v3438 = vadd.f32 %v2773, %v3437
  %v3439 = vpop.f32.mrb[0].mxu0
  %3440 = vmatprep.mubr.bf16.mxu0 0
  %3441 = vmatmul.mubr.bf16.gmra.mrb[0].mxu0 %v2957
  %v3442 = vpop.f32.mrb[0].mxu0
  %v3443 = vadd.f32 %v2773, %v3442
  %v3444 = vpop.f32.mrb[0].mxu0
  %v3445 = vpop.f32.mrb[0].mxu0
  %v3446 = vadd.f32 %v2773, %v3445
  %v3447 = vpop.f32.mrb[0].mxu0
  %3448 = vmatprep.mubr.bf16.mxu0 0
  %3449 = vmatmul.mubr.bf16.gmra.mrb[0].mxu0 %v2960
  %v3450 = vpop.f32.mrb[0].mxu0
  %v3451 = vadd.f32 %v2773, %v3450
  %v3452 = vpop.f32.mrb[0].mxu0
  %v3453 = vpop.f32.mrb[0].mxu0
  %v3454 = vadd.f32 %v2773, %v3453
  %v3455 = vpop.f32.mrb[0].mxu0
  %3456 = vmatprep.mubr.bf16.mxu0 0
  %3457 = vmatmul.mubr.bf16.gmra.mrb[0].mxu0 %v2963
  %v3458 = vpop.f32.mrb[0].mxu0
  %v3459 = vadd.f32 %v2773, %v3458
  %v3460 = vpop.f32.mrb[0].mxu0
  %v3461 = vpop.f32.mrb[0].mxu0
  %v3462 = vadd.f32 %v2773, %v3461
  %v3463 = vpop.f32.mrb[0].mxu0
  %3464 = vmatprep.mubr.bf16.mxu0 0
  %3465 = vmatmul.mubr.bf16.gmra.mrb[0].mxu0 %v2966
  %v3466 = vpop.f32.mrb[0].mxu0
  %v3467 = vadd.f32 %v2773, %v3466
  %v3468 = vpop.f32.mrb[0].mxu0
  %v3469 = vpop.f32.mrb[0].mxu0
  %v3470 = vadd.f32 %v2773, %v3469
  %v3471 = vpop.f32.mrb[0].mxu0
  %3472 = vmatprep.mubr.bf16.mxu0 0
  %3473 = vmatmul.mubr.bf16.gmra.mrb[0].mxu0 %v2969
  %v3474 = vpop.f32.mrb[0].mxu0
  %v3475 = vadd.f32 %v2773, %v3474
  %v3476 = vpop.f32.mrb[0].mxu0
  %v3477 = vpop.f32.mrb[0].mxu0
  %v3478 = vadd.f32 %v2773, %v3477
  %v3479 = vpop.f32.mrb[0].mxu0
  %3480 = vmatprep.mubr.bf16.mxu0 0
  %3481 = vmatmul.mubr.bf16.gmra.mrb[0].mxu0 %v2972
  %v3482 = vpop.f32.mrb[0].mxu0
  %v3483 = vadd.f32 %v2773, %v3482
  %v3484 = vpop.f32.mrb[0].mxu0
  %v3485 = vpop.f32.mrb[0].mxu0
  %v3486 = vadd.f32 %v2773, %v3485
  %v3487 = vpop.f32.mrb[0].mxu0
  %3488 = vmatprep.mubr.bf16.mxu0 0
  %3489 = vmatmul.mubr.bf16.gmra.mrb[0].mxu0 %v2975
  %v3490 = vpop.f32.mrb[0].mxu0
  %v3491 = vadd.f32 %v2773, %v3490
  %v3492 = vpop.f32.mrb[0].mxu0
  %v3493 = vpop.f32.mrb[0].mxu0
  %v3494 = vadd.f32 %v2773, %v3493
  %v3495 = vpop.f32.mrb[0].mxu0
  %3496 = vmatprep.mubr.bf16.mxu0 0
  %3497 = vmatmul.mubr.bf16.gmra.mrb[0].mxu0 %v2978
  %v3498 = vpop.f32.mrb[0].mxu0
  %v3499 = vadd.f32 %v2773, %v3498
  %v3500 = vpop.f32.mrb[0].mxu0
  %v3501 = vpop.f32.mrb[0].mxu0
  %v3502 = vadd.f32 %v2773, %v3501
  %v3503 = vpop.f32.mrb[0].mxu0
  %3504 = vmatprep.mubr.bf16.mxu0 0
  %3505 = vmatmul.mubr.bf16.gmra.mrb[0].mxu0 %v2981
  %v3506 = vpop.f32.mrb[0].mxu0
  %v3507 = vadd.f32 %v2773, %v3506
  %v3508 = vpop.f32.mrb[0].mxu0
  %v3509 = vpop.f32.mrb[0].mxu0
  %v3510 = vadd.f32 %v2773, %v3509
  %v3511 = vpop.f32.mrb[0].mxu0
  %3512 = vmatprep.mubr.bf16.mxu0 0
  %3513 = vmatmul.mubr.bf16.gmra.mrb[0].mxu0 %v2984
  %v3514 = vpop.f32.mrb[0].mxu0
  %v3515 = vadd.f32 %v2773, %v3514
  %v3516 = vpop.f32.mrb[0].mxu0
  %v3517 = vpop.f32.mrb[0].mxu0
  %v3518 = vadd.f32 %v2773, %v3517
  %v3519 = vpop.f32.mrb[0].mxu0
  %3520 = vmatprep.mubr.bf16.mxu0 0
  %3521 = vmatmul.mubr.bf16.gmra.mrb[0].mxu0 %v2987
  %v3522 = vpop.f32.mrb[0].mxu0
  %v3523 = vadd.f32 %v2773, %v3522
  %v3524 = vpop.f32.mrb[0].mxu0
  %v3525 = vpop.f32.mrb[0].mxu0
  %v3526 = vadd.f32 %v2773, %v3525
  %v3527 = vpop.f32.mrb[0].mxu0
  %3528 = vmatprep.mubr.bf16.mxu0 0
  %3529 = vmatmul.mubr.bf16.gmra.mrb[0].mxu0 %v2990
  %v3530 = vpop.f32.mrb[0].mxu0
  %v3531 = vadd.f32 %v2773, %v3530
  %v3532 = vpop.f32.mrb[0].mxu0
  %v3533 = vpop.f32.mrb[0].mxu0
  %v3534 = vadd.f32 %v2773, %v3533
  %v3535 = vpop.f32.mrb[0].mxu0
  %3536 = vdwg.mxu0
  %v3537 = vmax.f32 %v3027, 0.0
  %v3538 = vmax.f32 %v3030, 0.0
  %v3539 = vmax.f32 %v3035, 0.0
  %v3540 = vmax.f32 %v3038, 0.0
  %v3541 = vmax.f32 %v3043, 0.0
  %v3542 = vmax.f32 %v3046, 0.0
  %v3543 = vmax.f32 %v3051, 0.0
  %v3544 = vmax.f32 %v3054, 0.0
  %v3545 = vmax.f32 %v3059, 0.0
  %v3546 = vmax.f32 %v3062, 0.0
  %v3547 = vmax.f32 %v3067, 0.0
  %v3548 = vmax.f32 %v3070, 0.0
  %v3549 = vmax.f32 %v3075, 0.0
  %v3550 = vmax.f32 %v3078, 0.0
  %v3551 = vmax.f32 %v3083, 0.0
  %v3552 = vmax.f32 %v3086, 0.0
  %v3553 = vmax.f32 %v3091, 0.0
  %v3554 = vmax.f32 %v3094, 0.0
  %v3555 = vmax.f32 %v3099, 0.0
  %v3556 = vmax.f32 %v3102, 0.0
  %v3557 = vmax.f32 %v3107, 0.0
  %v3558 = vmax.f32 %v3110, 0.0
  %v3559 = vmax.f32 %v3115, 0.0
  %v3560 = vmax.f32 %v3118, 0.0
  %v3561 = vmax.f32 %v3123, 0.0
  %v3562 = vmax.f32 %v3126, 0.0
  %v3563 = vmax.f32 %v3131, 0.0
  %v3564 = vmax.f32 %v3134, 0.0
  %v3565 = vmax.f32 %v3139, 0.0
  %v3566 = vmax.f32 %v3142, 0.0
  %v3567 = vmax.f32 %v3147, 0.0
  %v3568 = vmax.f32 %v3150, 0.0
  %v3569 = vmax.f32 %v3155, 0.0
  %v3570 = vmax.f32 %v3158, 0.0
  %v3571 = vmax.f32 %v3163, 0.0
  %v3572 = vmax.f32 %v3166, 0.0
  %v3573 = vmax.f32 %v3171, 0.0
  %v3574 = vmax.f32 %v3174, 0.0
  %v3575 = vmax.f32 %v3179, 0.0
  %v3576 = vmax.f32 %v3182, 0.0
  %v3577 = vmax.f32 %v3187, 0.0
  %v3578 = vmax.f32 %v3190, 0.0
  %v3579 = vmax.f32 %v3195, 0.0
  %v3580 = vmax.f32 %v3198, 0.0
  %v3581 = vmax.f32 %v3203, 0.0
  %v3582 = vmax.f32 %v3206, 0.0
  %v3583 = vmax.f32 %v3211, 0.0
  %v3584 = vmax.f32 %v3214, 0.0
  %v3585 = vmax.f32 %v3219, 0.0
  %v3586 = vmax.f32 %v3222, 0.0
  %v3587 = vmax.f32 %v3227, 0.0
  %v3588 = vmax.f32 %v3230, 0.0
  %v3589 = vmax.f32 %v3235, 0.0
  %v3590 = vmax.f32 %v3238, 0.0
  %v3591 = vmax.f32 %v3243, 0.0
  %v3592 = vmax.f32 %v3246, 0.0
  %v3593 = vmax.f32 %v3251, 0.0
  %v3594 = vmax.f32 %v3254, 0.0
  %v3595 = vmax.f32 %v3259, 0.0
  %v3596 = vmax.f32 %v3262, 0.0
  %v3597 = vmax.f32 %v3267, 0.0
  %v3598 = vmax.f32 %v3270, 0.0
  %v3599 = vmax.f32 %v3275, 0.0
  %v3600 = vmax.f32 %v3278, 0.0
  %v3601 = vmax.f32 %v3283, 0.0
  %v3602 = vmax.f32 %v3286, 0.0
  %v3603 = vmax.f32 %v3291, 0.0
  %v3604 = vmax.f32 %v3294, 0.0
  %v3605 = vmax.f32 %v3299, 0.0
  %v3606 = vmax.f32 %v3302, 0.0
  %v3607 = vmax.f32 %v3307, 0.0
  %v3608 = vmax.f32 %v3310, 0.0
  %v3609 = vmax.f32 %v3315, 0.0
  %v3610 = vmax.f32 %v3318, 0.0
  %v3611 = vmax.f32 %v3323, 0.0
  %v3612 = vmax.f32 %v3326, 0.0
  %v3613 = vmax.f32 %v3331, 0.0
  %v3614 = vmax.f32 %v3334, 0.0
  %v3615 = vmax.f32 %v3339, 0.0
  %v3616 = vmax.f32 %v3342, 0.0
  %v3617 = vmax.f32 %v3347, 0.0
  %v3618 = vmax.f32 %v3350, 0.0
  %v3619 = vmax.f32 %v3355, 0.0
  %v3620 = vmax.f32 %v3358, 0.0
  %v3621 = vmax.f32 %v3363, 0.0
  %v3622 = vmax.f32 %v3366, 0.0
  %v3623 = vmax.f32 %v3371, 0.0
  %v3624 = vmax.f32 %v3374, 0.0
  %v3625 = vmax.f32 %v3379, 0.0
  %v3626 = vmax.f32 %v3382, 0.0
  %v3627 = vmax.f32 %v3387, 0.0
  %v3628 = vmax.f32 %v3390, 0.0
  %v3629 = vmax.f32 %v3395, 0.0
  %v3630 = vmax.f32 %v3398, 0.0
  %v3631 = vmax.f32 %v3403, 0.0
  %v3632 = vmax.f32 %v3406, 0.0
  %v3633 = vmax.f32 %v3411, 0.0
  %v3634 = vmax.f32 %v3414, 0.0
  %v3635 = vmax.f32 %v3419, 0.0
  %v3636 = vmax.f32 %v3422, 0.0
  %v3637 = vmax.f32 %v3427, 0.0
  %v3638 = vmax.f32 %v3430, 0.0
  %v3639 = vmax.f32 %v3435, 0.0
  %v3640 = vmax.f32 %v3438, 0.0
  %v3641 = vmax.f32 %v3443, 0.0
  %v3642 = vmax.f32 %v3446, 0.0
  %v3643 = vmax.f32 %v3451, 0.0
  %v3644 = vmax.f32 %v3454, 0.0
  %v3645 = vmax.f32 %v3459, 0.0
  %v3646 = vmax.f32 %v3462, 0.0
  %v3647 = vmax.f32 %v3467, 0.0
  %v3648 = vmax.f32 %v3470, 0.0
  %v3649 = vmax.f32 %v3475, 0.0
  %v3650 = vmax.f32 %v3478, 0.0
  %v3651 = vmax.f32 %v3483, 0.0
  %v3652 = vmax.f32 %v3486, 0.0
  %v3653 = vmax.f32 %v3491, 0.0
  %v3654 = vmax.f32 %v3494, 0.0
  %v3655 = vmax.f32 %v3499, 0.0
  %v3656 = vmax.f32 %v3502, 0.0
  %v3657 = vmax.f32 %v3507, 0.0
  %v3658 = vmax.f32 %v3510, 0.0
  %v3659 = vmax.f32 %v3515, 0.0
  %v3660 = vmax.f32 %v3518, 0.0
  %v3661 = vmax.f32 %v3523, 0.0
  %v3662 = vmax.f32 %v3526, 0.0
  %v3663 = vmax.f32 %v3531, 0.0
  %v3664 = vmax.f32 %v3534, 0.0
  %v3665 = vpack.c.bf16 %v3538, %v3537
  %v3666 = vpack.c.bf16 %v3540, %v3539
  %v3667 = vpack.c.bf16 %v3542, %v3541
  %v3668 = vpack.c.bf16 %v3544, %v3543
  %v3669 = vpack.c.bf16 %v3546, %v3545
  %v3670 = vpack.c.bf16 %v3548, %v3547
  %v3671 = vpack.c.bf16 %v3550, %v3549
  %v3672 = vpack.c.bf16 %v3552, %v3551
  %v3673 = vpack.c.bf16 %v3554, %v3553
  %v3674 = vpack.c.bf16 %v3556, %v3555
  %v3675 = vpack.c.bf16 %v3558, %v3557
  %v3676 = vpack.c.bf16 %v3560, %v3559
  %v3677 = vpack.c.bf16 %v3562, %v3561
  %v3678 = vpack.c.bf16 %v3564, %v3563
  %v3679 = vpack.c.bf16 %v3566, %v3565
  %v3680 = vpack.c.bf16 %v3568, %v3567
  %v3681 = vpack.c.bf16 %v3570, %v3569
  %v3682 = vpack.c.bf16 %v3572, %v3571
  %v3683 = vpack.c.bf16 %v3574, %v3573
  %v3684 = vpack.c.bf16 %v3576, %v3575
  %v3685 = vpack.c.bf16 %v3578, %v3577
  %v3686 = vpack.c.bf16 %v3580, %v3579
  %v3687 = vpack.c.bf16 %v3582, %v3581
  %v3688 = vpack.c.bf16 %v3584, %v3583
  %v3689 = vpack.c.bf16 %v3586, %v3585
  %v3690 = vpack.c.bf16 %v3588, %v3587
  %v3691 = vpack.c.bf16 %v3590, %v3589
  %v3692 = vpack.c.bf16 %v3592, %v3591
  %v3693 = vpack.c.bf16 %v3594, %v3593
  %v3694 = vpack.c.bf16 %v3596, %v3595
  %v3695 = vpack.c.bf16 %v3598, %v3597
  %v3696 = vpack.c.bf16 %v3600, %v3599
  %v3697 = vpack.c.bf16 %v3602, %v3601
  %v3698 = vpack.c.bf16 %v3604, %v3603
  %v3699 = vpack.c.bf16 %v3606, %v3605
  %v3700 = vpack.c.bf16 %v3608, %v3607
  %v3701 = vpack.c.bf16 %v3610, %v3609
  %v3702 = vpack.c.bf16 %v3612, %v3611
  %v3703 = vpack.c.bf16 %v3614, %v3613
  %v3704 = vpack.c.bf16 %v3616, %v3615
  %v3705 = vpack.c.bf16 %v3618, %v3617
  %v3706 = vpack.c.bf16 %v3620, %v3619
  %v3707 = vpack.c.bf16 %v3622, %v3621
  %v3708 = vpack.c.bf16 %v3624, %v3623
  %v3709 = vpack.c.bf16 %v3626, %v3625
  %v3710 = vpack.c.bf16 %v3628, %v3627
  %v3711 = vpack.c.bf16 %v3630, %v3629
  %v3712 = vpack.c.bf16 %v3632, %v3631
  %v3713 = vpack.c.bf16 %v3634, %v3633
  %v3714 = vpack.c.bf16 %v3636, %v3635
  %v3715 = vpack.c.bf16 %v3638, %v3637
  %v3716 = vpack.c.bf16 %v3640, %v3639
  %v3717 = vpack.c.bf16 %v3642, %v3641
  %v3718 = vpack.c.bf16 %v3644, %v3643
  %v3719 = vpack.c.bf16 %v3646, %v3645
  %v3720 = vpack.c.bf16 %v3648, %v3647
  %v3721 = vpack.c.bf16 %v3650, %v3649
  %v3722 = vpack.c.bf16 %v3652, %v3651
  %v3723 = vpack.c.bf16 %v3654, %v3653
  %v3724 = vpack.c.bf16 %v3656, %v3655
  %v3725 = vpack.c.bf16 %v3658, %v3657
  %v3726 = vpack.c.bf16 %v3660, %v3659
  %v3727 = vpack.c.bf16 %v3662, %v3661
  %v3728 = vpack.c.bf16 %v3664, %v3663
  %v3730 = vlaneseq
  %v3731 = vshrl.u32 %v3730, 7
  %v3732 = vsub.s32 0, %v3731
  %v3733 = vrot.slane %v56, %v3732
  %v3743 = vunpack.c.l.b16 %v48
  %v3744 = vunpack.c.l.b16 %v49
  %v3745 = vunpack.c.l.b16 %v50
  %v3746 = vunpack.c.l.b16 %v51
  %v3747 = vunpack.c.l.b16 %v52
  %v3748 = vunpack.c.l.b16 %v53
  %v3749 = vunpack.c.l.b16 %v54
  %v3750 = vunpack.c.l.b16 %v55
  %v3751 = vpack.c.b16 %v3744, %v3743
  %v3752 = vpack.c.b16 %v3746, %v3745
  %v3753 = vpack.c.b16 %v3748, %v3747
  %v3754 = vpack.c.b16 %v3750, %v3749
  %v3760 = vsel %vm2799, %v3665, 0
  %v3763 = vsel %vm2799, %v3666, 0
  %v3766 = vsel %vm2799, %v3667, 0
  %v3769 = vsel %vm2799, %v3668, 0
  %v3772 = vsel %vm2799, %v3669, 0
  %v3775 = vsel %vm2799, %v3670, 0
  %v3778 = vsel %vm2799, %v3671, 0
  %v3781 = vsel %vm2799, %v3672, 0
  %v3784 = vsel %vm2799, %v3673, 0
  %v3787 = vsel %vm2799, %v3674, 0
  %v3790 = vsel %vm2799, %v3675, 0
  %v3793 = vsel %vm2799, %v3676, 0
  %v3796 = vsel %vm2799, %v3677, 0
  %v3799 = vsel %vm2799, %v3678, 0
  %v3802 = vsel %vm2799, %v3679, 0
  %v3805 = vsel %vm2799, %v3680, 0
  %v3808 = vsel %vm2799, %v3681, 0
  %v3811 = vsel %vm2799, %v3682, 0
  %v3814 = vsel %vm2799, %v3683, 0
  %v3817 = vsel %vm2799, %v3684, 0
  %v3820 = vsel %vm2799, %v3685, 0
  %v3823 = vsel %vm2799, %v3686, 0
  %v3826 = vsel %vm2799, %v3687, 0
  %v3829 = vsel %vm2799, %v3688, 0
  %v3832 = vsel %vm2799, %v3689, 0
  %v3835 = vsel %vm2799, %v3690, 0
  %v3838 = vsel %vm2799, %v3691, 0
  %v3841 = vsel %vm2799, %v3692, 0
  %v3844 = vsel %vm2799, %v3693, 0
  %v3847 = vsel %vm2799, %v3694, 0
  %v3850 = vsel %vm2799, %v3695, 0
  %v3853 = vsel %vm2799, %v3696, 0
  %v3856 = vsel %vm2799, %v3697, 0
  %v3859 = vsel %vm2799, %v3698, 0
  %v3862 = vsel %vm2799, %v3699, 0
  %v3865 = vsel %vm2799, %v3700, 0
  %v3868 = vsel %vm2799, %v3701, 0
  %v3871 = vsel %vm2799, %v3702, 0
  %v3874 = vsel %vm2799, %v3703, 0
  %v3877 = vsel %vm2799, %v3704, 0
  %v3880 = vsel %vm2799, %v3705, 0
  %v3883 = vsel %vm2799, %v3706, 0
  %v3886 = vsel %vm2799, %v3707, 0
  %v3889 = vsel %vm2799, %v3708, 0
  %v3892 = vsel %vm2799, %v3709, 0
  %v3895 = vsel %vm2799, %v3710, 0
  %v3898 = vsel %vm2799, %v3711, 0
  %v3901 = vsel %vm2799, %v3712, 0
  %v3904 = vsel %vm2799, %v3713, 0
  %v3907 = vsel %vm2799, %v3714, 0
  %v3910 = vsel %vm2799, %v3715, 0
  %v3913 = vsel %vm2799, %v3716, 0
  %v3916 = vsel %vm2799, %v3717, 0
  %v3919 = vsel %vm2799, %v3718, 0
  %v3922 = vsel %vm2799, %v3719, 0
  %v3925 = vsel %vm2799, %v3720, 0
  %v3928 = vsel %vm2799, %v3721, 0
  %v3931 = vsel %vm2799, %v3722, 0
  %v3934 = vsel %vm2799, %v3723, 0
  %v3937 = vsel %vm2799, %v3724, 0
  %v3940 = vsel %vm2799, %v3725, 0
  %v3943 = vsel %vm2799, %v3726, 0
  %v3946 = vsel %vm2799, %v3727, 0
  %v3949 = vsel %vm2799, %v3728, 0
  %3951 = vmatprep.subr.bf16.mxu0 0
  %3952 = vmatpush1.bf16.msra.mxu0 %v3751
  %3953 = vmatprep.subr.bf16.mxu0 0
  %3954 = vmatpush1.bf16.msra.mxu0 %v3752
  %3955 = vmatprep.subr.bf16.mxu0 0
  %3956 = vmatpush1.bf16.msra.mxu0 %v3753
  %3957 = vmatprep.subr.bf16.mxu0 0
  %3958 = vmatpush1.bf16.msra.mxu0 %v3754
  %3959 = vmatprep.subr.bf16.mxu0 0
  %3960 = vmatpush1.bf16.msra.mxu0 0
  %3961 = vmatprep.subr.bf16.mxu0 0
  %3962 = vmatpush1.bf16.msra.mxu0 0
  %3963 = vmatprep.subr.bf16.mxu0 0
  %3964 = vmatpush1.bf16.msra.mxu0 0
  %3965 = vmatprep.subr.bf16.mxu0 0
  %3966 = vmatpush1.bf16.msra.mxu0 0
  %3967 = vmatprep.subr.bf16.mxu0 0
  %3968 = vmatpush1.bf16.msra.mxu0 0
  %3969 = vmatprep.subr.bf16.mxu0 0
  %3970 = vmatpush1.bf16.msra.mxu0 0
  %3971 = vmatprep.subr.bf16.mxu0 0
  %3972 = vmatpush1.bf16.msra.mxu0 0
  %3973 = vmatprep.subr.bf16.mxu0 0
  %3974 = vmatpush1.bf16.msra.mxu0 0
  %3975 = vmatprep.subr.bf16.mxu0 0
  %3976 = vmatpush1.bf16.msra.mxu0 0
  %3977 = vmatprep.subr.bf16.mxu0 0
  %3978 = vmatpush1.bf16.msra.mxu0 0
  %3979 = vmatprep.subr.bf16.mxu0 0
  %3980 = vmatpush1.bf16.msra.mxu0 0
  %3981 = vmatprep.subr.bf16.mxu0 0
  %3982 = vmatpush1.bf16.msra.mxu0 0
  %3983 = vmatprep.mubr.bf16.mxu0 0
  %3984 = vmatmul.mubr.bf16.gmra.mrb[0].mxu0 %v3760
  %v3985 = vpop.f32.mrb[0].mxu0
  %v3986 = vadd.f32 %v3733, %v3985
  %v3987 = vpop.f32.mrb[0].mxu0
  %v3988 = vpop.f32.mrb[0].mxu0
  %v3989 = vadd.f32 %v3733, %v3988
  %v3990 = vpop.f32.mrb[0].mxu0
  %3991 = vmatprep.mubr.bf16.mxu0 0
  %3992 = vmatmul.mubr.bf16.gmra.mrb[0].mxu0 %v3763
  %v3993 = vpop.f32.mrb[0].mxu0
  %v3994 = vadd.f32 %v3733, %v3993
  %v3995 = vpop.f32.mrb[0].mxu0
  %v3996 = vpop.f32.mrb[0].mxu0
  %v3997 = vadd.f32 %v3733, %v3996
  %v3998 = vpop.f32.mrb[0].mxu0
  %3999 = vmatprep.mubr.bf16.mxu0 0
  %4000 = vmatmul.mubr.bf16.gmra.mrb[0].mxu0 %v3766
  %v4001 = vpop.f32.mrb[0].mxu0
  %v4002 = vadd.f32 %v3733, %v4001
  %v4003 = vpop.f32.mrb[0].mxu0
  %v4004 = vpop.f32.mrb[0].mxu0
  %v4005 = vadd.f32 %v3733, %v4004
  %v4006 = vpop.f32.mrb[0].mxu0
  %4007 = vmatprep.mubr.bf16.mxu0 0
  %4008 = vmatmul.mubr.bf16.gmra.mrb[0].mxu0 %v3769
  %v4009 = vpop.f32.mrb[0].mxu0
  %v4010 = vadd.f32 %v3733, %v4009
  %v4011 = vpop.f32.mrb[0].mxu0
  %v4012 = vpop.f32.mrb[0].mxu0
  %v4013 = vadd.f32 %v3733, %v4012
  %v4014 = vpop.f32.mrb[0].mxu0
  %4015 = vmatprep.mubr.bf16.mxu0 0
  %4016 = vmatmul.mubr.bf16.gmra.mrb[0].mxu0 %v3772
  %v4017 = vpop.f32.mrb[0].mxu0
  %v4018 = vadd.f32 %v3733, %v4017
  %v4019 = vpop.f32.mrb[0].mxu0
  %v4020 = vpop.f32.mrb[0].mxu0
  %v4021 = vadd.f32 %v3733, %v4020
  %v4022 = vpop.f32.mrb[0].mxu0
  %4023 = vmatprep.mubr.bf16.mxu0 0
  %4024 = vmatmul.mubr.bf16.gmra.mrb[0].mxu0 %v3775
  %v4025 = vpop.f32.mrb[0].mxu0
  %v4026 = vadd.f32 %v3733, %v4025
  %v4027 = vpop.f32.mrb[0].mxu0
  %v4028 = vpop.f32.mrb[0].mxu0
  %v4029 = vadd.f32 %v3733, %v4028
  %v4030 = vpop.f32.mrb[0].mxu0
  %4031 = vmatprep.mubr.bf16.mxu0 0
  %4032 = vmatmul.mubr.bf16.gmra.mrb[0].mxu0 %v3778
  %v4033 = vpop.f32.mrb[0].mxu0
  %v4034 = vadd.f32 %v3733, %v4033
  %v4035 = vpop.f32.mrb[0].mxu0
  %v4036 = vpop.f32.mrb[0].mxu0
  %v4037 = vadd.f32 %v3733, %v4036
  %v4038 = vpop.f32.mrb[0].mxu0
  %4039 = vmatprep.mubr.bf16.mxu0 0
  %4040 = vmatmul.mubr.bf16.gmra.mrb[0].mxu0 %v3781
  %v4041 = vpop.f32.mrb[0].mxu0
  %v4042 = vadd.f32 %v3733, %v4041
  %v4043 = vpop.f32.mrb[0].mxu0
  %v4044 = vpop.f32.mrb[0].mxu0
  %v4045 = vadd.f32 %v3733, %v4044
  %v4046 = vpop.f32.mrb[0].mxu0
  %4047 = vmatprep.mubr.bf16.mxu0 0
  %4048 = vmatmul.mubr.bf16.gmra.mrb[0].mxu0 %v3784
  %v4049 = vpop.f32.mrb[0].mxu0
  %v4050 = vadd.f32 %v3733, %v4049
  %v4051 = vpop.f32.mrb[0].mxu0
  %v4052 = vpop.f32.mrb[0].mxu0
  %v4053 = vadd.f32 %v3733, %v4052
  %v4054 = vpop.f32.mrb[0].mxu0
  %4055 = vmatprep.mubr.bf16.mxu0 0
  %4056 = vmatmul.mubr.bf16.gmra.mrb[0].mxu0 %v3787
  %v4057 = vpop.f32.mrb[0].mxu0
  %v4058 = vadd.f32 %v3733, %v4057
  %v4059 = vpop.f32.mrb[0].mxu0
  %v4060 = vpop.f32.mrb[0].mxu0
  %v4061 = vadd.f32 %v3733, %v4060
  %v4062 = vpop.f32.mrb[0].mxu0
  %4063 = vmatprep.mubr.bf16.mxu0 0
  %4064 = vmatmul.mubr.bf16.gmra.mrb[0].mxu0 %v3790
  %v4065 = vpop.f32.mrb[0].mxu0
  %v4066 = vadd.f32 %v3733, %v4065
  %v4067 = vpop.f32.mrb[0].mxu0
  %v4068 = vpop.f32.mrb[0].mxu0
  %v4069 = vadd.f32 %v3733, %v4068
  %v4070 = vpop.f32.mrb[0].mxu0
  %4071 = vmatprep.mubr.bf16.mxu0 0
  %4072 = vmatmul.mubr.bf16.gmra.mrb[0].mxu0 %v3793
  %v4073 = vpop.f32.mrb[0].mxu0
  %v4074 = vadd.f32 %v3733, %v4073
  %v4075 = vpop.f32.mrb[0].mxu0
  %v4076 = vpop.f32.mrb[0].mxu0
  %v4077 = vadd.f32 %v3733, %v4076
  %v4078 = vpop.f32.mrb[0].mxu0
  %4079 = vmatprep.mubr.bf16.mxu0 0
  %4080 = vmatmul.mubr.bf16.gmra.mrb[0].mxu0 %v3796
  %v4081 = vpop.f32.mrb[0].mxu0
  %v4082 = vadd.f32 %v3733, %v4081
  %v4083 = vpop.f32.mrb[0].mxu0
  %v4084 = vpop.f32.mrb[0].mxu0
  %v4085 = vadd.f32 %v3733, %v4084
  %v4086 = vpop.f32.mrb[0].mxu0
  %4087 = vmatprep.mubr.bf16.mxu0 0
  %4088 = vmatmul.mubr.bf16.gmra.mrb[0].mxu0 %v3799
  %v4089 = vpop.f32.mrb[0].mxu0
  %v4090 = vadd.f32 %v3733, %v4089
  %v4091 = vpop.f32.mrb[0].mxu0
  %v4092 = vpop.f32.mrb[0].mxu0
  %v4093 = vadd.f32 %v3733, %v4092
  %v4094 = vpop.f32.mrb[0].mxu0
  %4095 = vmatprep.mubr.bf16.mxu0 0
  %4096 = vmatmul.mubr.bf16.gmra.mrb[0].mxu0 %v3802
  %v4097 = vpop.f32.mrb[0].mxu0
  %v4098 = vadd.f32 %v3733, %v4097
  %v4099 = vpop.f32.mrb[0].mxu0
  %v4100 = vpop.f32.mrb[0].mxu0
  %v4101 = vadd.f32 %v3733, %v4100
  %v4102 = vpop.f32.mrb[0].mxu0
  %4103 = vmatprep.mubr.bf16.mxu0 0
  %4104 = vmatmul.mubr.bf16.gmra.mrb[0].mxu0 %v3805
  %v4105 = vpop.f32.mrb[0].mxu0
  %v4106 = vadd.f32 %v3733, %v4105
  %v4107 = vpop.f32.mrb[0].mxu0
  %v4108 = vpop.f32.mrb[0].mxu0
  %v4109 = vadd.f32 %v3733, %v4108
  %v4110 = vpop.f32.mrb[0].mxu0
  %4111 = vmatprep.mubr.bf16.mxu0 0
  %4112 = vmatmul.mubr.bf16.gmra.mrb[0].mxu0 %v3808
  %v4113 = vpop.f32.mrb[0].mxu0
  %v4114 = vadd.f32 %v3733, %v4113
  %v4115 = vpop.f32.mrb[0].mxu0
  %v4116 = vpop.f32.mrb[0].mxu0
  %v4117 = vadd.f32 %v3733, %v4116
  %v4118 = vpop.f32.mrb[0].mxu0
  %4119 = vmatprep.mubr.bf16.mxu0 0
  %4120 = vmatmul.mubr.bf16.gmra.mrb[0].mxu0 %v3811
  %v4121 = vpop.f32.mrb[0].mxu0
  %v4122 = vadd.f32 %v3733, %v4121
  %v4123 = vpop.f32.mrb[0].mxu0
  %v4124 = vpop.f32.mrb[0].mxu0
  %v4125 = vadd.f32 %v3733, %v4124
  %v4126 = vpop.f32.mrb[0].mxu0
  %4127 = vmatprep.mubr.bf16.mxu0 0
  %4128 = vmatmul.mubr.bf16.gmra.mrb[0].mxu0 %v3814
  %v4129 = vpop.f32.mrb[0].mxu0
  %v4130 = vadd.f32 %v3733, %v4129
  %v4131 = vpop.f32.mrb[0].mxu0
  %v4132 = vpop.f32.mrb[0].mxu0
  %v4133 = vadd.f32 %v3733, %v4132
  %v4134 = vpop.f32.mrb[0].mxu0
  %4135 = vmatprep.mubr.bf16.mxu0 0
  %4136 = vmatmul.mubr.bf16.gmra.mrb[0].mxu0 %v3817
  %v4137 = vpop.f32.mrb[0].mxu0
  %v4138 = vadd.f32 %v3733, %v4137
  %v4139 = vpop.f32.mrb[0].mxu0
  %v4140 = vpop.f32.mrb[0].mxu0
  %v4141 = vadd.f32 %v3733, %v4140
  %v4142 = vpop.f32.mrb[0].mxu0
  %4143 = vmatprep.mubr.bf16.mxu0 0
  %4144 = vmatmul.mubr.bf16.gmra.mrb[0].mxu0 %v3820
  %v4145 = vpop.f32.mrb[0].mxu0
  %v4146 = vadd.f32 %v3733, %v4145
  %v4147 = vpop.f32.mrb[0].mxu0
  %v4148 = vpop.f32.mrb[0].mxu0
  %v4149 = vadd.f32 %v3733, %v4148
  %v4150 = vpop.f32.mrb[0].mxu0
  %4151 = vmatprep.mubr.bf16.mxu0 0
  %4152 = vmatmul.mubr.bf16.gmra.mrb[0].mxu0 %v3823
  %v4153 = vpop.f32.mrb[0].mxu0
  %v4154 = vadd.f32 %v3733, %v4153
  %v4155 = vpop.f32.mrb[0].mxu0
  %v4156 = vpop.f32.mrb[0].mxu0
  %v4157 = vadd.f32 %v3733, %v4156
  %v4158 = vpop.f32.mrb[0].mxu0
  %4159 = vmatprep.mubr.bf16.mxu0 0
  %4160 = vmatmul.mubr.bf16.gmra.mrb[0].mxu0 %v3826
  %v4161 = vpop.f32.mrb[0].mxu0
  %v4162 = vadd.f32 %v3733, %v4161
  %v4163 = vpop.f32.mrb[0].mxu0
  %v4164 = vpop.f32.mrb[0].mxu0
  %v4165 = vadd.f32 %v3733, %v4164
  %v4166 = vpop.f32.mrb[0].mxu0
  %4167 = vmatprep.mubr.bf16.mxu0 0
  %4168 = vmatmul.mubr.bf16.gmra.mrb[0].mxu0 %v3829
  %v4169 = vpop.f32.mrb[0].mxu0
  %v4170 = vadd.f32 %v3733, %v4169
  %v4171 = vpop.f32.mrb[0].mxu0
  %v4172 = vpop.f32.mrb[0].mxu0
  %v4173 = vadd.f32 %v3733, %v4172
  %v4174 = vpop.f32.mrb[0].mxu0
  %4175 = vmatprep.mubr.bf16.mxu0 0
  %4176 = vmatmul.mubr.bf16.gmra.mrb[0].mxu0 %v3832
  %v4177 = vpop.f32.mrb[0].mxu0
  %v4178 = vadd.f32 %v3733, %v4177
  %v4179 = vpop.f32.mrb[0].mxu0
  %v4180 = vpop.f32.mrb[0].mxu0
  %v4181 = vadd.f32 %v3733, %v4180
  %v4182 = vpop.f32.mrb[0].mxu0
  %4183 = vmatprep.mubr.bf16.mxu0 0
  %4184 = vmatmul.mubr.bf16.gmra.mrb[0].mxu0 %v3835
  %v4185 = vpop.f32.mrb[0].mxu0
  %v4186 = vadd.f32 %v3733, %v4185
  %v4187 = vpop.f32.mrb[0].mxu0
  %v4188 = vpop.f32.mrb[0].mxu0
  %v4189 = vadd.f32 %v3733, %v4188
  %v4190 = vpop.f32.mrb[0].mxu0
  %4191 = vmatprep.mubr.bf16.mxu0 0
  %4192 = vmatmul.mubr.bf16.gmra.mrb[0].mxu0 %v3838
  %v4193 = vpop.f32.mrb[0].mxu0
  %v4194 = vadd.f32 %v3733, %v4193
  %v4195 = vpop.f32.mrb[0].mxu0
  %v4196 = vpop.f32.mrb[0].mxu0
  %v4197 = vadd.f32 %v3733, %v4196
  %v4198 = vpop.f32.mrb[0].mxu0
  %4199 = vmatprep.mubr.bf16.mxu0 0
  %4200 = vmatmul.mubr.bf16.gmra.mrb[0].mxu0 %v3841
  %v4201 = vpop.f32.mrb[0].mxu0
  %v4202 = vadd.f32 %v3733, %v4201
  %v4203 = vpop.f32.mrb[0].mxu0
  %v4204 = vpop.f32.mrb[0].mxu0
  %v4205 = vadd.f32 %v3733, %v4204
  %v4206 = vpop.f32.mrb[0].mxu0
  %4207 = vmatprep.mubr.bf16.mxu0 0
  %4208 = vmatmul.mubr.bf16.gmra.mrb[0].mxu0 %v3844
  %v4209 = vpop.f32.mrb[0].mxu0
  %v4210 = vadd.f32 %v3733, %v4209
  %v4211 = vpop.f32.mrb[0].mxu0
  %v4212 = vpop.f32.mrb[0].mxu0
  %v4213 = vadd.f32 %v3733, %v4212
  %v4214 = vpop.f32.mrb[0].mxu0
  %4215 = vmatprep.mubr.bf16.mxu0 0
  %4216 = vmatmul.mubr.bf16.gmra.mrb[0].mxu0 %v3847
  %v4217 = vpop.f32.mrb[0].mxu0
  %v4218 = vadd.f32 %v3733, %v4217
  %v4219 = vpop.f32.mrb[0].mxu0
  %v4220 = vpop.f32.mrb[0].mxu0
  %v4221 = vadd.f32 %v3733, %v4220
  %v4222 = vpop.f32.mrb[0].mxu0
  %4223 = vmatprep.mubr.bf16.mxu0 0
  %4224 = vmatmul.mubr.bf16.gmra.mrb[0].mxu0 %v3850
  %v4225 = vpop.f32.mrb[0].mxu0
  %v4226 = vadd.f32 %v3733, %v4225
  %v4227 = vpop.f32.mrb[0].mxu0
  %v4228 = vpop.f32.mrb[0].mxu0
  %v4229 = vadd.f32 %v3733, %v4228
  %v4230 = vpop.f32.mrb[0].mxu0
  %4231 = vmatprep.mubr.bf16.mxu0 0
  %4232 = vmatmul.mubr.bf16.gmra.mrb[0].mxu0 %v3853
  %v4233 = vpop.f32.mrb[0].mxu0
  %v4234 = vadd.f32 %v3733, %v4233
  %v4235 = vpop.f32.mrb[0].mxu0
  %v4236 = vpop.f32.mrb[0].mxu0
  %v4237 = vadd.f32 %v3733, %v4236
  %v4238 = vpop.f32.mrb[0].mxu0
  %4239 = vmatprep.mubr.bf16.mxu0 0
  %4240 = vmatmul.mubr.bf16.gmra.mrb[0].mxu0 %v3856
  %v4241 = vpop.f32.mrb[0].mxu0
  %v4242 = vadd.f32 %v3733, %v4241
  %v4243 = vpop.f32.mrb[0].mxu0
  %v4244 = vpop.f32.mrb[0].mxu0
  %v4245 = vadd.f32 %v3733, %v4244
  %v4246 = vpop.f32.mrb[0].mxu0
  %4247 = vmatprep.mubr.bf16.mxu0 0
  %4248 = vmatmul.mubr.bf16.gmra.mrb[0].mxu0 %v3859
  %v4249 = vpop.f32.mrb[0].mxu0
  %v4250 = vadd.f32 %v3733, %v4249
  %v4251 = vpop.f32.mrb[0].mxu0
  %v4252 = vpop.f32.mrb[0].mxu0
  %v4253 = vadd.f32 %v3733, %v4252
  %v4254 = vpop.f32.mrb[0].mxu0
  %4255 = vmatprep.mubr.bf16.mxu0 0
  %4256 = vmatmul.mubr.bf16.gmra.mrb[0].mxu0 %v3862
  %v4257 = vpop.f32.mrb[0].mxu0
  %v4258 = vadd.f32 %v3733, %v4257
  %v4259 = vpop.f32.mrb[0].mxu0
  %v4260 = vpop.f32.mrb[0].mxu0
  %v4261 = vadd.f32 %v3733, %v4260
  %v4262 = vpop.f32.mrb[0].mxu0
  %4263 = vmatprep.mubr.bf16.mxu0 0
  %4264 = vmatmul.mubr.bf16.gmra.mrb[0].mxu0 %v3865
  %v4265 = vpop.f32.mrb[0].mxu0
  %v4266 = vadd.f32 %v3733, %v4265
  %v4267 = vpop.f32.mrb[0].mxu0
  %v4268 = vpop.f32.mrb[0].mxu0
  %v4269 = vadd.f32 %v3733, %v4268
  %v4270 = vpop.f32.mrb[0].mxu0
  %4271 = vmatprep.mubr.bf16.mxu0 0
  %4272 = vmatmul.mubr.bf16.gmra.mrb[0].mxu0 %v3868
  %v4273 = vpop.f32.mrb[0].mxu0
  %v4274 = vadd.f32 %v3733, %v4273
  %v4275 = vpop.f32.mrb[0].mxu0
  %v4276 = vpop.f32.mrb[0].mxu0
  %v4277 = vadd.f32 %v3733, %v4276
  %v4278 = vpop.f32.mrb[0].mxu0
  %4279 = vmatprep.mubr.bf16.mxu0 0
  %4280 = vmatmul.mubr.bf16.gmra.mrb[0].mxu0 %v3871
  %v4281 = vpop.f32.mrb[0].mxu0
  %v4282 = vadd.f32 %v3733, %v4281
  %v4283 = vpop.f32.mrb[0].mxu0
  %v4284 = vpop.f32.mrb[0].mxu0
  %v4285 = vadd.f32 %v3733, %v4284
  %v4286 = vpop.f32.mrb[0].mxu0
  %4287 = vmatprep.mubr.bf16.mxu0 0
  %4288 = vmatmul.mubr.bf16.gmra.mrb[0].mxu0 %v3874
  %v4289 = vpop.f32.mrb[0].mxu0
  %v4290 = vadd.f32 %v3733, %v4289
  %v4291 = vpop.f32.mrb[0].mxu0
  %v4292 = vpop.f32.mrb[0].mxu0
  %v4293 = vadd.f32 %v3733, %v4292
  %v4294 = vpop.f32.mrb[0].mxu0
  %4295 = vmatprep.mubr.bf16.mxu0 0
  %4296 = vmatmul.mubr.bf16.gmra.mrb[0].mxu0 %v3877
  %v4297 = vpop.f32.mrb[0].mxu0
  %v4298 = vadd.f32 %v3733, %v4297
  %v4299 = vpop.f32.mrb[0].mxu0
  %v4300 = vpop.f32.mrb[0].mxu0
  %v4301 = vadd.f32 %v3733, %v4300
  %v4302 = vpop.f32.mrb[0].mxu0
  %4303 = vmatprep.mubr.bf16.mxu0 0
  %4304 = vmatmul.mubr.bf16.gmra.mrb[0].mxu0 %v3880
  %v4305 = vpop.f32.mrb[0].mxu0
  %v4306 = vadd.f32 %v3733, %v4305
  %v4307 = vpop.f32.mrb[0].mxu0
  %v4308 = vpop.f32.mrb[0].mxu0
  %v4309 = vadd.f32 %v3733, %v4308
  %v4310 = vpop.f32.mrb[0].mxu0
  %4311 = vmatprep.mubr.bf16.mxu0 0
  %4312 = vmatmul.mubr.bf16.gmra.mrb[0].mxu0 %v3883
  %v4313 = vpop.f32.mrb[0].mxu0
  %v4314 = vadd.f32 %v3733, %v4313
  %v4315 = vpop.f32.mrb[0].mxu0
  %v4316 = vpop.f32.mrb[0].mxu0
  %v4317 = vadd.f32 %v3733, %v4316
  %v4318 = vpop.f32.mrb[0].mxu0
  %4319 = vmatprep.mubr.bf16.mxu0 0
  %4320 = vmatmul.mubr.bf16.gmra.mrb[0].mxu0 %v3886
  %v4321 = vpop.f32.mrb[0].mxu0
  %v4322 = vadd.f32 %v3733, %v4321
  %v4323 = vpop.f32.mrb[0].mxu0
  %v4324 = vpop.f32.mrb[0].mxu0
  %v4325 = vadd.f32 %v3733, %v4324
  %v4326 = vpop.f32.mrb[0].mxu0
  %4327 = vmatprep.mubr.bf16.mxu0 0
  %4328 = vmatmul.mubr.bf16.gmra.mrb[0].mxu0 %v3889
  %v4329 = vpop.f32.mrb[0].mxu0
  %v4330 = vadd.f32 %v3733, %v4329
  %v4331 = vpop.f32.mrb[0].mxu0
  %v4332 = vpop.f32.mrb[0].mxu0
  %v4333 = vadd.f32 %v3733, %v4332
  %v4334 = vpop.f32.mrb[0].mxu0
  %4335 = vmatprep.mubr.bf16.mxu0 0
  %4336 = vmatmul.mubr.bf16.gmra.mrb[0].mxu0 %v3892
  %v4337 = vpop.f32.mrb[0].mxu0
  %v4338 = vadd.f32 %v3733, %v4337
  %v4339 = vpop.f32.mrb[0].mxu0
  %v4340 = vpop.f32.mrb[0].mxu0
  %v4341 = vadd.f32 %v3733, %v4340
  %v4342 = vpop.f32.mrb[0].mxu0
  %4343 = vmatprep.mubr.bf16.mxu0 0
  %4344 = vmatmul.mubr.bf16.gmra.mrb[0].mxu0 %v3895
  %v4345 = vpop.f32.mrb[0].mxu0
  %v4346 = vadd.f32 %v3733, %v4345
  %v4347 = vpop.f32.mrb[0].mxu0
  %v4348 = vpop.f32.mrb[0].mxu0
  %v4349 = vadd.f32 %v3733, %v4348
  %v4350 = vpop.f32.mrb[0].mxu0
  %4351 = vmatprep.mubr.bf16.mxu0 0
  %4352 = vmatmul.mubr.bf16.gmra.mrb[0].mxu0 %v3898
  %v4353 = vpop.f32.mrb[0].mxu0
  %v4354 = vadd.f32 %v3733, %v4353
  %v4355 = vpop.f32.mrb[0].mxu0
  %v4356 = vpop.f32.mrb[0].mxu0
  %v4357 = vadd.f32 %v3733, %v4356
  %v4358 = vpop.f32.mrb[0].mxu0
  %4359 = vmatprep.mubr.bf16.mxu0 0
  %4360 = vmatmul.mubr.bf16.gmra.mrb[0].mxu0 %v3901
  %v4361 = vpop.f32.mrb[0].mxu0
  %v4362 = vadd.f32 %v3733, %v4361
  %v4363 = vpop.f32.mrb[0].mxu0
  %v4364 = vpop.f32.mrb[0].mxu0
  %v4365 = vadd.f32 %v3733, %v4364
  %v4366 = vpop.f32.mrb[0].mxu0
  %4367 = vmatprep.mubr.bf16.mxu0 0
  %4368 = vmatmul.mubr.bf16.gmra.mrb[0].mxu0 %v3904
  %v4369 = vpop.f32.mrb[0].mxu0
  %v4370 = vadd.f32 %v3733, %v4369
  %v4371 = vpop.f32.mrb[0].mxu0
  %v4372 = vpop.f32.mrb[0].mxu0
  %v4373 = vadd.f32 %v3733, %v4372
  %v4374 = vpop.f32.mrb[0].mxu0
  %4375 = vmatprep.mubr.bf16.mxu0 0
  %4376 = vmatmul.mubr.bf16.gmra.mrb[0].mxu0 %v3907
  %v4377 = vpop.f32.mrb[0].mxu0
  %v4378 = vadd.f32 %v3733, %v4377
  %v4379 = vpop.f32.mrb[0].mxu0
  %v4380 = vpop.f32.mrb[0].mxu0
  %v4381 = vadd.f32 %v3733, %v4380
  %v4382 = vpop.f32.mrb[0].mxu0
  %4383 = vmatprep.mubr.bf16.mxu0 0
  %4384 = vmatmul.mubr.bf16.gmra.mrb[0].mxu0 %v3910
  %v4385 = vpop.f32.mrb[0].mxu0
  %v4386 = vadd.f32 %v3733, %v4385
  %v4387 = vpop.f32.mrb[0].mxu0
  %v4388 = vpop.f32.mrb[0].mxu0
  %v4389 = vadd.f32 %v3733, %v4388
  %v4390 = vpop.f32.mrb[0].mxu0
  %4391 = vmatprep.mubr.bf16.mxu0 0
  %4392 = vmatmul.mubr.bf16.gmra.mrb[0].mxu0 %v3913
  %v4393 = vpop.f32.mrb[0].mxu0
  %v4394 = vadd.f32 %v3733, %v4393
  %v4395 = vpop.f32.mrb[0].mxu0
  %v4396 = vpop.f32.mrb[0].mxu0
  %v4397 = vadd.f32 %v3733, %v4396
  %v4398 = vpop.f32.mrb[0].mxu0
  %4399 = vmatprep.mubr.bf16.mxu0 0
  %4400 = vmatmul.mubr.bf16.gmra.mrb[0].mxu0 %v3916
  %v4401 = vpop.f32.mrb[0].mxu0
  %v4402 = vadd.f32 %v3733, %v4401
  %v4403 = vpop.f32.mrb[0].mxu0
  %v4404 = vpop.f32.mrb[0].mxu0
  %v4405 = vadd.f32 %v3733, %v4404
  %v4406 = vpop.f32.mrb[0].mxu0
  %4407 = vmatprep.mubr.bf16.mxu0 0
  %4408 = vmatmul.mubr.bf16.gmra.mrb[0].mxu0 %v3919
  %v4409 = vpop.f32.mrb[0].mxu0
  %v4410 = vadd.f32 %v3733, %v4409
  %v4411 = vpop.f32.mrb[0].mxu0
  %v4412 = vpop.f32.mrb[0].mxu0
  %v4413 = vadd.f32 %v3733, %v4412
  %v4414 = vpop.f32.mrb[0].mxu0
  %4415 = vmatprep.mubr.bf16.mxu0 0
  %4416 = vmatmul.mubr.bf16.gmra.mrb[0].mxu0 %v3922
  %v4417 = vpop.f32.mrb[0].mxu0
  %v4418 = vadd.f32 %v3733, %v4417
  %v4419 = vpop.f32.mrb[0].mxu0
  %v4420 = vpop.f32.mrb[0].mxu0
  %v4421 = vadd.f32 %v3733, %v4420
  %v4422 = vpop.f32.mrb[0].mxu0
  %4423 = vmatprep.mubr.bf16.mxu0 0
  %4424 = vmatmul.mubr.bf16.gmra.mrb[0].mxu0 %v3925
  %v4425 = vpop.f32.mrb[0].mxu0
  %v4426 = vadd.f32 %v3733, %v4425
  %v4427 = vpop.f32.mrb[0].mxu0
  %v4428 = vpop.f32.mrb[0].mxu0
  %v4429 = vadd.f32 %v3733, %v4428
  %v4430 = vpop.f32.mrb[0].mxu0
  %4431 = vmatprep.mubr.bf16.mxu0 0
  %4432 = vmatmul.mubr.bf16.gmra.mrb[0].mxu0 %v3928
  %v4433 = vpop.f32.mrb[0].mxu0
  %v4434 = vadd.f32 %v3733, %v4433
  %v4435 = vpop.f32.mrb[0].mxu0
  %v4436 = vpop.f32.mrb[0].mxu0
  %v4437 = vadd.f32 %v3733, %v4436
  %v4438 = vpop.f32.mrb[0].mxu0
  %4439 = vmatprep.mubr.bf16.mxu0 0
  %4440 = vmatmul.mubr.bf16.gmra.mrb[0].mxu0 %v3931
  %v4441 = vpop.f32.mrb[0].mxu0
  %v4442 = vadd.f32 %v3733, %v4441
  %v4443 = vpop.f32.mrb[0].mxu0
  %v4444 = vpop.f32.mrb[0].mxu0
  %v4445 = vadd.f32 %v3733, %v4444
  %v4446 = vpop.f32.mrb[0].mxu0
  %4447 = vmatprep.mubr.bf16.mxu0 0
  %4448 = vmatmul.mubr.bf16.gmra.mrb[0].mxu0 %v3934
  %v4449 = vpop.f32.mrb[0].mxu0
  %v4450 = vadd.f32 %v3733, %v4449
  %v4451 = vpop.f32.mrb[0].mxu0
  %v4452 = vpop.f32.mrb[0].mxu0
  %v4453 = vadd.f32 %v3733, %v4452
  %v4454 = vpop.f32.mrb[0].mxu0
  %4455 = vmatprep.mubr.bf16.mxu0 0
  %4456 = vmatmul.mubr.bf16.gmra.mrb[0].mxu0 %v3937
  %v4457 = vpop.f32.mrb[0].mxu0
  %v4458 = vadd.f32 %v3733, %v4457
  %v4459 = vpop.f32.mrb[0].mxu0
  %v4460 = vpop.f32.mrb[0].mxu0
  %v4461 = vadd.f32 %v3733, %v4460
  %v4462 = vpop.f32.mrb[0].mxu0
  %4463 = vmatprep.mubr.bf16.mxu0 0
  %4464 = vmatmul.mubr.bf16.gmra.mrb[0].mxu0 %v3940
  %v4465 = vpop.f32.mrb[0].mxu0
  %v4466 = vadd.f32 %v3733, %v4465
  %v4467 = vpop.f32.mrb[0].mxu0
  %v4468 = vpop.f32.mrb[0].mxu0
  %v4469 = vadd.f32 %v3733, %v4468
  %v4470 = vpop.f32.mrb[0].mxu0
  %4471 = vmatprep.mubr.bf16.mxu0 0
  %4472 = vmatmul.mubr.bf16.gmra.mrb[0].mxu0 %v3943
  %v4473 = vpop.f32.mrb[0].mxu0
  %v4474 = vadd.f32 %v3733, %v4473
  %v4475 = vpop.f32.mrb[0].mxu0
  %v4476 = vpop.f32.mrb[0].mxu0
  %v4477 = vadd.f32 %v3733, %v4476
  %v4478 = vpop.f32.mrb[0].mxu0
  %4479 = vmatprep.mubr.bf16.mxu0 0
  %4480 = vmatmul.mubr.bf16.gmra.mrb[0].mxu0 %v3946
  %v4481 = vpop.f32.mrb[0].mxu0
  %v4482 = vadd.f32 %v3733, %v4481
  %v4483 = vpop.f32.mrb[0].mxu0
  %v4484 = vpop.f32.mrb[0].mxu0
  %v4485 = vadd.f32 %v3733, %v4484
  %v4486 = vpop.f32.mrb[0].mxu0
  %4487 = vmatprep.mubr.bf16.mxu0 0
  %4488 = vmatmul.mubr.bf16.gmra.mrb[0].mxu0 %v3949
  %v4489 = vpop.f32.mrb[0].mxu0
  %v4490 = vadd.f32 %v3733, %v4489
  %v4491 = vpop.f32.mrb[0].mxu0
  %v4492 = vpop.f32.mrb[0].mxu0
  %v4493 = vadd.f32 %v3733, %v4492
  %v4494 = vpop.f32.mrb[0].mxu0
  %4495 = vdwg.mxu0
  %v4496 = vlaneseq
  %v4497 = vshrl.u32 %v4496, 7
  %v4498 = vadd.s32 %v4497, 8
  %v4499 = vadd.s32 %v4497, 16
  %v4500 = vadd.s32 %v4497, 24
  %v4501 = vcombine.high %v57, %v57
  %v4503 = vunpack.c.l.s4 1966171168
  %v4504 = vunpack.c.0.s8 %v4503
  %v4505 = vlaneseq
  %v4506 = vshrl.u32 %v4505, 7
  %v4507 = vsub.s32 %v4504, %v4506
  %v4508 = vrot.slane %v57, %v4507
  %v4510 = vunpack.c.l.s4 1966171168
  %v4511 = vunpack.c.0.s8 %v4510
  %v4512 = vlaneseq
  %v4513 = vshrl.u32 %v4512, 7
  %v4514 = vsub.s32 %v4511, %v4513
  %v4515 = vrot.slane %v4501, %v4514
  %v4516 = vcombine.high %v4508, %v4508
  %v4517 = vcombine.high %v4515, %v4515
  %v4519 = vunpack.c.l.s4 1966171168
  %v4520 = vunpack.c.0.s8 %v4519
  %v4521 = vlaneseq
  %v4522 = vshrl.u32 %v4521, 7
  %v4523 = vsub.s32 %v4520, %v4522
  %v4524 = vrot.slane %v4508, %v4523
  %v4526 = vunpack.c.l.s4 1966171168
  %v4527 = vunpack.c.0.s8 %v4526
  %v4528 = vlaneseq
  %v4529 = vshrl.u32 %v4528, 7
  %v4530 = vsub.s32 %v4527, %v4529
  %v4531 = vrot.slane %v4515, %v4530
  %v4533 = vunpack.c.l.s4 1966171168
  %v4534 = vunpack.c.0.s8 %v4533
  %v4535 = vlaneseq
  %v4536 = vshrl.u32 %v4535, 7
  %v4537 = vsub.s32 %v4534, %v4536
  %v4538 = vrot.slane %v4516, %v4537
  %v4540 = vunpack.c.l.s4 1966171168
  %v4541 = vunpack.c.0.s8 %v4540
  %v4542 = vlaneseq
  %v4543 = vshrl.u32 %v4542, 7
  %v4544 = vsub.s32 %v4541, %v4543
  %v4545 = vrot.slane %v4517, %v4544
  %v4546 = vcombine.high %v4524, %v4524
  %v4547 = vcombine.high %v4531, %v4531
  %v4548 = vcombine.high %v4538, %v4538
  %v4549 = vcombine.high %v4545, %v4545
  %v4550 = vcombine.high %v58, %v58
  %v4552 = vunpack.c.l.s4 1966171168
  %v4553 = vunpack.c.0.s8 %v4552
  %v4554 = vlaneseq
  %v4555 = vshrl.u32 %v4554, 7
  %v4556 = vsub.s32 %v4553, %v4555
  %v4557 = vrot.slane %v58, %v4556
  %v4559 = vunpack.c.l.s4 1966171168
  %v4560 = vunpack.c.0.s8 %v4559
  %v4561 = vlaneseq
  %v4562 = vshrl.u32 %v4561, 7
  %v4563 = vsub.s32 %v4560, %v4562
  %v4564 = vrot.slane %v4550, %v4563
  %v4565 = vcombine.high %v4557, %v4557
  %v4566 = vcombine.high %v4564, %v4564
  %v4568 = vunpack.c.l.s4 1966171168
  %v4569 = vunpack.c.0.s8 %v4568
  %v4570 = vlaneseq
  %v4571 = vshrl.u32 %v4570, 7
  %v4572 = vsub.s32 %v4569, %v4571
  %v4573 = vrot.slane %v4557, %v4572
  %v4575 = vunpack.c.l.s4 1966171168
  %v4576 = vunpack.c.0.s8 %v4575
  %v4577 = vlaneseq
  %v4578 = vshrl.u32 %v4577, 7
  %v4579 = vsub.s32 %v4576, %v4578
  %v4580 = vrot.slane %v4564, %v4579
  %v4582 = vunpack.c.l.s4 1966171168
  %v4583 = vunpack.c.0.s8 %v4582
  %v4584 = vlaneseq
  %v4585 = vshrl.u32 %v4584, 7
  %v4586 = vsub.s32 %v4583, %v4585
  %v4587 = vrot.slane %v4565, %v4586
  %v4589 = vunpack.c.l.s4 1966171168
  %v4590 = vunpack.c.0.s8 %v4589
  %v4591 = vlaneseq
  %v4592 = vshrl.u32 %v4591, 7
  %v4593 = vsub.s32 %v4590, %v4592
  %v4594 = vrot.slane %v4566, %v4593
  %v4595 = vcombine.high %v4573, %v4573
  %v4596 = vcombine.high %v4580, %v4580
  %v4597 = vcombine.high %v4587, %v4587
  %v4598 = vcombine.high %v4594, %v4594
  %v4599 = vcombine.high %v59, %v59
  %v4601 = vunpack.c.l.s4 1966171168
  %v4602 = vunpack.c.0.s8 %v4601
  %v4603 = vlaneseq
  %v4604 = vshrl.u32 %v4603, 7
  %v4605 = vsub.s32 %v4602, %v4604
  %v4606 = vrot.slane %v59, %v4605
  %v4608 = vunpack.c.l.s4 1966171168
  %v4609 = vunpack.c.0.s8 %v4608
  %v4610 = vlaneseq
  %v4611 = vshrl.u32 %v4610, 7
  %v4612 = vsub.s32 %v4609, %v4611
  %v4613 = vrot.slane %v4599, %v4612
  %v4614 = vcombine.high %v4606, %v4606
  %v4615 = vcombine.high %v4613, %v4613
  %v4617 = vunpack.c.l.s4 1966171168
  %v4618 = vunpack.c.0.s8 %v4617
  %v4619 = vlaneseq
  %v4620 = vshrl.u32 %v4619, 7
  %v4621 = vsub.s32 %v4618, %v4620
  %v4622 = vrot.slane %v4606, %v4621
  %v4624 = vunpack.c.l.s4 1966171168
  %v4625 = vunpack.c.0.s8 %v4624
  %v4626 = vlaneseq
  %v4627 = vshrl.u32 %v4626, 7
  %v4628 = vsub.s32 %v4625, %v4627
  %v4629 = vrot.slane %v4613, %v4628
  %v4631 = vunpack.c.l.s4 1966171168
  %v4632 = vunpack.c.0.s8 %v4631
  %v4633 = vlaneseq
  %v4634 = vshrl.u32 %v4633, 7
  %v4635 = vsub.s32 %v4632, %v4634
  %v4636 = vrot.slane %v4614, %v4635
  %v4638 = vunpack.c.l.s4 1966171168
  %v4639 = vunpack.c.0.s8 %v4638
  %v4640 = vlaneseq
  %v4641 = vshrl.u32 %v4640, 7
  %v4642 = vsub.s32 %v4639, %v4641
  %v4643 = vrot.slane %v4615, %v4642
  %v4644 = vcombine.high %v4622, %v4622
  %v4645 = vcombine.high %v4629, %v4629
  %v4646 = vcombine.high %v4636, %v4636
  %v4647 = vcombine.high %v4643, %v4643
  %v4648 = vcombine.high %v60, %v60
  %v4650 = vunpack.c.l.s4 1966171168
  %v4651 = vunpack.c.0.s8 %v4650
  %v4652 = vlaneseq
  %v4653 = vshrl.u32 %v4652, 7
  %v4654 = vsub.s32 %v4651, %v4653
  %v4655 = vrot.slane %v60, %v4654
  %v4657 = vunpack.c.l.s4 1966171168
  %v4658 = vunpack.c.0.s8 %v4657
  %v4659 = vlaneseq
  %v4660 = vshrl.u32 %v4659, 7
  %v4661 = vsub.s32 %v4658, %v4660
  %v4662 = vrot.slane %v4648, %v4661
  %v4663 = vcombine.high %v4655, %v4655
  %v4664 = vcombine.high %v4662, %v4662
  %v4666 = vunpack.c.l.s4 1966171168
  %v4667 = vunpack.c.0.s8 %v4666
  %v4668 = vlaneseq
  %v4669 = vshrl.u32 %v4668, 7
  %v4670 = vsub.s32 %v4667, %v4669
  %v4671 = vrot.slane %v4655, %v4670
  %v4673 = vunpack.c.l.s4 1966171168
  %v4674 = vunpack.c.0.s8 %v4673
  %v4675 = vlaneseq
  %v4676 = vshrl.u32 %v4675, 7
  %v4677 = vsub.s32 %v4674, %v4676
  %v4678 = vrot.slane %v4662, %v4677
  %v4680 = vunpack.c.l.s4 1966171168
  %v4681 = vunpack.c.0.s8 %v4680
  %v4682 = vlaneseq
  %v4683 = vshrl.u32 %v4682, 7
  %v4684 = vsub.s32 %v4681, %v4683
  %v4685 = vrot.slane %v4663, %v4684
  %v4687 = vunpack.c.l.s4 1966171168
  %v4688 = vunpack.c.0.s8 %v4687
  %v4689 = vlaneseq
  %v4690 = vshrl.u32 %v4689, 7
  %v4691 = vsub.s32 %v4688, %v4690
  %v4692 = vrot.slane %v4664, %v4691
  %v4693 = vcombine.high %v4671, %v4671
  %v4694 = vcombine.high %v4678, %v4678
  %v4695 = vcombine.high %v4685, %v4685
  %v4696 = vcombine.high %v4692, %v4692
  %v4697 = vlaneseq
  %v4698 = vshrl.u32 %v4697, 7
  %v4699 = vsub.s32 0, %v4698
  %v4700 = vrot.slane %v4524, %v4699
  %v4701 = vlaneseq
  %v4702 = vshrl.u32 %v4701, 7
  %v4703 = vsub.s32 0, %v4702
  %v4704 = vrot.slane %v4538, %v4703
  %v4705 = vlaneseq
  %v4706 = vshrl.u32 %v4705, 7
  %v4707 = vsub.s32 0, %v4706
  %v4708 = vrot.slane %v4546, %v4707
  %v4709 = vlaneseq
  %v4710 = vshrl.u32 %v4709, 7
  %v4711 = vsub.s32 0, %v4710
  %v4712 = vrot.slane %v4548, %v4711
  %v4713 = vlaneseq
  %v4714 = vshrl.u32 %v4713, 7
  %v4715 = vsub.s32 0, %v4714
  %v4716 = vrot.slane %v4531, %v4715
  %v4717 = vlaneseq
  %v4718 = vshrl.u32 %v4717, 7
  %v4719 = vsub.s32 0, %v4718
  %v4720 = vrot.slane %v4545, %v4719
  %v4721 = vlaneseq
  %v4722 = vshrl.u32 %v4721, 7
  %v4723 = vsub.s32 0, %v4722
  %v4724 = vrot.slane %v4547, %v4723
  %v4725 = vlaneseq
  %v4726 = vshrl.u32 %v4725, 7
  %v4727 = vsub.s32 0, %v4726
  %v4728 = vrot.slane %v4549, %v4727
  %v4729 = vlaneseq
  %v4730 = vshrl.u32 %v4729, 7
  %v4731 = vsub.s32 0, %v4730
  %v4732 = vrot.slane %v4573, %v4731
  %v4733 = vlaneseq
  %v4734 = vshrl.u32 %v4733, 7
  %v4735 = vsub.s32 0, %v4734
  %v4736 = vrot.slane %v4587, %v4735
  %v4737 = vlaneseq
  %v4738 = vshrl.u32 %v4737, 7
  %v4739 = vsub.s32 0, %v4738
  %v4740 = vrot.slane %v4595, %v4739
  %v4741 = vlaneseq
  %v4742 = vshrl.u32 %v4741, 7
  %v4743 = vsub.s32 0, %v4742
  %v4744 = vrot.slane %v4597, %v4743
  %v4745 = vlaneseq
  %v4746 = vshrl.u32 %v4745, 7
  %v4747 = vsub.s32 0, %v4746
  %v4748 = vrot.slane %v4580, %v4747
  %v4749 = vlaneseq
  %v4750 = vshrl.u32 %v4749, 7
  %v4751 = vsub.s32 0, %v4750
  %v4752 = vrot.slane %v4594, %v4751
  %v4753 = vlaneseq
  %v4754 = vshrl.u32 %v4753, 7
  %v4755 = vsub.s32 0, %v4754
  %v4756 = vrot.slane %v4596, %v4755
  %v4757 = vlaneseq
  %v4758 = vshrl.u32 %v4757, 7
  %v4759 = vsub.s32 0, %v4758
  %v4760 = vrot.slane %v4598, %v4759
  %v4761 = vlaneseq
  %v4762 = vshrl.u32 %v4761, 7
  %v4763 = vsub.s32 0, %v4762
  %v4764 = vrot.slane %v4622, %v4763
  %v4765 = vlaneseq
  %v4766 = vshrl.u32 %v4765, 7
  %v4767 = vsub.s32 0, %v4766
  %v4768 = vrot.slane %v4636, %v4767
  %v4769 = vlaneseq
  %v4770 = vshrl.u32 %v4769, 7
  %v4771 = vsub.s32 0, %v4770
  %v4772 = vrot.slane %v4644, %v4771
  %v4773 = vlaneseq
  %v4774 = vshrl.u32 %v4773, 7
  %v4775 = vsub.s32 0, %v4774
  %v4776 = vrot.slane %v4646, %v4775
  %v4777 = vlaneseq
  %v4778 = vshrl.u32 %v4777, 7
  %v4779 = vsub.s32 0, %v4778
  %v4780 = vrot.slane %v4629, %v4779
  %v4781 = vlaneseq
  %v4782 = vshrl.u32 %v4781, 7
  %v4783 = vsub.s32 0, %v4782
  %v4784 = vrot.slane %v4643, %v4783
  %v4785 = vlaneseq
  %v4786 = vshrl.u32 %v4785, 7
  %v4787 = vsub.s32 0, %v4786
  %v4788 = vrot.slane %v4645, %v4787
  %v4789 = vlaneseq
  %v4790 = vshrl.u32 %v4789, 7
  %v4791 = vsub.s32 0, %v4790
  %v4792 = vrot.slane %v4647, %v4791
  %v4793 = vlaneseq
  %v4794 = vshrl.u32 %v4793, 7
  %v4795 = vsub.s32 0, %v4794
  %v4796 = vrot.slane %v4671, %v4795
  %v4797 = vlaneseq
  %v4798 = vshrl.u32 %v4797, 7
  %v4799 = vsub.s32 0, %v4798
  %v4800 = vrot.slane %v4685, %v4799
  %v4801 = vlaneseq
  %v4802 = vshrl.u32 %v4801, 7
  %v4803 = vsub.s32 0, %v4802
  %v4804 = vrot.slane %v4693, %v4803
  %v4805 = vlaneseq
  %v4806 = vshrl.u32 %v4805, 7
  %v4807 = vsub.s32 0, %v4806
  %v4808 = vrot.slane %v4695, %v4807
  %v4809 = vlaneseq
  %v4810 = vshrl.u32 %v4809, 7
  %v4811 = vsub.s32 0, %v4810
  %v4812 = vrot.slane %v4678, %v4811
  %v4813 = vlaneseq
  %v4814 = vshrl.u32 %v4813, 7
  %v4815 = vsub.s32 0, %v4814
  %v4816 = vrot.slane %v4692, %v4815
  %v4817 = vlaneseq
  %v4818 = vshrl.u32 %v4817, 7
  %v4819 = vsub.s32 0, %v4818
  %v4820 = vrot.slane %v4694, %v4819
  %v4821 = vlaneseq
  %v4822 = vshrl.u32 %v4821, 7
  %v4823 = vsub.s32 0, %v4822
  %v4824 = vrot.slane %v4696, %v4823
  %vm4825 = vcmp.lt.s32.totalorder %v4497, %v4700
  %vm4826 = vcmp.lt.s32.totalorder %v4498, %v4700
  %vm4827 = vcmp.lt.s32.totalorder %v4499, %v4700
  %vm4828 = vcmp.lt.s32.totalorder %v4500, %v4700
  %vm4829 = vcmp.lt.s32.totalorder %v4497, %v4704
  %vm4830 = vcmp.lt.s32.totalorder %v4498, %v4704
  %vm4831 = vcmp.lt.s32.totalorder %v4499, %v4704
  %vm4832 = vcmp.lt.s32.totalorder %v4500, %v4704
  %vm4833 = vcmp.lt.s32.totalorder %v4497, %v4708
  %vm4834 = vcmp.lt.s32.totalorder %v4498, %v4708
  %vm4835 = vcmp.lt.s32.totalorder %v4499, %v4708
  %vm4836 = vcmp.lt.s32.totalorder %v4500, %v4708
  %vm4837 = vcmp.lt.s32.totalorder %v4497, %v4712
  %vm4838 = vcmp.lt.s32.totalorder %v4498, %v4712
  %vm4839 = vcmp.lt.s32.totalorder %v4499, %v4712
  %vm4840 = vcmp.lt.s32.totalorder %v4500, %v4712
  %vm4841 = vcmp.lt.s32.totalorder %v4497, %v4716
  %vm4842 = vcmp.lt.s32.totalorder %v4498, %v4716
  %vm4843 = vcmp.lt.s32.totalorder %v4499, %v4716
  %vm4844 = vcmp.lt.s32.totalorder %v4500, %v4716
  %vm4845 = vcmp.lt.s32.totalorder %v4497, %v4720
  %vm4846 = vcmp.lt.s32.totalorder %v4498, %v4720
  %vm4847 = vcmp.lt.s32.totalorder %v4499, %v4720
  %vm4848 = vcmp.lt.s32.totalorder %v4500, %v4720
  %vm4849 = vcmp.lt.s32.totalorder %v4497, %v4724
  %vm4850 = vcmp.lt.s32.totalorder %v4498, %v4724
  %vm4851 = vcmp.lt.s32.totalorder %v4499, %v4724
  %vm4852 = vcmp.lt.s32.totalorder %v4500, %v4724
  %vm4853 = vcmp.lt.s32.totalorder %v4497, %v4728
  %vm4854 = vcmp.lt.s32.totalorder %v4498, %v4728
  %vm4855 = vcmp.lt.s32.totalorder %v4499, %v4728
  %vm4856 = vcmp.lt.s32.totalorder %v4500, %v4728
  %vm4857 = vcmp.lt.s32.totalorder %v4497, %v4732
  %vm4858 = vcmp.lt.s32.totalorder %v4498, %v4732
  %vm4859 = vcmp.lt.s32.totalorder %v4499, %v4732
  %vm4860 = vcmp.lt.s32.totalorder %v4500, %v4732
  %vm4861 = vcmp.lt.s32.totalorder %v4497, %v4736
  %vm4862 = vcmp.lt.s32.totalorder %v4498, %v4736
  %vm4863 = vcmp.lt.s32.totalorder %v4499, %v4736
  %vm4864 = vcmp.lt.s32.totalorder %v4500, %v4736
  %vm4865 = vcmp.lt.s32.totalorder %v4497, %v4740
  %vm4866 = vcmp.lt.s32.totalorder %v4498, %v4740
  %vm4867 = vcmp.lt.s32.totalorder %v4499, %v4740
  %vm4868 = vcmp.lt.s32.totalorder %v4500, %v4740
  %vm4869 = vcmp.lt.s32.totalorder %v4497, %v4744
  %vm4870 = vcmp.lt.s32.totalorder %v4498, %v4744
  %vm4871 = vcmp.lt.s32.totalorder %v4499, %v4744
  %vm4872 = vcmp.lt.s32.totalorder %v4500, %v4744
  %vm4873 = vcmp.lt.s32.totalorder %v4497, %v4748
  %vm4874 = vcmp.lt.s32.totalorder %v4498, %v4748
  %vm4875 = vcmp.lt.s32.totalorder %v4499, %v4748
  %vm4876 = vcmp.lt.s32.totalorder %v4500, %v4748
  %vm4877 = vcmp.lt.s32.totalorder %v4497, %v4752
  %vm4878 = vcmp.lt.s32.totalorder %v4498, %v4752
  %vm4879 = vcmp.lt.s32.totalorder %v4499, %v4752
  %vm4880 = vcmp.lt.s32.totalorder %v4500, %v4752
  %vm4881 = vcmp.lt.s32.totalorder %v4497, %v4756
  %vm4882 = vcmp.lt.s32.totalorder %v4498, %v4756
  %vm4883 = vcmp.lt.s32.totalorder %v4499, %v4756
  %vm4884 = vcmp.lt.s32.totalorder %v4500, %v4756
  %vm4885 = vcmp.lt.s32.totalorder %v4497, %v4760
  %vm4886 = vcmp.lt.s32.totalorder %v4498, %v4760
  %vm4887 = vcmp.lt.s32.totalorder %v4499, %v4760
  %vm4888 = vcmp.lt.s32.totalorder %v4500, %v4760
  %vm4889 = vcmp.lt.s32.totalorder %v4497, %v4764
  %vm4890 = vcmp.lt.s32.totalorder %v4498, %v4764
  %vm4891 = vcmp.lt.s32.totalorder %v4499, %v4764
  %vm4892 = vcmp.lt.s32.totalorder %v4500, %v4764
  %vm4893 = vcmp.lt.s32.totalorder %v4497, %v4768
  %vm4894 = vcmp.lt.s32.totalorder %v4498, %v4768
  %vm4895 = vcmp.lt.s32.totalorder %v4499, %v4768
  %vm4896 = vcmp.lt.s32.totalorder %v4500, %v4768
  %vm4897 = vcmp.lt.s32.totalorder %v4497, %v4772
  %vm4898 = vcmp.lt.s32.totalorder %v4498, %v4772
  %vm4899 = vcmp.lt.s32.totalorder %v4499, %v4772
  %vm4900 = vcmp.lt.s32.totalorder %v4500, %v4772
  %vm4901 = vcmp.lt.s32.totalorder %v4497, %v4776
  %vm4902 = vcmp.lt.s32.totalorder %v4498, %v4776
  %vm4903 = vcmp.lt.s32.totalorder %v4499, %v4776
  %vm4904 = vcmp.lt.s32.totalorder %v4500, %v4776
  %vm4905 = vcmp.lt.s32.totalorder %v4497, %v4780
  %vm4906 = vcmp.lt.s32.totalorder %v4498, %v4780
  %vm4907 = vcmp.lt.s32.totalorder %v4499, %v4780
  %vm4908 = vcmp.lt.s32.totalorder %v4500, %v4780
  %vm4909 = vcmp.lt.s32.totalorder %v4497, %v4784
  %vm4910 = vcmp.lt.s32.totalorder %v4498, %v4784
  %vm4911 = vcmp.lt.s32.totalorder %v4499, %v4784
  %vm4912 = vcmp.lt.s32.totalorder %v4500, %v4784
  %vm4913 = vcmp.lt.s32.totalorder %v4497, %v4788
  %vm4914 = vcmp.lt.s32.totalorder %v4498, %v4788
  %vm4915 = vcmp.lt.s32.totalorder %v4499, %v4788
  %vm4916 = vcmp.lt.s32.totalorder %v4500, %v4788
  %vm4917 = vcmp.lt.s32.totalorder %v4497, %v4792
  %vm4918 = vcmp.lt.s32.totalorder %v4498, %v4792
  %vm4919 = vcmp.lt.s32.totalorder %v4499, %v4792
  %vm4920 = vcmp.lt.s32.totalorder %v4500, %v4792
  %vm4921 = vcmp.lt.s32.totalorder %v4497, %v4796
  %vm4922 = vcmp.lt.s32.totalorder %v4498, %v4796
  %vm4923 = vcmp.lt.s32.totalorder %v4499, %v4796
  %vm4924 = vcmp.lt.s32.totalorder %v4500, %v4796
  %vm4925 = vcmp.lt.s32.totalorder %v4497, %v4800
  %vm4926 = vcmp.lt.s32.totalorder %v4498, %v4800
  %vm4927 = vcmp.lt.s32.totalorder %v4499, %v4800
  %vm4928 = vcmp.lt.s32.totalorder %v4500, %v4800
  %vm4929 = vcmp.lt.s32.totalorder %v4497, %v4804
  %vm4930 = vcmp.lt.s32.totalorder %v4498, %v4804
  %vm4931 = vcmp.lt.s32.totalorder %v4499, %v4804
  %vm4932 = vcmp.lt.s32.totalorder %v4500, %v4804
  %vm4933 = vcmp.lt.s32.totalorder %v4497, %v4808
  %vm4934 = vcmp.lt.s32.totalorder %v4498, %v4808
  %vm4935 = vcmp.lt.s32.totalorder %v4499, %v4808
  %vm4936 = vcmp.lt.s32.totalorder %v4500, %v4808
  %vm4937 = vcmp.lt.s32.totalorder %v4497, %v4812
  %vm4938 = vcmp.lt.s32.totalorder %v4498, %v4812
  %vm4939 = vcmp.lt.s32.totalorder %v4499, %v4812
  %vm4940 = vcmp.lt.s32.totalorder %v4500, %v4812
  %vm4941 = vcmp.lt.s32.totalorder %v4497, %v4816
  %vm4942 = vcmp.lt.s32.totalorder %v4498, %v4816
  %vm4943 = vcmp.lt.s32.totalorder %v4499, %v4816
  %vm4944 = vcmp.lt.s32.totalorder %v4500, %v4816
  %vm4945 = vcmp.lt.s32.totalorder %v4497, %v4820
  %vm4946 = vcmp.lt.s32.totalorder %v4498, %v4820
  %vm4947 = vcmp.lt.s32.totalorder %v4499, %v4820
  %vm4948 = vcmp.lt.s32.totalorder %v4500, %v4820
  %vm4949 = vcmp.lt.s32.totalorder %v4497, %v4824
  %vm4950 = vcmp.lt.s32.totalorder %v4498, %v4824
  %vm4951 = vcmp.lt.s32.totalorder %v4499, %v4824
  %vm4952 = vcmp.lt.s32.totalorder %v4500, %v4824
  %v4953 = vsel %vm4825, 1, 0
  %v4954 = vsel %vm4826, 1, 0
  %v4955 = vsel %vm4827, 1, 0
  %v4956 = vsel %vm4828, 1, 0
  %v4957 = vsel %vm4829, 1, 0
  %v4958 = vsel %vm4830, 1, 0
  %v4959 = vsel %vm4831, 1, 0
  %v4960 = vsel %vm4832, 1, 0
  %v4961 = vsel %vm4833, 1, 0
  %v4962 = vsel %vm4834, 1, 0
  %v4963 = vsel %vm4835, 1, 0
  %v4964 = vsel %vm4836, 1, 0
  %v4965 = vsel %vm4837, 1, 0
  %v4966 = vsel %vm4838, 1, 0
  %v4967 = vsel %vm4839, 1, 0
  %v4968 = vsel %vm4840, 1, 0
  %v4969 = vsel %vm4841, 1, 0
  %v4970 = vsel %vm4842, 1, 0
  %v4971 = vsel %vm4843, 1, 0
  %v4972 = vsel %vm4844, 1, 0
  %v4973 = vsel %vm4845, 1, 0
  %v4974 = vsel %vm4846, 1, 0
  %v4975 = vsel %vm4847, 1, 0
  %v4976 = vsel %vm4848, 1, 0
  %v4977 = vsel %vm4849, 1, 0
  %v4978 = vsel %vm4850, 1, 0
  %v4979 = vsel %vm4851, 1, 0
  %v4980 = vsel %vm4852, 1, 0
  %v4981 = vsel %vm4853, 1, 0
  %v4982 = vsel %vm4854, 1, 0
  %v4983 = vsel %vm4855, 1, 0
  %v4984 = vsel %vm4856, 1, 0
  %v4985 = vsel %vm4857, 1, 0
  %v4986 = vsel %vm4858, 1, 0
  %v4987 = vsel %vm4859, 1, 0
  %v4988 = vsel %vm4860, 1, 0
  %v4989 = vsel %vm4861, 1, 0
  %v4990 = vsel %vm4862, 1, 0
  %v4991 = vsel %vm4863, 1, 0
  %v4992 = vsel %vm4864, 1, 0
  %v4993 = vsel %vm4865, 1, 0
  %v4994 = vsel %vm4866, 1, 0
  %v4995 = vsel %vm4867, 1, 0
  %v4996 = vsel %vm4868, 1, 0
  %v4997 = vsel %vm4869, 1, 0
  %v4998 = vsel %vm4870, 1, 0
  %v4999 = vsel %vm4871, 1, 0
  %v5000 = vsel %vm4872, 1, 0
  %v5001 = vsel %vm4873, 1, 0
  %v5002 = vsel %vm4874, 1, 0
  %v5003 = vsel %vm4875, 1, 0
  %v5004 = vsel %vm4876, 1, 0
  %v5005 = vsel %vm4877, 1, 0
  %v5006 = vsel %vm4878, 1, 0
  %v5007 = vsel %vm4879, 1, 0
  %v5008 = vsel %vm4880, 1, 0
  %v5009 = vsel %vm4881, 1, 0
  %v5010 = vsel %vm4882, 1, 0
  %v5011 = vsel %vm4883, 1, 0
  %v5012 = vsel %vm4884, 1, 0
  %v5013 = vsel %vm4885, 1, 0
  %v5014 = vsel %vm4886, 1, 0
  %v5015 = vsel %vm4887, 1, 0
  %v5016 = vsel %vm4888, 1, 0
  %v5017 = vsel %vm4889, 1, 0
  %v5018 = vsel %vm4890, 1, 0
  %v5019 = vsel %vm4891, 1, 0
  %v5020 = vsel %vm4892, 1, 0
  %v5021 = vsel %vm4893, 1, 0
  %v5022 = vsel %vm4894, 1, 0
  %v5023 = vsel %vm4895, 1, 0
  %v5024 = vsel %vm4896, 1, 0
  %v5025 = vsel %vm4897, 1, 0
  %v5026 = vsel %vm4898, 1, 0
  %v5027 = vsel %vm4899, 1, 0
  %v5028 = vsel %vm4900, 1, 0
  %v5029 = vsel %vm4901, 1, 0
  %v5030 = vsel %vm4902, 1, 0
  %v5031 = vsel %vm4903, 1, 0
  %v5032 = vsel %vm4904, 1, 0
  %v5033 = vsel %vm4905, 1, 0
  %v5034 = vsel %vm4906, 1, 0
  %v5035 = vsel %vm4907, 1, 0
  %v5036 = vsel %vm4908, 1, 0
  %v5037 = vsel %vm4909, 1, 0
  %v5038 = vsel %vm4910, 1, 0
  %v5039 = vsel %vm4911, 1, 0
  %v5040 = vsel %vm4912, 1, 0
  %v5041 = vsel %vm4913, 1, 0
  %v5042 = vsel %vm4914, 1, 0
  %v5043 = vsel %vm4915, 1, 0
  %v5044 = vsel %vm4916, 1, 0
  %v5045 = vsel %vm4917, 1, 0
  %v5046 = vsel %vm4918, 1, 0
  %v5047 = vsel %vm4919, 1, 0
  %v5048 = vsel %vm4920, 1, 0
  %v5049 = vsel %vm4921, 1, 0
  %v5050 = vsel %vm4922, 1, 0
  %v5051 = vsel %vm4923, 1, 0
  %v5052 = vsel %vm4924, 1, 0
  %v5053 = vsel %vm4925, 1, 0
  %v5054 = vsel %vm4926, 1, 0
  %v5055 = vsel %vm4927, 1, 0
  %v5056 = vsel %vm4928, 1, 0
  %v5057 = vsel %vm4929, 1, 0
  %v5058 = vsel %vm4930, 1, 0
  %v5059 = vsel %vm4931, 1, 0
  %v5060 = vsel %vm4932, 1, 0
  %v5061 = vsel %vm4933, 1, 0
  %v5062 = vsel %vm4934, 1, 0
  %v5063 = vsel %vm4935, 1, 0
  %v5064 = vsel %vm4936, 1, 0
  %v5065 = vsel %vm4937, 1, 0
  %v5066 = vsel %vm4938, 1, 0
  %v5067 = vsel %vm4939, 1, 0
  %v5068 = vsel %vm4940, 1, 0
  %v5069 = vsel %vm4941, 1, 0
  %v5070 = vsel %vm4942, 1, 0
  %v5071 = vsel %vm4943, 1, 0
  %v5072 = vsel %vm4944, 1, 0
  %v5073 = vsel %vm4945, 1, 0
  %v5074 = vsel %vm4946, 1, 0
  %v5075 = vsel %vm4947, 1, 0
  %v5076 = vsel %vm4948, 1, 0
  %v5077 = vsel %vm4949, 1, 0
  %v5078 = vsel %vm4950, 1, 0
  %v5079 = vsel %vm4951, 1, 0
  %v5080 = vsel %vm4952, 1, 0
  %5081 = vset.pattern.permute.xlu0 0
  %5082 = vperm.xlu0 %5081, %v4953
  %v5083 = vpop.permute.xlu0 %5082
  %5084 = vset.pattern.permute.xlu0 0
  %5085 = vperm.xlu0 %5084, %v4954
  %v5086 = vpop.permute.xlu0 %5085
  %5087 = vset.pattern.permute.xlu0 0
  %5088 = vperm.xlu0 %5087, %v4955
  %v5089 = vpop.permute.xlu0 %5088
  %5090 = vset.pattern.permute.xlu0 0
  %5091 = vperm.xlu0 %5090, %v4956
  %v5092 = vpop.permute.xlu0 %5091
  %5093 = vset.pattern.permute.xlu0 0
  %5094 = vperm.xlu0 %5093, %v4957
  %v5095 = vpop.permute.xlu0 %5094
  %5096 = vset.pattern.permute.xlu0 0
  %5097 = vperm.xlu0 %5096, %v4958
  %v5098 = vpop.permute.xlu0 %5097
  %5099 = vset.pattern.permute.xlu0 0
  %5100 = vperm.xlu0 %5099, %v4959
  %v5101 = vpop.permute.xlu0 %5100
  %5102 = vset.pattern.permute.xlu0 0
  %5103 = vperm.xlu0 %5102, %v4960
  %v5104 = vpop.permute.xlu0 %5103
  %5105 = vset.pattern.permute.xlu0 0
  %5106 = vperm.xlu0 %5105, %v4961
  %v5107 = vpop.permute.xlu0 %5106
  %5108 = vset.pattern.permute.xlu0 0
  %5109 = vperm.xlu0 %5108, %v4962
  %v5110 = vpop.permute.xlu0 %5109
  %5111 = vset.pattern.permute.xlu0 0
  %5112 = vperm.xlu0 %5111, %v4963
  %v5113 = vpop.permute.xlu0 %5112
  %5114 = vset.pattern.permute.xlu0 0
  %5115 = vperm.xlu0 %5114, %v4964
  %v5116 = vpop.permute.xlu0 %5115
  %5117 = vset.pattern.permute.xlu0 0
  %5118 = vperm.xlu0 %5117, %v4965
  %v5119 = vpop.permute.xlu0 %5118
  %5120 = vset.pattern.permute.xlu0 0
  %5121 = vperm.xlu0 %5120, %v4966
  %v5122 = vpop.permute.xlu0 %5121
  %5123 = vset.pattern.permute.xlu0 0
  %5124 = vperm.xlu0 %5123, %v4967
  %v5125 = vpop.permute.xlu0 %5124
  %5126 = vset.pattern.permute.xlu0 0
  %5127 = vperm.xlu0 %5126, %v4968
  %v5128 = vpop.permute.xlu0 %5127
  %5129 = vset.pattern.permute.xlu0 0
  %5130 = vperm.xlu0 %5129, %v4969
  %v5131 = vpop.permute.xlu0 %5130
  %5132 = vset.pattern.permute.xlu0 0
  %5133 = vperm.xlu0 %5132, %v4970
  %v5134 = vpop.permute.xlu0 %5133
  %5135 = vset.pattern.permute.xlu0 0
  %5136 = vperm.xlu0 %5135, %v4971
  %v5137 = vpop.permute.xlu0 %5136
  %5138 = vset.pattern.permute.xlu0 0
  %5139 = vperm.xlu0 %5138, %v4972
  %v5140 = vpop.permute.xlu0 %5139
  %5141 = vset.pattern.permute.xlu0 0
  %5142 = vperm.xlu0 %5141, %v4973
  %v5143 = vpop.permute.xlu0 %5142
  %5144 = vset.pattern.permute.xlu0 0
  %5145 = vperm.xlu0 %5144, %v4974
  %v5146 = vpop.permute.xlu0 %5145
  %5147 = vset.pattern.permute.xlu0 0
  %5148 = vperm.xlu0 %5147, %v4975
  %v5149 = vpop.permute.xlu0 %5148
  %5150 = vset.pattern.permute.xlu0 0
  %5151 = vperm.xlu0 %5150, %v4976
  %v5152 = vpop.permute.xlu0 %5151
  %5153 = vset.pattern.permute.xlu0 0
  %5154 = vperm.xlu0 %5153, %v4977
  %v5155 = vpop.permute.xlu0 %5154
  %5156 = vset.pattern.permute.xlu0 0
  %5157 = vperm.xlu0 %5156, %v4978
  %v5158 = vpop.permute.xlu0 %5157
  %5159 = vset.pattern.permute.xlu0 0
  %5160 = vperm.xlu0 %5159, %v4979
  %v5161 = vpop.permute.xlu0 %5160
  %5162 = vset.pattern.permute.xlu0 0
  %5163 = vperm.xlu0 %5162, %v4980
  %v5164 = vpop.permute.xlu0 %5163
  %5165 = vset.pattern.permute.xlu0 0
  %5166 = vperm.xlu0 %5165, %v4981
  %v5167 = vpop.permute.xlu0 %5166
  %5168 = vset.pattern.permute.xlu0 0
  %5169 = vperm.xlu0 %5168, %v4982
  %v5170 = vpop.permute.xlu0 %5169
  %5171 = vset.pattern.permute.xlu0 0
  %5172 = vperm.xlu0 %5171, %v4983
  %v5173 = vpop.permute.xlu0 %5172
  %5174 = vset.pattern.permute.xlu0 0
  %5175 = vperm.xlu0 %5174, %v4984
  %v5176 = vpop.permute.xlu0 %5175
  %5177 = vset.pattern.permute.xlu0 0
  %5178 = vperm.xlu0 %5177, %v4985
  %v5179 = vpop.permute.xlu0 %5178
  %5180 = vset.pattern.permute.xlu0 0
  %5181 = vperm.xlu0 %5180, %v4986
  %v5182 = vpop.permute.xlu0 %5181
  %5183 = vset.pattern.permute.xlu0 0
  %5184 = vperm.xlu0 %5183, %v4987
  %v5185 = vpop.permute.xlu0 %5184
  %5186 = vset.pattern.permute.xlu0 0
  %5187 = vperm.xlu0 %5186, %v4988
  %v5188 = vpop.permute.xlu0 %5187
  %5189 = vset.pattern.permute.xlu0 0
  %5190 = vperm.xlu0 %5189, %v4989
  %v5191 = vpop.permute.xlu0 %5190
  %5192 = vset.pattern.permute.xlu0 0
  %5193 = vperm.xlu0 %5192, %v4990
  %v5194 = vpop.permute.xlu0 %5193
  %5195 = vset.pattern.permute.xlu0 0
  %5196 = vperm.xlu0 %5195, %v4991
  %v5197 = vpop.permute.xlu0 %5196
  %5198 = vset.pattern.permute.xlu0 0
  %5199 = vperm.xlu0 %5198, %v4992
  %v5200 = vpop.permute.xlu0 %5199
  %5201 = vset.pattern.permute.xlu0 0
  %5202 = vperm.xlu0 %5201, %v4993
  %v5203 = vpop.permute.xlu0 %5202
  %5204 = vset.pattern.permute.xlu0 0
  %5205 = vperm.xlu0 %5204, %v4994
  %v5206 = vpop.permute.xlu0 %5205
  %5207 = vset.pattern.permute.xlu0 0
  %5208 = vperm.xlu0 %5207, %v4995
  %v5209 = vpop.permute.xlu0 %5208
  %5210 = vset.pattern.permute.xlu0 0
  %5211 = vperm.xlu0 %5210, %v4996
  %v5212 = vpop.permute.xlu0 %5211
  %5213 = vset.pattern.permute.xlu0 0
  %5214 = vperm.xlu0 %5213, %v4997
  %v5215 = vpop.permute.xlu0 %5214
  %5216 = vset.pattern.permute.xlu0 0
  %5217 = vperm.xlu0 %5216, %v4998
  %v5218 = vpop.permute.xlu0 %5217
  %5219 = vset.pattern.permute.xlu0 0
  %5220 = vperm.xlu0 %5219, %v4999
  %v5221 = vpop.permute.xlu0 %5220
  %5222 = vset.pattern.permute.xlu0 0
  %5223 = vperm.xlu0 %5222, %v5000
  %v5224 = vpop.permute.xlu0 %5223
  %5225 = vset.pattern.permute.xlu0 0
  %5226 = vperm.xlu0 %5225, %v5001
  %v5227 = vpop.permute.xlu0 %5226
  %5228 = vset.pattern.permute.xlu0 0
  %5229 = vperm.xlu0 %5228, %v5002
  %v5230 = vpop.permute.xlu0 %5229
  %5231 = vset.pattern.permute.xlu0 0
  %5232 = vperm.xlu0 %5231, %v5003
  %v5233 = vpop.permute.xlu0 %5232
  %5234 = vset.pattern.permute.xlu0 0
  %5235 = vperm.xlu0 %5234, %v5004
  %v5236 = vpop.permute.xlu0 %5235
  %5237 = vset.pattern.permute.xlu0 0
  %5238 = vperm.xlu0 %5237, %v5005
  %v5239 = vpop.permute.xlu0 %5238
  %5240 = vset.pattern.permute.xlu0 0
  %5241 = vperm.xlu0 %5240, %v5006
  %v5242 = vpop.permute.xlu0 %5241
  %5243 = vset.pattern.permute.xlu0 0
  %5244 = vperm.xlu0 %5243, %v5007
  %v5245 = vpop.permute.xlu0 %5244
  %5246 = vset.pattern.permute.xlu0 0
  %5247 = vperm.xlu0 %5246, %v5008
  %v5248 = vpop.permute.xlu0 %5247
  %5249 = vset.pattern.permute.xlu0 0
  %5250 = vperm.xlu0 %5249, %v5009
  %v5251 = vpop.permute.xlu0 %5250
  %5252 = vset.pattern.permute.xlu0 0
  %5253 = vperm.xlu0 %5252, %v5010
  %v5254 = vpop.permute.xlu0 %5253
  %5255 = vset.pattern.permute.xlu0 0
  %5256 = vperm.xlu0 %5255, %v5011
  %v5257 = vpop.permute.xlu0 %5256
  %5258 = vset.pattern.permute.xlu0 0
  %5259 = vperm.xlu0 %5258, %v5012
  %v5260 = vpop.permute.xlu0 %5259
  %5261 = vset.pattern.permute.xlu0 0
  %5262 = vperm.xlu0 %5261, %v5013
  %v5263 = vpop.permute.xlu0 %5262
  %5264 = vset.pattern.permute.xlu0 0
  %5265 = vperm.xlu0 %5264, %v5014
  %v5266 = vpop.permute.xlu0 %5265
  %5267 = vset.pattern.permute.xlu0 0
  %5268 = vperm.xlu0 %5267, %v5015
  %v5269 = vpop.permute.xlu0 %5268
  %5270 = vset.pattern.permute.xlu0 0
  %5271 = vperm.xlu0 %5270, %v5016
  %v5272 = vpop.permute.xlu0 %5271
  %5273 = vset.pattern.permute.xlu0 0
  %5274 = vperm.xlu0 %5273, %v5017
  %v5275 = vpop.permute.xlu0 %5274
  %5276 = vset.pattern.permute.xlu0 0
  %5277 = vperm.xlu0 %5276, %v5018
  %v5278 = vpop.permute.xlu0 %5277
  %5279 = vset.pattern.permute.xlu0 0
  %5280 = vperm.xlu0 %5279, %v5019
  %v5281 = vpop.permute.xlu0 %5280
  %5282 = vset.pattern.permute.xlu0 0
  %5283 = vperm.xlu0 %5282, %v5020
  %v5284 = vpop.permute.xlu0 %5283
  %5285 = vset.pattern.permute.xlu0 0
  %5286 = vperm.xlu0 %5285, %v5021
  %v5287 = vpop.permute.xlu0 %5286
  %5288 = vset.pattern.permute.xlu0 0
  %5289 = vperm.xlu0 %5288, %v5022
  %v5290 = vpop.permute.xlu0 %5289
  %5291 = vset.pattern.permute.xlu0 0
  %5292 = vperm.xlu0 %5291, %v5023
  %v5293 = vpop.permute.xlu0 %5292
  %5294 = vset.pattern.permute.xlu0 0
  %5295 = vperm.xlu0 %5294, %v5024
  %v5296 = vpop.permute.xlu0 %5295
  %5297 = vset.pattern.permute.xlu0 0
  %5298 = vperm.xlu0 %5297, %v5025
  %v5299 = vpop.permute.xlu0 %5298
  %5300 = vset.pattern.permute.xlu0 0
  %5301 = vperm.xlu0 %5300, %v5026
  %v5302 = vpop.permute.xlu0 %5301
  %5303 = vset.pattern.permute.xlu0 0
  %5304 = vperm.xlu0 %5303, %v5027
  %v5305 = vpop.permute.xlu0 %5304
  %5306 = vset.pattern.permute.xlu0 0
  %5307 = vperm.xlu0 %5306, %v5028
  %v5308 = vpop.permute.xlu0 %5307
  %5309 = vset.pattern.permute.xlu0 0
  %5310 = vperm.xlu0 %5309, %v5029
  %v5311 = vpop.permute.xlu0 %5310
  %5312 = vset.pattern.permute.xlu0 0
  %5313 = vperm.xlu0 %5312, %v5030
  %v5314 = vpop.permute.xlu0 %5313
  %5315 = vset.pattern.permute.xlu0 0
  %5316 = vperm.xlu0 %5315, %v5031
  %v5317 = vpop.permute.xlu0 %5316
  %5318 = vset.pattern.permute.xlu0 0
  %5319 = vperm.xlu0 %5318, %v5032
  %v5320 = vpop.permute.xlu0 %5319
  %5321 = vset.pattern.permute.xlu0 0
  %5322 = vperm.xlu0 %5321, %v5033
  %v5323 = vpop.permute.xlu0 %5322
  %5324 = vset.pattern.permute.xlu0 0
  %5325 = vperm.xlu0 %5324, %v5034
  %v5326 = vpop.permute.xlu0 %5325
  %5327 = vset.pattern.permute.xlu0 0
  %5328 = vperm.xlu0 %5327, %v5035
  %v5329 = vpop.permute.xlu0 %5328
  %5330 = vset.pattern.permute.xlu0 0
  %5331 = vperm.xlu0 %5330, %v5036
  %v5332 = vpop.permute.xlu0 %5331
  %5333 = vset.pattern.permute.xlu0 0
  %5334 = vperm.xlu0 %5333, %v5037
  %v5335 = vpop.permute.xlu0 %5334
  %5336 = vset.pattern.permute.xlu0 0
  %5337 = vperm.xlu0 %5336, %v5038
  %v5338 = vpop.permute.xlu0 %5337
  %5339 = vset.pattern.permute.xlu0 0
  %5340 = vperm.xlu0 %5339, %v5039
  %v5341 = vpop.permute.xlu0 %5340
  %5342 = vset.pattern.permute.xlu0 0
  %5343 = vperm.xlu0 %5342, %v5040
  %v5344 = vpop.permute.xlu0 %5343
  %5345 = vset.pattern.permute.xlu0 0
  %5346 = vperm.xlu0 %5345, %v5041
  %v5347 = vpop.permute.xlu0 %5346
  %5348 = vset.pattern.permute.xlu0 0
  %5349 = vperm.xlu0 %5348, %v5042
  %v5350 = vpop.permute.xlu0 %5349
  %5351 = vset.pattern.permute.xlu0 0
  %5352 = vperm.xlu0 %5351, %v5043
  %v5353 = vpop.permute.xlu0 %5352
  %5354 = vset.pattern.permute.xlu0 0
  %5355 = vperm.xlu0 %5354, %v5044
  %v5356 = vpop.permute.xlu0 %5355
  %5357 = vset.pattern.permute.xlu0 0
  %5358 = vperm.xlu0 %5357, %v5045
  %v5359 = vpop.permute.xlu0 %5358
  %5360 = vset.pattern.permute.xlu0 0
  %5361 = vperm.xlu0 %5360, %v5046
  %v5362 = vpop.permute.xlu0 %5361
  %5363 = vset.pattern.permute.xlu0 0
  %5364 = vperm.xlu0 %5363, %v5047
  %v5365 = vpop.permute.xlu0 %5364
  %5366 = vset.pattern.permute.xlu0 0
  %5367 = vperm.xlu0 %5366, %v5048
  %v5368 = vpop.permute.xlu0 %5367
  %5369 = vset.pattern.permute.xlu0 0
  %5370 = vperm.xlu0 %5369, %v5049
  %v5371 = vpop.permute.xlu0 %5370
  %5372 = vset.pattern.permute.xlu0 0
  %5373 = vperm.xlu0 %5372, %v5050
  %v5374 = vpop.permute.xlu0 %5373
  %5375 = vset.pattern.permute.xlu0 0
  %5376 = vperm.xlu0 %5375, %v5051
  %v5377 = vpop.permute.xlu0 %5376
  %5378 = vset.pattern.permute.xlu0 0
  %5379 = vperm.xlu0 %5378, %v5052
  %v5380 = vpop.permute.xlu0 %5379
  %5381 = vset.pattern.permute.xlu0 0
  %5382 = vperm.xlu0 %5381, %v5053
  %v5383 = vpop.permute.xlu0 %5382
  %5384 = vset.pattern.permute.xlu0 0
  %5385 = vperm.xlu0 %5384, %v5054
  %v5386 = vpop.permute.xlu0 %5385
  %5387 = vset.pattern.permute.xlu0 0
  %5388 = vperm.xlu0 %5387, %v5055
  %v5389 = vpop.permute.xlu0 %5388
  %5390 = vset.pattern.permute.xlu0 0
  %5391 = vperm.xlu0 %5390, %v5056
  %v5392 = vpop.permute.xlu0 %5391
  %5393 = vset.pattern.permute.xlu0 0
  %5394 = vperm.xlu0 %5393, %v5057
  %v5395 = vpop.permute.xlu0 %5394
  %5396 = vset.pattern.permute.xlu0 0
  %5397 = vperm.xlu0 %5396, %v5058
  %v5398 = vpop.permute.xlu0 %5397
  %5399 = vset.pattern.permute.xlu0 0
  %5400 = vperm.xlu0 %5399, %v5059
  %v5401 = vpop.permute.xlu0 %5400
  %5402 = vset.pattern.permute.xlu0 0
  %5403 = vperm.xlu0 %5402, %v5060
  %v5404 = vpop.permute.xlu0 %5403
  %5405 = vset.pattern.permute.xlu0 0
  %5406 = vperm.xlu0 %5405, %v5061
  %v5407 = vpop.permute.xlu0 %5406
  %5408 = vset.pattern.permute.xlu0 0
  %5409 = vperm.xlu0 %5408, %v5062
  %v5410 = vpop.permute.xlu0 %5409
  %5411 = vset.pattern.permute.xlu0 0
  %5412 = vperm.xlu0 %5411, %v5063
  %v5413 = vpop.permute.xlu0 %5412
  %5414 = vset.pattern.permute.xlu0 0
  %5415 = vperm.xlu0 %5414, %v5064
  %v5416 = vpop.permute.xlu0 %5415
  %5417 = vset.pattern.permute.xlu0 0
  %5418 = vperm.xlu0 %5417, %v5065
  %v5419 = vpop.permute.xlu0 %5418
  %5420 = vset.pattern.permute.xlu0 0
  %5421 = vperm.xlu0 %5420, %v5066
  %v5422 = vpop.permute.xlu0 %5421
  %5423 = vset.pattern.permute.xlu0 0
  %5424 = vperm.xlu0 %5423, %v5067
  %v5425 = vpop.permute.xlu0 %5424
  %5426 = vset.pattern.permute.xlu0 0
  %5427 = vperm.xlu0 %5426, %v5068
  %v5428 = vpop.permute.xlu0 %5427
  %5429 = vset.pattern.permute.xlu0 0
  %5430 = vperm.xlu0 %5429, %v5069
  %v5431 = vpop.permute.xlu0 %5430
  %5432 = vset.pattern.permute.xlu0 0
  %5433 = vperm.xlu0 %5432, %v5070
  %v5434 = vpop.permute.xlu0 %5433
  %5435 = vset.pattern.permute.xlu0 0
  %5436 = vperm.xlu0 %5435, %v5071
  %v5437 = vpop.permute.xlu0 %5436
  %5438 = vset.pattern.permute.xlu0 0
  %5439 = vperm.xlu0 %5438, %v5072
  %v5440 = vpop.permute.xlu0 %5439
  %5441 = vset.pattern.permute.xlu0 0
  %5442 = vperm.xlu0 %5441, %v5073
  %v5443 = vpop.permute.xlu0 %5442
  %5444 = vset.pattern.permute.xlu0 0
  %5445 = vperm.xlu0 %5444, %v5074
  %v5446 = vpop.permute.xlu0 %5445
  %5447 = vset.pattern.permute.xlu0 0
  %5448 = vperm.xlu0 %5447, %v5075
  %v5449 = vpop.permute.xlu0 %5448
  %5450 = vset.pattern.permute.xlu0 0
  %5451 = vperm.xlu0 %5450, %v5076
  %v5452 = vpop.permute.xlu0 %5451
  %5453 = vset.pattern.permute.xlu0 0
  %5454 = vperm.xlu0 %5453, %v5077
  %v5455 = vpop.permute.xlu0 %5454
  %5456 = vset.pattern.permute.xlu0 0
  %5457 = vperm.xlu0 %5456, %v5078
  %v5458 = vpop.permute.xlu0 %5457
  %5459 = vset.pattern.permute.xlu0 0
  %5460 = vperm.xlu0 %5459, %v5079
  %v5461 = vpop.permute.xlu0 %5460
  %5462 = vset.pattern.permute.xlu0 0
  %5463 = vperm.xlu0 %5462, %v5080
  %v5464 = vpop.permute.xlu0 %5463
  %vm5465 = vcmp.eq.s32.totalorder %v5083, 1
  %vm5466 = vcmp.eq.s32.totalorder %v5086, 1
  %vm5467 = vcmp.eq.s32.totalorder %v5089, 1
  %vm5468 = vcmp.eq.s32.totalorder %v5092, 1
  %vm5469 = vcmp.eq.s32.totalorder %v5095, 1
  %vm5470 = vcmp.eq.s32.totalorder %v5098, 1
  %vm5471 = vcmp.eq.s32.totalorder %v5101, 1
  %vm5472 = vcmp.eq.s32.totalorder %v5104, 1
  %vm5473 = vcmp.eq.s32.totalorder %v5107, 1
  %vm5474 = vcmp.eq.s32.totalorder %v5110, 1
  %vm5475 = vcmp.eq.s32.totalorder %v5113, 1
  %vm5476 = vcmp.eq.s32.totalorder %v5116, 1
  %vm5477 = vcmp.eq.s32.totalorder %v5119, 1
  %vm5478 = vcmp.eq.s32.totalorder %v5122, 1
  %vm5479 = vcmp.eq.s32.totalorder %v5125, 1
  %vm5480 = vcmp.eq.s32.totalorder %v5128, 1
  %vm5481 = vcmp.eq.s32.totalorder %v5131, 1
  %vm5482 = vcmp.eq.s32.totalorder %v5134, 1
  %vm5483 = vcmp.eq.s32.totalorder %v5137, 1
  %vm5484 = vcmp.eq.s32.totalorder %v5140, 1
  %vm5485 = vcmp.eq.s32.totalorder %v5143, 1
  %vm5486 = vcmp.eq.s32.totalorder %v5146, 1
  %vm5487 = vcmp.eq.s32.totalorder %v5149, 1
  %vm5488 = vcmp.eq.s32.totalorder %v5152, 1
  %vm5489 = vcmp.eq.s32.totalorder %v5155, 1
  %vm5490 = vcmp.eq.s32.totalorder %v5158, 1
  %vm5491 = vcmp.eq.s32.totalorder %v5161, 1
  %vm5492 = vcmp.eq.s32.totalorder %v5164, 1
  %vm5493 = vcmp.eq.s32.totalorder %v5167, 1
  %vm5494 = vcmp.eq.s32.totalorder %v5170, 1
  %vm5495 = vcmp.eq.s32.totalorder %v5173, 1
  %vm5496 = vcmp.eq.s32.totalorder %v5176, 1
  %vm5497 = vcmp.eq.s32.totalorder %v5179, 1
  %vm5498 = vcmp.eq.s32.totalorder %v5182, 1
  %vm5499 = vcmp.eq.s32.totalorder %v5185, 1
  %vm5500 = vcmp.eq.s32.totalorder %v5188, 1
  %vm5501 = vcmp.eq.s32.totalorder %v5191, 1
  %vm5502 = vcmp.eq.s32.totalorder %v5194, 1
  %vm5503 = vcmp.eq.s32.totalorder %v5197, 1
  %vm5504 = vcmp.eq.s32.totalorder %v5200, 1
  %vm5505 = vcmp.eq.s32.totalorder %v5203, 1
  %vm5506 = vcmp.eq.s32.totalorder %v5206, 1
  %vm5507 = vcmp.eq.s32.totalorder %v5209, 1
  %vm5508 = vcmp.eq.s32.totalorder %v5212, 1
  %vm5509 = vcmp.eq.s32.totalorder %v5215, 1
  %vm5510 = vcmp.eq.s32.totalorder %v5218, 1
  %vm5511 = vcmp.eq.s32.totalorder %v5221, 1
  %vm5512 = vcmp.eq.s32.totalorder %v5224, 1
  %vm5513 = vcmp.eq.s32.totalorder %v5227, 1
  %vm5514 = vcmp.eq.s32.totalorder %v5230, 1
  %vm5515 = vcmp.eq.s32.totalorder %v5233, 1
  %vm5516 = vcmp.eq.s32.totalorder %v5236, 1
  %vm5517 = vcmp.eq.s32.totalorder %v5239, 1
  %vm5518 = vcmp.eq.s32.totalorder %v5242, 1
  %vm5519 = vcmp.eq.s32.totalorder %v5245, 1
  %vm5520 = vcmp.eq.s32.totalorder %v5248, 1
  %vm5521 = vcmp.eq.s32.totalorder %v5251, 1
  %vm5522 = vcmp.eq.s32.totalorder %v5254, 1
  %vm5523 = vcmp.eq.s32.totalorder %v5257, 1
  %vm5524 = vcmp.eq.s32.totalorder %v5260, 1
  %vm5525 = vcmp.eq.s32.totalorder %v5263, 1
  %vm5526 = vcmp.eq.s32.totalorder %v5266, 1
  %vm5527 = vcmp.eq.s32.totalorder %v5269, 1
  %vm5528 = vcmp.eq.s32.totalorder %v5272, 1
  %vm5529 = vcmp.eq.s32.totalorder %v5275, 1
  %vm5530 = vcmp.eq.s32.totalorder %v5278, 1
  %vm5531 = vcmp.eq.s32.totalorder %v5281, 1
  %vm5532 = vcmp.eq.s32.totalorder %v5284, 1
  %vm5533 = vcmp.eq.s32.totalorder %v5287, 1
  %vm5534 = vcmp.eq.s32.totalorder %v5290, 1
  %vm5535 = vcmp.eq.s32.totalorder %v5293, 1
  %vm5536 = vcmp.eq.s32.totalorder %v5296, 1
  %vm5537 = vcmp.eq.s32.totalorder %v5299, 1
  %vm5538 = vcmp.eq.s32.totalorder %v5302, 1
  %vm5539 = vcmp.eq.s32.totalorder %v5305, 1
  %vm5540 = vcmp.eq.s32.totalorder %v5308, 1
  %vm5541 = vcmp.eq.s32.totalorder %v5311, 1
  %vm5542 = vcmp.eq.s32.totalorder %v5314, 1
  %vm5543 = vcmp.eq.s32.totalorder %v5317, 1
  %vm5544 = vcmp.eq.s32.totalorder %v5320, 1
  %vm5545 = vcmp.eq.s32.totalorder %v5323, 1
  %vm5546 = vcmp.eq.s32.totalorder %v5326, 1
  %vm5547 = vcmp.eq.s32.totalorder %v5329, 1
  %vm5548 = vcmp.eq.s32.totalorder %v5332, 1
  %vm5549 = vcmp.eq.s32.totalorder %v5335, 1
  %vm5550 = vcmp.eq.s32.totalorder %v5338, 1
  %vm5551 = vcmp.eq.s32.totalorder %v5341, 1
  %vm5552 = vcmp.eq.s32.totalorder %v5344, 1
  %vm5553 = vcmp.eq.s32.totalorder %v5347, 1
  %vm5554 = vcmp.eq.s32.totalorder %v5350, 1
  %vm5555 = vcmp.eq.s32.totalorder %v5353, 1
  %vm5556 = vcmp.eq.s32.totalorder %v5356, 1
  %vm5557 = vcmp.eq.s32.totalorder %v5359, 1
  %vm5558 = vcmp.eq.s32.totalorder %v5362, 1
  %vm5559 = vcmp.eq.s32.totalorder %v5365, 1
  %vm5560 = vcmp.eq.s32.totalorder %v5368, 1
  %vm5561 = vcmp.eq.s32.totalorder %v5371, 1
  %vm5562 = vcmp.eq.s32.totalorder %v5374, 1
  %vm5563 = vcmp.eq.s32.totalorder %v5377, 1
  %vm5564 = vcmp.eq.s32.totalorder %v5380, 1
  %vm5565 = vcmp.eq.s32.totalorder %v5383, 1
  %vm5566 = vcmp.eq.s32.totalorder %v5386, 1
  %vm5567 = vcmp.eq.s32.totalorder %v5389, 1
  %vm5568 = vcmp.eq.s32.totalorder %v5392, 1
  %vm5569 = vcmp.eq.s32.totalorder %v5395, 1
  %vm5570 = vcmp.eq.s32.totalorder %v5398, 1
  %vm5571 = vcmp.eq.s32.totalorder %v5401, 1
  %vm5572 = vcmp.eq.s32.totalorder %v5404, 1
  %vm5573 = vcmp.eq.s32.totalorder %v5407, 1
  %vm5574 = vcmp.eq.s32.totalorder %v5410, 1
  %vm5575 = vcmp.eq.s32.totalorder %v5413, 1
  %vm5576 = vcmp.eq.s32.totalorder %v5416, 1
  %vm5577 = vcmp.eq.s32.totalorder %v5419, 1
  %vm5578 = vcmp.eq.s32.totalorder %v5422, 1
  %vm5579 = vcmp.eq.s32.totalorder %v5425, 1
  %vm5580 = vcmp.eq.s32.totalorder %v5428, 1
  %vm5581 = vcmp.eq.s32.totalorder %v5431, 1
  %vm5582 = vcmp.eq.s32.totalorder %v5434, 1
  %vm5583 = vcmp.eq.s32.totalorder %v5437, 1
  %vm5584 = vcmp.eq.s32.totalorder %v5440, 1
  %vm5585 = vcmp.eq.s32.totalorder %v5443, 1
  %vm5586 = vcmp.eq.s32.totalorder %v5446, 1
  %vm5587 = vcmp.eq.s32.totalorder %v5449, 1
  %vm5588 = vcmp.eq.s32.totalorder %v5452, 1
  %vm5589 = vcmp.eq.s32.totalorder %v5455, 1
  %vm5590 = vcmp.eq.s32.totalorder %v5458, 1
  %vm5591 = vcmp.eq.s32.totalorder %v5461, 1
  %vm5592 = vcmp.eq.s32.totalorder %v5464, 1
  %v5593 = vsel %vm5465, %v3986, -1e+30
  %v5594 = vsel %vm5466, %v3989, -1e+30
  %v5595 = vsel %vm5467, %v3994, -1e+30
  %v5596 = vsel %vm5468, %v3997, -1e+30
  %v5597 = vsel %vm5469, %v4002, -1e+30
  %v5598 = vsel %vm5470, %v4005, -1e+30
  %v5599 = vsel %vm5471, %v4010, -1e+30
  %v5600 = vsel %vm5472, %v4013, -1e+30
  %v5601 = vsel %vm5473, %v4018, -1e+30
  %v5602 = vsel %vm5474, %v4021, -1e+30
  %v5603 = vsel %vm5475, %v4026, -1e+30
  %v5604 = vsel %vm5476, %v4029, -1e+30
  %v5605 = vsel %vm5477, %v4034, -1e+30
  %v5606 = vsel %vm5478, %v4037, -1e+30
  %v5607 = vsel %vm5479, %v4042, -1e+30
  %v5608 = vsel %vm5480, %v4045, -1e+30
  %v5609 = vsel %vm5481, %v4050, -1e+30
  %v5610 = vsel %vm5482, %v4053, -1e+30
  %v5611 = vsel %vm5483, %v4058, -1e+30
  %v5612 = vsel %vm5484, %v4061, -1e+30
  %v5613 = vsel %vm5485, %v4066, -1e+30
  %v5614 = vsel %vm5486, %v4069, -1e+30
  %v5615 = vsel %vm5487, %v4074, -1e+30
  %v5616 = vsel %vm5488, %v4077, -1e+30
  %v5617 = vsel %vm5489, %v4082, -1e+30
  %v5618 = vsel %vm5490, %v4085, -1e+30
  %v5619 = vsel %vm5491, %v4090, -1e+30
  %v5620 = vsel %vm5492, %v4093, -1e+30
  %v5621 = vsel %vm5493, %v4098, -1e+30
  %v5622 = vsel %vm5494, %v4101, -1e+30
  %v5623 = vsel %vm5495, %v4106, -1e+30
  %v5624 = vsel %vm5496, %v4109, -1e+30
  %v5625 = vsel %vm5497, %v4114, -1e+30
  %v5626 = vsel %vm5498, %v4117, -1e+30
  %v5627 = vsel %vm5499, %v4122, -1e+30
  %v5628 = vsel %vm5500, %v4125, -1e+30
  %v5629 = vsel %vm5501, %v4130, -1e+30
  %v5630 = vsel %vm5502, %v4133, -1e+30
  %v5631 = vsel %vm5503, %v4138, -1e+30
  %v5632 = vsel %vm5504, %v4141, -1e+30
  %v5633 = vsel %vm5505, %v4146, -1e+30
  %v5634 = vsel %vm5506, %v4149, -1e+30
  %v5635 = vsel %vm5507, %v4154, -1e+30
  %v5636 = vsel %vm5508, %v4157, -1e+30
  %v5637 = vsel %vm5509, %v4162, -1e+30
  %v5638 = vsel %vm5510, %v4165, -1e+30
  %v5639 = vsel %vm5511, %v4170, -1e+30
  %v5640 = vsel %vm5512, %v4173, -1e+30
  %v5641 = vsel %vm5513, %v4178, -1e+30
  %v5642 = vsel %vm5514, %v4181, -1e+30
  %v5643 = vsel %vm5515, %v4186, -1e+30
  %v5644 = vsel %vm5516, %v4189, -1e+30
  %v5645 = vsel %vm5517, %v4194, -1e+30
  %v5646 = vsel %vm5518, %v4197, -1e+30
  %v5647 = vsel %vm5519, %v4202, -1e+30
  %v5648 = vsel %vm5520, %v4205, -1e+30
  %v5649 = vsel %vm5521, %v4210, -1e+30
  %v5650 = vsel %vm5522, %v4213, -1e+30
  %v5651 = vsel %vm5523, %v4218, -1e+30
  %v5652 = vsel %vm5524, %v4221, -1e+30
  %v5653 = vsel %vm5525, %v4226, -1e+30
  %v5654 = vsel %vm5526, %v4229, -1e+30
  %v5655 = vsel %vm5527, %v4234, -1e+30
  %v5656 = vsel %vm5528, %v4237, -1e+30
  %v5657 = vsel %vm5529, %v4242, -1e+30
  %v5658 = vsel %vm5530, %v4245, -1e+30
  %v5659 = vsel %vm5531, %v4250, -1e+30
  %v5660 = vsel %vm5532, %v4253, -1e+30
  %v5661 = vsel %vm5533, %v4258, -1e+30
  %v5662 = vsel %vm5534, %v4261, -1e+30
  %v5663 = vsel %vm5535, %v4266, -1e+30
  %v5664 = vsel %vm5536, %v4269, -1e+30
  %v5665 = vsel %vm5537, %v4274, -1e+30
  %v5666 = vsel %vm5538, %v4277, -1e+30
  %v5667 = vsel %vm5539, %v4282, -1e+30
  %v5668 = vsel %vm5540, %v4285, -1e+30
  %v5669 = vsel %vm5541, %v4290, -1e+30
  %v5670 = vsel %vm5542, %v4293, -1e+30
  %v5671 = vsel %vm5543, %v4298, -1e+30
  %v5672 = vsel %vm5544, %v4301, -1e+30
  %v5673 = vsel %vm5545, %v4306, -1e+30
  %v5674 = vsel %vm5546, %v4309, -1e+30
  %v5675 = vsel %vm5547, %v4314, -1e+30
  %v5676 = vsel %vm5548, %v4317, -1e+30
  %v5677 = vsel %vm5549, %v4322, -1e+30
  %v5678 = vsel %vm5550, %v4325, -1e+30
  %v5679 = vsel %vm5551, %v4330, -1e+30
  %v5680 = vsel %vm5552, %v4333, -1e+30
  %v5681 = vsel %vm5553, %v4338, -1e+30
  %v5682 = vsel %vm5554, %v4341, -1e+30
  %v5683 = vsel %vm5555, %v4346, -1e+30
  %v5684 = vsel %vm5556, %v4349, -1e+30
  %v5685 = vsel %vm5557, %v4354, -1e+30
  %v5686 = vsel %vm5558, %v4357, -1e+30
  %v5687 = vsel %vm5559, %v4362, -1e+30
  %v5688 = vsel %vm5560, %v4365, -1e+30
  %v5689 = vsel %vm5561, %v4370, -1e+30
  %v5690 = vsel %vm5562, %v4373, -1e+30
  %v5691 = vsel %vm5563, %v4378, -1e+30
  %v5692 = vsel %vm5564, %v4381, -1e+30
  %v5693 = vsel %vm5565, %v4386, -1e+30
  %v5694 = vsel %vm5566, %v4389, -1e+30
  %v5695 = vsel %vm5567, %v4394, -1e+30
  %v5696 = vsel %vm5568, %v4397, -1e+30
  %v5697 = vsel %vm5569, %v4402, -1e+30
  %v5698 = vsel %vm5570, %v4405, -1e+30
  %v5699 = vsel %vm5571, %v4410, -1e+30
  %v5700 = vsel %vm5572, %v4413, -1e+30
  %v5701 = vsel %vm5573, %v4418, -1e+30
  %v5702 = vsel %vm5574, %v4421, -1e+30
  %v5703 = vsel %vm5575, %v4426, -1e+30
  %v5704 = vsel %vm5576, %v4429, -1e+30
  %v5705 = vsel %vm5577, %v4434, -1e+30
  %v5706 = vsel %vm5578, %v4437, -1e+30
  %v5707 = vsel %vm5579, %v4442, -1e+30
  %v5708 = vsel %vm5580, %v4445, -1e+30
  %v5709 = vsel %vm5581, %v4450, -1e+30
  %v5710 = vsel %vm5582, %v4453, -1e+30
  %v5711 = vsel %vm5583, %v4458, -1e+30
  %v5712 = vsel %vm5584, %v4461, -1e+30
  %v5713 = vsel %vm5585, %v4466, -1e+30
  %v5714 = vsel %vm5586, %v4469, -1e+30
  %v5715 = vsel %vm5587, %v4474, -1e+30
  %v5716 = vsel %vm5588, %v4477, -1e+30
  %v5717 = vsel %vm5589, %v4482, -1e+30
  %v5718 = vsel %vm5590, %v4485, -1e+30
  %v5719 = vsel %vm5591, %v4490, -1e+30
  %v5720 = vsel %vm5592, %v4493, -1e+30
  %v5721 = vmax.f32 %v5593, %v5594
  %v5722 = vmax.f32 %v5721, %v5595
  %v5723 = vmax.f32 %v5722, %v5596
  %v5724 = vrot.slane %v5723, 4
  %v5725 = vmax.f32 %v5723, %v5724
  %v5726 = vrot.slane %v5725, 2
  %v5727 = vmax.f32 %v5725, %v5726
  %v5728 = vrot.slane %v5727, 1
  %v5729 = vmax.f32 %v5727, %v5728
  %v5730 = vmax.f32 %v5597, %v5598
  %v5731 = vmax.f32 %v5730, %v5599
  %v5732 = vmax.f32 %v5731, %v5600
  %v5733 = vrot.slane %v5732, 4
  %v5734 = vmax.f32 %v5732, %v5733
  %v5735 = vrot.slane %v5734, 2
  %v5736 = vmax.f32 %v5734, %v5735
  %v5737 = vrot.slane %v5736, 1
  %v5738 = vmax.f32 %v5736, %v5737
  %v5739 = vmax.f32 %v5601, %v5602
  %v5740 = vmax.f32 %v5739, %v5603
  %v5741 = vmax.f32 %v5740, %v5604
  %v5742 = vrot.slane %v5741, 4
  %v5743 = vmax.f32 %v5741, %v5742
  %v5744 = vrot.slane %v5743, 2
  %v5745 = vmax.f32 %v5743, %v5744
  %v5746 = vrot.slane %v5745, 1
  %v5747 = vmax.f32 %v5745, %v5746
  %v5748 = vmax.f32 %v5605, %v5606
  %v5749 = vmax.f32 %v5748, %v5607
  %v5750 = vmax.f32 %v5749, %v5608
  %v5751 = vrot.slane %v5750, 4
  %v5752 = vmax.f32 %v5750, %v5751
  %v5753 = vrot.slane %v5752, 2
  %v5754 = vmax.f32 %v5752, %v5753
  %v5755 = vrot.slane %v5754, 1
  %v5756 = vmax.f32 %v5754, %v5755
  %v5757 = vmax.f32 %v5609, %v5610
  %v5758 = vmax.f32 %v5757, %v5611
  %v5759 = vmax.f32 %v5758, %v5612
  %v5760 = vrot.slane %v5759, 4
  %v5761 = vmax.f32 %v5759, %v5760
  %v5762 = vrot.slane %v5761, 2
  %v5763 = vmax.f32 %v5761, %v5762
  %v5764 = vrot.slane %v5763, 1
  %v5765 = vmax.f32 %v5763, %v5764
  %v5766 = vmax.f32 %v5613, %v5614
  %v5767 = vmax.f32 %v5766, %v5615
  %v5768 = vmax.f32 %v5767, %v5616
  %v5769 = vrot.slane %v5768, 4
  %v5770 = vmax.f32 %v5768, %v5769
  %v5771 = vrot.slane %v5770, 2
  %v5772 = vmax.f32 %v5770, %v5771
  %v5773 = vrot.slane %v5772, 1
  %v5774 = vmax.f32 %v5772, %v5773
  %v5775 = vmax.f32 %v5617, %v5618
  %v5776 = vmax.f32 %v5775, %v5619
  %v5777 = vmax.f32 %v5776, %v5620
  %v5778 = vrot.slane %v5777, 4
  %v5779 = vmax.f32 %v5777, %v5778
  %v5780 = vrot.slane %v5779, 2
  %v5781 = vmax.f32 %v5779, %v5780
  %v5782 = vrot.slane %v5781, 1
  %v5783 = vmax.f32 %v5781, %v5782
  %v5784 = vmax.f32 %v5621, %v5622
  %v5785 = vmax.f32 %v5784, %v5623
  %v5786 = vmax.f32 %v5785, %v5624
  %v5787 = vrot.slane %v5786, 4
  %v5788 = vmax.f32 %v5786, %v5787
  %v5789 = vrot.slane %v5788, 2
  %v5790 = vmax.f32 %v5788, %v5789
  %v5791 = vrot.slane %v5790, 1
  %v5792 = vmax.f32 %v5790, %v5791
  %v5793 = vmax.f32 %v5625, %v5626
  %v5794 = vmax.f32 %v5793, %v5627
  %v5795 = vmax.f32 %v5794, %v5628
  %v5796 = vrot.slane %v5795, 4
  %v5797 = vmax.f32 %v5795, %v5796
  %v5798 = vrot.slane %v5797, 2
  %v5799 = vmax.f32 %v5797, %v5798
  %v5800 = vrot.slane %v5799, 1
  %v5801 = vmax.f32 %v5799, %v5800
  %v5802 = vmax.f32 %v5629, %v5630
  %v5803 = vmax.f32 %v5802, %v5631
  %v5804 = vmax.f32 %v5803, %v5632
  %v5805 = vrot.slane %v5804, 4
  %v5806 = vmax.f32 %v5804, %v5805
  %v5807 = vrot.slane %v5806, 2
  %v5808 = vmax.f32 %v5806, %v5807
  %v5809 = vrot.slane %v5808, 1
  %v5810 = vmax.f32 %v5808, %v5809
  %v5811 = vmax.f32 %v5633, %v5634
  %v5812 = vmax.f32 %v5811, %v5635
  %v5813 = vmax.f32 %v5812, %v5636
  %v5814 = vrot.slane %v5813, 4
  %v5815 = vmax.f32 %v5813, %v5814
  %v5816 = vrot.slane %v5815, 2
  %v5817 = vmax.f32 %v5815, %v5816
  %v5818 = vrot.slane %v5817, 1
  %v5819 = vmax.f32 %v5817, %v5818
  %v5820 = vmax.f32 %v5637, %v5638
  %v5821 = vmax.f32 %v5820, %v5639
  %v5822 = vmax.f32 %v5821, %v5640
  %v5823 = vrot.slane %v5822, 4
  %v5824 = vmax.f32 %v5822, %v5823
  %v5825 = vrot.slane %v5824, 2
  %v5826 = vmax.f32 %v5824, %v5825
  %v5827 = vrot.slane %v5826, 1
  %v5828 = vmax.f32 %v5826, %v5827
  %v5829 = vmax.f32 %v5641, %v5642
  %v5830 = vmax.f32 %v5829, %v5643
  %v5831 = vmax.f32 %v5830, %v5644
  %v5832 = vrot.slane %v5831, 4
  %v5833 = vmax.f32 %v5831, %v5832
  %v5834 = vrot.slane %v5833, 2
  %v5835 = vmax.f32 %v5833, %v5834
  %v5836 = vrot.slane %v5835, 1
  %v5837 = vmax.f32 %v5835, %v5836
  %v5838 = vmax.f32 %v5645, %v5646
  %v5839 = vmax.f32 %v5838, %v5647
  %v5840 = vmax.f32 %v5839, %v5648
  %v5841 = vrot.slane %v5840, 4
  %v5842 = vmax.f32 %v5840, %v5841
  %v5843 = vrot.slane %v5842, 2
  %v5844 = vmax.f32 %v5842, %v5843
  %v5845 = vrot.slane %v5844, 1
  %v5846 = vmax.f32 %v5844, %v5845
  %v5847 = vmax.f32 %v5649, %v5650
  %v5848 = vmax.f32 %v5847, %v5651
  %v5849 = vmax.f32 %v5848, %v5652
  %v5850 = vrot.slane %v5849, 4
  %v5851 = vmax.f32 %v5849, %v5850
  %v5852 = vrot.slane %v5851, 2
  %v5853 = vmax.f32 %v5851, %v5852
  %v5854 = vrot.slane %v5853, 1
  %v5855 = vmax.f32 %v5853, %v5854
  %v5856 = vmax.f32 %v5653, %v5654
  %v5857 = vmax.f32 %v5856, %v5655
  %v5858 = vmax.f32 %v5857, %v5656
  %v5859 = vrot.slane %v5858, 4
  %v5860 = vmax.f32 %v5858, %v5859
  %v5861 = vrot.slane %v5860, 2
  %v5862 = vmax.f32 %v5860, %v5861
  %v5863 = vrot.slane %v5862, 1
  %v5864 = vmax.f32 %v5862, %v5863
  %v5865 = vmax.f32 %v5657, %v5658
  %v5866 = vmax.f32 %v5865, %v5659
  %v5867 = vmax.f32 %v5866, %v5660
  %v5868 = vrot.slane %v5867, 4
  %v5869 = vmax.f32 %v5867, %v5868
  %v5870 = vrot.slane %v5869, 2
  %v5871 = vmax.f32 %v5869, %v5870
  %v5872 = vrot.slane %v5871, 1
  %v5873 = vmax.f32 %v5871, %v5872
  %v5874 = vmax.f32 %v5661, %v5662
  %v5875 = vmax.f32 %v5874, %v5663
  %v5876 = vmax.f32 %v5875, %v5664
  %v5877 = vrot.slane %v5876, 4
  %v5878 = vmax.f32 %v5876, %v5877
  %v5879 = vrot.slane %v5878, 2
  %v5880 = vmax.f32 %v5878, %v5879
  %v5881 = vrot.slane %v5880, 1
  %v5882 = vmax.f32 %v5880, %v5881
  %v5883 = vmax.f32 %v5665, %v5666
  %v5884 = vmax.f32 %v5883, %v5667
  %v5885 = vmax.f32 %v5884, %v5668
  %v5886 = vrot.slane %v5885, 4
  %v5887 = vmax.f32 %v5885, %v5886
  %v5888 = vrot.slane %v5887, 2
  %v5889 = vmax.f32 %v5887, %v5888
  %v5890 = vrot.slane %v5889, 1
  %v5891 = vmax.f32 %v5889, %v5890
  %v5892 = vmax.f32 %v5669, %v5670
  %v5893 = vmax.f32 %v5892, %v5671
  %v5894 = vmax.f32 %v5893, %v5672
  %v5895 = vrot.slane %v5894, 4
  %v5896 = vmax.f32 %v5894, %v5895
  %v5897 = vrot.slane %v5896, 2
  %v5898 = vmax.f32 %v5896, %v5897
  %v5899 = vrot.slane %v5898, 1
  %v5900 = vmax.f32 %v5898, %v5899
  %v5901 = vmax.f32 %v5673, %v5674
  %v5902 = vmax.f32 %v5901, %v5675
  %v5903 = vmax.f32 %v5902, %v5676
  %v5904 = vrot.slane %v5903, 4
  %v5905 = vmax.f32 %v5903, %v5904
  %v5906 = vrot.slane %v5905, 2
  %v5907 = vmax.f32 %v5905, %v5906
  %v5908 = vrot.slane %v5907, 1
  %v5909 = vmax.f32 %v5907, %v5908
  %v5910 = vmax.f32 %v5677, %v5678
  %v5911 = vmax.f32 %v5910, %v5679
  %v5912 = vmax.f32 %v5911, %v5680
  %v5913 = vrot.slane %v5912, 4
  %v5914 = vmax.f32 %v5912, %v5913
  %v5915 = vrot.slane %v5914, 2
  %v5916 = vmax.f32 %v5914, %v5915
  %v5917 = vrot.slane %v5916, 1
  %v5918 = vmax.f32 %v5916, %v5917
  %v5919 = vmax.f32 %v5681, %v5682
  %v5920 = vmax.f32 %v5919, %v5683
  %v5921 = vmax.f32 %v5920, %v5684
  %v5922 = vrot.slane %v5921, 4
  %v5923 = vmax.f32 %v5921, %v5922
  %v5924 = vrot.slane %v5923, 2
  %v5925 = vmax.f32 %v5923, %v5924
  %v5926 = vrot.slane %v5925, 1
  %v5927 = vmax.f32 %v5925, %v5926
  %v5928 = vmax.f32 %v5685, %v5686
  %v5929 = vmax.f32 %v5928, %v5687
  %v5930 = vmax.f32 %v5929, %v5688
  %v5931 = vrot.slane %v5930, 4
  %v5932 = vmax.f32 %v5930, %v5931
  %v5933 = vrot.slane %v5932, 2
  %v5934 = vmax.f32 %v5932, %v5933
  %v5935 = vrot.slane %v5934, 1
  %v5936 = vmax.f32 %v5934, %v5935
  %v5937 = vmax.f32 %v5689, %v5690
  %v5938 = vmax.f32 %v5937, %v5691
  %v5939 = vmax.f32 %v5938, %v5692
  %v5940 = vrot.slane %v5939, 4
  %v5941 = vmax.f32 %v5939, %v5940
  %v5942 = vrot.slane %v5941, 2
  %v5943 = vmax.f32 %v5941, %v5942
  %v5944 = vrot.slane %v5943, 1
  %v5945 = vmax.f32 %v5943, %v5944
  %v5946 = vmax.f32 %v5693, %v5694
  %v5947 = vmax.f32 %v5946, %v5695
  %v5948 = vmax.f32 %v5947, %v5696
  %v5949 = vrot.slane %v5948, 4
  %v5950 = vmax.f32 %v5948, %v5949
  %v5951 = vrot.slane %v5950, 2
  %v5952 = vmax.f32 %v5950, %v5951
  %v5953 = vrot.slane %v5952, 1
  %v5954 = vmax.f32 %v5952, %v5953
  %v5955 = vmax.f32 %v5697, %v5698
  %v5956 = vmax.f32 %v5955, %v5699
  %v5957 = vmax.f32 %v5956, %v5700
  %v5958 = vrot.slane %v5957, 4
  %v5959 = vmax.f32 %v5957, %v5958
  %v5960 = vrot.slane %v5959, 2
  %v5961 = vmax.f32 %v5959, %v5960
  %v5962 = vrot.slane %v5961, 1
  %v5963 = vmax.f32 %v5961, %v5962
  %v5964 = vmax.f32 %v5701, %v5702
  %v5965 = vmax.f32 %v5964, %v5703
  %v5966 = vmax.f32 %v5965, %v5704
  %v5967 = vrot.slane %v5966, 4
  %v5968 = vmax.f32 %v5966, %v5967
  %v5969 = vrot.slane %v5968, 2
  %v5970 = vmax.f32 %v5968, %v5969
  %v5971 = vrot.slane %v5970, 1
  %v5972 = vmax.f32 %v5970, %v5971
  %v5973 = vmax.f32 %v5705, %v5706
  %v5974 = vmax.f32 %v5973, %v5707
  %v5975 = vmax.f32 %v5974, %v5708
  %v5976 = vrot.slane %v5975, 4
  %v5977 = vmax.f32 %v5975, %v5976
  %v5978 = vrot.slane %v5977, 2
  %v5979 = vmax.f32 %v5977, %v5978
  %v5980 = vrot.slane %v5979, 1
  %v5981 = vmax.f32 %v5979, %v5980
  %v5982 = vmax.f32 %v5709, %v5710
  %v5983 = vmax.f32 %v5982, %v5711
  %v5984 = vmax.f32 %v5983, %v5712
  %v5985 = vrot.slane %v5984, 4
  %v5986 = vmax.f32 %v5984, %v5985
  %v5987 = vrot.slane %v5986, 2
  %v5988 = vmax.f32 %v5986, %v5987
  %v5989 = vrot.slane %v5988, 1
  %v5990 = vmax.f32 %v5988, %v5989
  %v5991 = vmax.f32 %v5713, %v5714
  %v5992 = vmax.f32 %v5991, %v5715
  %v5993 = vmax.f32 %v5992, %v5716
  %v5994 = vrot.slane %v5993, 4
  %v5995 = vmax.f32 %v5993, %v5994
  %v5996 = vrot.slane %v5995, 2
  %v5997 = vmax.f32 %v5995, %v5996
  %v5998 = vrot.slane %v5997, 1
  %v5999 = vmax.f32 %v5997, %v5998
  %v6000 = vmax.f32 %v5717, %v5718
  %v6001 = vmax.f32 %v6000, %v5719
  %v6002 = vmax.f32 %v6001, %v5720
  %v6003 = vrot.slane %v6002, 4
  %v6004 = vmax.f32 %v6002, %v6003
  %v6005 = vrot.slane %v6004, 2
  %v6006 = vmax.f32 %v6004, %v6005
  %v6007 = vrot.slane %v6006, 1
  %v6008 = vmax.f32 %v6006, %v6007
  %v6009 = vmax.f32 %v5729, -1e+30
  %v6010 = vmax.f32 %v5738, -1e+30
  %v6011 = vmax.f32 %v5747, -1e+30
  %v6012 = vmax.f32 %v5756, -1e+30
  %v6013 = vmax.f32 %v5765, -1e+30
  %v6014 = vmax.f32 %v5774, -1e+30
  %v6015 = vmax.f32 %v5783, -1e+30
  %v6016 = vmax.f32 %v5792, -1e+30
  %v6017 = vmax.f32 %v5801, -1e+30
  %v6018 = vmax.f32 %v5810, -1e+30
  %v6019 = vmax.f32 %v5819, -1e+30
  %v6020 = vmax.f32 %v5828, -1e+30
  %v6021 = vmax.f32 %v5837, -1e+30
  %v6022 = vmax.f32 %v5846, -1e+30
  %v6023 = vmax.f32 %v5855, -1e+30
  %v6024 = vmax.f32 %v5864, -1e+30
  %v6025 = vmax.f32 %v5873, -1e+30
  %v6026 = vmax.f32 %v5882, -1e+30
  %v6027 = vmax.f32 %v5891, -1e+30
  %v6028 = vmax.f32 %v5900, -1e+30
  %v6029 = vmax.f32 %v5909, -1e+30
  %v6030 = vmax.f32 %v5918, -1e+30
  %v6031 = vmax.f32 %v5927, -1e+30
  %v6032 = vmax.f32 %v5936, -1e+30
  %v6033 = vmax.f32 %v5945, -1e+30
  %v6034 = vmax.f32 %v5954, -1e+30
  %v6035 = vmax.f32 %v5963, -1e+30
  %v6036 = vmax.f32 %v5972, -1e+30
  %v6037 = vmax.f32 %v5981, -1e+30
  %v6038 = vmax.f32 %v5990, -1e+30
  %v6039 = vmax.f32 %v5999, -1e+30
  %v6040 = vmax.f32 %v6008, -1e+30
  %vm6073 = vcmask 1041409
  %v6074 = vsel %vm6073, %v6010, %v6009
  %vm6075 = vcmask 1042434
  %v6076 = vsel %vm6075, %v6011, %v6074
  %vm6077 = vcmask 1043459
  %v6078 = vsel %vm6077, %v6012, %v6076
  %vm6079 = vcmask 1044484
  %v6080 = vsel %vm6079, %v6013, %v6078
  %vm6081 = vcmask 1045509
  %v6082 = vsel %vm6081, %v6014, %v6080
  %vm6083 = vcmask 1046534
  %v6084 = vsel %vm6083, %v6015, %v6082
  %vm6085 = vcmask 1047559
  %v6086 = vsel %vm6085, %v6016, %v6084
  %v6087 = vsel %vm6073, %v6018, %v6017
  %v6088 = vsel %vm6075, %v6019, %v6087
  %v6089 = vsel %vm6077, %v6020, %v6088
  %v6090 = vsel %vm6079, %v6021, %v6089
  %v6091 = vsel %vm6081, %v6022, %v6090
  %v6092 = vsel %vm6083, %v6023, %v6091
  %v6093 = vsel %vm6085, %v6024, %v6092
  %v6094 = vsel %vm6073, %v6026, %v6025
  %v6095 = vsel %vm6075, %v6027, %v6094
  %v6096 = vsel %vm6077, %v6028, %v6095
  %v6097 = vsel %vm6079, %v6029, %v6096
  %v6098 = vsel %vm6081, %v6030, %v6097
  %v6099 = vsel %vm6083, %v6031, %v6098
  %v6100 = vsel %vm6085, %v6032, %v6099
  %v6101 = vsel %vm6073, %v6034, %v6033
  %v6102 = vsel %vm6075, %v6035, %v6101
  %v6103 = vsel %vm6077, %v6036, %v6102
  %v6104 = vsel %vm6079, %v6037, %v6103
  %v6105 = vsel %vm6081, %v6038, %v6104
  %v6106 = vsel %vm6083, %v6039, %v6105
  %v6107 = vsel %vm6085, %v6040, %v6106
  %6112 = vst [vmem:[%s10] sm:$0xff] %v6086
  %6113 = vst [vmem:[%s10 + $0x8] sm:$0xff] %v6093
  %6114 = vst [vmem:[%s10 + $0x10] sm:$0xff] %v6100
  %6115 = vst [vmem:[%s10 + $0x18] sm:$0xff] %v6107
  // Predicated region
  $region42: #{pointnet2_forward.4} parent=0 // pred_check
    _
  $region43: #{pointnet2_forward.4} parent=0 // pred_check_branch
    %6117 = sbr.rel (0) target = $region45
  $region44: #{pointnet2_forward.4} parent=0 // pred_region
    _
  $region45: #{pointnet2_forward.4} parent=0 // pred_fallthru
    _
  // Predicated region
  $region46: #{pointnet2_forward.4} parent=0 // pred_check
    _
  $region47: #{pointnet2_forward.4} parent=0 // pred_check_branch
    %6119 = sbr.rel (0) target = $region49
  $region48: #{pointnet2_forward.4} parent=0 // pred_region
    _
  $region49: #{pointnet2_forward.4} parent=0 // pred_fallthru
    _

// kernel: pointnet2_forward.6
$region0: #{pointnet2_forward.6}
  #allocation0 [shape = 'u32[]', space=smem, size = 0x4, offset = 0x4, fixed_abs, tag = 'smem constant byte address 0x4 - core index']
  #allocation1 [shape = 'u32[144,128]{1,0:T(1,128)}', space=vmem, size = 0x12000, scoped, tag = 'internal scratch']
  %s0 = inlined_call_operand.vmem [shape: bf16[8,4,256], index: 0, kind: input, shape index: {}]
  %s1 = inlined_call_operand.vmem [shape: bf16[8,4,3], index: 1, kind: input, shape index: {}]
  %s2 = inlined_call_operand.vmem [shape: s32[8,1], index: 2, kind: input, shape index: {}]
  %s3 = inlined_call_operand.vmem [shape: bf16[256,256], index: 3, kind: input, shape index: {}]
  %s4 = inlined_call_operand.vmem [shape: bf16[3,256], index: 4, kind: input, shape index: {}]
  %s5 = inlined_call_operand.vmem [shape: f32[1,256], index: 5, kind: input, shape index: {}]
  %s6 = inlined_call_operand.vmem [shape: bf16[256,512], index: 6, kind: input, shape index: {}]
  %s7 = inlined_call_operand.vmem [shape: f32[1,512], index: 7, kind: input, shape index: {}]
  %s8 = inlined_call_operand.vmem [shape: bf16[512,1024], index: 8, kind: input, shape index: {}]
  %s9 = inlined_call_operand.vmem [shape: f32[1,1024], index: 9, kind: input, shape index: {}]
  %s10 = inlined_call_operand.vmem [shape: f32[8,1024], index: 10, kind: output, shape index: {}]
  %s11 = sld [smem:[#allocation0]]
  $region50: #{pointnet2_forward.6} parent=0
    _
  %s13 = ssub.s32 1, %s11
  %s14 = scalar_select 0, %s13, %s11
  // Predicated region
  $region2: #{pointnet2_forward.6} parent=0 // pred_check
    _
  $region3: #{pointnet2_forward.6} parent=0 // pred_check_branch
    %16 = sbr.rel (0) target = $region5
  $region4: #{pointnet2_forward.6} parent=0 // pred_region
    _
  $region5: #{pointnet2_forward.6} parent=0 // pred_fallthru
    _
  // Predicated region
  $region6: #{pointnet2_forward.6} parent=0 // pred_check
    _
  $region7: #{pointnet2_forward.6} parent=0 // pred_check_branch
    %18 = sbr.rel (0) target = $region9
  $region8: #{pointnet2_forward.6} parent=0 // pred_region
    _
  $region9: #{pointnet2_forward.6} parent=0 // pred_fallthru
    _
  // Predicated region
  $region10: #{pointnet2_forward.6} parent=0 // pred_check
    _
  $region11: #{pointnet2_forward.6} parent=0 // pred_check_branch
    %20 = sbr.rel (0) target = $region13
  $region12: #{pointnet2_forward.6} parent=0 // pred_region
    _
  $region13: #{pointnet2_forward.6} parent=0 // pred_fallthru
    _
  // Predicated region
  $region14: #{pointnet2_forward.6} parent=0 // pred_check
    _
  $region15: #{pointnet2_forward.6} parent=0 // pred_check_branch
    %22 = sbr.rel (0) target = $region17
  $region16: #{pointnet2_forward.6} parent=0 // pred_region
    _
  $region17: #{pointnet2_forward.6} parent=0 // pred_fallthru
    _
  // Predicated region
  $region18: #{pointnet2_forward.6} parent=0 // pred_check
    _
  $region19: #{pointnet2_forward.6} parent=0 // pred_check_branch
    %24 = sbr.rel (0) target = $region21
  $region20: #{pointnet2_forward.6} parent=0 // pred_region
    _
  $region21: #{pointnet2_forward.6} parent=0 // pred_fallthru
    _
  // Predicated region
  $region22: #{pointnet2_forward.6} parent=0 // pred_check
    _
  $region23: #{pointnet2_forward.6} parent=0 // pred_check_branch
    %26 = sbr.rel (0) target = $region25
  $region24: #{pointnet2_forward.6} parent=0 // pred_region
    _
  $region25: #{pointnet2_forward.6} parent=0 // pred_fallthru
    _
  // Predicated region
  $region26: #{pointnet2_forward.6} parent=0 // pred_check
    _
  $region27: #{pointnet2_forward.6} parent=0 // pred_check_branch
    %28 = sbr.rel (0) target = $region29
  $region28: #{pointnet2_forward.6} parent=0 // pred_region
    _
  $region29: #{pointnet2_forward.6} parent=0 // pred_fallthru
    _
  // Predicated region
  $region30: #{pointnet2_forward.6} parent=0 // pred_check
    _
  $region31: #{pointnet2_forward.6} parent=0 // pred_check_branch
    %30 = sbr.rel (0) target = $region33
  $region32: #{pointnet2_forward.6} parent=0 // pred_region
    _
  $region33: #{pointnet2_forward.6} parent=0 // pred_fallthru
    _
  // Predicated region
  $region34: #{pointnet2_forward.6} parent=0 // pred_check
    _
  $region35: #{pointnet2_forward.6} parent=0 // pred_check_branch
    %32 = sbr.rel (0) target = $region37
  $region36: #{pointnet2_forward.6} parent=0 // pred_region
    _
  $region37: #{pointnet2_forward.6} parent=0 // pred_fallthru
    _
  // Predicated region
  $region38: #{pointnet2_forward.6} parent=0 // pred_check
    _
  $region39: #{pointnet2_forward.6} parent=0 // pred_check_branch
    %34 = sbr.rel (0) target = $region41
  $region40: #{pointnet2_forward.6} parent=0 // pred_region
    _
  $region41: #{pointnet2_forward.6} parent=0 // pred_fallthru
    _
  %v36 = vld [vmem:[%s3] sm:$0xff]
  %v37 = vld [vmem:[%s3 + $0x8] sm:$0xff]
  %v38 = vld [vmem:[%s3 + $0x10] sm:$0xff]
  %v39 = vld [vmem:[%s3 + $0x18] sm:$0xff]
  %v40 = vld [vmem:[%s3 + $0x20] sm:$0xff]
  %v41 = vld [vmem:[%s3 + $0x28] sm:$0xff]
  %v42 = vld [vmem:[%s3 + $0x30] sm:$0xff]
  %v43 = vld [vmem:[%s3 + $0x38] sm:$0xff]
  %v44 = vld [vmem:[%s3 + $0x40] sm:$0xff]
  %v45 = vld [vmem:[%s3 + $0x48] sm:$0xff]
  %v46 = vld [vmem:[%s3 + $0x50] sm:$0xff]
  %v47 = vld [vmem:[%s3 + $0x58] sm:$0xff]
  %v48 = vld [vmem:[%s3 + $0x60] sm:$0xff]
  %v49 = vld [vmem:[%s3 + $0x68] sm:$0xff]
  %v50 = vld [vmem:[%s3 + $0x70] sm:$0xff]
  %v51 = vld [vmem:[%s3 + $0x78] sm:$0xff]
  %v52 = vld [vmem:[%s3 + $0x80] sm:$0xff]
  %v53 = vld [vmem:[%s3 + $0x88] sm:$0xff]
  %v54 = vld [vmem:[%s3 + $0x90] sm:$0xff]
  %v55 = vld [vmem:[%s3 + $0x98] sm:$0xff]
  %v56 = vld [vmem:[%s3 + $0xa0] sm:$0xff]
  %v57 = vld [vmem:[%s3 + $0xa8] sm:$0xff]
  %v58 = vld [vmem:[%s3 + $0xb0] sm:$0xff]
  %v59 = vld [vmem:[%s3 + $0xb8] sm:$0xff]
  %v60 = vld [vmem:[%s3 + $0xc0] sm:$0xff]
  %v61 = vld [vmem:[%s3 + $0xc8] sm:$0xff]
  %v62 = vld [vmem:[%s3 + $0xd0] sm:$0xff]
  %v63 = vld [vmem:[%s3 + $0xd8] sm:$0xff]
  %v64 = vld [vmem:[%s3 + $0xe0] sm:$0xff]
  %v65 = vld [vmem:[%s3 + $0xe8] sm:$0xff]
  %v66 = vld [vmem:[%s3 + $0xf0] sm:$0xff]
  %v67 = vld [vmem:[%s3 + $0xf8] sm:$0xff]
  %v68 = vld [vmem:[%s4] sm:$0xf]
  %v69 = vld [vmem:[%s5] sm:$0x3]
  %v70 = vld [vmem:[%s6] sm:$0xff]
  %v71 = vld [vmem:[%s6 + $0x8] sm:$0xff]
  %v72 = vld [vmem:[%s6 + $0x10] sm:$0xff]
  %v73 = vld [vmem:[%s6 + $0x18] sm:$0xff]
  %v74 = vld [vmem:[%s6 + $0x20] sm:$0xff]
  %v75 = vld [vmem:[%s6 + $0x28] sm:$0xff]
  %v76 = vld [vmem:[%s6 + $0x30] sm:$0xff]
  %v77 = vld [vmem:[%s6 + $0x38] sm:$0xff]
  %v78 = vld [vmem:[%s6 + $0x40] sm:$0xff]
  %v79 = vld [vmem:[%s6 + $0x48] sm:$0xff]
  %v80 = vld [vmem:[%s6 + $0x50] sm:$0xff]
  %v81 = vld [vmem:[%s6 + $0x58] sm:$0xff]
  %v82 = vld [vmem:[%s6 + $0x60] sm:$0xff]
  %v83 = vld [vmem:[%s6 + $0x68] sm:$0xff]
  %v84 = vld [vmem:[%s6 + $0x70] sm:$0xff]
  %v85 = vld [vmem:[%s6 + $0x78] sm:$0xff]
  %v86 = vld [vmem:[%s6 + $0x80] sm:$0xff]
  %v87 = vld [vmem:[%s6 + $0x88] sm:$0xff]
  %v88 = vld [vmem:[%s6 + $0x90] sm:$0xff]
  %v89 = vld [vmem:[%s6 + $0x98] sm:$0xff]
  %v90 = vld [vmem:[%s6 + $0xa0] sm:$0xff]
  %v91 = vld [vmem:[%s6 + $0xa8] sm:$0xff]
  %v92 = vld [vmem:[%s6 + $0xb0] sm:$0xff]
  %v93 = vld [vmem:[%s6 + $0xb8] sm:$0xff]
  %v94 = vld [vmem:[%s6 + $0xc0] sm:$0xff]
  %v95 = vld [vmem:[%s6 + $0xc8] sm:$0xff]
  %v96 = vld [vmem:[%s6 + $0xd0] sm:$0xff]
  %v97 = vld [vmem:[%s6 + $0xd8] sm:$0xff]
  %v98 = vld [vmem:[%s6 + $0xe0] sm:$0xff]
  %v99 = vld [vmem:[%s6 + $0xe8] sm:$0xff]
  %v100 = vld [vmem:[%s6 + $0xf0] sm:$0xff]
  %v101 = vld [vmem:[%s6 + $0xf8] sm:$0xff]
  %v102 = vld [vmem:[%s6 + $0x100] sm:$0xff]
  %v103 = vld [vmem:[%s6 + $0x108] sm:$0xff]
  %v104 = vld [vmem:[%s6 + $0x110] sm:$0xff]
  %v105 = vld [vmem:[%s6 + $0x118] sm:$0xff]
  %v106 = vld [vmem:[%s6 + $0x120] sm:$0xff]
  %v107 = vld [vmem:[%s6 + $0x128] sm:$0xff]
  %v108 = vld [vmem:[%s6 + $0x130] sm:$0xff]
  %v109 = vld [vmem:[%s6 + $0x138] sm:$0xff]
  %v110 = vld [vmem:[%s6 + $0x140] sm:$0xff]
  %v111 = vld [vmem:[%s6 + $0x148] sm:$0xff]
  %v112 = vld [vmem:[%s6 + $0x150] sm:$0xff]
  %v113 = vld [vmem:[%s6 + $0x158] sm:$0xff]
  %v114 = vld [vmem:[%s6 + $0x160] sm:$0xff]
  %v115 = vld [vmem:[%s6 + $0x168] sm:$0xff]
  %v116 = vld [vmem:[%s6 + $0x170] sm:$0xff]
  %v117 = vld [vmem:[%s6 + $0x178] sm:$0xff]
  %v118 = vld [vmem:[%s6 + $0x180] sm:$0xff]
  %v119 = vld [vmem:[%s6 + $0x188] sm:$0xff]
  %v120 = vld [vmem:[%s6 + $0x190] sm:$0xff]
  %v121 = vld [vmem:[%s6 + $0x198] sm:$0xff]
  %v122 = vld [vmem:[%s6 + $0x1a0] sm:$0xff]
  %v123 = vld [vmem:[%s6 + $0x1a8] sm:$0xff]
  %v124 = vld [vmem:[%s6 + $0x1b0] sm:$0xff]
  %v125 = vld [vmem:[%s6 + $0x1b8] sm:$0xff]
  %v126 = vld [vmem:[%s6 + $0x1c0] sm:$0xff]
  %v127 = vld [vmem:[%s6 + $0x1c8] sm:$0xff]
  %v128 = vld [vmem:[%s6 + $0x1d0] sm:$0xff]
  %v129 = vld [vmem:[%s6 + $0x1d8] sm:$0xff]
  %v130 = vld [vmem:[%s6 + $0x1e0] sm:$0xff]
  %v131 = vld [vmem:[%s6 + $0x1e8] sm:$0xff]
  %v132 = vld [vmem:[%s6 + $0x1f0] sm:$0xff]
  %v133 = vld [vmem:[%s6 + $0x1f8] sm:$0xff]
  %v134 = vld [vmem:[%s7] sm:$0xf]
  %v135 = vld [vmem:[%s8] sm:$0xff]
  %v136 = vld [vmem:[%s8 + $0x8] sm:$0xff]
  %v137 = vld [vmem:[%s8 + $0x10] sm:$0xff]
  %v138 = vld [vmem:[%s8 + $0x18] sm:$0xff]
  %v139 = vld [vmem:[%s8 + $0x20] sm:$0xff]
  %v140 = vld [vmem:[%s8 + $0x28] sm:$0xff]
  %v141 = vld [vmem:[%s8 + $0x30] sm:$0xff]
  %v142 = vld [vmem:[%s8 + $0x38] sm:$0xff]
  %v143 = vld [vmem:[%s8 + $0x40] sm:$0xff]
  %v144 = vld [vmem:[%s8 + $0x48] sm:$0xff]
  %v145 = vld [vmem:[%s8 + $0x50] sm:$0xff]
  %v146 = vld [vmem:[%s8 + $0x58] sm:$0xff]
  %v147 = vld [vmem:[%s8 + $0x60] sm:$0xff]
  %v148 = vld [vmem:[%s8 + $0x68] sm:$0xff]
  %v149 = vld [vmem:[%s8 + $0x70] sm:$0xff]
  %v150 = vld [vmem:[%s8 + $0x78] sm:$0xff]
  %v151 = vld [vmem:[%s8 + $0x80] sm:$0xff]
  %v152 = vld [vmem:[%s8 + $0x88] sm:$0xff]
  %v153 = vld [vmem:[%s8 + $0x90] sm:$0xff]
  %v154 = vld [vmem:[%s8 + $0x98] sm:$0xff]
  %v155 = vld [vmem:[%s8 + $0xa0] sm:$0xff]
  %v156 = vld [vmem:[%s8 + $0xa8] sm:$0xff]
  %v157 = vld [vmem:[%s8 + $0xb0] sm:$0xff]
  %v158 = vld [vmem:[%s8 + $0xb8] sm:$0xff]
  %v159 = vld [vmem:[%s8 + $0xc0] sm:$0xff]
  %v160 = vld [vmem:[%s8 + $0xc8] sm:$0xff]
  %v161 = vld [vmem:[%s8 + $0xd0] sm:$0xff]
  %v162 = vld [vmem:[%s8 + $0xd8] sm:$0xff]
  %v163 = vld [vmem:[%s8 + $0xe0] sm:$0xff]
  %v164 = vld [vmem:[%s8 + $0xe8] sm:$0xff]
  %v165 = vld [vmem:[%s8 + $0xf0] sm:$0xff]
  %v166 = vld [vmem:[%s8 + $0xf8] sm:$0xff]
  %v167 = vld [vmem:[%s8 + $0x100] sm:$0xff]
  %v168 = vld [vmem:[%s8 + $0x108] sm:$0xff]
  %v169 = vld [vmem:[%s8 + $0x110] sm:$0xff]
  %v170 = vld [vmem:[%s8 + $0x118] sm:$0xff]
  %v171 = vld [vmem:[%s8 + $0x120] sm:$0xff]
  %v172 = vld [vmem:[%s8 + $0x128] sm:$0xff]
  %v173 = vld [vmem:[%s8 + $0x130] sm:$0xff]
  %v174 = vld [vmem:[%s8 + $0x138] sm:$0xff]
  %v175 = vld [vmem:[%s8 + $0x140] sm:$0xff]
  %v176 = vld [vmem:[%s8 + $0x148] sm:$0xff]
  %v177 = vld [vmem:[%s8 + $0x150] sm:$0xff]
  %v178 = vld [vmem:[%s8 + $0x158] sm:$0xff]
  %v179 = vld [vmem:[%s8 + $0x160] sm:$0xff]
  %v180 = vld [vmem:[%s8 + $0x168] sm:$0xff]
  %v181 = vld [vmem:[%s8 + $0x170] sm:$0xff]
  %v182 = vld [vmem:[%s8 + $0x178] sm:$0xff]
  %v183 = vld [vmem:[%s8 + $0x180] sm:$0xff]
  %v184 = vld [vmem:[%s8 + $0x188] sm:$0xff]
  %v185 = vld [vmem:[%s8 + $0x190] sm:$0xff]
  %v186 = vld [vmem:[%s8 + $0x198] sm:$0xff]
  %v187 = vld [vmem:[%s8 + $0x1a0] sm:$0xff]
  %v188 = vld [vmem:[%s8 + $0x1a8] sm:$0xff]
  %v189 = vld [vmem:[%s8 + $0x1b0] sm:$0xff]
  %v190 = vld [vmem:[%s8 + $0x1b8] sm:$0xff]
  %v191 = vld [vmem:[%s8 + $0x1c0] sm:$0xff]
  %v192 = vld [vmem:[%s8 + $0x1c8] sm:$0xff]
  %v193 = vld [vmem:[%s8 + $0x1d0] sm:$0xff]
  %v194 = vld [vmem:[%s8 + $0x1d8] sm:$0xff]
  %v195 = vld [vmem:[%s8 + $0x1e0] sm:$0xff]
  %v196 = vld [vmem:[%s8 + $0x1e8] sm:$0xff]
  %v197 = vld [vmem:[%s8 + $0x1f0] sm:$0xff]
  %v198 = vld [vmem:[%s8 + $0x1f8] sm:$0xff]
  %v199 = vld [vmem:[%s8 + $0x200] sm:$0xff]
  %v200 = vld [vmem:[%s8 + $0x208] sm:$0xff]
  %v201 = vld [vmem:[%s8 + $0x210] sm:$0xff]
  %v202 = vld [vmem:[%s8 + $0x218] sm:$0xff]
  %v203 = vld [vmem:[%s8 + $0x220] sm:$0xff]
  %v204 = vld [vmem:[%s8 + $0x228] sm:$0xff]
  %v205 = vld [vmem:[%s8 + $0x230] sm:$0xff]
  %v206 = vld [vmem:[%s8 + $0x238] sm:$0xff]
  %v207 = vld [vmem:[%s8 + $0x240] sm:$0xff]
  %v208 = vld [vmem:[%s8 + $0x248] sm:$0xff]
  %v209 = vld [vmem:[%s8 + $0x250] sm:$0xff]
  %v210 = vld [vmem:[%s8 + $0x258] sm:$0xff]
  %v211 = vld [vmem:[%s8 + $0x260] sm:$0xff]
  %v212 = vld [vmem:[%s8 + $0x268] sm:$0xff]
  %v213 = vld [vmem:[%s8 + $0x270] sm:$0xff]
  %v214 = vld [vmem:[%s8 + $0x278] sm:$0xff]
  %v215 = vld [vmem:[%s8 + $0x280] sm:$0xff]
  %v216 = vld [vmem:[%s8 + $0x288] sm:$0xff]
  %v217 = vld [vmem:[%s8 + $0x290] sm:$0xff]
  %v218 = vld [vmem:[%s8 + $0x298] sm:$0xff]
  %v219 = vld [vmem:[%s8 + $0x2a0] sm:$0xff]
  %v220 = vld [vmem:[%s8 + $0x2a8] sm:$0xff]
  %v221 = vld [vmem:[%s8 + $0x2b0] sm:$0xff]
  %v222 = vld [vmem:[%s8 + $0x2b8] sm:$0xff]
  %v223 = vld [vmem:[%s8 + $0x2c0] sm:$0xff]
  %v224 = vld [vmem:[%s8 + $0x2c8] sm:$0xff]
  %v225 = vld [vmem:[%s8 + $0x2d0] sm:$0xff]
  %v226 = vld [vmem:[%s8 + $0x2d8] sm:$0xff]
  %v227 = vld [vmem:[%s8 + $0x2e0] sm:$0xff]
  %v228 = vld [vmem:[%s8 + $0x2e8] sm:$0xff]
  %v229 = vld [vmem:[%s8 + $0x2f0] sm:$0xff]
  %v230 = vld [vmem:[%s8 + $0x2f8] sm:$0xff]
  %v231 = vld [vmem:[%s8 + $0x300] sm:$0xff]
  %v232 = vld [vmem:[%s8 + $0x308] sm:$0xff]
  %v233 = vld [vmem:[%s8 + $0x310] sm:$0xff]
  %v234 = vld [vmem:[%s8 + $0x318] sm:$0xff]
  %v235 = vld [vmem:[%s8 + $0x320] sm:$0xff]
  %v236 = vld [vmem:[%s8 + $0x328] sm:$0xff]
  %v237 = vld [vmem:[%s8 + $0x330] sm:$0xff]
  %v238 = vld [vmem:[%s8 + $0x338] sm:$0xff]
  %v239 = vld [vmem:[%s8 + $0x340] sm:$0xff]
  %v240 = vld [vmem:[%s8 + $0x348] sm:$0xff]
  %v241 = vld [vmem:[%s8 + $0x350] sm:$0xff]
  %v242 = vld [vmem:[%s8 + $0x358] sm:$0xff]
  %v243 = vld [vmem:[%s8 + $0x360] sm:$0xff]
  %v244 = vld [vmem:[%s8 + $0x368] sm:$0xff]
  %v245 = vld [vmem:[%s8 + $0x370] sm:$0xff]
  %v246 = vld [vmem:[%s8 + $0x378] sm:$0xff]
  %v247 = vld [vmem:[%s8 + $0x380] sm:$0xff]
  %v248 = vld [vmem:[%s8 + $0x388] sm:$0xff]
  %v249 = vld [vmem:[%s8 + $0x390] sm:$0xff]
  %v250 = vld [vmem:[%s8 + $0x398] sm:$0xff]
  %v251 = vld [vmem:[%s8 + $0x3a0] sm:$0xff]
  %v252 = vld [vmem:[%s8 + $0x3a8] sm:$0xff]
  %v253 = vld [vmem:[%s8 + $0x3b0] sm:$0xff]
  %v254 = vld [vmem:[%s8 + $0x3b8] sm:$0xff]
  %v255 = vld [vmem:[%s8 + $0x3c0] sm:$0xff]
  %v256 = vld [vmem:[%s8 + $0x3c8] sm:$0xff]
  %v257 = vld [vmem:[%s8 + $0x3d0] sm:$0xff]
  %v258 = vld [vmem:[%s8 + $0x3d8] sm:$0xff]
  %v259 = vld [vmem:[%s8 + $0x3e0] sm:$0xff]
  %v260 = vld [vmem:[%s8 + $0x3e8] sm:$0xff]
  %v261 = vld [vmem:[%s8 + $0x3f0] sm:$0xff]
  %v262 = vld [vmem:[%s8 + $0x3f8] sm:$0xff]
  %v263 = vld [vmem:[%s8 + $0x400] sm:$0xff]
  %v264 = vld [vmem:[%s8 + $0x408] sm:$0xff]
  %v265 = vld [vmem:[%s8 + $0x410] sm:$0xff]
  %v266 = vld [vmem:[%s8 + $0x418] sm:$0xff]
  %v267 = vld [vmem:[%s8 + $0x420] sm:$0xff]
  %v268 = vld [vmem:[%s8 + $0x428] sm:$0xff]
  %v269 = vld [vmem:[%s8 + $0x430] sm:$0xff]
  %v270 = vld [vmem:[%s8 + $0x438] sm:$0xff]
  %v271 = vld [vmem:[%s8 + $0x440] sm:$0xff]
  %v272 = vld [vmem:[%s8 + $0x448] sm:$0xff]
  %v273 = vld [vmem:[%s8 + $0x450] sm:$0xff]
  %v274 = vld [vmem:[%s8 + $0x458] sm:$0xff]
  %v275 = vld [vmem:[%s8 + $0x460] sm:$0xff]
  %v276 = vld [vmem:[%s8 + $0x468] sm:$0xff]
  %v277 = vld [vmem:[%s8 + $0x470] sm:$0xff]
  %v278 = vld [vmem:[%s8 + $0x478] sm:$0xff]
  %v279 = vld [vmem:[%s8 + $0x480] sm:$0xff]
  %v280 = vld [vmem:[%s8 + $0x488] sm:$0xff]
  %v281 = vld [vmem:[%s8 + $0x490] sm:$0xff]
  %v282 = vld [vmem:[%s8 + $0x498] sm:$0xff]
  %v283 = vld [vmem:[%s8 + $0x4a0] sm:$0xff]
  %v284 = vld [vmem:[%s8 + $0x4a8] sm:$0xff]
  %v285 = vld [vmem:[%s8 + $0x4b0] sm:$0xff]
  %v286 = vld [vmem:[%s8 + $0x4b8] sm:$0xff]
  %v287 = vld [vmem:[%s8 + $0x4c0] sm:$0xff]
  %v288 = vld [vmem:[%s8 + $0x4c8] sm:$0xff]
  %v289 = vld [vmem:[%s8 + $0x4d0] sm:$0xff]
  %v290 = vld [vmem:[%s8 + $0x4d8] sm:$0xff]
  %v291 = vld [vmem:[%s8 + $0x4e0] sm:$0xff]
  %v292 = vld [vmem:[%s8 + $0x4e8] sm:$0xff]
  %v293 = vld [vmem:[%s8 + $0x4f0] sm:$0xff]
  %v294 = vld [vmem:[%s8 + $0x4f8] sm:$0xff]
  %v295 = vld [vmem:[%s8 + $0x500] sm:$0xff]
  %v296 = vld [vmem:[%s8 + $0x508] sm:$0xff]
  %v297 = vld [vmem:[%s8 + $0x510] sm:$0xff]
  %v298 = vld [vmem:[%s8 + $0x518] sm:$0xff]
  %v299 = vld [vmem:[%s8 + $0x520] sm:$0xff]
  %v300 = vld [vmem:[%s8 + $0x528] sm:$0xff]
  %v301 = vld [vmem:[%s8 + $0x530] sm:$0xff]
  %v302 = vld [vmem:[%s8 + $0x538] sm:$0xff]
  %v303 = vld [vmem:[%s8 + $0x540] sm:$0xff]
  %v304 = vld [vmem:[%s8 + $0x548] sm:$0xff]
  %v305 = vld [vmem:[%s8 + $0x550] sm:$0xff]
  %v306 = vld [vmem:[%s8 + $0x558] sm:$0xff]
  %v307 = vld [vmem:[%s8 + $0x560] sm:$0xff]
  %v308 = vld [vmem:[%s8 + $0x568] sm:$0xff]
  %v309 = vld [vmem:[%s8 + $0x570] sm:$0xff]
  %v310 = vld [vmem:[%s8 + $0x578] sm:$0xff]
  %v311 = vld [vmem:[%s8 + $0x580] sm:$0xff]
  %v312 = vld [vmem:[%s8 + $0x588] sm:$0xff]
  %v313 = vld [vmem:[%s8 + $0x590] sm:$0xff]
  %v314 = vld [vmem:[%s8 + $0x598] sm:$0xff]
  %v315 = vld [vmem:[%s8 + $0x5a0] sm:$0xff]
  %v316 = vld [vmem:[%s8 + $0x5a8] sm:$0xff]
  %v317 = vld [vmem:[%s8 + $0x5b0] sm:$0xff]
  %v318 = vld [vmem:[%s8 + $0x5b8] sm:$0xff]
  %v319 = vld [vmem:[%s8 + $0x5c0] sm:$0xff]
  %v320 = vld [vmem:[%s8 + $0x5c8] sm:$0xff]
  %v321 = vld [vmem:[%s8 + $0x5d0] sm:$0xff]
  %v322 = vld [vmem:[%s8 + $0x5d8] sm:$0xff]
  %v323 = vld [vmem:[%s8 + $0x5e0] sm:$0xff]
  %v324 = vld [vmem:[%s8 + $0x5e8] sm:$0xff]
  %v325 = vld [vmem:[%s8 + $0x5f0] sm:$0xff]
  %v326 = vld [vmem:[%s8 + $0x5f8] sm:$0xff]
  %v327 = vld [vmem:[%s8 + $0x600] sm:$0xff]
  %v328 = vld [vmem:[%s8 + $0x608] sm:$0xff]
  %v329 = vld [vmem:[%s8 + $0x610] sm:$0xff]
  %v330 = vld [vmem:[%s8 + $0x618] sm:$0xff]
  %v331 = vld [vmem:[%s8 + $0x620] sm:$0xff]
  %v332 = vld [vmem:[%s8 + $0x628] sm:$0xff]
  %v333 = vld [vmem:[%s8 + $0x630] sm:$0xff]
  %v334 = vld [vmem:[%s8 + $0x638] sm:$0xff]
  %v335 = vld [vmem:[%s8 + $0x640] sm:$0xff]
  %v336 = vld [vmem:[%s8 + $0x648] sm:$0xff]
  %v337 = vld [vmem:[%s8 + $0x650] sm:$0xff]
  %v338 = vld [vmem:[%s8 + $0x658] sm:$0xff]
  %v339 = vld [vmem:[%s8 + $0x660] sm:$0xff]
  %v340 = vld [vmem:[%s8 + $0x668] sm:$0xff]
  %v341 = vld [vmem:[%s8 + $0x670] sm:$0xff]
  %v342 = vld [vmem:[%s8 + $0x678] sm:$0xff]
  %v343 = vld [vmem:[%s8 + $0x680] sm:$0xff]
  %v344 = vld [vmem:[%s8 + $0x688] sm:$0xff]
  %v345 = vld [vmem:[%s8 + $0x690] sm:$0xff]
  %v346 = vld [vmem:[%s8 + $0x698] sm:$0xff]
  %v347 = vld [vmem:[%s8 + $0x6a0] sm:$0xff]
  %v348 = vld [vmem:[%s8 + $0x6a8] sm:$0xff]
  %v349 = vld [vmem:[%s8 + $0x6b0] sm:$0xff]
  %v350 = vld [vmem:[%s8 + $0x6b8] sm:$0xff]
  %v351 = vld [vmem:[%s8 + $0x6c0] sm:$0xff]
  %v352 = vld [vmem:[%s8 + $0x6c8] sm:$0xff]
  %v353 = vld [vmem:[%s8 + $0x6d0] sm:$0xff]
  %v354 = vld [vmem:[%s8 + $0x6d8] sm:$0xff]
  %v355 = vld [vmem:[%s8 + $0x6e0] sm:$0xff]
  %v356 = vld [vmem:[%s8 + $0x6e8] sm:$0xff]
  %v357 = vld [vmem:[%s8 + $0x6f0] sm:$0xff]
  %v358 = vld [vmem:[%s8 + $0x6f8] sm:$0xff]
  %v359 = vld [vmem:[%s8 + $0x700] sm:$0xff]
  %v360 = vld [vmem:[%s8 + $0x708] sm:$0xff]
  %v361 = vld [vmem:[%s8 + $0x710] sm:$0xff]
  %v362 = vld [vmem:[%s8 + $0x718] sm:$0xff]
  %v363 = vld [vmem:[%s8 + $0x720] sm:$0xff]
  %v364 = vld [vmem:[%s8 + $0x728] sm:$0xff]
  %v365 = vld [vmem:[%s8 + $0x730] sm:$0xff]
  %v366 = vld [vmem:[%s8 + $0x738] sm:$0xff]
  %v367 = vld [vmem:[%s8 + $0x740] sm:$0xff]
  %v368 = vld [vmem:[%s8 + $0x748] sm:$0xff]
  %v369 = vld [vmem:[%s8 + $0x750] sm:$0xff]
  %v370 = vld [vmem:[%s8 + $0x758] sm:$0xff]
  %v371 = vld [vmem:[%s8 + $0x760] sm:$0xff]
  %v372 = vld [vmem:[%s8 + $0x768] sm:$0xff]
  %v373 = vld [vmem:[%s8 + $0x770] sm:$0xff]
  %v374 = vld [vmem:[%s8 + $0x778] sm:$0xff]
  %v375 = vld [vmem:[%s8 + $0x780] sm:$0xff]
  %v376 = vld [vmem:[%s8 + $0x788] sm:$0xff]
  %v377 = vld [vmem:[%s8 + $0x790] sm:$0xff]
  %v378 = vld [vmem:[%s8 + $0x798] sm:$0xff]
  %v379 = vld [vmem:[%s8 + $0x7a0] sm:$0xff]
  %v380 = vld [vmem:[%s8 + $0x7a8] sm:$0xff]
  %v381 = vld [vmem:[%s8 + $0x7b0] sm:$0xff]
  %v382 = vld [vmem:[%s8 + $0x7b8] sm:$0xff]
  %v383 = vld [vmem:[%s8 + $0x7c0] sm:$0xff]
  %v384 = vld [vmem:[%s8 + $0x7c8] sm:$0xff]
  %v385 = vld [vmem:[%s8 + $0x7d0] sm:$0xff]
  %v386 = vld [vmem:[%s8 + $0x7d8] sm:$0xff]
  %v387 = vld [vmem:[%s8 + $0x7e0] sm:$0xff]
  %v388 = vld [vmem:[%s8 + $0x7e8] sm:$0xff]
  %v389 = vld [vmem:[%s8 + $0x7f0] sm:$0xff]
  %v390 = vld [vmem:[%s8 + $0x7f8] sm:$0xff]
  %v391 = vld [vmem:[%s9] sm:$0xff]
  %v392 = vld [vmem:[%s2] sm:$0xff]
  %v393 = vld [vmem:[%s0] sm:$0xf]
  %v394 = vld [vmem:[%s0 + $0x4] sm:$0xf]
  %v395 = vld [vmem:[%s0 + $0x8] sm:$0xf]
  %v396 = vld [vmem:[%s0 + $0xc] sm:$0xf]
  %v397 = vld [vmem:[%s0 + $0x10] sm:$0xf]
  %v398 = vld [vmem:[%s0 + $0x14] sm:$0xf]
  %v399 = vld [vmem:[%s0 + $0x18] sm:$0xf]
  %v400 = vld [vmem:[%s0 + $0x1c] sm:$0xf]
  %v401 = vld [vmem:[%s1] sm:$0x3]
  %v402 = vld [vmem:[%s1 + $0x2] sm:$0x3]
  %v403 = vld [vmem:[%s1 + $0x4] sm:$0x3]
  %v404 = vld [vmem:[%s1 + $0x6] sm:$0x3]
  %v405 = vld [vmem:[%s1 + $0x8] sm:$0x3]
  %v406 = vld [vmem:[%s1 + $0xa] sm:$0x3]
  %v407 = vld [vmem:[%s1 + $0xc] sm:$0x3]
  %v408 = vld [vmem:[%s1 + $0xe] sm:$0x3]
  %v417 = vcombine.low %v401, %v402
  %v418 = vcombine.low %v403, %v404
  %v420 = vunpack.c.l.s4 1983009808
  %v421 = vunpack.c.0.s8 %v420
  %v422 = vlaneseq
  %v423 = vshrl.u32 %v422, 7
  %v424 = vsub.s32 %v421, %v423
  %v425 = vrot.slane %v417, %v424
  %v427 = vunpack.c.l.s4 1983009808
  %v428 = vunpack.c.0.s8 %v427
  %v429 = vlaneseq
  %v430 = vshrl.u32 %v429, 7
  %v431 = vsub.s32 %v428, %v430
  %v432 = vrot.slane %v418, %v431
  %v433 = vcombine.low %v425, %v432
  %v434 = vcombine.low %v405, %v406
  %v435 = vcombine.low %v407, %v408
  %v437 = vunpack.c.l.s4 1983009808
  %v438 = vunpack.c.0.s8 %v437
  %v439 = vlaneseq
  %v440 = vshrl.u32 %v439, 7
  %v441 = vsub.s32 %v438, %v440
  %v442 = vrot.slane %v434, %v441
  %v444 = vunpack.c.l.s4 1983009808
  %v445 = vunpack.c.0.s8 %v444
  %v446 = vlaneseq
  %v447 = vshrl.u32 %v446, 7
  %v448 = vsub.s32 %v445, %v447
  %v449 = vrot.slane %v435, %v448
  %v450 = vcombine.low %v442, %v449
  %v453 = vunpack.c.l.s4 1983009808
  %v454 = vunpack.c.0.s8 %v453
  %v455 = vlaneseq
  %v456 = vshrl.u32 %v455, 7
  %v457 = vsub.s32 %v454, %v456
  %v458 = vrot.slane %v68, %v457
  %v459 = vcombine.high %v458, %v458
  %vm460 = vcmask 23552
  %v462 = vsel %vm460, %v433, 0
  %v465 = vsel %vm460, %v450, 0
  %vm467 = vcmask 1040384
  %vm468 = vcmask 1041408
  %v469 = vsel %vm467, 4294967295, 65535
  %v470 = vsel %vm468, %v469, 0
  %v472 = vand.u32 %v458, %v470
  %v475 = vand.u32 %v459, %v470
  %477 = vmatprep.subr.bf16.mxu0 %v475
  %478 = vmatpush1.bf16.msra.mxu0 %v472
  %479 = vmatprep.subr.bf16.mxu0 0
  %480 = vmatpush1.bf16.msra.mxu0 0
  %481 = vmatprep.subr.bf16.mxu0 0
  %482 = vmatpush1.bf16.msra.mxu0 0
  %483 = vmatprep.subr.bf16.mxu0 0
  %484 = vmatpush1.bf16.msra.mxu0 0
  %485 = vmatprep.subr.bf16.mxu0 0
  %486 = vmatpush1.bf16.msra.mxu0 0
  %487 = vmatprep.subr.bf16.mxu0 0
  %488 = vmatpush1.bf16.msra.mxu0 0
  %489 = vmatprep.subr.bf16.mxu0 0
  %490 = vmatpush1.bf16.msra.mxu0 0
  %491 = vmatprep.subr.bf16.mxu0 0
  %492 = vmatpush1.bf16.msra.mxu0 0
  %493 = vmatprep.subr.bf16.mxu0 0
  %494 = vmatpush1.bf16.msra.mxu0 0
  %495 = vmatprep.subr.bf16.mxu0 0
  %496 = vmatpush1.bf16.msra.mxu0 0
  %497 = vmatprep.subr.bf16.mxu0 0
  %498 = vmatpush1.bf16.msra.mxu0 0
  %499 = vmatprep.subr.bf16.mxu0 0
  %500 = vmatpush1.bf16.msra.mxu0 0
  %501 = vmatprep.subr.bf16.mxu0 0
  %502 = vmatpush1.bf16.msra.mxu0 0
  %503 = vmatprep.subr.bf16.mxu0 0
  %504 = vmatpush1.bf16.msra.mxu0 0
  %505 = vmatprep.subr.bf16.mxu0 0
  %506 = vmatpush1.bf16.msra.mxu0 0
  %507 = vmatprep.subr.bf16.mxu0 0
  %508 = vmatpush1.bf16.msra.mxu0 0
  %509 = vmatprep.mubr.bf16.mxu0 0
  %510 = vmatmul.mubr.bf16.gmra.mrb[0].mxu0 %v462
  %v511 = vpop.f32.mrb[0].mxu0
  %v512 = vadd.f32 0.0, %v511
  %v513 = vpop.f32.mrb[0].mxu0
  %v514 = vadd.f32 0.0, %v513
  %v515 = vpop.f32.mrb[0].mxu0
  %v516 = vadd.f32 0.0, %v515
  %v517 = vpop.f32.mrb[0].mxu0
  %v518 = vadd.f32 0.0, %v517
  %519 = vmatprep.mubr.bf16.mxu0 0
  %520 = vmatmul.mubr.bf16.gmra.mrb[0].mxu0 %v465
  %v521 = vpop.f32.mrb[0].mxu0
  %v522 = vadd.f32 0.0, %v521
  %v523 = vpop.f32.mrb[0].mxu0
  %v524 = vadd.f32 0.0, %v523
  %v525 = vpop.f32.mrb[0].mxu0
  %v526 = vadd.f32 0.0, %v525
  %v527 = vpop.f32.mrb[0].mxu0
  %v528 = vadd.f32 0.0, %v527
  %529 = vdwg.mxu0
  %v538 = vcombine.low %v393, %v394
  %v539 = vcombine.low %v395, %v396
  %v541 = vunpack.c.l.s4 1983009808
  %v542 = vunpack.c.0.s8 %v541
  %v543 = vlaneseq
  %v544 = vshrl.u32 %v543, 7
  %v545 = vsub.s32 %v542, %v544
  %v546 = vrot.slane %v538, %v545
  %v548 = vunpack.c.l.s4 1983009808
  %v549 = vunpack.c.0.s8 %v548
  %v550 = vlaneseq
  %v551 = vshrl.u32 %v550, 7
  %v552 = vsub.s32 %v549, %v551
  %v553 = vrot.slane %v539, %v552
  %v554 = vcombine.low %v546, %v553
  %v555 = vcombine.high %v546, %v553
  %v556 = vcombine.low %v397, %v398
  %v557 = vcombine.low %v399, %v400
  %v559 = vunpack.c.l.s4 1983009808
  %v560 = vunpack.c.0.s8 %v559
  %v561 = vlaneseq
  %v562 = vshrl.u32 %v561, 7
  %v563 = vsub.s32 %v560, %v562
  %v564 = vrot.slane %v556, %v563
  %v566 = vunpack.c.l.s4 1983009808
  %v567 = vunpack.c.0.s8 %v566
  %v568 = vlaneseq
  %v569 = vshrl.u32 %v568, 7
  %v570 = vsub.s32 %v567, %v569
  %v571 = vrot.slane %v557, %v570
  %v572 = vcombine.low %v564, %v571
  %v573 = vcombine.high %v564, %v571
  %v610 = vunpack.c.l.b16 %v36
  %v611 = vunpack.c.h.b16 %v36
  %v612 = vunpack.c.l.b16 %v37
  %v613 = vunpack.c.h.b16 %v37
  %v614 = vunpack.c.l.b16 %v38
  %v615 = vunpack.c.h.b16 %v38
  %v616 = vunpack.c.l.b16 %v39
  %v617 = vunpack.c.h.b16 %v39
  %v618 = vunpack.c.l.b16 %v40
  %v619 = vunpack.c.h.b16 %v40
  %v620 = vunpack.c.l.b16 %v41
  %v621 = vunpack.c.h.b16 %v41
  %v622 = vunpack.c.l.b16 %v42
  %v623 = vunpack.c.h.b16 %v42
  %v624 = vunpack.c.l.b16 %v43
  %v625 = vunpack.c.h.b16 %v43
  %v626 = vunpack.c.l.b16 %v44
  %v627 = vunpack.c.h.b16 %v44
  %v628 = vunpack.c.l.b16 %v45
  %v629 = vunpack.c.h.b16 %v45
  %v630 = vunpack.c.l.b16 %v46
  %v631 = vunpack.c.h.b16 %v46
  %v632 = vunpack.c.l.b16 %v47
  %v633 = vunpack.c.h.b16 %v47
  %v634 = vunpack.c.l.b16 %v48
  %v635 = vunpack.c.h.b16 %v48
  %v636 = vunpack.c.l.b16 %v49
  %v637 = vunpack.c.h.b16 %v49
  %v638 = vunpack.c.l.b16 %v50
  %v639 = vunpack.c.h.b16 %v50
  %v640 = vunpack.c.l.b16 %v51
  %v641 = vunpack.c.h.b16 %v51
  %v642 = vunpack.c.l.b16 %v52
  %v643 = vunpack.c.h.b16 %v52
  %v644 = vunpack.c.l.b16 %v53
  %v645 = vunpack.c.h.b16 %v53
  %v646 = vunpack.c.l.b16 %v54
  %v647 = vunpack.c.h.b16 %v54
  %v648 = vunpack.c.l.b16 %v55
  %v649 = vunpack.c.h.b16 %v55
  %v650 = vunpack.c.l.b16 %v56
  %v651 = vunpack.c.h.b16 %v56
  %v652 = vunpack.c.l.b16 %v57
  %v653 = vunpack.c.h.b16 %v57
  %v654 = vunpack.c.l.b16 %v58
  %v655 = vunpack.c.h.b16 %v58
  %v656 = vunpack.c.l.b16 %v59
  %v657 = vunpack.c.h.b16 %v59
  %v658 = vunpack.c.l.b16 %v60
  %v659 = vunpack.c.h.b16 %v60
  %v660 = vunpack.c.l.b16 %v61
  %v661 = vunpack.c.h.b16 %v61
  %v662 = vunpack.c.l.b16 %v62
  %v663 = vunpack.c.h.b16 %v62
  %v664 = vunpack.c.l.b16 %v63
  %v665 = vunpack.c.h.b16 %v63
  %v666 = vunpack.c.l.b16 %v64
  %v667 = vunpack.c.h.b16 %v64
  %v668 = vunpack.c.l.b16 %v65
  %v669 = vunpack.c.h.b16 %v65
  %v670 = vunpack.c.l.b16 %v66
  %v671 = vunpack.c.h.b16 %v66
  %v672 = vunpack.c.l.b16 %v67
  %v673 = vunpack.c.h.b16 %v67
  %v674 = vpack.c.b16 %v612, %v610
  %v675 = vpack.c.b16 %v613, %v611
  %v676 = vpack.c.b16 %v616, %v614
  %v677 = vpack.c.b16 %v617, %v615
  %v678 = vpack.c.b16 %v620, %v618
  %v679 = vpack.c.b16 %v621, %v619
  %v680 = vpack.c.b16 %v624, %v622
  %v681 = vpack.c.b16 %v625, %v623
  %v682 = vpack.c.b16 %v628, %v626
  %v683 = vpack.c.b16 %v629, %v627
  %v684 = vpack.c.b16 %v632, %v630
  %v685 = vpack.c.b16 %v633, %v631
  %v686 = vpack.c.b16 %v636, %v634
  %v687 = vpack.c.b16 %v637, %v635
  %v688 = vpack.c.b16 %v640, %v638
  %v689 = vpack.c.b16 %v641, %v639
  %v690 = vpack.c.b16 %v644, %v642
  %v691 = vpack.c.b16 %v645, %v643
  %v692 = vpack.c.b16 %v648, %v646
  %v693 = vpack.c.b16 %v649, %v647
  %v694 = vpack.c.b16 %v652, %v650
  %v695 = vpack.c.b16 %v653, %v651
  %v696 = vpack.c.b16 %v656, %v654
  %v697 = vpack.c.b16 %v657, %v655
  %v698 = vpack.c.b16 %v660, %v658
  %v699 = vpack.c.b16 %v661, %v659
  %v700 = vpack.c.b16 %v664, %v662
  %v701 = vpack.c.b16 %v665, %v663
  %v702 = vpack.c.b16 %v668, %v666
  %v703 = vpack.c.b16 %v669, %v667
  %v704 = vpack.c.b16 %v672, %v670
  %v705 = vpack.c.b16 %v673, %v671
  %738 = vmatprep.subr.bf16.mxu0 %v675
  %739 = vmatpush1.bf16.msra.mxu0 %v674
  %740 = vmatprep.subr.bf16.mxu0 %v677
  %741 = vmatpush1.bf16.msra.mxu0 %v676
  %742 = vmatprep.subr.bf16.mxu0 %v679
  %743 = vmatpush1.bf16.msra.mxu0 %v678
  %744 = vmatprep.subr.bf16.mxu0 %v681
  %745 = vmatpush1.bf16.msra.mxu0 %v680
  %746 = vmatprep.subr.bf16.mxu0 %v683
  %747 = vmatpush1.bf16.msra.mxu0 %v682
  %748 = vmatprep.subr.bf16.mxu0 %v685
  %749 = vmatpush1.bf16.msra.mxu0 %v684
  %750 = vmatprep.subr.bf16.mxu0 %v687
  %751 = vmatpush1.bf16.msra.mxu0 %v686
  %752 = vmatprep.subr.bf16.mxu0 %v689
  %753 = vmatpush1.bf16.msra.mxu0 %v688
  %754 = vmatprep.subr.bf16.mxu0 %v691
  %755 = vmatpush1.bf16.msra.mxu0 %v690
  %756 = vmatprep.subr.bf16.mxu0 %v693
  %757 = vmatpush1.bf16.msra.mxu0 %v692
  %758 = vmatprep.subr.bf16.mxu0 %v695
  %759 = vmatpush1.bf16.msra.mxu0 %v694
  %760 = vmatprep.subr.bf16.mxu0 %v697
  %761 = vmatpush1.bf16.msra.mxu0 %v696
  %762 = vmatprep.subr.bf16.mxu0 %v699
  %763 = vmatpush1.bf16.msra.mxu0 %v698
  %764 = vmatprep.subr.bf16.mxu0 %v701
  %765 = vmatpush1.bf16.msra.mxu0 %v700
  %766 = vmatprep.subr.bf16.mxu0 %v703
  %767 = vmatpush1.bf16.msra.mxu0 %v702
  %768 = vmatprep.subr.bf16.mxu0 %v705
  %769 = vmatpush1.bf16.msra.mxu0 %v704
  %770 = vmatprep.mubr.bf16.mxu0 %v555
  %771 = vmatmul.mubr.bf16.gmra.mrb[0].mxu0 %v554
  %v772 = vpop.f32.mrb[0].mxu0
  %v773 = vadd.f32 %v512, %v772
  %v774 = vpop.f32.mrb[0].mxu0
  %v775 = vadd.f32 %v514, %v774
  %v776 = vpop.f32.mrb[0].mxu0
  %v777 = vadd.f32 %v516, %v776
  %v778 = vpop.f32.mrb[0].mxu0
  %v779 = vadd.f32 %v518, %v778
  %780 = vmatprep.mubr.bf16.mxu0 %v573
  %781 = vmatmul.mubr.bf16.gmra.mrb[0].mxu0 %v572
  %v782 = vpop.f32.mrb[0].mxu0
  %v783 = vadd.f32 %v522, %v782
  %v784 = vpop.f32.mrb[0].mxu0
  %v785 = vadd.f32 %v524, %v784
  %v786 = vpop.f32.mrb[0].mxu0
  %v787 = vadd.f32 %v526, %v786
  %v788 = vpop.f32.mrb[0].mxu0
  %v789 = vadd.f32 %v528, %v788
  %790 = vdwg.mxu0
  %v792 = vlaneseq
  %v793 = vshrl.u32 %v792, 7
  %v794 = vsub.s32 0, %v793
  %v795 = vrot.slane %v69, %v794
  %v796 = vlaneseq
  %v797 = vshrl.u32 %v796, 7
  %v798 = vsub.s32 1, %v797
  %v799 = vrot.slane %v69, %v798
  %v802 = vadd.f32 %v773, %v795
  %v803 = vadd.f32 %v775, %v799
  %v804 = vadd.f32 %v777, %v795
  %v805 = vadd.f32 %v779, %v799
  %v806 = vadd.f32 %v783, %v795
  %v807 = vadd.f32 %v785, %v799
  %v808 = vadd.f32 %v787, %v795
  %v809 = vadd.f32 %v789, %v799
  %v810 = vmax.f32 %v802, 0.0
  %v811 = vmax.f32 %v803, 0.0
  %v812 = vmax.f32 %v804, 0.0
  %v813 = vmax.f32 %v805, 0.0
  %v814 = vmax.f32 %v806, 0.0
  %v815 = vmax.f32 %v807, 0.0
  %v816 = vmax.f32 %v808, 0.0
  %v817 = vmax.f32 %v809, 0.0
  %v818 = vpack.c.bf16 %v812, %v810
  %v819 = vpack.c.bf16 %v813, %v811
  %v820 = vpack.c.bf16 %v816, %v814
  %v821 = vpack.c.bf16 %v817, %v815
  %v823 = vlaneseq
  %v824 = vshrl.u32 %v823, 7
  %v825 = vsub.s32 0, %v824
  %v826 = vrot.slane %v134, %v825
  %v827 = vlaneseq
  %v828 = vshrl.u32 %v827, 7
  %v829 = vsub.s32 1, %v828
  %v830 = vrot.slane %v134, %v829
  %v831 = vlaneseq
  %v832 = vshrl.u32 %v831, 7
  %v833 = vsub.s32 2, %v832
  %v834 = vrot.slane %v134, %v833
  %v835 = vlaneseq
  %v836 = vshrl.u32 %v835, 7
  %v837 = vsub.s32 3, %v836
  %v838 = vrot.slane %v134, %v837
  %v907 = vunpack.c.l.b16 %v70
  %v908 = vunpack.c.h.b16 %v70
  %v909 = vunpack.c.l.b16 %v71
  %v910 = vunpack.c.h.b16 %v71
  %v911 = vunpack.c.l.b16 %v72
  %v912 = vunpack.c.h.b16 %v72
  %v913 = vunpack.c.l.b16 %v73
  %v914 = vunpack.c.h.b16 %v73
  %v915 = vunpack.c.l.b16 %v74
  %v916 = vunpack.c.h.b16 %v74
  %v917 = vunpack.c.l.b16 %v75
  %v918 = vunpack.c.h.b16 %v75
  %v919 = vunpack.c.l.b16 %v76
  %v920 = vunpack.c.h.b16 %v76
  %v921 = vunpack.c.l.b16 %v77
  %v922 = vunpack.c.h.b16 %v77
  %v923 = vunpack.c.l.b16 %v78
  %v924 = vunpack.c.h.b16 %v78
  %v925 = vunpack.c.l.b16 %v79
  %v926 = vunpack.c.h.b16 %v79
  %v927 = vunpack.c.l.b16 %v80
  %v928 = vunpack.c.h.b16 %v80
  %v929 = vunpack.c.l.b16 %v81
  %v930 = vunpack.c.h.b16 %v81
  %v931 = vunpack.c.l.b16 %v82
  %v932 = vunpack.c.h.b16 %v82
  %v933 = vunpack.c.l.b16 %v83
  %v934 = vunpack.c.h.b16 %v83
  %v935 = vunpack.c.l.b16 %v84
  %v936 = vunpack.c.h.b16 %v84
  %v937 = vunpack.c.l.b16 %v85
  %v938 = vunpack.c.h.b16 %v85
  %v939 = vunpack.c.l.b16 %v86
  %v940 = vunpack.c.h.b16 %v86
  %v941 = vunpack.c.l.b16 %v87
  %v942 = vunpack.c.h.b16 %v87
  %v943 = vunpack.c.l.b16 %v88
  %v944 = vunpack.c.h.b16 %v88
  %v945 = vunpack.c.l.b16 %v89
  %v946 = vunpack.c.h.b16 %v89
  %v947 = vunpack.c.l.b16 %v90
  %v948 = vunpack.c.h.b16 %v90
  %v949 = vunpack.c.l.b16 %v91
  %v950 = vunpack.c.h.b16 %v91
  %v951 = vunpack.c.l.b16 %v92
  %v952 = vunpack.c.h.b16 %v92
  %v953 = vunpack.c.l.b16 %v93
  %v954 = vunpack.c.h.b16 %v93
  %v955 = vunpack.c.l.b16 %v94
  %v956 = vunpack.c.h.b16 %v94
  %v957 = vunpack.c.l.b16 %v95
  %v958 = vunpack.c.h.b16 %v95
  %v959 = vunpack.c.l.b16 %v96
  %v960 = vunpack.c.h.b16 %v96
  %v961 = vunpack.c.l.b16 %v97
  %v962 = vunpack.c.h.b16 %v97
  %v963 = vunpack.c.l.b16 %v98
  %v964 = vunpack.c.h.b16 %v98
  %v965 = vunpack.c.l.b16 %v99
  %v966 = vunpack.c.h.b16 %v99
  %v967 = vunpack.c.l.b16 %v100
  %v968 = vunpack.c.h.b16 %v100
  %v969 = vunpack.c.l.b16 %v101
  %v970 = vunpack.c.h.b16 %v101
  %v971 = vunpack.c.l.b16 %v102
  %v972 = vunpack.c.h.b16 %v102
  %v973 = vunpack.c.l.b16 %v103
  %v974 = vunpack.c.h.b16 %v103
  %v975 = vunpack.c.l.b16 %v104
  %v976 = vunpack.c.h.b16 %v104
  %v977 = vunpack.c.l.b16 %v105
  %v978 = vunpack.c.h.b16 %v105
  %v979 = vunpack.c.l.b16 %v106
  %v980 = vunpack.c.h.b16 %v106
  %v981 = vunpack.c.l.b16 %v107
  %v982 = vunpack.c.h.b16 %v107
  %v983 = vunpack.c.l.b16 %v108
  %v984 = vunpack.c.h.b16 %v108
  %v985 = vunpack.c.l.b16 %v109
  %v986 = vunpack.c.h.b16 %v109
  %v987 = vunpack.c.l.b16 %v110
  %v988 = vunpack.c.h.b16 %v110
  %v989 = vunpack.c.l.b16 %v111
  %v990 = vunpack.c.h.b16 %v111
  %v991 = vunpack.c.l.b16 %v112
  %v992 = vunpack.c.h.b16 %v112
  %v993 = vunpack.c.l.b16 %v113
  %v994 = vunpack.c.h.b16 %v113
  %v995 = vunpack.c.l.b16 %v114
  %v996 = vunpack.c.h.b16 %v114
  %v997 = vunpack.c.l.b16 %v115
  %v998 = vunpack.c.h.b16 %v115
  %v999 = vunpack.c.l.b16 %v116
  %v1000 = vunpack.c.h.b16 %v116
  %v1001 = vunpack.c.l.b16 %v117
  %v1002 = vunpack.c.h.b16 %v117
  %v1003 = vunpack.c.l.b16 %v118
  %v1004 = vunpack.c.h.b16 %v118
  %v1005 = vunpack.c.l.b16 %v119
  %v1006 = vunpack.c.h.b16 %v119
  %v1007 = vunpack.c.l.b16 %v120
  %v1008 = vunpack.c.h.b16 %v120
  %v1009 = vunpack.c.l.b16 %v121
  %v1010 = vunpack.c.h.b16 %v121
  %v1011 = vunpack.c.l.b16 %v122
  %v1012 = vunpack.c.h.b16 %v122
  %v1013 = vunpack.c.l.b16 %v123
  %v1014 = vunpack.c.h.b16 %v123
  %v1015 = vunpack.c.l.b16 %v124
  %v1016 = vunpack.c.h.b16 %v124
  %v1017 = vunpack.c.l.b16 %v125
  %v1018 = vunpack.c.h.b16 %v125
  %v1019 = vunpack.c.l.b16 %v126
  %v1020 = vunpack.c.h.b16 %v126
  %v1021 = vunpack.c.l.b16 %v127
  %v1022 = vunpack.c.h.b16 %v127
  %v1023 = vunpack.c.l.b16 %v128
  %v1024 = vunpack.c.h.b16 %v128
  %v1025 = vunpack.c.l.b16 %v129
  %v1026 = vunpack.c.h.b16 %v129
  %v1027 = vunpack.c.l.b16 %v130
  %v1028 = vunpack.c.h.b16 %v130
  %v1029 = vunpack.c.l.b16 %v131
  %v1030 = vunpack.c.h.b16 %v131
  %v1031 = vunpack.c.l.b16 %v132
  %v1032 = vunpack.c.h.b16 %v132
  %v1033 = vunpack.c.l.b16 %v133
  %v1034 = vunpack.c.h.b16 %v133
  %v1035 = vpack.c.b16 %v911, %v907
  %v1036 = vpack.c.b16 %v912, %v908
  %v1037 = vpack.c.b16 %v913, %v909
  %v1038 = vpack.c.b16 %v914, %v910
  %v1039 = vpack.c.b16 %v919, %v915
  %v1040 = vpack.c.b16 %v920, %v916
  %v1041 = vpack.c.b16 %v921, %v917
  %v1042 = vpack.c.b16 %v922, %v918
  %v1043 = vpack.c.b16 %v927, %v923
  %v1044 = vpack.c.b16 %v928, %v924
  %v1045 = vpack.c.b16 %v929, %v925
  %v1046 = vpack.c.b16 %v930, %v926
  %v1047 = vpack.c.b16 %v935, %v931
  %v1048 = vpack.c.b16 %v936, %v932
  %v1049 = vpack.c.b16 %v937, %v933
  %v1050 = vpack.c.b16 %v938, %v934
  %v1051 = vpack.c.b16 %v943, %v939
  %v1052 = vpack.c.b16 %v944, %v940
  %v1053 = vpack.c.b16 %v945, %v941
  %v1054 = vpack.c.b16 %v946, %v942
  %v1055 = vpack.c.b16 %v951, %v947
  %v1056 = vpack.c.b16 %v952, %v948
  %v1057 = vpack.c.b16 %v953, %v949
  %v1058 = vpack.c.b16 %v954, %v950
  %v1059 = vpack.c.b16 %v959, %v955
  %v1060 = vpack.c.b16 %v960, %v956
  %v1061 = vpack.c.b16 %v961, %v957
  %v1062 = vpack.c.b16 %v962, %v958
  %v1063 = vpack.c.b16 %v967, %v963
  %v1064 = vpack.c.b16 %v968, %v964
  %v1065 = vpack.c.b16 %v969, %v965
  %v1066 = vpack.c.b16 %v970, %v966
  %v1067 = vpack.c.b16 %v975, %v971
  %v1068 = vpack.c.b16 %v976, %v972
  %v1069 = vpack.c.b16 %v977, %v973
  %v1070 = vpack.c.b16 %v978, %v974
  %v1071 = vpack.c.b16 %v983, %v979
  %v1072 = vpack.c.b16 %v984, %v980
  %v1073 = vpack.c.b16 %v985, %v981
  %v1074 = vpack.c.b16 %v986, %v982
  %v1075 = vpack.c.b16 %v991, %v987
  %v1076 = vpack.c.b16 %v992, %v988
  %v1077 = vpack.c.b16 %v993, %v989
  %v1078 = vpack.c.b16 %v994, %v990
  %v1079 = vpack.c.b16 %v999, %v995
  %v1080 = vpack.c.b16 %v1000, %v996
  %v1081 = vpack.c.b16 %v1001, %v997
  %v1082 = vpack.c.b16 %v1002, %v998
  %v1083 = vpack.c.b16 %v1007, %v1003
  %v1084 = vpack.c.b16 %v1008, %v1004
  %v1085 = vpack.c.b16 %v1009, %v1005
  %v1086 = vpack.c.b16 %v1010, %v1006
  %v1087 = vpack.c.b16 %v1015, %v1011
  %v1088 = vpack.c.b16 %v1016, %v1012
  %v1089 = vpack.c.b16 %v1017, %v1013
  %v1090 = vpack.c.b16 %v1018, %v1014
  %v1091 = vpack.c.b16 %v1023, %v1019
  %v1092 = vpack.c.b16 %v1024, %v1020
  %v1093 = vpack.c.b16 %v1025, %v1021
  %v1094 = vpack.c.b16 %v1026, %v1022
  %v1095 = vpack.c.b16 %v1031, %v1027
  %v1096 = vpack.c.b16 %v1032, %v1028
  %v1097 = vpack.c.b16 %v1033, %v1029
  %v1098 = vpack.c.b16 %v1034, %v1030
  %1163 = vmatprep.subr.bf16.mxu0 %v1036
  %1164 = vmatpush1.bf16.msra.mxu0 %v1035
  %1165 = vmatprep.subr.bf16.mxu0 %v1040
  %1166 = vmatpush1.bf16.msra.mxu0 %v1039
  %1167 = vmatprep.subr.bf16.mxu0 %v1044
  %1168 = vmatpush1.bf16.msra.mxu0 %v1043
  %1169 = vmatprep.subr.bf16.mxu0 %v1048
  %1170 = vmatpush1.bf16.msra.mxu0 %v1047
  %1171 = vmatprep.subr.bf16.mxu0 %v1052
  %1172 = vmatpush1.bf16.msra.mxu0 %v1051
  %1173 = vmatprep.subr.bf16.mxu0 %v1056
  %1174 = vmatpush1.bf16.msra.mxu0 %v1055
  %1175 = vmatprep.subr.bf16.mxu0 %v1060
  %1176 = vmatpush1.bf16.msra.mxu0 %v1059
  %1177 = vmatprep.subr.bf16.mxu0 %v1064
  %1178 = vmatpush1.bf16.msra.mxu0 %v1063
  %1179 = vmatprep.subr.bf16.mxu0 %v1068
  %1180 = vmatpush1.bf16.msra.mxu0 %v1067
  %1181 = vmatprep.subr.bf16.mxu0 %v1072
  %1182 = vmatpush1.bf16.msra.mxu0 %v1071
  %1183 = vmatprep.subr.bf16.mxu0 %v1076
  %1184 = vmatpush1.bf16.msra.mxu0 %v1075
  %1185 = vmatprep.subr.bf16.mxu0 %v1080
  %1186 = vmatpush1.bf16.msra.mxu0 %v1079
  %1187 = vmatprep.subr.bf16.mxu0 %v1084
  %1188 = vmatpush1.bf16.msra.mxu0 %v1083
  %1189 = vmatprep.subr.bf16.mxu0 %v1088
  %1190 = vmatpush1.bf16.msra.mxu0 %v1087
  %1191 = vmatprep.subr.bf16.mxu0 %v1092
  %1192 = vmatpush1.bf16.msra.mxu0 %v1091
  %1193 = vmatprep.subr.bf16.mxu0 %v1096
  %1194 = vmatpush1.bf16.msra.mxu0 %v1095
  %1195 = vmatprep.mubr.bf16.mxu0 %v819
  %1196 = vmatmul.mubr.bf16.gmra.mrb[0].mxu0 %v818
  %v1197 = vpop.f32.mrb[0].mxu0
  %v1198 = vadd.f32 %v826, %v1197
  %v1199 = vpop.f32.mrb[0].mxu0
  %v1200 = vadd.f32 %v830, %v1199
  %v1201 = vpop.f32.mrb[0].mxu0
  %v1202 = vadd.f32 %v826, %v1201
  %v1203 = vpop.f32.mrb[0].mxu0
  %v1204 = vadd.f32 %v830, %v1203
  %1205 = vmatprep.mubr.bf16.mxu0 %v821
  %1206 = vmatmul.mubr.bf16.gmra.mrb[0].mxu0 %v820
  %v1207 = vpop.f32.mrb[0].mxu0
  %v1208 = vadd.f32 %v826, %v1207
  %v1209 = vpop.f32.mrb[0].mxu0
  %v1210 = vadd.f32 %v830, %v1209
  %v1211 = vpop.f32.mrb[0].mxu0
  %v1212 = vadd.f32 %v826, %v1211
  %v1213 = vpop.f32.mrb[0].mxu0
  %v1214 = vadd.f32 %v830, %v1213
  %1215 = vdwg.mxu0
  %1216 = vmatprep.subr.bf16.mxu0 %v1038
  %1217 = vmatpush1.bf16.msra.mxu0 %v1037
  %1218 = vmatprep.subr.bf16.mxu0 %v1042
  %1219 = vmatpush1.bf16.msra.mxu0 %v1041
  %1220 = vmatprep.subr.bf16.mxu0 %v1046
  %1221 = vmatpush1.bf16.msra.mxu0 %v1045
  %1222 = vmatprep.subr.bf16.mxu0 %v1050
  %1223 = vmatpush1.bf16.msra.mxu0 %v1049
  %1224 = vmatprep.subr.bf16.mxu0 %v1054
  %1225 = vmatpush1.bf16.msra.mxu0 %v1053
  %1226 = vmatprep.subr.bf16.mxu0 %v1058
  %1227 = vmatpush1.bf16.msra.mxu0 %v1057
  %1228 = vmatprep.subr.bf16.mxu0 %v1062
  %1229 = vmatpush1.bf16.msra.mxu0 %v1061
  %1230 = vmatprep.subr.bf16.mxu0 %v1066
  %1231 = vmatpush1.bf16.msra.mxu0 %v1065
  %1232 = vmatprep.subr.bf16.mxu0 %v1070
  %1233 = vmatpush1.bf16.msra.mxu0 %v1069
  %1234 = vmatprep.subr.bf16.mxu0 %v1074
  %1235 = vmatpush1.bf16.msra.mxu0 %v1073
  %1236 = vmatprep.subr.bf16.mxu0 %v1078
  %1237 = vmatpush1.bf16.msra.mxu0 %v1077
  %1238 = vmatprep.subr.bf16.mxu0 %v1082
  %1239 = vmatpush1.bf16.msra.mxu0 %v1081
  %1240 = vmatprep.subr.bf16.mxu0 %v1086
  %1241 = vmatpush1.bf16.msra.mxu0 %v1085
  %1242 = vmatprep.subr.bf16.mxu0 %v1090
  %1243 = vmatpush1.bf16.msra.mxu0 %v1089
  %1244 = vmatprep.subr.bf16.mxu0 %v1094
  %1245 = vmatpush1.bf16.msra.mxu0 %v1093
  %1246 = vmatprep.subr.bf16.mxu0 %v1098
  %1247 = vmatpush1.bf16.msra.mxu0 %v1097
  %1248 = vmatprep.mubr.bf16.mxu0 %v819
  %1249 = vmatmul.mubr.bf16.gmra.mrb[0].mxu0 %v818
  %v1250 = vpop.f32.mrb[0].mxu0
  %v1251 = vadd.f32 %v834, %v1250
  %v1252 = vpop.f32.mrb[0].mxu0
  %v1253 = vadd.f32 %v838, %v1252
  %v1254 = vpop.f32.mrb[0].mxu0
  %v1255 = vadd.f32 %v834, %v1254
  %v1256 = vpop.f32.mrb[0].mxu0
  %v1257 = vadd.f32 %v838, %v1256
  %1258 = vmatprep.mubr.bf16.mxu0 %v821
  %1259 = vmatmul.mubr.bf16.gmra.mrb[0].mxu0 %v820
  %v1260 = vpop.f32.mrb[0].mxu0
  %v1261 = vadd.f32 %v834, %v1260
  %v1262 = vpop.f32.mrb[0].mxu0
  %v1263 = vadd.f32 %v838, %v1262
  %v1264 = vpop.f32.mrb[0].mxu0
  %v1265 = vadd.f32 %v834, %v1264
  %v1266 = vpop.f32.mrb[0].mxu0
  %v1267 = vadd.f32 %v838, %v1266
  %1268 = vdwg.mxu0
  %v1269 = vmax.f32 %v1198, 0.0
  %v1270 = vmax.f32 %v1200, 0.0
  %v1271 = vmax.f32 %v1251, 0.0
  %v1272 = vmax.f32 %v1253, 0.0
  %v1273 = vmax.f32 %v1202, 0.0
  %v1274 = vmax.f32 %v1204, 0.0
  %v1275 = vmax.f32 %v1255, 0.0
  %v1276 = vmax.f32 %v1257, 0.0
  %v1277 = vmax.f32 %v1208, 0.0
  %v1278 = vmax.f32 %v1210, 0.0
  %v1279 = vmax.f32 %v1261, 0.0
  %v1280 = vmax.f32 %v1263, 0.0
  %v1281 = vmax.f32 %v1212, 0.0
  %v1282 = vmax.f32 %v1214, 0.0
  %v1283 = vmax.f32 %v1265, 0.0
  %v1284 = vmax.f32 %v1267, 0.0
  %v1285 = vpack.c.bf16 %v1273, %v1269
  %v1286 = vpack.c.bf16 %v1274, %v1270
  %v1287 = vpack.c.bf16 %v1275, %v1271
  %v1288 = vpack.c.bf16 %v1276, %v1272
  %v1289 = vpack.c.bf16 %v1281, %v1277
  %v1290 = vpack.c.bf16 %v1282, %v1278
  %v1291 = vpack.c.bf16 %v1283, %v1279
  %v1292 = vpack.c.bf16 %v1284, %v1280
  %v1294 = vlaneseq
  %v1295 = vshrl.u32 %v1294, 7
  %v1296 = vsub.s32 0, %v1295
  %v1297 = vrot.slane %v391, %v1296
  %v1298 = vlaneseq
  %v1299 = vshrl.u32 %v1298, 7
  %v1300 = vsub.s32 1, %v1299
  %v1301 = vrot.slane %v391, %v1300
  %v1302 = vlaneseq
  %v1303 = vshrl.u32 %v1302, 7
  %v1304 = vsub.s32 2, %v1303
  %v1305 = vrot.slane %v391, %v1304
  %v1306 = vlaneseq
  %v1307 = vshrl.u32 %v1306, 7
  %v1308 = vsub.s32 3, %v1307
  %v1309 = vrot.slane %v391, %v1308
  %v1310 = vlaneseq
  %v1311 = vshrl.u32 %v1310, 7
  %v1312 = vsub.s32 4, %v1311
  %v1313 = vrot.slane %v391, %v1312
  %v1314 = vlaneseq
  %v1315 = vshrl.u32 %v1314, 7
  %v1316 = vsub.s32 5, %v1315
  %v1317 = vrot.slane %v391, %v1316
  %v1318 = vlaneseq
  %v1319 = vshrl.u32 %v1318, 7
  %v1320 = vsub.s32 6, %v1319
  %v1321 = vrot.slane %v391, %v1320
  %v1322 = vlaneseq
  %v1323 = vshrl.u32 %v1322, 7
  %v1324 = vsub.s32 7, %v1323
  %v1325 = vrot.slane %v391, %v1324
  %v1590 = vunpack.c.l.b16 %v135
  %v1591 = vunpack.c.h.b16 %v135
  %v1592 = vunpack.c.l.b16 %v136
  %v1593 = vunpack.c.h.b16 %v136
  %v1594 = vunpack.c.l.b16 %v137
  %v1595 = vunpack.c.h.b16 %v137
  %v1596 = vunpack.c.l.b16 %v138
  %v1597 = vunpack.c.h.b16 %v138
  %v1598 = vunpack.c.l.b16 %v139
  %v1599 = vunpack.c.h.b16 %v139
  %v1600 = vunpack.c.l.b16 %v140
  %v1601 = vunpack.c.h.b16 %v140
  %v1602 = vunpack.c.l.b16 %v141
  %v1603 = vunpack.c.h.b16 %v141
  %v1604 = vunpack.c.l.b16 %v142
  %v1605 = vunpack.c.h.b16 %v142
  %v1606 = vunpack.c.l.b16 %v143
  %v1607 = vunpack.c.h.b16 %v143
  %v1608 = vunpack.c.l.b16 %v144
  %v1609 = vunpack.c.h.b16 %v144
  %v1610 = vunpack.c.l.b16 %v145
  %v1611 = vunpack.c.h.b16 %v145
  %v1612 = vunpack.c.l.b16 %v146
  %v1613 = vunpack.c.h.b16 %v146
  %v1614 = vunpack.c.l.b16 %v147
  %v1615 = vunpack.c.h.b16 %v147
  %v1616 = vunpack.c.l.b16 %v148
  %v1617 = vunpack.c.h.b16 %v148
  %v1618 = vunpack.c.l.b16 %v149
  %v1619 = vunpack.c.h.b16 %v149
  %v1620 = vunpack.c.l.b16 %v150
  %v1621 = vunpack.c.h.b16 %v150
  %v1622 = vunpack.c.l.b16 %v151
  %v1623 = vunpack.c.h.b16 %v151
  %v1624 = vunpack.c.l.b16 %v152
  %v1625 = vunpack.c.h.b16 %v152
  %v1626 = vunpack.c.l.b16 %v153
  %v1627 = vunpack.c.h.b16 %v153
  %v1628 = vunpack.c.l.b16 %v154
  %v1629 = vunpack.c.h.b16 %v154
  %v1630 = vunpack.c.l.b16 %v155
  %v1631 = vunpack.c.h.b16 %v155
  %v1632 = vunpack.c.l.b16 %v156
  %v1633 = vunpack.c.h.b16 %v156
  %v1634 = vunpack.c.l.b16 %v157
  %v1635 = vunpack.c.h.b16 %v157
  %v1636 = vunpack.c.l.b16 %v158
  %v1637 = vunpack.c.h.b16 %v158
  %v1638 = vunpack.c.l.b16 %v159
  %v1639 = vunpack.c.h.b16 %v159
  %v1640 = vunpack.c.l.b16 %v160
  %v1641 = vunpack.c.h.b16 %v160
  %v1642 = vunpack.c.l.b16 %v161
  %v1643 = vunpack.c.h.b16 %v161
  %v1644 = vunpack.c.l.b16 %v162
  %v1645 = vunpack.c.h.b16 %v162
  %v1646 = vunpack.c.l.b16 %v163
  %v1647 = vunpack.c.h.b16 %v163
  %v1648 = vunpack.c.l.b16 %v164
  %v1649 = vunpack.c.h.b16 %v164
  %v1650 = vunpack.c.l.b16 %v165
  %v1651 = vunpack.c.h.b16 %v165
  %v1652 = vunpack.c.l.b16 %v166
  %v1653 = vunpack.c.h.b16 %v166
  %v1654 = vunpack.c.l.b16 %v167
  %v1655 = vunpack.c.h.b16 %v167
  %v1656 = vunpack.c.l.b16 %v168
  %v1657 = vunpack.c.h.b16 %v168
  %v1658 = vunpack.c.l.b16 %v169
  %v1659 = vunpack.c.h.b16 %v169
  %v1660 = vunpack.c.l.b16 %v170
  %v1661 = vunpack.c.h.b16 %v170
  %v1662 = vunpack.c.l.b16 %v171
  %v1663 = vunpack.c.h.b16 %v171
  %v1664 = vunpack.c.l.b16 %v172
  %v1665 = vunpack.c.h.b16 %v172
  %v1666 = vunpack.c.l.b16 %v173
  %v1667 = vunpack.c.h.b16 %v173
  %v1668 = vunpack.c.l.b16 %v174
  %v1669 = vunpack.c.h.b16 %v174
  %v1670 = vunpack.c.l.b16 %v175
  %v1671 = vunpack.c.h.b16 %v175
  %v1672 = vunpack.c.l.b16 %v176
  %v1673 = vunpack.c.h.b16 %v176
  %v1674 = vunpack.c.l.b16 %v177
  %v1675 = vunpack.c.h.b16 %v177
  %v1676 = vunpack.c.l.b16 %v178
  %v1677 = vunpack.c.h.b16 %v178
  %v1678 = vunpack.c.l.b16 %v179
  %v1679 = vunpack.c.h.b16 %v179
  %v1680 = vunpack.c.l.b16 %v180
  %v1681 = vunpack.c.h.b16 %v180
  %v1682 = vunpack.c.l.b16 %v181
  %v1683 = vunpack.c.h.b16 %v181
  %v1684 = vunpack.c.l.b16 %v182
  %v1685 = vunpack.c.h.b16 %v182
  %v1686 = vunpack.c.l.b16 %v183
  %v1687 = vunpack.c.h.b16 %v183
  %v1688 = vunpack.c.l.b16 %v184
  %v1689 = vunpack.c.h.b16 %v184
  %v1690 = vunpack.c.l.b16 %v185
  %v1691 = vunpack.c.h.b16 %v185
  %v1692 = vunpack.c.l.b16 %v186
  %v1693 = vunpack.c.h.b16 %v186
  %v1694 = vunpack.c.l.b16 %v187
  %v1695 = vunpack.c.h.b16 %v187
  %v1696 = vunpack.c.l.b16 %v188
  %v1697 = vunpack.c.h.b16 %v188
  %v1698 = vunpack.c.l.b16 %v189
  %v1699 = vunpack.c.h.b16 %v189
  %v1700 = vunpack.c.l.b16 %v190
  %v1701 = vunpack.c.h.b16 %v190
  %v1702 = vunpack.c.l.b16 %v191
  %v1703 = vunpack.c.h.b16 %v191
  %v1704 = vunpack.c.l.b16 %v192
  %v1705 = vunpack.c.h.b16 %v192
  %v1706 = vunpack.c.l.b16 %v193
  %v1707 = vunpack.c.h.b16 %v193
  %v1708 = vunpack.c.l.b16 %v194
  %v1709 = vunpack.c.h.b16 %v194
  %v1710 = vunpack.c.l.b16 %v195
  %v1711 = vunpack.c.h.b16 %v195
  %v1712 = vunpack.c.l.b16 %v196
  %v1713 = vunpack.c.h.b16 %v196
  %v1714 = vunpack.c.l.b16 %v197
  %v1715 = vunpack.c.h.b16 %v197
  %v1716 = vunpack.c.l.b16 %v198
  %v1717 = vunpack.c.h.b16 %v198
  %v1718 = vunpack.c.l.b16 %v199
  %v1719 = vunpack.c.h.b16 %v199
  %v1720 = vunpack.c.l.b16 %v200
  %v1721 = vunpack.c.h.b16 %v200
  %v1722 = vunpack.c.l.b16 %v201
  %v1723 = vunpack.c.h.b16 %v201
  %v1724 = vunpack.c.l.b16 %v202
  %v1725 = vunpack.c.h.b16 %v202
  %v1726 = vunpack.c.l.b16 %v203
  %v1727 = vunpack.c.h.b16 %v203
  %v1728 = vunpack.c.l.b16 %v204
  %v1729 = vunpack.c.h.b16 %v204
  %v1730 = vunpack.c.l.b16 %v205
  %v1731 = vunpack.c.h.b16 %v205
  %v1732 = vunpack.c.l.b16 %v206
  %v1733 = vunpack.c.h.b16 %v206
  %v1734 = vunpack.c.l.b16 %v207
  %v1735 = vunpack.c.h.b16 %v207
  %v1736 = vunpack.c.l.b16 %v208
  %v1737 = vunpack.c.h.b16 %v208
  %v1738 = vunpack.c.l.b16 %v209
  %v1739 = vunpack.c.h.b16 %v209
  %v1740 = vunpack.c.l.b16 %v210
  %v1741 = vunpack.c.h.b16 %v210
  %v1742 = vunpack.c.l.b16 %v211
  %v1743 = vunpack.c.h.b16 %v211
  %v1744 = vunpack.c.l.b16 %v212
  %v1745 = vunpack.c.h.b16 %v212
  %v1746 = vunpack.c.l.b16 %v213
  %v1747 = vunpack.c.h.b16 %v213
  %v1748 = vunpack.c.l.b16 %v214
  %v1749 = vunpack.c.h.b16 %v214
  %v1750 = vunpack.c.l.b16 %v215
  %v1751 = vunpack.c.h.b16 %v215
  %v1752 = vunpack.c.l.b16 %v216
  %v1753 = vunpack.c.h.b16 %v216
  %v1754 = vunpack.c.l.b16 %v217
  %v1755 = vunpack.c.h.b16 %v217
  %v1756 = vunpack.c.l.b16 %v218
  %v1757 = vunpack.c.h.b16 %v218
  %v1758 = vunpack.c.l.b16 %v219
  %v1759 = vunpack.c.h.b16 %v219
  %v1760 = vunpack.c.l.b16 %v220
  %v1761 = vunpack.c.h.b16 %v220
  %v1762 = vunpack.c.l.b16 %v221
  %v1763 = vunpack.c.h.b16 %v221
  %v1764 = vunpack.c.l.b16 %v222
  %v1765 = vunpack.c.h.b16 %v222
  %v1766 = vunpack.c.l.b16 %v223
  %v1767 = vunpack.c.h.b16 %v223
  %v1768 = vunpack.c.l.b16 %v224
  %v1769 = vunpack.c.h.b16 %v224
  %v1770 = vunpack.c.l.b16 %v225
  %v1771 = vunpack.c.h.b16 %v225
  %v1772 = vunpack.c.l.b16 %v226
  %v1773 = vunpack.c.h.b16 %v226
  %v1774 = vunpack.c.l.b16 %v227
  %v1775 = vunpack.c.h.b16 %v227
  %v1776 = vunpack.c.l.b16 %v228
  %v1777 = vunpack.c.h.b16 %v228
  %v1778 = vunpack.c.l.b16 %v229
  %v1779 = vunpack.c.h.b16 %v229
  %v1780 = vunpack.c.l.b16 %v230
  %v1781 = vunpack.c.h.b16 %v230
  %v1782 = vunpack.c.l.b16 %v231
  %v1783 = vunpack.c.h.b16 %v231
  %v1784 = vunpack.c.l.b16 %v232
  %v1785 = vunpack.c.h.b16 %v232
  %v1786 = vunpack.c.l.b16 %v233
  %v1787 = vunpack.c.h.b16 %v233
  %v1788 = vunpack.c.l.b16 %v234
  %v1789 = vunpack.c.h.b16 %v234
  %v1790 = vunpack.c.l.b16 %v235
  %v1791 = vunpack.c.h.b16 %v235
  %v1792 = vunpack.c.l.b16 %v236
  %v1793 = vunpack.c.h.b16 %v236
  %v1794 = vunpack.c.l.b16 %v237
  %v1795 = vunpack.c.h.b16 %v237
  %v1796 = vunpack.c.l.b16 %v238
  %v1797 = vunpack.c.h.b16 %v238
  %v1798 = vunpack.c.l.b16 %v239
  %v1799 = vunpack.c.h.b16 %v239
  %v1800 = vunpack.c.l.b16 %v240
  %v1801 = vunpack.c.h.b16 %v240
  %v1802 = vunpack.c.l.b16 %v241
  %v1803 = vunpack.c.h.b16 %v241
  %v1804 = vunpack.c.l.b16 %v242
  %v1805 = vunpack.c.h.b16 %v242
  %v1806 = vunpack.c.l.b16 %v243
  %v1807 = vunpack.c.h.b16 %v243
  %v1808 = vunpack.c.l.b16 %v244
  %v1809 = vunpack.c.h.b16 %v244
  %v1810 = vunpack.c.l.b16 %v245
  %v1811 = vunpack.c.h.b16 %v245
  %v1812 = vunpack.c.l.b16 %v246
  %v1813 = vunpack.c.h.b16 %v246
  %v1814 = vunpack.c.l.b16 %v247
  %v1815 = vunpack.c.h.b16 %v247
  %v1816 = vunpack.c.l.b16 %v248
  %v1817 = vunpack.c.h.b16 %v248
  %v1818 = vunpack.c.l.b16 %v249
  %v1819 = vunpack.c.h.b16 %v249
  %v1820 = vunpack.c.l.b16 %v250
  %v1821 = vunpack.c.h.b16 %v250
  %v1822 = vunpack.c.l.b16 %v251
  %v1823 = vunpack.c.h.b16 %v251
  %v1824 = vunpack.c.l.b16 %v252
  %v1825 = vunpack.c.h.b16 %v252
  %v1826 = vunpack.c.l.b16 %v253
  %v1827 = vunpack.c.h.b16 %v253
  %v1828 = vunpack.c.l.b16 %v254
  %v1829 = vunpack.c.h.b16 %v254
  %v1830 = vunpack.c.l.b16 %v255
  %v1831 = vunpack.c.h.b16 %v255
  %v1832 = vunpack.c.l.b16 %v256
  %v1833 = vunpack.c.h.b16 %v256
  %v1834 = vunpack.c.l.b16 %v257
  %v1835 = vunpack.c.h.b16 %v257
  %v1836 = vunpack.c.l.b16 %v258
  %v1837 = vunpack.c.h.b16 %v258
  %v1838 = vunpack.c.l.b16 %v259
  %v1839 = vunpack.c.h.b16 %v259
  %v1840 = vunpack.c.l.b16 %v260
  %v1841 = vunpack.c.h.b16 %v260
  %v1842 = vunpack.c.l.b16 %v261
  %v1843 = vunpack.c.h.b16 %v261
  %v1844 = vunpack.c.l.b16 %v262
  %v1845 = vunpack.c.h.b16 %v262
  %v1846 = vunpack.c.l.b16 %v263
  %v1847 = vunpack.c.h.b16 %v263
  %v1848 = vunpack.c.l.b16 %v264
  %v1849 = vunpack.c.h.b16 %v264
  %v1850 = vunpack.c.l.b16 %v265
  %v1851 = vunpack.c.h.b16 %v265
  %v1852 = vunpack.c.l.b16 %v266
  %v1853 = vunpack.c.h.b16 %v266
  %v1854 = vunpack.c.l.b16 %v267
  %v1855 = vunpack.c.h.b16 %v267
  %v1856 = vunpack.c.l.b16 %v268
  %v1857 = vunpack.c.h.b16 %v268
  %v1858 = vunpack.c.l.b16 %v269
  %v1859 = vunpack.c.h.b16 %v269
  %v1860 = vunpack.c.l.b16 %v270
  %v1861 = vunpack.c.h.b16 %v270
  %v1862 = vunpack.c.l.b16 %v271
  %v1863 = vunpack.c.h.b16 %v271
  %v1864 = vunpack.c.l.b16 %v272
  %v1865 = vunpack.c.h.b16 %v272
  %v1866 = vunpack.c.l.b16 %v273
  %v1867 = vunpack.c.h.b16 %v273
  %v1868 = vunpack.c.l.b16 %v274
  %v1869 = vunpack.c.h.b16 %v274
  %v1870 = vunpack.c.l.b16 %v275
  %v1871 = vunpack.c.h.b16 %v275
  %v1872 = vunpack.c.l.b16 %v276
  %v1873 = vunpack.c.h.b16 %v276
  %v1874 = vunpack.c.l.b16 %v277
  %v1875 = vunpack.c.h.b16 %v277
  %v1876 = vunpack.c.l.b16 %v278
  %v1877 = vunpack.c.h.b16 %v278
  %v1878 = vunpack.c.l.b16 %v279
  %v1879 = vunpack.c.h.b16 %v279
  %v1880 = vunpack.c.l.b16 %v280
  %v1881 = vunpack.c.h.b16 %v280
  %v1882 = vunpack.c.l.b16 %v281
  %v1883 = vunpack.c.h.b16 %v281
  %v1884 = vunpack.c.l.b16 %v282
  %v1885 = vunpack.c.h.b16 %v282
  %v1886 = vunpack.c.l.b16 %v283
  %v1887 = vunpack.c.h.b16 %v283
  %v1888 = vunpack.c.l.b16 %v284
  %v1889 = vunpack.c.h.b16 %v284
  %v1890 = vunpack.c.l.b16 %v285
  %v1891 = vunpack.c.h.b16 %v285
  %v1892 = vunpack.c.l.b16 %v286
  %v1893 = vunpack.c.h.b16 %v286
  %v1894 = vunpack.c.l.b16 %v287
  %v1895 = vunpack.c.h.b16 %v287
  %v1896 = vunpack.c.l.b16 %v288
  %v1897 = vunpack.c.h.b16 %v288
  %v1898 = vunpack.c.l.b16 %v289
  %v1899 = vunpack.c.h.b16 %v289
  %v1900 = vunpack.c.l.b16 %v290
  %v1901 = vunpack.c.h.b16 %v290
  %v1902 = vunpack.c.l.b16 %v291
  %v1903 = vunpack.c.h.b16 %v291
  %v1904 = vunpack.c.l.b16 %v292
  %v1905 = vunpack.c.h.b16 %v292
  %v1906 = vunpack.c.l.b16 %v293
  %v1907 = vunpack.c.h.b16 %v293
  %v1908 = vunpack.c.l.b16 %v294
  %v1909 = vunpack.c.h.b16 %v294
  %v1910 = vunpack.c.l.b16 %v295
  %v1911 = vunpack.c.h.b16 %v295
  %v1912 = vunpack.c.l.b16 %v296
  %v1913 = vunpack.c.h.b16 %v296
  %v1914 = vunpack.c.l.b16 %v297
  %v1915 = vunpack.c.h.b16 %v297
  %v1916 = vunpack.c.l.b16 %v298
  %v1917 = vunpack.c.h.b16 %v298
  %v1918 = vunpack.c.l.b16 %v299
  %v1919 = vunpack.c.h.b16 %v299
  %v1920 = vunpack.c.l.b16 %v300
  %v1921 = vunpack.c.h.b16 %v300
  %v1922 = vunpack.c.l.b16 %v301
  %v1923 = vunpack.c.h.b16 %v301
  %v1924 = vunpack.c.l.b16 %v302
  %v1925 = vunpack.c.h.b16 %v302
  %v1926 = vunpack.c.l.b16 %v303
  %v1927 = vunpack.c.h.b16 %v303
  %v1928 = vunpack.c.l.b16 %v304
  %v1929 = vunpack.c.h.b16 %v304
  %v1930 = vunpack.c.l.b16 %v305
  %v1931 = vunpack.c.h.b16 %v305
  %v1932 = vunpack.c.l.b16 %v306
  %v1933 = vunpack.c.h.b16 %v306
  %v1934 = vunpack.c.l.b16 %v307
  %v1935 = vunpack.c.h.b16 %v307
  %v1936 = vunpack.c.l.b16 %v308
  %v1937 = vunpack.c.h.b16 %v308
  %v1938 = vunpack.c.l.b16 %v309
  %v1939 = vunpack.c.h.b16 %v309
  %v1940 = vunpack.c.l.b16 %v310
  %v1941 = vunpack.c.h.b16 %v310
  %v1942 = vunpack.c.l.b16 %v311
  %v1943 = vunpack.c.h.b16 %v311
  %v1944 = vunpack.c.l.b16 %v312
  %v1945 = vunpack.c.h.b16 %v312
  %v1946 = vunpack.c.l.b16 %v313
  %v1947 = vunpack.c.h.b16 %v313
  %v1948 = vunpack.c.l.b16 %v314
  %v1949 = vunpack.c.h.b16 %v314
  %v1950 = vunpack.c.l.b16 %v315
  %v1951 = vunpack.c.h.b16 %v315
  %v1952 = vunpack.c.l.b16 %v316
  %v1953 = vunpack.c.h.b16 %v316
  %v1954 = vunpack.c.l.b16 %v317
  %v1955 = vunpack.c.h.b16 %v317
  %v1956 = vunpack.c.l.b16 %v318
  %v1957 = vunpack.c.h.b16 %v318
  %v1958 = vunpack.c.l.b16 %v319
  %v1959 = vunpack.c.h.b16 %v319
  %v1960 = vunpack.c.l.b16 %v320
  %v1961 = vunpack.c.h.b16 %v320
  %v1962 = vunpack.c.l.b16 %v321
  %v1963 = vunpack.c.h.b16 %v321
  %v1964 = vunpack.c.l.b16 %v322
  %v1965 = vunpack.c.h.b16 %v322
  %v1966 = vunpack.c.l.b16 %v323
  %v1967 = vunpack.c.h.b16 %v323
  %v1968 = vunpack.c.l.b16 %v324
  %v1969 = vunpack.c.h.b16 %v324
  %v1970 = vunpack.c.l.b16 %v325
  %v1971 = vunpack.c.h.b16 %v325
  %v1972 = vunpack.c.l.b16 %v326
  %v1973 = vunpack.c.h.b16 %v326
  %v1974 = vunpack.c.l.b16 %v327
  %v1975 = vunpack.c.h.b16 %v327
  %v1976 = vunpack.c.l.b16 %v328
  %v1977 = vunpack.c.h.b16 %v328
  %v1978 = vunpack.c.l.b16 %v329
  %v1979 = vunpack.c.h.b16 %v329
  %v1980 = vunpack.c.l.b16 %v330
  %v1981 = vunpack.c.h.b16 %v330
  %v1982 = vunpack.c.l.b16 %v331
  %v1983 = vunpack.c.h.b16 %v331
  %v1984 = vunpack.c.l.b16 %v332
  %v1985 = vunpack.c.h.b16 %v332
  %v1986 = vunpack.c.l.b16 %v333
  %v1987 = vunpack.c.h.b16 %v333
  %v1988 = vunpack.c.l.b16 %v334
  %v1989 = vunpack.c.h.b16 %v334
  %v1990 = vunpack.c.l.b16 %v335
  %v1991 = vunpack.c.h.b16 %v335
  %v1992 = vunpack.c.l.b16 %v336
  %v1993 = vunpack.c.h.b16 %v336
  %v1994 = vunpack.c.l.b16 %v337
  %v1995 = vunpack.c.h.b16 %v337
  %v1996 = vunpack.c.l.b16 %v338
  %v1997 = vunpack.c.h.b16 %v338
  %v1998 = vunpack.c.l.b16 %v339
  %v1999 = vunpack.c.h.b16 %v339
  %v2000 = vunpack.c.l.b16 %v340
  %v2001 = vunpack.c.h.b16 %v340
  %v2002 = vunpack.c.l.b16 %v341
  %v2003 = vunpack.c.h.b16 %v341
  %v2004 = vunpack.c.l.b16 %v342
  %v2005 = vunpack.c.h.b16 %v342
  %v2006 = vunpack.c.l.b16 %v343
  %v2007 = vunpack.c.h.b16 %v343
  %v2008 = vunpack.c.l.b16 %v344
  %v2009 = vunpack.c.h.b16 %v344
  %v2010 = vunpack.c.l.b16 %v345
  %v2011 = vunpack.c.h.b16 %v345
  %v2012 = vunpack.c.l.b16 %v346
  %v2013 = vunpack.c.h.b16 %v346
  %v2014 = vunpack.c.l.b16 %v347
  %v2015 = vunpack.c.h.b16 %v347
  %v2016 = vunpack.c.l.b16 %v348
  %v2017 = vunpack.c.h.b16 %v348
  %v2018 = vunpack.c.l.b16 %v349
  %v2019 = vunpack.c.h.b16 %v349
  %v2020 = vunpack.c.l.b16 %v350
  %v2021 = vunpack.c.h.b16 %v350
  %v2022 = vunpack.c.l.b16 %v351
  %v2023 = vunpack.c.h.b16 %v351
  %v2024 = vunpack.c.l.b16 %v352
  %v2025 = vunpack.c.h.b16 %v352
  %v2026 = vunpack.c.l.b16 %v353
  %v2027 = vunpack.c.h.b16 %v353
  %v2028 = vunpack.c.l.b16 %v354
  %v2029 = vunpack.c.h.b16 %v354
  %v2030 = vunpack.c.l.b16 %v355
  %v2031 = vunpack.c.h.b16 %v355
  %v2032 = vunpack.c.l.b16 %v356
  %v2033 = vunpack.c.h.b16 %v356
  %v2034 = vunpack.c.l.b16 %v357
  %v2035 = vunpack.c.h.b16 %v357
  %v2036 = vunpack.c.l.b16 %v358
  %v2037 = vunpack.c.h.b16 %v358
  %v2038 = vunpack.c.l.b16 %v359
  %v2039 = vunpack.c.h.b16 %v359
  %v2040 = vunpack.c.l.b16 %v360
  %v2041 = vunpack.c.h.b16 %v360
  %v2042 = vunpack.c.l.b16 %v361
  %v2043 = vunpack.c.h.b16 %v361
  %v2044 = vunpack.c.l.b16 %v362
  %v2045 = vunpack.c.h.b16 %v362
  %v2046 = vunpack.c.l.b16 %v363
  %v2047 = vunpack.c.h.b16 %v363
  %v2048 = vunpack.c.l.b16 %v364
  %v2049 = vunpack.c.h.b16 %v364
  %v2050 = vunpack.c.l.b16 %v365
  %v2051 = vunpack.c.h.b16 %v365
  %v2052 = vunpack.c.l.b16 %v366
  %v2053 = vunpack.c.h.b16 %v366
  %v2054 = vunpack.c.l.b16 %v367
  %v2055 = vunpack.c.h.b16 %v367
  %v2056 = vunpack.c.l.b16 %v368
  %v2057 = vunpack.c.h.b16 %v368
  %v2058 = vunpack.c.l.b16 %v369
  %v2059 = vunpack.c.h.b16 %v369
  %v2060 = vunpack.c.l.b16 %v370
  %v2061 = vunpack.c.h.b16 %v370
  %v2062 = vunpack.c.l.b16 %v371
  %v2063 = vunpack.c.h.b16 %v371
  %v2064 = vunpack.c.l.b16 %v372
  %v2065 = vunpack.c.h.b16 %v372
  %v2066 = vunpack.c.l.b16 %v373
  %v2067 = vunpack.c.h.b16 %v373
  %v2068 = vunpack.c.l.b16 %v374
  %v2069 = vunpack.c.h.b16 %v374
  %v2070 = vunpack.c.l.b16 %v375
  %v2071 = vunpack.c.h.b16 %v375
  %v2072 = vunpack.c.l.b16 %v376
  %v2073 = vunpack.c.h.b16 %v376
  %v2074 = vunpack.c.l.b16 %v377
  %v2075 = vunpack.c.h.b16 %v377
  %v2076 = vunpack.c.l.b16 %v378
  %v2077 = vunpack.c.h.b16 %v378
  %v2078 = vunpack.c.l.b16 %v379
  %v2079 = vunpack.c.h.b16 %v379
  %v2080 = vunpack.c.l.b16 %v380
  %v2081 = vunpack.c.h.b16 %v380
  %v2082 = vunpack.c.l.b16 %v381
  %v2083 = vunpack.c.h.b16 %v381
  %v2084 = vunpack.c.l.b16 %v382
  %v2085 = vunpack.c.h.b16 %v382
  %v2086 = vunpack.c.l.b16 %v383
  %v2087 = vunpack.c.h.b16 %v383
  %v2088 = vunpack.c.l.b16 %v384
  %v2089 = vunpack.c.h.b16 %v384
  %v2090 = vunpack.c.l.b16 %v385
  %v2091 = vunpack.c.h.b16 %v385
  %v2092 = vunpack.c.l.b16 %v386
  %v2093 = vunpack.c.h.b16 %v386
  %v2094 = vunpack.c.l.b16 %v387
  %v2095 = vunpack.c.h.b16 %v387
  %v2096 = vunpack.c.l.b16 %v388
  %v2097 = vunpack.c.h.b16 %v388
  %v2098 = vunpack.c.l.b16 %v389
  %v2099 = vunpack.c.h.b16 %v389
  %v2100 = vunpack.c.l.b16 %v390
  %v2101 = vunpack.c.h.b16 %v390
  %v2102 = vpack.c.b16 %v1598, %v1590
  %v2103 = vpack.c.b16 %v1599, %v1591
  %v2104 = vpack.c.b16 %v1600, %v1592
  %v2105 = vpack.c.b16 %v1601, %v1593
  %v2106 = vpack.c.b16 %v1602, %v1594
  %v2107 = vpack.c.b16 %v1603, %v1595
  %v2108 = vpack.c.b16 %v1604, %v1596
  %v2109 = vpack.c.b16 %v1605, %v1597
  %v2110 = vpack.c.b16 %v1614, %v1606
  %v2111 = vpack.c.b16 %v1615, %v1607
  %v2112 = vpack.c.b16 %v1616, %v1608
  %v2113 = vpack.c.b16 %v1617, %v1609
  %v2114 = vpack.c.b16 %v1618, %v1610
  %v2115 = vpack.c.b16 %v1619, %v1611
  %v2116 = vpack.c.b16 %v1620, %v1612
  %v2117 = vpack.c.b16 %v1621, %v1613
  %v2118 = vpack.c.b16 %v1630, %v1622
  %v2119 = vpack.c.b16 %v1631, %v1623
  %v2120 = vpack.c.b16 %v1632, %v1624
  %v2121 = vpack.c.b16 %v1633, %v1625
  %v2122 = vpack.c.b16 %v1634, %v1626
  %v2123 = vpack.c.b16 %v1635, %v1627
  %v2124 = vpack.c.b16 %v1636, %v1628
  %v2125 = vpack.c.b16 %v1637, %v1629
  %v2126 = vpack.c.b16 %v1646, %v1638
  %v2127 = vpack.c.b16 %v1647, %v1639
  %v2128 = vpack.c.b16 %v1648, %v1640
  %v2129 = vpack.c.b16 %v1649, %v1641
  %v2130 = vpack.c.b16 %v1650, %v1642
  %v2131 = vpack.c.b16 %v1651, %v1643
  %v2132 = vpack.c.b16 %v1652, %v1644
  %v2133 = vpack.c.b16 %v1653, %v1645
  %v2134 = vpack.c.b16 %v1662, %v1654
  %v2135 = vpack.c.b16 %v1663, %v1655
  %v2136 = vpack.c.b16 %v1664, %v1656
  %v2137 = vpack.c.b16 %v1665, %v1657
  %v2138 = vpack.c.b16 %v1666, %v1658
  %v2139 = vpack.c.b16 %v1667, %v1659
  %v2140 = vpack.c.b16 %v1668, %v1660
  %v2141 = vpack.c.b16 %v1669, %v1661
  %v2142 = vpack.c.b16 %v1678, %v1670
  %v2143 = vpack.c.b16 %v1679, %v1671
  %v2144 = vpack.c.b16 %v1680, %v1672
  %v2145 = vpack.c.b16 %v1681, %v1673
  %v2146 = vpack.c.b16 %v1682, %v1674
  %v2147 = vpack.c.b16 %v1683, %v1675
  %v2148 = vpack.c.b16 %v1684, %v1676
  %v2149 = vpack.c.b16 %v1685, %v1677
  %v2150 = vpack.c.b16 %v1694, %v1686
  %v2151 = vpack.c.b16 %v1695, %v1687
  %v2152 = vpack.c.b16 %v1696, %v1688
  %v2153 = vpack.c.b16 %v1697, %v1689
  %v2154 = vpack.c.b16 %v1698, %v1690
  %v2155 = vpack.c.b16 %v1699, %v1691
  %v2156 = vpack.c.b16 %v1700, %v1692
  %v2157 = vpack.c.b16 %v1701, %v1693
  %v2158 = vpack.c.b16 %v1710, %v1702
  %v2159 = vpack.c.b16 %v1711, %v1703
  %v2160 = vpack.c.b16 %v1712, %v1704
  %v2161 = vpack.c.b16 %v1713, %v1705
  %v2162 = vpack.c.b16 %v1714, %v1706
  %v2163 = vpack.c.b16 %v1715, %v1707
  %v2164 = vpack.c.b16 %v1716, %v1708
  %v2165 = vpack.c.b16 %v1717, %v1709
  %v2166 = vpack.c.b16 %v1726, %v1718
  %v2167 = vpack.c.b16 %v1727, %v1719
  %v2168 = vpack.c.b16 %v1728, %v1720
  %v2169 = vpack.c.b16 %v1729, %v1721
  %v2170 = vpack.c.b16 %v1730, %v1722
  %v2171 = vpack.c.b16 %v1731, %v1723
  %v2172 = vpack.c.b16 %v1732, %v1724
  %v2173 = vpack.c.b16 %v1733, %v1725
  %v2174 = vpack.c.b16 %v1742, %v1734
  %v2175 = vpack.c.b16 %v1743, %v1735
  %v2176 = vpack.c.b16 %v1744, %v1736
  %v2177 = vpack.c.b16 %v1745, %v1737
  %v2178 = vpack.c.b16 %v1746, %v1738
  %v2179 = vpack.c.b16 %v1747, %v1739
  %v2180 = vpack.c.b16 %v1748, %v1740
  %v2181 = vpack.c.b16 %v1749, %v1741
  %v2182 = vpack.c.b16 %v1758, %v1750
  %v2183 = vpack.c.b16 %v1759, %v1751
  %v2184 = vpack.c.b16 %v1760, %v1752
  %v2185 = vpack.c.b16 %v1761, %v1753
  %v2186 = vpack.c.b16 %v1762, %v1754
  %v2187 = vpack.c.b16 %v1763, %v1755
  %v2188 = vpack.c.b16 %v1764, %v1756
  %v2189 = vpack.c.b16 %v1765, %v1757
  %v2190 = vpack.c.b16 %v1774, %v1766
  %v2191 = vpack.c.b16 %v1775, %v1767
  %v2192 = vpack.c.b16 %v1776, %v1768
  %v2193 = vpack.c.b16 %v1777, %v1769
  %v2194 = vpack.c.b16 %v1778, %v1770
  %v2195 = vpack.c.b16 %v1779, %v1771
  %v2196 = vpack.c.b16 %v1780, %v1772
  %v2197 = vpack.c.b16 %v1781, %v1773
  %v2198 = vpack.c.b16 %v1790, %v1782
  %v2199 = vpack.c.b16 %v1791, %v1783
  %v2200 = vpack.c.b16 %v1792, %v1784
  %v2201 = vpack.c.b16 %v1793, %v1785
  %v2202 = vpack.c.b16 %v1794, %v1786
  %v2203 = vpack.c.b16 %v1795, %v1787
  %v2204 = vpack.c.b16 %v1796, %v1788
  %v2205 = vpack.c.b16 %v1797, %v1789
  %v2206 = vpack.c.b16 %v1806, %v1798
  %v2207 = vpack.c.b16 %v1807, %v1799
  %v2208 = vpack.c.b16 %v1808, %v1800
  %v2209 = vpack.c.b16 %v1809, %v1801
  %v2210 = vpack.c.b16 %v1810, %v1802
  %v2211 = vpack.c.b16 %v1811, %v1803
  %v2212 = vpack.c.b16 %v1812, %v1804
  %v2213 = vpack.c.b16 %v1813, %v1805
  %v2214 = vpack.c.b16 %v1822, %v1814
  %v2215 = vpack.c.b16 %v1823, %v1815
  %v2216 = vpack.c.b16 %v1824, %v1816
  %v2217 = vpack.c.b16 %v1825, %v1817
  %v2218 = vpack.c.b16 %v1826, %v1818
  %v2219 = vpack.c.b16 %v1827, %v1819
  %v2220 = vpack.c.b16 %v1828, %v1820
  %v2221 = vpack.c.b16 %v1829, %v1821
  %v2222 = vpack.c.b16 %v1838, %v1830
  %v2223 = vpack.c.b16 %v1839, %v1831
  %v2224 = vpack.c.b16 %v1840, %v1832
  %v2225 = vpack.c.b16 %v1841, %v1833
  %v2226 = vpack.c.b16 %v1842, %v1834
  %v2227 = vpack.c.b16 %v1843, %v1835
  %v2228 = vpack.c.b16 %v1844, %v1836
  %v2229 = vpack.c.b16 %v1845, %v1837
  %v2230 = vpack.c.b16 %v1854, %v1846
  %v2231 = vpack.c.b16 %v1855, %v1847
  %v2232 = vpack.c.b16 %v1856, %v1848
  %v2233 = vpack.c.b16 %v1857, %v1849
  %v2234 = vpack.c.b16 %v1858, %v1850
  %v2235 = vpack.c.b16 %v1859, %v1851
  %v2236 = vpack.c.b16 %v1860, %v1852
  %v2237 = vpack.c.b16 %v1861, %v1853
  %v2238 = vpack.c.b16 %v1870, %v1862
  %v2239 = vpack.c.b16 %v1871, %v1863
  %v2240 = vpack.c.b16 %v1872, %v1864
  %v2241 = vpack.c.b16 %v1873, %v1865
  %v2242 = vpack.c.b16 %v1874, %v1866
  %v2243 = vpack.c.b16 %v1875, %v1867
  %v2244 = vpack.c.b16 %v1876, %v1868
  %v2245 = vpack.c.b16 %v1877, %v1869
  %v2246 = vpack.c.b16 %v1886, %v1878
  %v2247 = vpack.c.b16 %v1887, %v1879
  %v2248 = vpack.c.b16 %v1888, %v1880
  %v2249 = vpack.c.b16 %v1889, %v1881
  %v2250 = vpack.c.b16 %v1890, %v1882
  %v2251 = vpack.c.b16 %v1891, %v1883
  %v2252 = vpack.c.b16 %v1892, %v1884
  %v2253 = vpack.c.b16 %v1893, %v1885
  %v2254 = vpack.c.b16 %v1902, %v1894
  %v2255 = vpack.c.b16 %v1903, %v1895
  %v2256 = vpack.c.b16 %v1904, %v1896
  %v2257 = vpack.c.b16 %v1905, %v1897
  %v2258 = vpack.c.b16 %v1906, %v1898
  %v2259 = vpack.c.b16 %v1907, %v1899
  %v2260 = vpack.c.b16 %v1908, %v1900
  %v2261 = vpack.c.b16 %v1909, %v1901
  %v2262 = vpack.c.b16 %v1918, %v1910
  %v2263 = vpack.c.b16 %v1919, %v1911
  %v2264 = vpack.c.b16 %v1920, %v1912
  %v2265 = vpack.c.b16 %v1921, %v1913
  %v2266 = vpack.c.b16 %v1922, %v1914
  %v2267 = vpack.c.b16 %v1923, %v1915
  %v2268 = vpack.c.b16 %v1924, %v1916
  %v2269 = vpack.c.b16 %v1925, %v1917
  %v2270 = vpack.c.b16 %v1934, %v1926
  %v2271 = vpack.c.b16 %v1935, %v1927
  %v2272 = vpack.c.b16 %v1936, %v1928
  %v2273 = vpack.c.b16 %v1937, %v1929
  %v2274 = vpack.c.b16 %v1938, %v1930
  %v2275 = vpack.c.b16 %v1939, %v1931
  %v2276 = vpack.c.b16 %v1940, %v1932
  %v2277 = vpack.c.b16 %v1941, %v1933
  %v2278 = vpack.c.b16 %v1950, %v1942
  %v2279 = vpack.c.b16 %v1951, %v1943
  %v2280 = vpack.c.b16 %v1952, %v1944
  %v2281 = vpack.c.b16 %v1953, %v1945
  %v2282 = vpack.c.b16 %v1954, %v1946
  %v2283 = vpack.c.b16 %v1955, %v1947
  %v2284 = vpack.c.b16 %v1956, %v1948
  %v2285 = vpack.c.b16 %v1957, %v1949
  %v2286 = vpack.c.b16 %v1966, %v1958
  %v2287 = vpack.c.b16 %v1967, %v1959
  %v2288 = vpack.c.b16 %v1968, %v1960
  %v2289 = vpack.c.b16 %v1969, %v1961
  %v2290 = vpack.c.b16 %v1970, %v1962
  %v2291 = vpack.c.b16 %v1971, %v1963
  %v2292 = vpack.c.b16 %v1972, %v1964
  %v2293 = vpack.c.b16 %v1973, %v1965
  %v2294 = vpack.c.b16 %v1982, %v1974
  %v2295 = vpack.c.b16 %v1983, %v1975
  %v2296 = vpack.c.b16 %v1984, %v1976
  %v2297 = vpack.c.b16 %v1985, %v1977
  %v2298 = vpack.c.b16 %v1986, %v1978
  %v2299 = vpack.c.b16 %v1987, %v1979
  %v2300 = vpack.c.b16 %v1988, %v1980
  %v2301 = vpack.c.b16 %v1989, %v1981
  %v2302 = vpack.c.b16 %v1998, %v1990
  %v2303 = vpack.c.b16 %v1999, %v1991
  %v2304 = vpack.c.b16 %v2000, %v1992
  %v2305 = vpack.c.b16 %v2001, %v1993
  %v2306 = vpack.c.b16 %v2002, %v1994
  %v2307 = vpack.c.b16 %v2003, %v1995
  %v2308 = vpack.c.b16 %v2004, %v1996
  %v2309 = vpack.c.b16 %v2005, %v1997
  %v2310 = vpack.c.b16 %v2014, %v2006
  %v2311 = vpack.c.b16 %v2015, %v2007
  %v2312 = vpack.c.b16 %v2016, %v2008
  %v2313 = vpack.c.b16 %v2017, %v2009
  %v2314 = vpack.c.b16 %v2018, %v2010
  %v2315 = vpack.c.b16 %v2019, %v2011
  %v2316 = vpack.c.b16 %v2020, %v2012
  %v2317 = vpack.c.b16 %v2021, %v2013
  %v2318 = vpack.c.b16 %v2030, %v2022
  %v2319 = vpack.c.b16 %v2031, %v2023
  %v2320 = vpack.c.b16 %v2032, %v2024
  %v2321 = vpack.c.b16 %v2033, %v2025
  %v2322 = vpack.c.b16 %v2034, %v2026
  %v2323 = vpack.c.b16 %v2035, %v2027
  %v2324 = vpack.c.b16 %v2036, %v2028
  %v2325 = vpack.c.b16 %v2037, %v2029
  %v2326 = vpack.c.b16 %v2046, %v2038
  %v2327 = vpack.c.b16 %v2047, %v2039
  %v2328 = vpack.c.b16 %v2048, %v2040
  %v2329 = vpack.c.b16 %v2049, %v2041
  %v2330 = vpack.c.b16 %v2050, %v2042
  %v2331 = vpack.c.b16 %v2051, %v2043
  %v2332 = vpack.c.b16 %v2052, %v2044
  %v2333 = vpack.c.b16 %v2053, %v2045
  %v2334 = vpack.c.b16 %v2062, %v2054
  %v2335 = vpack.c.b16 %v2063, %v2055
  %v2336 = vpack.c.b16 %v2064, %v2056
  %v2337 = vpack.c.b16 %v2065, %v2057
  %v2338 = vpack.c.b16 %v2066, %v2058
  %v2339 = vpack.c.b16 %v2067, %v2059
  %v2340 = vpack.c.b16 %v2068, %v2060
  %v2341 = vpack.c.b16 %v2069, %v2061
  %v2342 = vpack.c.b16 %v2078, %v2070
  %v2343 = vpack.c.b16 %v2079, %v2071
  %v2344 = vpack.c.b16 %v2080, %v2072
  %v2345 = vpack.c.b16 %v2081, %v2073
  %v2346 = vpack.c.b16 %v2082, %v2074
  %v2347 = vpack.c.b16 %v2083, %v2075
  %v2348 = vpack.c.b16 %v2084, %v2076
  %v2349 = vpack.c.b16 %v2085, %v2077
  %v2350 = vpack.c.b16 %v2094, %v2086
  %v2351 = vpack.c.b16 %v2095, %v2087
  %v2352 = vpack.c.b16 %v2096, %v2088
  %v2353 = vpack.c.b16 %v2097, %v2089
  %v2354 = vpack.c.b16 %v2098, %v2090
  %v2355 = vpack.c.b16 %v2099, %v2091
  %v2356 = vpack.c.b16 %v2100, %v2092
  %v2357 = vpack.c.b16 %v2101, %v2093
  %2614 = vmatprep.subr.bf16.mxu0 %v2103
  %2615 = vmatpush1.bf16.msra.mxu0 %v2102
  %2616 = vmatprep.subr.bf16.mxu0 %v2111
  %2617 = vmatpush1.bf16.msra.mxu0 %v2110
  %2618 = vmatprep.subr.bf16.mxu0 %v2119
  %2619 = vmatpush1.bf16.msra.mxu0 %v2118
  %2620 = vmatprep.subr.bf16.mxu0 %v2127
  %2621 = vmatpush1.bf16.msra.mxu0 %v2126
  %2622 = vmatprep.subr.bf16.mxu0 %v2135
  %2623 = vmatpush1.bf16.msra.mxu0 %v2134
  %2624 = vmatprep.subr.bf16.mxu0 %v2143
  %2625 = vmatpush1.bf16.msra.mxu0 %v2142
  %2626 = vmatprep.subr.bf16.mxu0 %v2151
  %2627 = vmatpush1.bf16.msra.mxu0 %v2150
  %2628 = vmatprep.subr.bf16.mxu0 %v2159
  %2629 = vmatpush1.bf16.msra.mxu0 %v2158
  %2630 = vmatprep.subr.bf16.mxu0 %v2167
  %2631 = vmatpush1.bf16.msra.mxu0 %v2166
  %2632 = vmatprep.subr.bf16.mxu0 %v2175
  %2633 = vmatpush1.bf16.msra.mxu0 %v2174
  %2634 = vmatprep.subr.bf16.mxu0 %v2183
  %2635 = vmatpush1.bf16.msra.mxu0 %v2182
  %2636 = vmatprep.subr.bf16.mxu0 %v2191
  %2637 = vmatpush1.bf16.msra.mxu0 %v2190
  %2638 = vmatprep.subr.bf16.mxu0 %v2199
  %2639 = vmatpush1.bf16.msra.mxu0 %v2198
  %2640 = vmatprep.subr.bf16.mxu0 %v2207
  %2641 = vmatpush1.bf16.msra.mxu0 %v2206
  %2642 = vmatprep.subr.bf16.mxu0 %v2215
  %2643 = vmatpush1.bf16.msra.mxu0 %v2214
  %2644 = vmatprep.subr.bf16.mxu0 %v2223
  %2645 = vmatpush1.bf16.msra.mxu0 %v2222
  %2646 = vmatprep.mubr.bf16.mxu0 %v1286
  %2647 = vmatmul.mubr.bf16.gmra.mrb[0].mxu0 %v1285
  %v2648 = vpop.f32.mrb[0].mxu0
  %v2649 = vadd.f32 %v1297, %v2648
  %v2650 = vpop.f32.mrb[0].mxu0
  %v2651 = vadd.f32 %v1301, %v2650
  %v2652 = vpop.f32.mrb[0].mxu0
  %v2653 = vadd.f32 %v1297, %v2652
  %v2654 = vpop.f32.mrb[0].mxu0
  %v2655 = vadd.f32 %v1301, %v2654
  %2656 = vmatprep.mubr.bf16.mxu0 %v1290
  %2657 = vmatmul.mubr.bf16.gmra.mrb[0].mxu0 %v1289
  %v2658 = vpop.f32.mrb[0].mxu0
  %v2659 = vadd.f32 %v1297, %v2658
  %v2660 = vpop.f32.mrb[0].mxu0
  %v2661 = vadd.f32 %v1301, %v2660
  %v2662 = vpop.f32.mrb[0].mxu0
  %v2663 = vadd.f32 %v1297, %v2662
  %v2664 = vpop.f32.mrb[0].mxu0
  %v2665 = vadd.f32 %v1301, %v2664
  %2666 = vdwg.mxu0
  %2667 = vmatprep.subr.bf16.mxu0 %v2231
  %2668 = vmatpush1.bf16.msra.mxu0 %v2230
  %2669 = vmatprep.subr.bf16.mxu0 %v2239
  %2670 = vmatpush1.bf16.msra.mxu0 %v2238
  %2671 = vmatprep.subr.bf16.mxu0 %v2247
  %2672 = vmatpush1.bf16.msra.mxu0 %v2246
  %2673 = vmatprep.subr.bf16.mxu0 %v2255
  %2674 = vmatpush1.bf16.msra.mxu0 %v2254
  %2675 = vmatprep.subr.bf16.mxu0 %v2263
  %2676 = vmatpush1.bf16.msra.mxu0 %v2262
  %2677 = vmatprep.subr.bf16.mxu0 %v2271
  %2678 = vmatpush1.bf16.msra.mxu0 %v2270
  %2679 = vmatprep.subr.bf16.mxu0 %v2279
  %2680 = vmatpush1.bf16.msra.mxu0 %v2278
  %2681 = vmatprep.subr.bf16.mxu0 %v2287
  %2682 = vmatpush1.bf16.msra.mxu0 %v2286
  %2683 = vmatprep.subr.bf16.mxu0 %v2295
  %2684 = vmatpush1.bf16.msra.mxu0 %v2294
  %2685 = vmatprep.subr.bf16.mxu0 %v2303
  %2686 = vmatpush1.bf16.msra.mxu0 %v2302
  %2687 = vmatprep.subr.bf16.mxu0 %v2311
  %2688 = vmatpush1.bf16.msra.mxu0 %v2310
  %2689 = vmatprep.subr.bf16.mxu0 %v2319
  %2690 = vmatpush1.bf16.msra.mxu0 %v2318
  %2691 = vmatprep.subr.bf16.mxu0 %v2327
  %2692 = vmatpush1.bf16.msra.mxu0 %v2326
  %2693 = vmatprep.subr.bf16.mxu0 %v2335
  %2694 = vmatpush1.bf16.msra.mxu0 %v2334
  %2695 = vmatprep.subr.bf16.mxu0 %v2343
  %2696 = vmatpush1.bf16.msra.mxu0 %v2342
  %2697 = vmatprep.subr.bf16.mxu0 %v2351
  %2698 = vmatpush1.bf16.msra.mxu0 %v2350
  %2699 = vmatprep.mubr.bf16.mxu0 %v1288
  %2700 = vmatmul.mubr.bf16.gmra.mrb[0].mxu0 %v1287
  %v2701 = vpop.f32.mrb[0].mxu0
  %v2702 = vadd.f32 %v2649, %v2701
  %v2703 = vpop.f32.mrb[0].mxu0
  %v2704 = vadd.f32 %v2651, %v2703
  %v2705 = vpop.f32.mrb[0].mxu0
  %v2706 = vadd.f32 %v2653, %v2705
  %v2707 = vpop.f32.mrb[0].mxu0
  %v2708 = vadd.f32 %v2655, %v2707
  %2709 = vmatprep.mubr.bf16.mxu0 %v1292
  %2710 = vmatmul.mubr.bf16.gmra.mrb[0].mxu0 %v1291
  %v2711 = vpop.f32.mrb[0].mxu0
  %v2712 = vadd.f32 %v2659, %v2711
  %v2713 = vpop.f32.mrb[0].mxu0
  %v2714 = vadd.f32 %v2661, %v2713
  %v2715 = vpop.f32.mrb[0].mxu0
  %v2716 = vadd.f32 %v2663, %v2715
  %v2717 = vpop.f32.mrb[0].mxu0
  %v2718 = vadd.f32 %v2665, %v2717
  %2719 = vdwg.mxu0
  %2720 = vmatprep.subr.bf16.mxu0 %v2105
  %2721 = vmatpush1.bf16.msra.mxu0 %v2104
  %2722 = vmatprep.subr.bf16.mxu0 %v2113
  %2723 = vmatpush1.bf16.msra.mxu0 %v2112
  %2724 = vmatprep.subr.bf16.mxu0 %v2121
  %2725 = vmatpush1.bf16.msra.mxu0 %v2120
  %2726 = vmatprep.subr.bf16.mxu0 %v2129
  %2727 = vmatpush1.bf16.msra.mxu0 %v2128
  %2728 = vmatprep.subr.bf16.mxu0 %v2137
  %2729 = vmatpush1.bf16.msra.mxu0 %v2136
  %2730 = vmatprep.subr.bf16.mxu0 %v2145
  %2731 = vmatpush1.bf16.msra.mxu0 %v2144
  %2732 = vmatprep.subr.bf16.mxu0 %v2153
  %2733 = vmatpush1.bf16.msra.mxu0 %v2152
  %2734 = vmatprep.subr.bf16.mxu0 %v2161
  %2735 = vmatpush1.bf16.msra.mxu0 %v2160
  %2736 = vmatprep.subr.bf16.mxu0 %v2169
  %2737 = vmatpush1.bf16.msra.mxu0 %v2168
  %2738 = vmatprep.subr.bf16.mxu0 %v2177
  %2739 = vmatpush1.bf16.msra.mxu0 %v2176
  %2740 = vmatprep.subr.bf16.mxu0 %v2185
  %2741 = vmatpush1.bf16.msra.mxu0 %v2184
  %2742 = vmatprep.subr.bf16.mxu0 %v2193
  %2743 = vmatpush1.bf16.msra.mxu0 %v2192
  %2744 = vmatprep.subr.bf16.mxu0 %v2201
  %2745 = vmatpush1.bf16.msra.mxu0 %v2200
  %2746 = vmatprep.subr.bf16.mxu0 %v2209
  %2747 = vmatpush1.bf16.msra.mxu0 %v2208
  %2748 = vmatprep.subr.bf16.mxu0 %v2217
  %2749 = vmatpush1.bf16.msra.mxu0 %v2216
  %2750 = vmatprep.subr.bf16.mxu0 %v2225
  %2751 = vmatpush1.bf16.msra.mxu0 %v2224
  %2752 = vmatprep.mubr.bf16.mxu0 %v1286
  %2753 = vmatmul.mubr.bf16.gmra.mrb[0].mxu0 %v1285
  %v2754 = vpop.f32.mrb[0].mxu0
  %v2755 = vadd.f32 %v1305, %v2754
  %v2756 = vpop.f32.mrb[0].mxu0
  %v2757 = vadd.f32 %v1309, %v2756
  %v2758 = vpop.f32.mrb[0].mxu0
  %v2759 = vadd.f32 %v1305, %v2758
  %v2760 = vpop.f32.mrb[0].mxu0
  %v2761 = vadd.f32 %v1309, %v2760
  %2762 = vmatprep.mubr.bf16.mxu0 %v1290
  %2763 = vmatmul.mubr.bf16.gmra.mrb[0].mxu0 %v1289
  %v2764 = vpop.f32.mrb[0].mxu0
  %v2765 = vadd.f32 %v1305, %v2764
  %v2766 = vpop.f32.mrb[0].mxu0
  %v2767 = vadd.f32 %v1309, %v2766
  %v2768 = vpop.f32.mrb[0].mxu0
  %v2769 = vadd.f32 %v1305, %v2768
  %v2770 = vpop.f32.mrb[0].mxu0
  %v2771 = vadd.f32 %v1309, %v2770
  %2772 = vdwg.mxu0
  %2773 = vmatprep.subr.bf16.mxu0 %v2233
  %2774 = vmatpush1.bf16.msra.mxu0 %v2232
  %2775 = vmatprep.subr.bf16.mxu0 %v2241
  %2776 = vmatpush1.bf16.msra.mxu0 %v2240
  %2777 = vmatprep.subr.bf16.mxu0 %v2249
  %2778 = vmatpush1.bf16.msra.mxu0 %v2248
  %2779 = vmatprep.subr.bf16.mxu0 %v2257
  %2780 = vmatpush1.bf16.msra.mxu0 %v2256
  %2781 = vmatprep.subr.bf16.mxu0 %v2265
  %2782 = vmatpush1.bf16.msra.mxu0 %v2264
  %2783 = vmatprep.subr.bf16.mxu0 %v2273
  %2784 = vmatpush1.bf16.msra.mxu0 %v2272
  %2785 = vmatprep.subr.bf16.mxu0 %v2281
  %2786 = vmatpush1.bf16.msra.mxu0 %v2280
  %2787 = vmatprep.subr.bf16.mxu0 %v2289
  %2788 = vmatpush1.bf16.msra.mxu0 %v2288
  %2789 = vmatprep.subr.bf16.mxu0 %v2297
  %2790 = vmatpush1.bf16.msra.mxu0 %v2296
  %2791 = vmatprep.subr.bf16.mxu0 %v2305
  %2792 = vmatpush1.bf16.msra.mxu0 %v2304
  %2793 = vmatprep.subr.bf16.mxu0 %v2313
  %2794 = vmatpush1.bf16.msra.mxu0 %v2312
  %2795 = vmatprep.subr.bf16.mxu0 %v2321
  %2796 = vmatpush1.bf16.msra.mxu0 %v2320
  %2797 = vmatprep.subr.bf16.mxu0 %v2329
  %2798 = vmatpush1.bf16.msra.mxu0 %v2328
  %2799 = vmatprep.subr.bf16.mxu0 %v2337
  %2800 = vmatpush1.bf16.msra.mxu0 %v2336
  %2801 = vmatprep.subr.bf16.mxu0 %v2345
  %2802 = vmatpush1.bf16.msra.mxu0 %v2344
  %2803 = vmatprep.subr.bf16.mxu0 %v2353
  %2804 = vmatpush1.bf16.msra.mxu0 %v2352
  %2805 = vmatprep.mubr.bf16.mxu0 %v1288
  %2806 = vmatmul.mubr.bf16.gmra.mrb[0].mxu0 %v1287
  %v2807 = vpop.f32.mrb[0].mxu0
  %v2808 = vadd.f32 %v2755, %v2807
  %v2809 = vpop.f32.mrb[0].mxu0
  %v2810 = vadd.f32 %v2757, %v2809
  %v2811 = vpop.f32.mrb[0].mxu0
  %v2812 = vadd.f32 %v2759, %v2811
  %v2813 = vpop.f32.mrb[0].mxu0
  %v2814 = vadd.f32 %v2761, %v2813
  %2815 = vmatprep.mubr.bf16.mxu0 %v1292
  %2816 = vmatmul.mubr.bf16.gmra.mrb[0].mxu0 %v1291
  %v2817 = vpop.f32.mrb[0].mxu0
  %v2818 = vadd.f32 %v2765, %v2817
  %v2819 = vpop.f32.mrb[0].mxu0
  %v2820 = vadd.f32 %v2767, %v2819
  %v2821 = vpop.f32.mrb[0].mxu0
  %v2822 = vadd.f32 %v2769, %v2821
  %v2823 = vpop.f32.mrb[0].mxu0
  %v2824 = vadd.f32 %v2771, %v2823
  %2825 = vdwg.mxu0
  %2826 = vmatprep.subr.bf16.mxu0 %v2107
  %2827 = vmatpush1.bf16.msra.mxu0 %v2106
  %2828 = vmatprep.subr.bf16.mxu0 %v2115
  %2829 = vmatpush1.bf16.msra.mxu0 %v2114
  %2830 = vmatprep.subr.bf16.mxu0 %v2123
  %2831 = vmatpush1.bf16.msra.mxu0 %v2122
  %2832 = vmatprep.subr.bf16.mxu0 %v2131
  %2833 = vmatpush1.bf16.msra.mxu0 %v2130
  %2834 = vmatprep.subr.bf16.mxu0 %v2139
  %2835 = vmatpush1.bf16.msra.mxu0 %v2138
  %2836 = vmatprep.subr.bf16.mxu0 %v2147
  %2837 = vmatpush1.bf16.msra.mxu0 %v2146
  %2838 = vmatprep.subr.bf16.mxu0 %v2155
  %2839 = vmatpush1.bf16.msra.mxu0 %v2154
  %2840 = vmatprep.subr.bf16.mxu0 %v2163
  %2841 = vmatpush1.bf16.msra.mxu0 %v2162
  %2842 = vmatprep.subr.bf16.mxu0 %v2171
  %2843 = vmatpush1.bf16.msra.mxu0 %v2170
  %2844 = vmatprep.subr.bf16.mxu0 %v2179
  %2845 = vmatpush1.bf16.msra.mxu0 %v2178
  %2846 = vmatprep.subr.bf16.mxu0 %v2187
  %2847 = vmatpush1.bf16.msra.mxu0 %v2186
  %2848 = vmatprep.subr.bf16.mxu0 %v2195
  %2849 = vmatpush1.bf16.msra.mxu0 %v2194
  %2850 = vmatprep.subr.bf16.mxu0 %v2203
  %2851 = vmatpush1.bf16.msra.mxu0 %v2202
  %2852 = vmatprep.subr.bf16.mxu0 %v2211
  %2853 = vmatpush1.bf16.msra.mxu0 %v2210
  %2854 = vmatprep.subr.bf16.mxu0 %v2219
  %2855 = vmatpush1.bf16.msra.mxu0 %v2218
  %2856 = vmatprep.subr.bf16.mxu0 %v2227
  %2857 = vmatpush1.bf16.msra.mxu0 %v2226
  %2858 = vmatprep.mubr.bf16.mxu0 %v1286
  %2859 = vmatmul.mubr.bf16.gmra.mrb[0].mxu0 %v1285
  %v2860 = vpop.f32.mrb[0].mxu0
  %v2861 = vadd.f32 %v1313, %v2860
  %v2862 = vpop.f32.mrb[0].mxu0
  %v2863 = vadd.f32 %v1317, %v2862
  %v2864 = vpop.f32.mrb[0].mxu0
  %v2865 = vadd.f32 %v1313, %v2864
  %v2866 = vpop.f32.mrb[0].mxu0
  %v2867 = vadd.f32 %v1317, %v2866
  %2868 = vmatprep.mubr.bf16.mxu0 %v1290
  %2869 = vmatmul.mubr.bf16.gmra.mrb[0].mxu0 %v1289
  %v2870 = vpop.f32.mrb[0].mxu0
  %v2871 = vadd.f32 %v1313, %v2870
  %v2872 = vpop.f32.mrb[0].mxu0
  %v2873 = vadd.f32 %v1317, %v2872
  %v2874 = vpop.f32.mrb[0].mxu0
  %v2875 = vadd.f32 %v1313, %v2874
  %v2876 = vpop.f32.mrb[0].mxu0
  %v2877 = vadd.f32 %v1317, %v2876
  %2878 = vdwg.mxu0
  %2879 = vmatprep.subr.bf16.mxu0 %v2235
  %2880 = vmatpush1.bf16.msra.mxu0 %v2234
  %2881 = vmatprep.subr.bf16.mxu0 %v2243
  %2882 = vmatpush1.bf16.msra.mxu0 %v2242
  %2883 = vmatprep.subr.bf16.mxu0 %v2251
  %2884 = vmatpush1.bf16.msra.mxu0 %v2250
  %2885 = vmatprep.subr.bf16.mxu0 %v2259
  %2886 = vmatpush1.bf16.msra.mxu0 %v2258
  %2887 = vmatprep.subr.bf16.mxu0 %v2267
  %2888 = vmatpush1.bf16.msra.mxu0 %v2266
  %2889 = vmatprep.subr.bf16.mxu0 %v2275
  %2890 = vmatpush1.bf16.msra.mxu0 %v2274
  %2891 = vmatprep.subr.bf16.mxu0 %v2283
  %2892 = vmatpush1.bf16.msra.mxu0 %v2282
  %2893 = vmatprep.subr.bf16.mxu0 %v2291
  %2894 = vmatpush1.bf16.msra.mxu0 %v2290
  %2895 = vmatprep.subr.bf16.mxu0 %v2299
  %2896 = vmatpush1.bf16.msra.mxu0 %v2298
  %2897 = vmatprep.subr.bf16.mxu0 %v2307
  %2898 = vmatpush1.bf16.msra.mxu0 %v2306
  %2899 = vmatprep.subr.bf16.mxu0 %v2315
  %2900 = vmatpush1.bf16.msra.mxu0 %v2314
  %2901 = vmatprep.subr.bf16.mxu0 %v2323
  %2902 = vmatpush1.bf16.msra.mxu0 %v2322
  %2903 = vmatprep.subr.bf16.mxu0 %v2331
  %2904 = vmatpush1.bf16.msra.mxu0 %v2330
  %2905 = vmatprep.subr.bf16.mxu0 %v2339
  %2906 = vmatpush1.bf16.msra.mxu0 %v2338
  %2907 = vmatprep.subr.bf16.mxu0 %v2347
  %2908 = vmatpush1.bf16.msra.mxu0 %v2346
  %2909 = vmatprep.subr.bf16.mxu0 %v2355
  %2910 = vmatpush1.bf16.msra.mxu0 %v2354
  %2911 = vmatprep.mubr.bf16.mxu0 %v1288
  %2912 = vmatmul.mubr.bf16.gmra.mrb[0].mxu0 %v1287
  %v2913 = vpop.f32.mrb[0].mxu0
  %v2914 = vadd.f32 %v2861, %v2913
  %v2915 = vpop.f32.mrb[0].mxu0
  %v2916 = vadd.f32 %v2863, %v2915
  %v2917 = vpop.f32.mrb[0].mxu0
  %v2918 = vadd.f32 %v2865, %v2917
  %v2919 = vpop.f32.mrb[0].mxu0
  %v2920 = vadd.f32 %v2867, %v2919
  %2921 = vmatprep.mubr.bf16.mxu0 %v1292
  %2922 = vmatmul.mubr.bf16.gmra.mrb[0].mxu0 %v1291
  %v2923 = vpop.f32.mrb[0].mxu0
  %v2924 = vadd.f32 %v2871, %v2923
  %v2925 = vpop.f32.mrb[0].mxu0
  %v2926 = vadd.f32 %v2873, %v2925
  %v2927 = vpop.f32.mrb[0].mxu0
  %v2928 = vadd.f32 %v2875, %v2927
  %v2929 = vpop.f32.mrb[0].mxu0
  %v2930 = vadd.f32 %v2877, %v2929
  %2931 = vdwg.mxu0
  %2932 = vmatprep.subr.bf16.mxu0 %v2109
  %2933 = vmatpush1.bf16.msra.mxu0 %v2108
  %2934 = vmatprep.subr.bf16.mxu0 %v2117
  %2935 = vmatpush1.bf16.msra.mxu0 %v2116
  %2936 = vmatprep.subr.bf16.mxu0 %v2125
  %2937 = vmatpush1.bf16.msra.mxu0 %v2124
  %2938 = vmatprep.subr.bf16.mxu0 %v2133
  %2939 = vmatpush1.bf16.msra.mxu0 %v2132
  %2940 = vmatprep.subr.bf16.mxu0 %v2141
  %2941 = vmatpush1.bf16.msra.mxu0 %v2140
  %2942 = vmatprep.subr.bf16.mxu0 %v2149
  %2943 = vmatpush1.bf16.msra.mxu0 %v2148
  %2944 = vmatprep.subr.bf16.mxu0 %v2157
  %2945 = vmatpush1.bf16.msra.mxu0 %v2156
  %2946 = vmatprep.subr.bf16.mxu0 %v2165
  %2947 = vmatpush1.bf16.msra.mxu0 %v2164
  %2948 = vmatprep.subr.bf16.mxu0 %v2173
  %2949 = vmatpush1.bf16.msra.mxu0 %v2172
  %2950 = vmatprep.subr.bf16.mxu0 %v2181
  %2951 = vmatpush1.bf16.msra.mxu0 %v2180
  %2952 = vmatprep.subr.bf16.mxu0 %v2189
  %2953 = vmatpush1.bf16.msra.mxu0 %v2188
  %2954 = vmatprep.subr.bf16.mxu0 %v2197
  %2955 = vmatpush1.bf16.msra.mxu0 %v2196
  %2956 = vmatprep.subr.bf16.mxu0 %v2205
  %2957 = vmatpush1.bf16.msra.mxu0 %v2204
  %2958 = vmatprep.subr.bf16.mxu0 %v2213
  %2959 = vmatpush1.bf16.msra.mxu0 %v2212
  %2960 = vmatprep.subr.bf16.mxu0 %v2221
  %2961 = vmatpush1.bf16.msra.mxu0 %v2220
  %2962 = vmatprep.subr.bf16.mxu0 %v2229
  %2963 = vmatpush1.bf16.msra.mxu0 %v2228
  %2964 = vmatprep.mubr.bf16.mxu0 %v1286
  %2965 = vmatmul.mubr.bf16.gmra.mrb[0].mxu0 %v1285
  %v2966 = vpop.f32.mrb[0].mxu0
  %v2967 = vadd.f32 %v1321, %v2966
  %v2968 = vpop.f32.mrb[0].mxu0
  %v2969 = vadd.f32 %v1325, %v2968
  %v2970 = vpop.f32.mrb[0].mxu0
  %v2971 = vadd.f32 %v1321, %v2970
  %v2972 = vpop.f32.mrb[0].mxu0
  %v2973 = vadd.f32 %v1325, %v2972
  %2974 = vmatprep.mubr.bf16.mxu0 %v1290
  %2975 = vmatmul.mubr.bf16.gmra.mrb[0].mxu0 %v1289
  %v2976 = vpop.f32.mrb[0].mxu0
  %v2977 = vadd.f32 %v1321, %v2976
  %v2978 = vpop.f32.mrb[0].mxu0
  %v2979 = vadd.f32 %v1325, %v2978
  %v2980 = vpop.f32.mrb[0].mxu0
  %v2981 = vadd.f32 %v1321, %v2980
  %v2982 = vpop.f32.mrb[0].mxu0
  %v2983 = vadd.f32 %v1325, %v2982
  %2984 = vdwg.mxu0
  %2985 = vmatprep.subr.bf16.mxu0 %v2237
  %2986 = vmatpush1.bf16.msra.mxu0 %v2236
  %2987 = vmatprep.subr.bf16.mxu0 %v2245
  %2988 = vmatpush1.bf16.msra.mxu0 %v2244
  %2989 = vmatprep.subr.bf16.mxu0 %v2253
  %2990 = vmatpush1.bf16.msra.mxu0 %v2252
  %2991 = vmatprep.subr.bf16.mxu0 %v2261
  %2992 = vmatpush1.bf16.msra.mxu0 %v2260
  %2993 = vmatprep.subr.bf16.mxu0 %v2269
  %2994 = vmatpush1.bf16.msra.mxu0 %v2268
  %2995 = vmatprep.subr.bf16.mxu0 %v2277
  %2996 = vmatpush1.bf16.msra.mxu0 %v2276
  %2997 = vmatprep.subr.bf16.mxu0 %v2285
  %2998 = vmatpush1.bf16.msra.mxu0 %v2284
  %2999 = vmatprep.subr.bf16.mxu0 %v2293
  %3000 = vmatpush1.bf16.msra.mxu0 %v2292
  %3001 = vmatprep.subr.bf16.mxu0 %v2301
  %3002 = vmatpush1.bf16.msra.mxu0 %v2300
  %3003 = vmatprep.subr.bf16.mxu0 %v2309
  %3004 = vmatpush1.bf16.msra.mxu0 %v2308
  %3005 = vmatprep.subr.bf16.mxu0 %v2317
  %3006 = vmatpush1.bf16.msra.mxu0 %v2316
  %3007 = vmatprep.subr.bf16.mxu0 %v2325
  %3008 = vmatpush1.bf16.msra.mxu0 %v2324
  %3009 = vmatprep.subr.bf16.mxu0 %v2333
  %3010 = vmatpush1.bf16.msra.mxu0 %v2332
  %3011 = vmatprep.subr.bf16.mxu0 %v2341
  %3012 = vmatpush1.bf16.msra.mxu0 %v2340
  %3013 = vmatprep.subr.bf16.mxu0 %v2349
  %3014 = vmatpush1.bf16.msra.mxu0 %v2348
  %3015 = vmatprep.subr.bf16.mxu0 %v2357
  %3016 = vmatpush1.bf16.msra.mxu0 %v2356
  %3017 = vmatprep.mubr.bf16.mxu0 %v1288
  %3018 = vmatmul.mubr.bf16.gmra.mrb[0].mxu0 %v1287
  %v3019 = vpop.f32.mrb[0].mxu0
  %v3020 = vadd.f32 %v2967, %v3019
  %v3021 = vpop.f32.mrb[0].mxu0
  %v3022 = vadd.f32 %v2969, %v3021
  %v3023 = vpop.f32.mrb[0].mxu0
  %v3024 = vadd.f32 %v2971, %v3023
  %v3025 = vpop.f32.mrb[0].mxu0
  %v3026 = vadd.f32 %v2973, %v3025
  %3027 = vmatprep.mubr.bf16.mxu0 %v1292
  %3028 = vmatmul.mubr.bf16.gmra.mrb[0].mxu0 %v1291
  %v3029 = vpop.f32.mrb[0].mxu0
  %v3030 = vadd.f32 %v2977, %v3029
  %v3031 = vpop.f32.mrb[0].mxu0
  %v3032 = vadd.f32 %v2979, %v3031
  %v3033 = vpop.f32.mrb[0].mxu0
  %v3034 = vadd.f32 %v2981, %v3033
  %v3035 = vpop.f32.mrb[0].mxu0
  %v3036 = vadd.f32 %v2983, %v3035
  %3037 = vdwg.mxu0
  %v3070 = vcombine.low %v2702, %v2704
  %v3071 = vcombine.high %v2702, %v2704
  %v3072 = vcombine.low %v2808, %v2810
  %v3073 = vcombine.high %v2808, %v2810
  %v3074 = vcombine.low %v2914, %v2916
  %v3075 = vcombine.high %v2914, %v2916
  %v3076 = vcombine.low %v3020, %v3022
  %v3077 = vcombine.high %v3020, %v3022
  %v3078 = vcombine.low %v2706, %v2708
  %v3079 = vcombine.high %v2706, %v2708
  %v3080 = vcombine.low %v2812, %v2814
  %v3081 = vcombine.high %v2812, %v2814
  %v3082 = vcombine.low %v2918, %v2920
  %v3083 = vcombine.high %v2918, %v2920
  %v3084 = vcombine.low %v3024, %v3026
  %v3085 = vcombine.high %v3024, %v3026
  %v3086 = vcombine.low %v2712, %v2714
  %v3087 = vcombine.high %v2712, %v2714
  %v3088 = vcombine.low %v2818, %v2820
  %v3089 = vcombine.high %v2818, %v2820
  %v3090 = vcombine.low %v2924, %v2926
  %v3091 = vcombine.high %v2924, %v2926
  %v3092 = vcombine.low %v3030, %v3032
  %v3093 = vcombine.high %v3030, %v3032
  %v3094 = vcombine.low %v2716, %v2718
  %v3095 = vcombine.high %v2716, %v2718
  %v3096 = vcombine.low %v2822, %v2824
  %v3097 = vcombine.high %v2822, %v2824
  %v3098 = vcombine.low %v2928, %v2930
  %v3099 = vcombine.high %v2928, %v2930
  %v3100 = vcombine.low %v3034, %v3036
  %v3101 = vcombine.high %v3034, %v3036
  %v3134 = vlaneseq
  %v3135 = vshrl.u32 %v3134, 7
  %v3136 = vcombine.high %v392, %v392
  %v3138 = vunpack.c.l.s4 1966171168
  %v3139 = vunpack.c.0.s8 %v3138
  %v3140 = vlaneseq
  %v3141 = vshrl.u32 %v3140, 7
  %v3142 = vsub.s32 %v3139, %v3141
  %v3143 = vrot.slane %v392, %v3142
  %v3145 = vunpack.c.l.s4 1966171168
  %v3146 = vunpack.c.0.s8 %v3145
  %v3147 = vlaneseq
  %v3148 = vshrl.u32 %v3147, 7
  %v3149 = vsub.s32 %v3146, %v3148
  %v3150 = vrot.slane %v3136, %v3149
  %v3151 = vcombine.high %v3143, %v3143
  %v3152 = vcombine.high %v3150, %v3150
  %v3154 = vunpack.c.l.s4 1966171168
  %v3155 = vunpack.c.0.s8 %v3154
  %v3156 = vlaneseq
  %v3157 = vshrl.u32 %v3156, 7
  %v3158 = vsub.s32 %v3155, %v3157
  %v3159 = vrot.slane %v3143, %v3158
  %v3161 = vunpack.c.l.s4 1966171168
  %v3162 = vunpack.c.0.s8 %v3161
  %v3163 = vlaneseq
  %v3164 = vshrl.u32 %v3163, 7
  %v3165 = vsub.s32 %v3162, %v3164
  %v3166 = vrot.slane %v3150, %v3165
  %v3168 = vunpack.c.l.s4 1966171168
  %v3169 = vunpack.c.0.s8 %v3168
  %v3170 = vlaneseq
  %v3171 = vshrl.u32 %v3170, 7
  %v3172 = vsub.s32 %v3169, %v3171
  %v3173 = vrot.slane %v3151, %v3172
  %v3175 = vunpack.c.l.s4 1966171168
  %v3176 = vunpack.c.0.s8 %v3175
  %v3177 = vlaneseq
  %v3178 = vshrl.u32 %v3177, 7
  %v3179 = vsub.s32 %v3176, %v3178
  %v3180 = vrot.slane %v3152, %v3179
  %v3181 = vcombine.high %v3159, %v3159
  %v3182 = vcombine.high %v3166, %v3166
  %v3183 = vcombine.high %v3173, %v3173
  %v3184 = vcombine.high %v3180, %v3180
  %v3185 = vlaneseq
  %v3186 = vshrl.u32 %v3185, 7
  %v3187 = vsub.s32 0, %v3186
  %v3188 = vrot.slane %v3159, %v3187
  %v3189 = vlaneseq
  %v3190 = vshrl.u32 %v3189, 7
  %v3191 = vsub.s32 0, %v3190
  %v3192 = vrot.slane %v3173, %v3191
  %v3193 = vlaneseq
  %v3194 = vshrl.u32 %v3193, 7
  %v3195 = vsub.s32 0, %v3194
  %v3196 = vrot.slane %v3181, %v3195
  %v3197 = vlaneseq
  %v3198 = vshrl.u32 %v3197, 7
  %v3199 = vsub.s32 0, %v3198
  %v3200 = vrot.slane %v3183, %v3199
  %v3201 = vlaneseq
  %v3202 = vshrl.u32 %v3201, 7
  %v3203 = vsub.s32 0, %v3202
  %v3204 = vrot.slane %v3166, %v3203
  %v3205 = vlaneseq
  %v3206 = vshrl.u32 %v3205, 7
  %v3207 = vsub.s32 0, %v3206
  %v3208 = vrot.slane %v3180, %v3207
  %v3209 = vlaneseq
  %v3210 = vshrl.u32 %v3209, 7
  %v3211 = vsub.s32 0, %v3210
  %v3212 = vrot.slane %v3182, %v3211
  %v3213 = vlaneseq
  %v3214 = vshrl.u32 %v3213, 7
  %v3215 = vsub.s32 0, %v3214
  %v3216 = vrot.slane %v3184, %v3215
  %vm3217 = vcmp.lt.s32.totalorder %v3135, %v3188
  %vm3218 = vcmp.lt.s32.totalorder %v3135, %v3192
  %vm3219 = vcmp.lt.s32.totalorder %v3135, %v3196
  %vm3220 = vcmp.lt.s32.totalorder %v3135, %v3200
  %vm3221 = vcmp.lt.s32.totalorder %v3135, %v3204
  %vm3222 = vcmp.lt.s32.totalorder %v3135, %v3208
  %vm3223 = vcmp.lt.s32.totalorder %v3135, %v3212
  %vm3224 = vcmp.lt.s32.totalorder %v3135, %v3216
  %v3225 = vsel %vm3217, 1, 0
  %v3226 = vsel %vm3218, 1, 0
  %v3227 = vsel %vm3219, 1, 0
  %v3228 = vsel %vm3220, 1, 0
  %v3229 = vsel %vm3221, 1, 0
  %v3230 = vsel %vm3222, 1, 0
  %v3231 = vsel %vm3223, 1, 0
  %v3232 = vsel %vm3224, 1, 0
  %3233 = vset.pattern.permute.xlu0 0
  %3234 = vperm.xlu0 %3233, %v3225
  %v3235 = vpop.permute.xlu0 %3234
  %3236 = vset.pattern.permute.xlu0 0
  %3237 = vperm.xlu0 %3236, %v3226
  %v3238 = vpop.permute.xlu0 %3237
  %3239 = vset.pattern.permute.xlu0 0
  %3240 = vperm.xlu0 %3239, %v3227
  %v3241 = vpop.permute.xlu0 %3240
  %3242 = vset.pattern.permute.xlu0 0
  %3243 = vperm.xlu0 %3242, %v3228
  %v3244 = vpop.permute.xlu0 %3243
  %3245 = vset.pattern.permute.xlu0 0
  %3246 = vperm.xlu0 %3245, %v3229
  %v3247 = vpop.permute.xlu0 %3246
  %3248 = vset.pattern.permute.xlu0 0
  %3249 = vperm.xlu0 %3248, %v3230
  %v3250 = vpop.permute.xlu0 %3249
  %3251 = vset.pattern.permute.xlu0 0
  %3252 = vperm.xlu0 %3251, %v3231
  %v3253 = vpop.permute.xlu0 %3252
  %3254 = vset.pattern.permute.xlu0 0
  %3255 = vperm.xlu0 %3254, %v3232
  %v3256 = vpop.permute.xlu0 %3255
  %vm3257 = vcmp.eq.s32.totalorder %v3235, 1
  %vm3258 = vcmp.eq.s32.totalorder %v3238, 1
  %vm3259 = vcmp.eq.s32.totalorder %v3241, 1
  %vm3260 = vcmp.eq.s32.totalorder %v3244, 1
  %vm3261 = vcmp.eq.s32.totalorder %v3247, 1
  %vm3262 = vcmp.eq.s32.totalorder %v3250, 1
  %vm3263 = vcmp.eq.s32.totalorder %v3253, 1
  %vm3264 = vcmp.eq.s32.totalorder %v3256, 1
  %v3265 = vcombine.high %v3070, %v3070
  %v3266 = vcombine.high %v3072, %v3072
  %v3267 = vcombine.high %v3074, %v3074
  %v3268 = vcombine.high %v3076, %v3076
  %v3269 = vcombine.high %v3071, %v3071
  %v3270 = vcombine.high %v3073, %v3073
  %v3271 = vcombine.high %v3075, %v3075
  %v3272 = vcombine.high %v3077, %v3077
  %v3273 = vcombine.high %v3078, %v3078
  %v3274 = vcombine.high %v3080, %v3080
  %v3275 = vcombine.high %v3082, %v3082
  %v3276 = vcombine.high %v3084, %v3084
  %v3277 = vcombine.high %v3079, %v3079
  %v3278 = vcombine.high %v3081, %v3081
  %v3279 = vcombine.high %v3083, %v3083
  %v3280 = vcombine.high %v3085, %v3085
  %v3281 = vcombine.high %v3086, %v3086
  %v3282 = vcombine.high %v3088, %v3088
  %v3283 = vcombine.high %v3090, %v3090
  %v3284 = vcombine.high %v3092, %v3092
  %v3285 = vcombine.high %v3087, %v3087
  %v3286 = vcombine.high %v3089, %v3089
  %v3287 = vcombine.high %v3091, %v3091
  %v3288 = vcombine.high %v3093, %v3093
  %v3289 = vcombine.high %v3094, %v3094
  %v3290 = vcombine.high %v3096, %v3096
  %v3291 = vcombine.high %v3098, %v3098
  %v3292 = vcombine.high %v3100, %v3100
  %v3293 = vcombine.high %v3095, %v3095
  %v3294 = vcombine.high %v3097, %v3097
  %v3295 = vcombine.high %v3099, %v3099
  %v3296 = vcombine.high %v3101, %v3101
  %v3329 = vsel %vm3257, %v3070, -1e+30
  %v3330 = vsel %vm3257, %v3265, -1e+30
  %v3331 = vsel %vm3257, %v3072, -1e+30
  %v3332 = vsel %vm3257, %v3266, -1e+30
  %v3333 = vsel %vm3257, %v3074, -1e+30
  %v3334 = vsel %vm3257, %v3267, -1e+30
  %v3335 = vsel %vm3257, %v3076, -1e+30
  %v3336 = vsel %vm3257, %v3268, -1e+30
  %v3337 = vsel %vm3258, %v3071, -1e+30
  %v3338 = vsel %vm3258, %v3269, -1e+30
  %v3339 = vsel %vm3258, %v3073, -1e+30
  %v3340 = vsel %vm3258, %v3270, -1e+30
  %v3341 = vsel %vm3258, %v3075, -1e+30
  %v3342 = vsel %vm3258, %v3271, -1e+30
  %v3343 = vsel %vm3258, %v3077, -1e+30
  %v3344 = vsel %vm3258, %v3272, -1e+30
  %v3345 = vsel %vm3259, %v3078, -1e+30
  %v3346 = vsel %vm3259, %v3273, -1e+30
  %v3347 = vsel %vm3259, %v3080, -1e+30
  %v3348 = vsel %vm3259, %v3274, -1e+30
  %v3349 = vsel %vm3259, %v3082, -1e+30
  %v3350 = vsel %vm3259, %v3275, -1e+30
  %v3351 = vsel %vm3259, %v3084, -1e+30
  %v3352 = vsel %vm3259, %v3276, -1e+30
  %v3353 = vsel %vm3260, %v3079, -1e+30
  %v3354 = vsel %vm3260, %v3277, -1e+30
  %v3355 = vsel %vm3260, %v3081, -1e+30
  %v3356 = vsel %vm3260, %v3278, -1e+30
  %v3357 = vsel %vm3260, %v3083, -1e+30
  %v3358 = vsel %vm3260, %v3279, -1e+30
  %v3359 = vsel %vm3260, %v3085, -1e+30
  %v3360 = vsel %vm3260, %v3280, -1e+30
  %v3361 = vsel %vm3261, %v3086, -1e+30
  %v3362 = vsel %vm3261, %v3281, -1e+30
  %v3363 = vsel %vm3261, %v3088, -1e+30
  %v3364 = vsel %vm3261, %v3282, -1e+30
  %v3365 = vsel %vm3261, %v3090, -1e+30
  %v3366 = vsel %vm3261, %v3283, -1e+30
  %v3367 = vsel %vm3261, %v3092, -1e+30
  %v3368 = vsel %vm3261, %v3284, -1e+30
  %v3369 = vsel %vm3262, %v3087, -1e+30
  %v3370 = vsel %vm3262, %v3285, -1e+30
  %v3371 = vsel %vm3262, %v3089, -1e+30
  %v3372 = vsel %vm3262, %v3286, -1e+30
  %v3373 = vsel %vm3262, %v3091, -1e+30
  %v3374 = vsel %vm3262, %v3287, -1e+30
  %v3375 = vsel %vm3262, %v3093, -1e+30
  %v3376 = vsel %vm3262, %v3288, -1e+30
  %v3377 = vsel %vm3263, %v3094, -1e+30
  %v3378 = vsel %vm3263, %v3289, -1e+30
  %v3379 = vsel %vm3263, %v3096, -1e+30
  %v3380 = vsel %vm3263, %v3290, -1e+30
  %v3381 = vsel %vm3263, %v3098, -1e+30
  %v3382 = vsel %vm3263, %v3291, -1e+30
  %v3383 = vsel %vm3263, %v3100, -1e+30
  %v3384 = vsel %vm3263, %v3292, -1e+30
  %v3385 = vsel %vm3264, %v3095, -1e+30
  %v3386 = vsel %vm3264, %v3293, -1e+30
  %v3387 = vsel %vm3264, %v3097, -1e+30
  %v3388 = vsel %vm3264, %v3294, -1e+30
  %v3389 = vsel %vm3264, %v3099, -1e+30
  %v3390 = vsel %vm3264, %v3295, -1e+30
  %v3391 = vsel %vm3264, %v3101, -1e+30
  %v3392 = vsel %vm3264, %v3296, -1e+30
  %vm3393 = vcmask 1043456
  %v3394 = vsel %vm3393, %v3329, -inf
  %v3395 = vrot.slane %v3394, 4
  %v3396 = vmax.f32 %v3394, %v3395
  %v3397 = vrot.slane %v3396, 2
  %v3398 = vmax.f32 %v3396, %v3397
  %v3399 = vrot.slane %v3398, 1
  %v3400 = vmax.f32 %v3398, %v3399
  %v3401 = vsel %vm3393, %v3330, -inf
  %v3402 = vrot.slane %v3401, 4
  %v3403 = vmax.f32 %v3401, %v3402
  %v3404 = vrot.slane %v3403, 2
  %v3405 = vmax.f32 %v3403, %v3404
  %v3406 = vrot.slane %v3405, 1
  %v3407 = vmax.f32 %v3405, %v3406
  %v3408 = vsel %vm3393, %v3331, -inf
  %v3409 = vrot.slane %v3408, 4
  %v3410 = vmax.f32 %v3408, %v3409
  %v3411 = vrot.slane %v3410, 2
  %v3412 = vmax.f32 %v3410, %v3411
  %v3413 = vrot.slane %v3412, 1
  %v3414 = vmax.f32 %v3412, %v3413
  %v3415 = vsel %vm3393, %v3332, -inf
  %v3416 = vrot.slane %v3415, 4
  %v3417 = vmax.f32 %v3415, %v3416
  %v3418 = vrot.slane %v3417, 2
  %v3419 = vmax.f32 %v3417, %v3418
  %v3420 = vrot.slane %v3419, 1
  %v3421 = vmax.f32 %v3419, %v3420
  %v3422 = vsel %vm3393, %v3333, -inf
  %v3423 = vrot.slane %v3422, 4
  %v3424 = vmax.f32 %v3422, %v3423
  %v3425 = vrot.slane %v3424, 2
  %v3426 = vmax.f32 %v3424, %v3425
  %v3427 = vrot.slane %v3426, 1
  %v3428 = vmax.f32 %v3426, %v3427
  %v3429 = vsel %vm3393, %v3334, -inf
  %v3430 = vrot.slane %v3429, 4
  %v3431 = vmax.f32 %v3429, %v3430
  %v3432 = vrot.slane %v3431, 2
  %v3433 = vmax.f32 %v3431, %v3432
  %v3434 = vrot.slane %v3433, 1
  %v3435 = vmax.f32 %v3433, %v3434
  %v3436 = vsel %vm3393, %v3335, -inf
  %v3437 = vrot.slane %v3436, 4
  %v3438 = vmax.f32 %v3436, %v3437
  %v3439 = vrot.slane %v3438, 2
  %v3440 = vmax.f32 %v3438, %v3439
  %v3441 = vrot.slane %v3440, 1
  %v3442 = vmax.f32 %v3440, %v3441
  %v3443 = vsel %vm3393, %v3336, -inf
  %v3444 = vrot.slane %v3443, 4
  %v3445 = vmax.f32 %v3443, %v3444
  %v3446 = vrot.slane %v3445, 2
  %v3447 = vmax.f32 %v3445, %v3446
  %v3448 = vrot.slane %v3447, 1
  %v3449 = vmax.f32 %v3447, %v3448
  %v3450 = vsel %vm3393, %v3337, -inf
  %v3451 = vrot.slane %v3450, 4
  %v3452 = vmax.f32 %v3450, %v3451
  %v3453 = vrot.slane %v3452, 2
  %v3454 = vmax.f32 %v3452, %v3453
  %v3455 = vrot.slane %v3454, 1
  %v3456 = vmax.f32 %v3454, %v3455
  %v3457 = vsel %vm3393, %v3338, -inf
  %v3458 = vrot.slane %v3457, 4
  %v3459 = vmax.f32 %v3457, %v3458
  %v3460 = vrot.slane %v3459, 2
  %v3461 = vmax.f32 %v3459, %v3460
  %v3462 = vrot.slane %v3461, 1
  %v3463 = vmax.f32 %v3461, %v3462
  %v3464 = vsel %vm3393, %v3339, -inf
  %v3465 = vrot.slane %v3464, 4
  %v3466 = vmax.f32 %v3464, %v3465
  %v3467 = vrot.slane %v3466, 2
  %v3468 = vmax.f32 %v3466, %v3467
  %v3469 = vrot.slane %v3468, 1
  %v3470 = vmax.f32 %v3468, %v3469
  %v3471 = vsel %vm3393, %v3340, -inf
  %v3472 = vrot.slane %v3471, 4
  %v3473 = vmax.f32 %v3471, %v3472
  %v3474 = vrot.slane %v3473, 2
  %v3475 = vmax.f32 %v3473, %v3474
  %v3476 = vrot.slane %v3475, 1
  %v3477 = vmax.f32 %v3475, %v3476
  %v3478 = vsel %vm3393, %v3341, -inf
  %v3479 = vrot.slane %v3478, 4
  %v3480 = vmax.f32 %v3478, %v3479
  %v3481 = vrot.slane %v3480, 2
  %v3482 = vmax.f32 %v3480, %v3481
  %v3483 = vrot.slane %v3482, 1
  %v3484 = vmax.f32 %v3482, %v3483
  %v3485 = vsel %vm3393, %v3342, -inf
  %v3486 = vrot.slane %v3485, 4
  %v3487 = vmax.f32 %v3485, %v3486
  %v3488 = vrot.slane %v3487, 2
  %v3489 = vmax.f32 %v3487, %v3488
  %v3490 = vrot.slane %v3489, 1
  %v3491 = vmax.f32 %v3489, %v3490
  %v3492 = vsel %vm3393, %v3343, -inf
  %v3493 = vrot.slane %v3492, 4
  %v3494 = vmax.f32 %v3492, %v3493
  %v3495 = vrot.slane %v3494, 2
  %v3496 = vmax.f32 %v3494, %v3495
  %v3497 = vrot.slane %v3496, 1
  %v3498 = vmax.f32 %v3496, %v3497
  %v3499 = vsel %vm3393, %v3344, -inf
  %v3500 = vrot.slane %v3499, 4
  %v3501 = vmax.f32 %v3499, %v3500
  %v3502 = vrot.slane %v3501, 2
  %v3503 = vmax.f32 %v3501, %v3502
  %v3504 = vrot.slane %v3503, 1
  %v3505 = vmax.f32 %v3503, %v3504
  %v3506 = vsel %vm3393, %v3345, -inf
  %v3507 = vrot.slane %v3506, 4
  %v3508 = vmax.f32 %v3506, %v3507
  %v3509 = vrot.slane %v3508, 2
  %v3510 = vmax.f32 %v3508, %v3509
  %v3511 = vrot.slane %v3510, 1
  %v3512 = vmax.f32 %v3510, %v3511
  %v3513 = vsel %vm3393, %v3346, -inf
  %v3514 = vrot.slane %v3513, 4
  %v3515 = vmax.f32 %v3513, %v3514
  %v3516 = vrot.slane %v3515, 2
  %v3517 = vmax.f32 %v3515, %v3516
  %v3518 = vrot.slane %v3517, 1
  %v3519 = vmax.f32 %v3517, %v3518
  %v3520 = vsel %vm3393, %v3347, -inf
  %v3521 = vrot.slane %v3520, 4
  %v3522 = vmax.f32 %v3520, %v3521
  %v3523 = vrot.slane %v3522, 2
  %v3524 = vmax.f32 %v3522, %v3523
  %v3525 = vrot.slane %v3524, 1
  %v3526 = vmax.f32 %v3524, %v3525
  %v3527 = vsel %vm3393, %v3348, -inf
  %v3528 = vrot.slane %v3527, 4
  %v3529 = vmax.f32 %v3527, %v3528
  %v3530 = vrot.slane %v3529, 2
  %v3531 = vmax.f32 %v3529, %v3530
  %v3532 = vrot.slane %v3531, 1
  %v3533 = vmax.f32 %v3531, %v3532
  %v3534 = vsel %vm3393, %v3349, -inf
  %v3535 = vrot.slane %v3534, 4
  %v3536 = vmax.f32 %v3534, %v3535
  %v3537 = vrot.slane %v3536, 2
  %v3538 = vmax.f32 %v3536, %v3537
  %v3539 = vrot.slane %v3538, 1
  %v3540 = vmax.f32 %v3538, %v3539
  %v3541 = vsel %vm3393, %v3350, -inf
  %v3542 = vrot.slane %v3541, 4
  %v3543 = vmax.f32 %v3541, %v3542
  %v3544 = vrot.slane %v3543, 2
  %v3545 = vmax.f32 %v3543, %v3544
  %v3546 = vrot.slane %v3545, 1
  %v3547 = vmax.f32 %v3545, %v3546
  %v3548 = vsel %vm3393, %v3351, -inf
  %v3549 = vrot.slane %v3548, 4
  %v3550 = vmax.f32 %v3548, %v3549
  %v3551 = vrot.slane %v3550, 2
  %v3552 = vmax.f32 %v3550, %v3551
  %v3553 = vrot.slane %v3552, 1
  %v3554 = vmax.f32 %v3552, %v3553
  %v3555 = vsel %vm3393, %v3352, -inf
  %v3556 = vrot.slane %v3555, 4
  %v3557 = vmax.f32 %v3555, %v3556
  %v3558 = vrot.slane %v3557, 2
  %v3559 = vmax.f32 %v3557, %v3558
  %v3560 = vrot.slane %v3559, 1
  %v3561 = vmax.f32 %v3559, %v3560
  %v3562 = vsel %vm3393, %v3353, -inf
  %v3563 = vrot.slane %v3562, 4
  %v3564 = vmax.f32 %v3562, %v3563
  %v3565 = vrot.slane %v3564, 2
  %v3566 = vmax.f32 %v3564, %v3565
  %v3567 = vrot.slane %v3566, 1
  %v3568 = vmax.f32 %v3566, %v3567
  %v3569 = vsel %vm3393, %v3354, -inf
  %v3570 = vrot.slane %v3569, 4
  %v3571 = vmax.f32 %v3569, %v3570
  %v3572 = vrot.slane %v3571, 2
  %v3573 = vmax.f32 %v3571, %v3572
  %v3574 = vrot.slane %v3573, 1
  %v3575 = vmax.f32 %v3573, %v3574
  %v3576 = vsel %vm3393, %v3355, -inf
  %v3577 = vrot.slane %v3576, 4
  %v3578 = vmax.f32 %v3576, %v3577
  %v3579 = vrot.slane %v3578, 2
  %v3580 = vmax.f32 %v3578, %v3579
  %v3581 = vrot.slane %v3580, 1
  %v3582 = vmax.f32 %v3580, %v3581
  %v3583 = vsel %vm3393, %v3356, -inf
  %v3584 = vrot.slane %v3583, 4
  %v3585 = vmax.f32 %v3583, %v3584
  %v3586 = vrot.slane %v3585, 2
  %v3587 = vmax.f32 %v3585, %v3586
  %v3588 = vrot.slane %v3587, 1
  %v3589 = vmax.f32 %v3587, %v3588
  %v3590 = vsel %vm3393, %v3357, -inf
  %v3591 = vrot.slane %v3590, 4
  %v3592 = vmax.f32 %v3590, %v3591
  %v3593 = vrot.slane %v3592, 2
  %v3594 = vmax.f32 %v3592, %v3593
  %v3595 = vrot.slane %v3594, 1
  %v3596 = vmax.f32 %v3594, %v3595
  %v3597 = vsel %vm3393, %v3358, -inf
  %v3598 = vrot.slane %v3597, 4
  %v3599 = vmax.f32 %v3597, %v3598
  %v3600 = vrot.slane %v3599, 2
  %v3601 = vmax.f32 %v3599, %v3600
  %v3602 = vrot.slane %v3601, 1
  %v3603 = vmax.f32 %v3601, %v3602
  %v3604 = vsel %vm3393, %v3359, -inf
  %v3605 = vrot.slane %v3604, 4
  %v3606 = vmax.f32 %v3604, %v3605
  %v3607 = vrot.slane %v3606, 2
  %v3608 = vmax.f32 %v3606, %v3607
  %v3609 = vrot.slane %v3608, 1
  %v3610 = vmax.f32 %v3608, %v3609
  %v3611 = vsel %vm3393, %v3360, -inf
  %v3612 = vrot.slane %v3611, 4
  %v3613 = vmax.f32 %v3611, %v3612
  %v3614 = vrot.slane %v3613, 2
  %v3615 = vmax.f32 %v3613, %v3614
  %v3616 = vrot.slane %v3615, 1
  %v3617 = vmax.f32 %v3615, %v3616
  %v3618 = vsel %vm3393, %v3361, -inf
  %v3619 = vrot.slane %v3618, 4
  %v3620 = vmax.f32 %v3618, %v3619
  %v3621 = vrot.slane %v3620, 2
  %v3622 = vmax.f32 %v3620, %v3621
  %v3623 = vrot.slane %v3622, 1
  %v3624 = vmax.f32 %v3622, %v3623
  %v3625 = vsel %vm3393, %v3362, -inf
  %v3626 = vrot.slane %v3625, 4
  %v3627 = vmax.f32 %v3625, %v3626
  %v3628 = vrot.slane %v3627, 2
  %v3629 = vmax.f32 %v3627, %v3628
  %v3630 = vrot.slane %v3629, 1
  %v3631 = vmax.f32 %v3629, %v3630
  %v3632 = vsel %vm3393, %v3363, -inf
  %v3633 = vrot.slane %v3632, 4
  %v3634 = vmax.f32 %v3632, %v3633
  %v3635 = vrot.slane %v3634, 2
  %v3636 = vmax.f32 %v3634, %v3635
  %v3637 = vrot.slane %v3636, 1
  %v3638 = vmax.f32 %v3636, %v3637
  %v3639 = vsel %vm3393, %v3364, -inf
  %v3640 = vrot.slane %v3639, 4
  %v3641 = vmax.f32 %v3639, %v3640
  %v3642 = vrot.slane %v3641, 2
  %v3643 = vmax.f32 %v3641, %v3642
  %v3644 = vrot.slane %v3643, 1
  %v3645 = vmax.f32 %v3643, %v3644
  %v3646 = vsel %vm3393, %v3365, -inf
  %v3647 = vrot.slane %v3646, 4
  %v3648 = vmax.f32 %v3646, %v3647
  %v3649 = vrot.slane %v3648, 2
  %v3650 = vmax.f32 %v3648, %v3649
  %v3651 = vrot.slane %v3650, 1
  %v3652 = vmax.f32 %v3650, %v3651
  %v3653 = vsel %vm3393, %v3366, -inf
  %v3654 = vrot.slane %v3653, 4
  %v3655 = vmax.f32 %v3653, %v3654
  %v3656 = vrot.slane %v3655, 2
  %v3657 = vmax.f32 %v3655, %v3656
  %v3658 = vrot.slane %v3657, 1
  %v3659 = vmax.f32 %v3657, %v3658
  %v3660 = vsel %vm3393, %v3367, -inf
  %v3661 = vrot.slane %v3660, 4
  %v3662 = vmax.f32 %v3660, %v3661
  %v3663 = vrot.slane %v3662, 2
  %v3664 = vmax.f32 %v3662, %v3663
  %v3665 = vrot.slane %v3664, 1
  %v3666 = vmax.f32 %v3664, %v3665
  %v3667 = vsel %vm3393, %v3368, -inf
  %v3668 = vrot.slane %v3667, 4
  %v3669 = vmax.f32 %v3667, %v3668
  %v3670 = vrot.slane %v3669, 2
  %v3671 = vmax.f32 %v3669, %v3670
  %v3672 = vrot.slane %v3671, 1
  %v3673 = vmax.f32 %v3671, %v3672
  %v3674 = vsel %vm3393, %v3369, -inf
  %v3675 = vrot.slane %v3674, 4
  %v3676 = vmax.f32 %v3674, %v3675
  %v3677 = vrot.slane %v3676, 2
  %v3678 = vmax.f32 %v3676, %v3677
  %v3679 = vrot.slane %v3678, 1
  %v3680 = vmax.f32 %v3678, %v3679
  %v3681 = vsel %vm3393, %v3370, -inf
  %v3682 = vrot.slane %v3681, 4
  %v3683 = vmax.f32 %v3681, %v3682
  %v3684 = vrot.slane %v3683, 2
  %v3685 = vmax.f32 %v3683, %v3684
  %v3686 = vrot.slane %v3685, 1
  %v3687 = vmax.f32 %v3685, %v3686
  %v3688 = vsel %vm3393, %v3371, -inf
  %v3689 = vrot.slane %v3688, 4
  %v3690 = vmax.f32 %v3688, %v3689
  %v3691 = vrot.slane %v3690, 2
  %v3692 = vmax.f32 %v3690, %v3691
  %v3693 = vrot.slane %v3692, 1
  %v3694 = vmax.f32 %v3692, %v3693
  %v3695 = vsel %vm3393, %v3372, -inf
  %v3696 = vrot.slane %v3695, 4
  %v3697 = vmax.f32 %v3695, %v3696
  %v3698 = vrot.slane %v3697, 2
  %v3699 = vmax.f32 %v3697, %v3698
  %v3700 = vrot.slane %v3699, 1
  %v3701 = vmax.f32 %v3699, %v3700
  %v3702 = vsel %vm3393, %v3373, -inf
  %v3703 = vrot.slane %v3702, 4
  %v3704 = vmax.f32 %v3702, %v3703
  %v3705 = vrot.slane %v3704, 2
  %v3706 = vmax.f32 %v3704, %v3705
  %v3707 = vrot.slane %v3706, 1
  %v3708 = vmax.f32 %v3706, %v3707
  %v3709 = vsel %vm3393, %v3374, -inf
  %v3710 = vrot.slane %v3709, 4
  %v3711 = vmax.f32 %v3709, %v3710
  %v3712 = vrot.slane %v3711, 2
  %v3713 = vmax.f32 %v3711, %v3712
  %v3714 = vrot.slane %v3713, 1
  %v3715 = vmax.f32 %v3713, %v3714
  %v3716 = vsel %vm3393, %v3375, -inf
  %v3717 = vrot.slane %v3716, 4
  %v3718 = vmax.f32 %v3716, %v3717
  %v3719 = vrot.slane %v3718, 2
  %v3720 = vmax.f32 %v3718, %v3719
  %v3721 = vrot.slane %v3720, 1
  %v3722 = vmax.f32 %v3720, %v3721
  %v3723 = vsel %vm3393, %v3376, -inf
  %v3724 = vrot.slane %v3723, 4
  %v3725 = vmax.f32 %v3723, %v3724
  %v3726 = vrot.slane %v3725, 2
  %v3727 = vmax.f32 %v3725, %v3726
  %v3728 = vrot.slane %v3727, 1
  %v3729 = vmax.f32 %v3727, %v3728
  %v3730 = vsel %vm3393, %v3377, -inf
  %v3731 = vrot.slane %v3730, 4
  %v3732 = vmax.f32 %v3730, %v3731
  %v3733 = vrot.slane %v3732, 2
  %v3734 = vmax.f32 %v3732, %v3733
  %v3735 = vrot.slane %v3734, 1
  %v3736 = vmax.f32 %v3734, %v3735
  %v3737 = vsel %vm3393, %v3378, -inf
  %v3738 = vrot.slane %v3737, 4
  %v3739 = vmax.f32 %v3737, %v3738
  %v3740 = vrot.slane %v3739, 2
  %v3741 = vmax.f32 %v3739, %v3740
  %v3742 = vrot.slane %v3741, 1
  %v3743 = vmax.f32 %v3741, %v3742
  %v3744 = vsel %vm3393, %v3379, -inf
  %v3745 = vrot.slane %v3744, 4
  %v3746 = vmax.f32 %v3744, %v3745
  %v3747 = vrot.slane %v3746, 2
  %v3748 = vmax.f32 %v3746, %v3747
  %v3749 = vrot.slane %v3748, 1
  %v3750 = vmax.f32 %v3748, %v3749
  %v3751 = vsel %vm3393, %v3380, -inf
  %v3752 = vrot.slane %v3751, 4
  %v3753 = vmax.f32 %v3751, %v3752
  %v3754 = vrot.slane %v3753, 2
  %v3755 = vmax.f32 %v3753, %v3754
  %v3756 = vrot.slane %v3755, 1
  %v3757 = vmax.f32 %v3755, %v3756
  %v3758 = vsel %vm3393, %v3381, -inf
  %v3759 = vrot.slane %v3758, 4
  %v3760 = vmax.f32 %v3758, %v3759
  %v3761 = vrot.slane %v3760, 2
  %v3762 = vmax.f32 %v3760, %v3761
  %v3763 = vrot.slane %v3762, 1
  %v3764 = vmax.f32 %v3762, %v3763
  %v3765 = vsel %vm3393, %v3382, -inf
  %v3766 = vrot.slane %v3765, 4
  %v3767 = vmax.f32 %v3765, %v3766
  %v3768 = vrot.slane %v3767, 2
  %v3769 = vmax.f32 %v3767, %v3768
  %v3770 = vrot.slane %v3769, 1
  %v3771 = vmax.f32 %v3769, %v3770
  %v3772 = vsel %vm3393, %v3383, -inf
  %v3773 = vrot.slane %v3772, 4
  %v3774 = vmax.f32 %v3772, %v3773
  %v3775 = vrot.slane %v3774, 2
  %v3776 = vmax.f32 %v3774, %v3775
  %v3777 = vrot.slane %v3776, 1
  %v3778 = vmax.f32 %v3776, %v3777
  %v3779 = vsel %vm3393, %v3384, -inf
  %v3780 = vrot.slane %v3779, 4
  %v3781 = vmax.f32 %v3779, %v3780
  %v3782 = vrot.slane %v3781, 2
  %v3783 = vmax.f32 %v3781, %v3782
  %v3784 = vrot.slane %v3783, 1
  %v3785 = vmax.f32 %v3783, %v3784
  %v3786 = vsel %vm3393, %v3385, -inf
  %v3787 = vrot.slane %v3786, 4
  %v3788 = vmax.f32 %v3786, %v3787
  %v3789 = vrot.slane %v3788, 2
  %v3790 = vmax.f32 %v3788, %v3789
  %v3791 = vrot.slane %v3790, 1
  %v3792 = vmax.f32 %v3790, %v3791
  %v3793 = vsel %vm3393, %v3386, -inf
  %v3794 = vrot.slane %v3793, 4
  %v3795 = vmax.f32 %v3793, %v3794
  %v3796 = vrot.slane %v3795, 2
  %v3797 = vmax.f32 %v3795, %v3796
  %v3798 = vrot.slane %v3797, 1
  %v3799 = vmax.f32 %v3797, %v3798
  %v3800 = vsel %vm3393, %v3387, -inf
  %v3801 = vrot.slane %v3800, 4
  %v3802 = vmax.f32 %v3800, %v3801
  %v3803 = vrot.slane %v3802, 2
  %v3804 = vmax.f32 %v3802, %v3803
  %v3805 = vrot.slane %v3804, 1
  %v3806 = vmax.f32 %v3804, %v3805
  %v3807 = vsel %vm3393, %v3388, -inf
  %v3808 = vrot.slane %v3807, 4
  %v3809 = vmax.f32 %v3807, %v3808
  %v3810 = vrot.slane %v3809, 2
  %v3811 = vmax.f32 %v3809, %v3810
  %v3812 = vrot.slane %v3811, 1
  %v3813 = vmax.f32 %v3811, %v3812
  %v3814 = vsel %vm3393, %v3389, -inf
  %v3815 = vrot.slane %v3814, 4
  %v3816 = vmax.f32 %v3814, %v3815
  %v3817 = vrot.slane %v3816, 2
  %v3818 = vmax.f32 %v3816, %v3817
  %v3819 = vrot.slane %v3818, 1
  %v3820 = vmax.f32 %v3818, %v3819
  %v3821 = vsel %vm3393, %v3390, -inf
  %v3822 = vrot.slane %v3821, 4
  %v3823 = vmax.f32 %v3821, %v3822
  %v3824 = vrot.slane %v3823, 2
  %v3825 = vmax.f32 %v3823, %v3824
  %v3826 = vrot.slane %v3825, 1
  %v3827 = vmax.f32 %v3825, %v3826
  %v3828 = vsel %vm3393, %v3391, -inf
  %v3829 = vrot.slane %v3828, 4
  %v3830 = vmax.f32 %v3828, %v3829
  %v3831 = vrot.slane %v3830, 2
  %v3832 = vmax.f32 %v3830, %v3831
  %v3833 = vrot.slane %v3832, 1
  %v3834 = vmax.f32 %v3832, %v3833
  %v3835 = vsel %vm3393, %v3392, -inf
  %v3836 = vrot.slane %v3835, 4
  %v3837 = vmax.f32 %v3835, %v3836
  %v3838 = vrot.slane %v3837, 2
  %v3839 = vmax.f32 %v3837, %v3838
  %v3840 = vrot.slane %v3839, 1
  %v3841 = vmax.f32 %v3839, %v3840
  %v3842 = vmax.f32 %v3400, -1e+30
  %v3843 = vmax.f32 %v3407, -1e+30
  %v3844 = vmax.f32 %v3414, -1e+30
  %v3845 = vmax.f32 %v3421, -1e+30
  %v3846 = vmax.f32 %v3428, -1e+30
  %v3847 = vmax.f32 %v3435, -1e+30
  %v3848 = vmax.f32 %v3442, -1e+30
  %v3849 = vmax.f32 %v3449, -1e+30
  %v3850 = vmax.f32 %v3456, -1e+30
  %v3851 = vmax.f32 %v3463, -1e+30
  %v3852 = vmax.f32 %v3470, -1e+30
  %v3853 = vmax.f32 %v3477, -1e+30
  %v3854 = vmax.f32 %v3484, -1e+30
  %v3855 = vmax.f32 %v3491, -1e+30
  %v3856 = vmax.f32 %v3498, -1e+30
  %v3857 = vmax.f32 %v3505, -1e+30
  %v3858 = vmax.f32 %v3512, -1e+30
  %v3859 = vmax.f32 %v3519, -1e+30
  %v3860 = vmax.f32 %v3526, -1e+30
  %v3861 = vmax.f32 %v3533, -1e+30
  %v3862 = vmax.f32 %v3540, -1e+30
  %v3863 = vmax.f32 %v3547, -1e+30
  %v3864 = vmax.f32 %v3554, -1e+30
  %v3865 = vmax.f32 %v3561, -1e+30
  %v3866 = vmax.f32 %v3568, -1e+30
  %v3867 = vmax.f32 %v3575, -1e+30
  %v3868 = vmax.f32 %v3582, -1e+30
  %v3869 = vmax.f32 %v3589, -1e+30
  %v3870 = vmax.f32 %v3596, -1e+30
  %v3871 = vmax.f32 %v3603, -1e+30
  %v3872 = vmax.f32 %v3610, -1e+30
  %v3873 = vmax.f32 %v3617, -1e+30
  %v3874 = vmax.f32 %v3624, -1e+30
  %v3875 = vmax.f32 %v3631, -1e+30
  %v3876 = vmax.f32 %v3638, -1e+30
  %v3877 = vmax.f32 %v3645, -1e+30
  %v3878 = vmax.f32 %v3652, -1e+30
  %v3879 = vmax.f32 %v3659, -1e+30
  %v3880 = vmax.f32 %v3666, -1e+30
  %v3881 = vmax.f32 %v3673, -1e+30
  %v3882 = vmax.f32 %v3680, -1e+30
  %v3883 = vmax.f32 %v3687, -1e+30
  %v3884 = vmax.f32 %v3694, -1e+30
  %v3885 = vmax.f32 %v3701, -1e+30
  %v3886 = vmax.f32 %v3708, -1e+30
  %v3887 = vmax.f32 %v3715, -1e+30
  %v3888 = vmax.f32 %v3722, -1e+30
  %v3889 = vmax.f32 %v3729, -1e+30
  %v3890 = vmax.f32 %v3736, -1e+30
  %v3891 = vmax.f32 %v3743, -1e+30
  %v3892 = vmax.f32 %v3750, -1e+30
  %v3893 = vmax.f32 %v3757, -1e+30
  %v3894 = vmax.f32 %v3764, -1e+30
  %v3895 = vmax.f32 %v3771, -1e+30
  %v3896 = vmax.f32 %v3778, -1e+30
  %v3897 = vmax.f32 %v3785, -1e+30
  %v3898 = vmax.f32 %v3792, -1e+30
  %v3899 = vmax.f32 %v3799, -1e+30
  %v3900 = vmax.f32 %v3806, -1e+30
  %v3901 = vmax.f32 %v3813, -1e+30
  %v3902 = vmax.f32 %v3820, -1e+30
  %v3903 = vmax.f32 %v3827, -1e+30
  %v3904 = vmax.f32 %v3834, -1e+30
  %v3905 = vmax.f32 %v3841, -1e+30
  %vm3970 = vcmask 1041409
  %v3971 = vsel %vm3970, %v3850, %v3842
  %vm3972 = vcmask 1042434
  %v3973 = vsel %vm3972, %v3858, %v3971
  %vm3974 = vcmask 1043459
  %v3975 = vsel %vm3974, %v3866, %v3973
  %vm3976 = vcmask 1044484
  %v3977 = vsel %vm3976, %v3874, %v3975
  %vm3978 = vcmask 1045509
  %v3979 = vsel %vm3978, %v3882, %v3977
  %vm3980 = vcmask 1046534
  %v3981 = vsel %vm3980, %v3890, %v3979
  %vm3982 = vcmask 1047559
  %v3983 = vsel %vm3982, %v3898, %v3981
  %v3984 = vsel %vm3970, %v3851, %v3843
  %v3985 = vsel %vm3972, %v3859, %v3984
  %v3986 = vsel %vm3974, %v3867, %v3985
  %v3987 = vsel %vm3976, %v3875, %v3986
  %v3988 = vsel %vm3978, %v3883, %v3987
  %v3989 = vsel %vm3980, %v3891, %v3988
  %v3990 = vsel %vm3982, %v3899, %v3989
  %v3991 = vsel %vm3970, %v3852, %v3844
  %v3992 = vsel %vm3972, %v3860, %v3991
  %v3993 = vsel %vm3974, %v3868, %v3992
  %v3994 = vsel %vm3976, %v3876, %v3993
  %v3995 = vsel %vm3978, %v3884, %v3994
  %v3996 = vsel %vm3980, %v3892, %v3995
  %v3997 = vsel %vm3982, %v3900, %v3996
  %v3998 = vsel %vm3970, %v3853, %v3845
  %v3999 = vsel %vm3972, %v3861, %v3998
  %v4000 = vsel %vm3974, %v3869, %v3999
  %v4001 = vsel %vm3976, %v3877, %v4000
  %v4002 = vsel %vm3978, %v3885, %v4001
  %v4003 = vsel %vm3980, %v3893, %v4002
  %v4004 = vsel %vm3982, %v3901, %v4003
  %v4005 = vsel %vm3970, %v3854, %v3846
  %v4006 = vsel %vm3972, %v3862, %v4005
  %v4007 = vsel %vm3974, %v3870, %v4006
  %v4008 = vsel %vm3976, %v3878, %v4007
  %v4009 = vsel %vm3978, %v3886, %v4008
  %v4010 = vsel %vm3980, %v3894, %v4009
  %v4011 = vsel %vm3982, %v3902, %v4010
  %v4012 = vsel %vm3970, %v3855, %v3847
  %v4013 = vsel %vm3972, %v3863, %v4012
  %v4014 = vsel %vm3974, %v3871, %v4013
  %v4015 = vsel %vm3976, %v3879, %v4014
  %v4016 = vsel %vm3978, %v3887, %v4015
  %v4017 = vsel %vm3980, %v3895, %v4016
  %v4018 = vsel %vm3982, %v3903, %v4017
  %v4019 = vsel %vm3970, %v3856, %v3848
  %v4020 = vsel %vm3972, %v3864, %v4019
  %v4021 = vsel %vm3974, %v3872, %v4020
  %v4022 = vsel %vm3976, %v3880, %v4021
  %v4023 = vsel %vm3978, %v3888, %v4022
  %v4024 = vsel %vm3980, %v3896, %v4023
  %v4025 = vsel %vm3982, %v3904, %v4024
  %v4026 = vsel %vm3970, %v3857, %v3849
  %v4027 = vsel %vm3972, %v3865, %v4026
  %v4028 = vsel %vm3974, %v3873, %v4027
  %v4029 = vsel %vm3976, %v3881, %v4028
  %v4030 = vsel %vm3978, %v3889, %v4029
  %v4031 = vsel %vm3980, %v3897, %v4030
  %v4032 = vsel %vm3982, %v3905, %v4031
  %4041 = vst [vmem:[%s10] sm:$0xff] %v3983
  %4042 = vst [vmem:[%s10 + $0x8] sm:$0xff] %v3990
  %4043 = vst [vmem:[%s10 + $0x10] sm:$0xff] %v3997
  %4044 = vst [vmem:[%s10 + $0x18] sm:$0xff] %v4004
  %4045 = vst [vmem:[%s10 + $0x20] sm:$0xff] %v4011
  %4046 = vst [vmem:[%s10 + $0x28] sm:$0xff] %v4018
  %4047 = vst [vmem:[%s10 + $0x30] sm:$0xff] %v4025
  %4048 = vst [vmem:[%s10 + $0x38] sm:$0xff] %v4032
  // Predicated region
  $region42: #{pointnet2_forward.6} parent=0 // pred_check
    _
  $region43: #{pointnet2_forward.6} parent=0 // pred_check_branch
    %4050 = sbr.rel (0) target = $region45
  $region44: #{pointnet2_forward.6} parent=0 // pred_region
    _
  $region45: #{pointnet2_forward.6} parent=0 // pred_fallthru
    _
  // Predicated region
  $region46: #{pointnet2_forward.6} parent=0 // pred_check
    _
  $region47: #{pointnet2_forward.6} parent=0 // pred_check_branch
    %4052 = sbr.rel (0) target = $region49
  $region48: #{pointnet2_forward.6} parent=0 // pred_region
    _
  $region49: #{pointnet2_forward.6} parent=0 // pred_fallthru
    _

// kernel: pointnet2_forward.7
$region0: #{pointnet2_forward.7}
  #allocation0 [shape = 'u32[]', space=smem, size = 0x4, offset = 0x4, fixed_abs, tag = 'smem constant byte address 0x4 - core index']
  #allocation1 [shape = 'u32[144,128]{1,0:T(1,128)}', space=vmem, size = 0x12000, scoped, tag = 'internal scratch']
  %s0 = inlined_call_operand.vmem [shape: bf16[2,1024], index: 0, kind: input, shape index: {}]
  %s1 = inlined_call_operand.vmem [shape: bf16[1024,512], index: 1, kind: input, shape index: {}]
  %s2 = inlined_call_operand.vmem [shape: f32[1,512], index: 2, kind: input, shape index: {}]
  %s3 = inlined_call_operand.vmem [shape: bf16[512,256], index: 3, kind: input, shape index: {}]
  %s4 = inlined_call_operand.vmem [shape: f32[1,256], index: 4, kind: input, shape index: {}]
  %s5 = inlined_call_operand.vmem [shape: bf16[256,10], index: 5, kind: input, shape index: {}]
  %s6 = inlined_call_operand.vmem [shape: f32[1,10], index: 6, kind: input, shape index: {}]
  %s7 = inlined_call_operand.hbm [shape: f32[2,10], index: 7, kind: output, shape index: {}]
  %s8 = sld [smem:[#allocation0]]
  $region38: #{pointnet2_forward.7} parent=0
    _
  %s10 = ssub.s32 1, %s8
  %s11 = scalar_select 0, %s10, %s8
  $region1: #{pointnet2_forward.7} parent=0
    #allocation2 [shape = 'u8[1024]{0}', space=vmem, size = 0x400, scoped, tag = 'output window, operand 0, single buffered']
    #allocation3 [shape = 's32[1]{0}', space=sflag, size = 0x4, scoped, tag = 'scoped memory for pointnet2_forward.7']
    %12 = vsyncpa [#allocation3], 0
    // Predicated region
    $region2: #{pointnet2_forward.7} parent=1 // pred_check
      _
    $region3: #{pointnet2_forward.7} parent=1 // pred_check_branch
      %14 = sbr.rel (0) target = $region5
    $region4: #{pointnet2_forward.7} parent=1 // pred_region
      _
    $region5: #{pointnet2_forward.7} parent=1 // pred_fallthru
      _
    // Predicated region
    $region6: #{pointnet2_forward.7} parent=1 // pred_check
      _
    $region7: #{pointnet2_forward.7} parent=1 // pred_check_branch
      %16 = sbr.rel (0) target = $region9
    $region8: #{pointnet2_forward.7} parent=1 // pred_region
      _
    $region9: #{pointnet2_forward.7} parent=1 // pred_fallthru
      _
    // Predicated region
    $region10: #{pointnet2_forward.7} parent=1 // pred_check
      _
    $region11: #{pointnet2_forward.7} parent=1 // pred_check_branch
      %18 = sbr.rel (0) target = $region13
    $region12: #{pointnet2_forward.7} parent=1 // pred_region
      _
    $region13: #{pointnet2_forward.7} parent=1 // pred_fallthru
      _
    // Predicated region
    $region14: #{pointnet2_forward.7} parent=1 // pred_check
      _
    $region15: #{pointnet2_forward.7} parent=1 // pred_check_branch
      %20 = sbr.rel (0) target = $region17
    $region16: #{pointnet2_forward.7} parent=1 // pred_region
      _
    $region17: #{pointnet2_forward.7} parent=1 // pred_fallthru
      _
    // Predicated region
    $region18: #{pointnet2_forward.7} parent=1 // pred_check
      _
    $region19: #{pointnet2_forward.7} parent=1 // pred_check_branch
      %22 = sbr.rel (0) target = $region21
    $region20: #{pointnet2_forward.7} parent=1 // pred_region
      _
    $region21: #{pointnet2_forward.7} parent=1 // pred_fallthru
      _
    // Predicated region
    $region22: #{pointnet2_forward.7} parent=1 // pred_check
      _
    $region23: #{pointnet2_forward.7} parent=1 // pred_check_branch
      %24 = sbr.rel (0) target = $region25
    $region24: #{pointnet2_forward.7} parent=1 // pred_region
      _
    $region25: #{pointnet2_forward.7} parent=1 // pred_fallthru
      _
    // Predicated region
    $region26: #{pointnet2_forward.7} parent=1 // pred_check
      _
    $region27: #{pointnet2_forward.7} parent=1 // pred_check_branch
      %26 = sbr.rel (0) target = $region29
    $region28: #{pointnet2_forward.7} parent=1 // pred_region
      _
    $region29: #{pointnet2_forward.7} parent=1 // pred_fallthru
      _
    %v28 = vld [vmem:[%s0] sm:$0xff]
    %v29 = vld [vmem:[%s1] sm:$0xff]
    %v30 = vld [vmem:[%s1 + $0x8] sm:$0xff]
    %v31 = vld [vmem:[%s1 + $0x10] sm:$0xff]
    %v32 = vld [vmem:[%s1 + $0x18] sm:$0xff]
    %v33 = vld [vmem:[%s1 + $0x20] sm:$0xff]
    %v34 = vld [vmem:[%s1 + $0x28] sm:$0xff]
    %v35 = vld [vmem:[%s1 + $0x30] sm:$0xff]
    %v36 = vld [vmem:[%s1 + $0x38] sm:$0xff]
    %v37 = vld [vmem:[%s1 + $0x40] sm:$0xff]
    %v38 = vld [vmem:[%s1 + $0x48] sm:$0xff]
    %v39 = vld [vmem:[%s1 + $0x50] sm:$0xff]
    %v40 = vld [vmem:[%s1 + $0x58] sm:$0xff]
    %v41 = vld [vmem:[%s1 + $0x60] sm:$0xff]
    %v42 = vld [vmem:[%s1 + $0x68] sm:$0xff]
    %v43 = vld [vmem:[%s1 + $0x70] sm:$0xff]
    %v44 = vld [vmem:[%s1 + $0x78] sm:$0xff]
    %v45 = vld [vmem:[%s1 + $0x80] sm:$0xff]
    %v46 = vld [vmem:[%s1 + $0x88] sm:$0xff]
    %v47 = vld [vmem:[%s1 + $0x90] sm:$0xff]
    %v48 = vld [vmem:[%s1 + $0x98] sm:$0xff]
    %v49 = vld [vmem:[%s1 + $0xa0] sm:$0xff]
    %v50 = vld [vmem:[%s1 + $0xa8] sm:$0xff]
    %v51 = vld [vmem:[%s1 + $0xb0] sm:$0xff]
    %v52 = vld [vmem:[%s1 + $0xb8] sm:$0xff]
    %v53 = vld [vmem:[%s1 + $0xc0] sm:$0xff]
    %v54 = vld [vmem:[%s1 + $0xc8] sm:$0xff]
    %v55 = vld [vmem:[%s1 + $0xd0] sm:$0xff]
    %v56 = vld [vmem:[%s1 + $0xd8] sm:$0xff]
    %v57 = vld [vmem:[%s1 + $0xe0] sm:$0xff]
    %v58 = vld [vmem:[%s1 + $0xe8] sm:$0xff]
    %v59 = vld [vmem:[%s1 + $0xf0] sm:$0xff]
    %v60 = vld [vmem:[%s1 + $0xf8] sm:$0xff]
    %v61 = vld [vmem:[%s1 + $0x100] sm:$0xff]
    %v62 = vld [vmem:[%s1 + $0x108] sm:$0xff]
    %v63 = vld [vmem:[%s1 + $0x110] sm:$0xff]
    %v64 = vld [vmem:[%s1 + $0x118] sm:$0xff]
    %v65 = vld [vmem:[%s1 + $0x120] sm:$0xff]
    %v66 = vld [vmem:[%s1 + $0x128] sm:$0xff]
    %v67 = vld [vmem:[%s1 + $0x130] sm:$0xff]
    %v68 = vld [vmem:[%s1 + $0x138] sm:$0xff]
    %v69 = vld [vmem:[%s1 + $0x140] sm:$0xff]
    %v70 = vld [vmem:[%s1 + $0x148] sm:$0xff]
    %v71 = vld [vmem:[%s1 + $0x150] sm:$0xff]
    %v72 = vld [vmem:[%s1 + $0x158] sm:$0xff]
    %v73 = vld [vmem:[%s1 + $0x160] sm:$0xff]
    %v74 = vld [vmem:[%s1 + $0x168] sm:$0xff]
    %v75 = vld [vmem:[%s1 + $0x170] sm:$0xff]
    %v76 = vld [vmem:[%s1 + $0x178] sm:$0xff]
    %v77 = vld [vmem:[%s1 + $0x180] sm:$0xff]
    %v78 = vld [vmem:[%s1 + $0x188] sm:$0xff]
    %v79 = vld [vmem:[%s1 + $0x190] sm:$0xff]
    %v80 = vld [vmem:[%s1 + $0x198] sm:$0xff]
    %v81 = vld [vmem:[%s1 + $0x1a0] sm:$0xff]
    %v82 = vld [vmem:[%s1 + $0x1a8] sm:$0xff]
    %v83 = vld [vmem:[%s1 + $0x1b0] sm:$0xff]
    %v84 = vld [vmem:[%s1 + $0x1b8] sm:$0xff]
    %v85 = vld [vmem:[%s1 + $0x1c0] sm:$0xff]
    %v86 = vld [vmem:[%s1 + $0x1c8] sm:$0xff]
    %v87 = vld [vmem:[%s1 + $0x1d0] sm:$0xff]
    %v88 = vld [vmem:[%s1 + $0x1d8] sm:$0xff]
    %v89 = vld [vmem:[%s1 + $0x1e0] sm:$0xff]
    %v90 = vld [vmem:[%s1 + $0x1e8] sm:$0xff]
    %v91 = vld [vmem:[%s1 + $0x1f0] sm:$0xff]
    %v92 = vld [vmem:[%s1 + $0x1f8] sm:$0xff]
    %v93 = vld [vmem:[%s1 + $0x200] sm:$0xff]
    %v94 = vld [vmem:[%s1 + $0x208] sm:$0xff]
    %v95 = vld [vmem:[%s1 + $0x210] sm:$0xff]
    %v96 = vld [vmem:[%s1 + $0x218] sm:$0xff]
    %v97 = vld [vmem:[%s1 + $0x220] sm:$0xff]
    %v98 = vld [vmem:[%s1 + $0x228] sm:$0xff]
    %v99 = vld [vmem:[%s1 + $0x230] sm:$0xff]
    %v100 = vld [vmem:[%s1 + $0x238] sm:$0xff]
    %v101 = vld [vmem:[%s1 + $0x240] sm:$0xff]
    %v102 = vld [vmem:[%s1 + $0x248] sm:$0xff]
    %v103 = vld [vmem:[%s1 + $0x250] sm:$0xff]
    %v104 = vld [vmem:[%s1 + $0x258] sm:$0xff]
    %v105 = vld [vmem:[%s1 + $0x260] sm:$0xff]
    %v106 = vld [vmem:[%s1 + $0x268] sm:$0xff]
    %v107 = vld [vmem:[%s1 + $0x270] sm:$0xff]
    %v108 = vld [vmem:[%s1 + $0x278] sm:$0xff]
    %v109 = vld [vmem:[%s1 + $0x280] sm:$0xff]
    %v110 = vld [vmem:[%s1 + $0x288] sm:$0xff]
    %v111 = vld [vmem:[%s1 + $0x290] sm:$0xff]
    %v112 = vld [vmem:[%s1 + $0x298] sm:$0xff]
    %v113 = vld [vmem:[%s1 + $0x2a0] sm:$0xff]
    %v114 = vld [vmem:[%s1 + $0x2a8] sm:$0xff]
    %v115 = vld [vmem:[%s1 + $0x2b0] sm:$0xff]
    %v116 = vld [vmem:[%s1 + $0x2b8] sm:$0xff]
    %v117 = vld [vmem:[%s1 + $0x2c0] sm:$0xff]
    %v118 = vld [vmem:[%s1 + $0x2c8] sm:$0xff]
    %v119 = vld [vmem:[%s1 + $0x2d0] sm:$0xff]
    %v120 = vld [vmem:[%s1 + $0x2d8] sm:$0xff]
    %v121 = vld [vmem:[%s1 + $0x2e0] sm:$0xff]
    %v122 = vld [vmem:[%s1 + $0x2e8] sm:$0xff]
    %v123 = vld [vmem:[%s1 + $0x2f0] sm:$0xff]
    %v124 = vld [vmem:[%s1 + $0x2f8] sm:$0xff]
    %v125 = vld [vmem:[%s1 + $0x300] sm:$0xff]
    %v126 = vld [vmem:[%s1 + $0x308] sm:$0xff]
    %v127 = vld [vmem:[%s1 + $0x310] sm:$0xff]
    %v128 = vld [vmem:[%s1 + $0x318] sm:$0xff]
    %v129 = vld [vmem:[%s1 + $0x320] sm:$0xff]
    %v130 = vld [vmem:[%s1 + $0x328] sm:$0xff]
    %v131 = vld [vmem:[%s1 + $0x330] sm:$0xff]
    %v132 = vld [vmem:[%s1 + $0x338] sm:$0xff]
    %v133 = vld [vmem:[%s1 + $0x340] sm:$0xff]
    %v134 = vld [vmem:[%s1 + $0x348] sm:$0xff]
    %v135 = vld [vmem:[%s1 + $0x350] sm:$0xff]
    %v136 = vld [vmem:[%s1 + $0x358] sm:$0xff]
    %v137 = vld [vmem:[%s1 + $0x360] sm:$0xff]
    %v138 = vld [vmem:[%s1 + $0x368] sm:$0xff]
    %v139 = vld [vmem:[%s1 + $0x370] sm:$0xff]
    %v140 = vld [vmem:[%s1 + $0x378] sm:$0xff]
    %v141 = vld [vmem:[%s1 + $0x380] sm:$0xff]
    %v142 = vld [vmem:[%s1 + $0x388] sm:$0xff]
    %v143 = vld [vmem:[%s1 + $0x390] sm:$0xff]
    %v144 = vld [vmem:[%s1 + $0x398] sm:$0xff]
    %v145 = vld [vmem:[%s1 + $0x3a0] sm:$0xff]
    %v146 = vld [vmem:[%s1 + $0x3a8] sm:$0xff]
    %v147 = vld [vmem:[%s1 + $0x3b0] sm:$0xff]
    %v148 = vld [vmem:[%s1 + $0x3b8] sm:$0xff]
    %v149 = vld [vmem:[%s1 + $0x3c0] sm:$0xff]
    %v150 = vld [vmem:[%s1 + $0x3c8] sm:$0xff]
    %v151 = vld [vmem:[%s1 + $0x3d0] sm:$0xff]
    %v152 = vld [vmem:[%s1 + $0x3d8] sm:$0xff]
    %v153 = vld [vmem:[%s1 + $0x3e0] sm:$0xff]
    %v154 = vld [vmem:[%s1 + $0x3e8] sm:$0xff]
    %v155 = vld [vmem:[%s1 + $0x3f0] sm:$0xff]
    %v156 = vld [vmem:[%s1 + $0x3f8] sm:$0xff]
    %v157 = vld [vmem:[%s1 + $0x400] sm:$0xff]
    %v158 = vld [vmem:[%s1 + $0x408] sm:$0xff]
    %v159 = vld [vmem:[%s1 + $0x410] sm:$0xff]
    %v160 = vld [vmem:[%s1 + $0x418] sm:$0xff]
    %v161 = vld [vmem:[%s1 + $0x420] sm:$0xff]
    %v162 = vld [vmem:[%s1 + $0x428] sm:$0xff]
    %v163 = vld [vmem:[%s1 + $0x430] sm:$0xff]
    %v164 = vld [vmem:[%s1 + $0x438] sm:$0xff]
    %v165 = vld [vmem:[%s1 + $0x440] sm:$0xff]
    %v166 = vld [vmem:[%s1 + $0x448] sm:$0xff]
    %v167 = vld [vmem:[%s1 + $0x450] sm:$0xff]
    %v168 = vld [vmem:[%s1 + $0x458] sm:$0xff]
    %v169 = vld [vmem:[%s1 + $0x460] sm:$0xff]
    %v170 = vld [vmem:[%s1 + $0x468] sm:$0xff]
    %v171 = vld [vmem:[%s1 + $0x470] sm:$0xff]
    %v172 = vld [vmem:[%s1 + $0x478] sm:$0xff]
    %v173 = vld [vmem:[%s1 + $0x480] sm:$0xff]
    %v174 = vld [vmem:[%s1 + $0x488] sm:$0xff]
    %v175 = vld [vmem:[%s1 + $0x490] sm:$0xff]
    %v176 = vld [vmem:[%s1 + $0x498] sm:$0xff]
    %v177 = vld [vmem:[%s1 + $0x4a0] sm:$0xff]
    %v178 = vld [vmem:[%s1 + $0x4a8] sm:$0xff]
    %v179 = vld [vmem:[%s1 + $0x4b0] sm:$0xff]
    %v180 = vld [vmem:[%s1 + $0x4b8] sm:$0xff]
    %v181 = vld [vmem:[%s1 + $0x4c0] sm:$0xff]
    %v182 = vld [vmem:[%s1 + $0x4c8] sm:$0xff]
    %v183 = vld [vmem:[%s1 + $0x4d0] sm:$0xff]
    %v184 = vld [vmem:[%s1 + $0x4d8] sm:$0xff]
    %v185 = vld [vmem:[%s1 + $0x4e0] sm:$0xff]
    %v186 = vld [vmem:[%s1 + $0x4e8] sm:$0xff]
    %v187 = vld [vmem:[%s1 + $0x4f0] sm:$0xff]
    %v188 = vld [vmem:[%s1 + $0x4f8] sm:$0xff]
    %v189 = vld [vmem:[%s1 + $0x500] sm:$0xff]
    %v190 = vld [vmem:[%s1 + $0x508] sm:$0xff]
    %v191 = vld [vmem:[%s1 + $0x510] sm:$0xff]
    %v192 = vld [vmem:[%s1 + $0x518] sm:$0xff]
    %v193 = vld [vmem:[%s1 + $0x520] sm:$0xff]
    %v194 = vld [vmem:[%s1 + $0x528] sm:$0xff]
    %v195 = vld [vmem:[%s1 + $0x530] sm:$0xff]
    %v196 = vld [vmem:[%s1 + $0x538] sm:$0xff]
    %v197 = vld [vmem:[%s1 + $0x540] sm:$0xff]
    %v198 = vld [vmem:[%s1 + $0x548] sm:$0xff]
    %v199 = vld [vmem:[%s1 + $0x550] sm:$0xff]
    %v200 = vld [vmem:[%s1 + $0x558] sm:$0xff]
    %v201 = vld [vmem:[%s1 + $0x560] sm:$0xff]
    %v202 = vld [vmem:[%s1 + $0x568] sm:$0xff]
    %v203 = vld [vmem:[%s1 + $0x570] sm:$0xff]
    %v204 = vld [vmem:[%s1 + $0x578] sm:$0xff]
    %v205 = vld [vmem:[%s1 + $0x580] sm:$0xff]
    %v206 = vld [vmem:[%s1 + $0x588] sm:$0xff]
    %v207 = vld [vmem:[%s1 + $0x590] sm:$0xff]
    %v208 = vld [vmem:[%s1 + $0x598] sm:$0xff]
    %v209 = vld [vmem:[%s1 + $0x5a0] sm:$0xff]
    %v210 = vld [vmem:[%s1 + $0x5a8] sm:$0xff]
    %v211 = vld [vmem:[%s1 + $0x5b0] sm:$0xff]
    %v212 = vld [vmem:[%s1 + $0x5b8] sm:$0xff]
    %v213 = vld [vmem:[%s1 + $0x5c0] sm:$0xff]
    %v214 = vld [vmem:[%s1 + $0x5c8] sm:$0xff]
    %v215 = vld [vmem:[%s1 + $0x5d0] sm:$0xff]
    %v216 = vld [vmem:[%s1 + $0x5d8] sm:$0xff]
    %v217 = vld [vmem:[%s1 + $0x5e0] sm:$0xff]
    %v218 = vld [vmem:[%s1 + $0x5e8] sm:$0xff]
    %v219 = vld [vmem:[%s1 + $0x5f0] sm:$0xff]
    %v220 = vld [vmem:[%s1 + $0x5f8] sm:$0xff]
    %v221 = vld [vmem:[%s1 + $0x600] sm:$0xff]
    %v222 = vld [vmem:[%s1 + $0x608] sm:$0xff]
    %v223 = vld [vmem:[%s1 + $0x610] sm:$0xff]
    %v224 = vld [vmem:[%s1 + $0x618] sm:$0xff]
    %v225 = vld [vmem:[%s1 + $0x620] sm:$0xff]
    %v226 = vld [vmem:[%s1 + $0x628] sm:$0xff]
    %v227 = vld [vmem:[%s1 + $0x630] sm:$0xff]
    %v228 = vld [vmem:[%s1 + $0x638] sm:$0xff]
    %v229 = vld [vmem:[%s1 + $0x640] sm:$0xff]
    %v230 = vld [vmem:[%s1 + $0x648] sm:$0xff]
    %v231 = vld [vmem:[%s1 + $0x650] sm:$0xff]
    %v232 = vld [vmem:[%s1 + $0x658] sm:$0xff]
    %v233 = vld [vmem:[%s1 + $0x660] sm:$0xff]
    %v234 = vld [vmem:[%s1 + $0x668] sm:$0xff]
    %v235 = vld [vmem:[%s1 + $0x670] sm:$0xff]
    %v236 = vld [vmem:[%s1 + $0x678] sm:$0xff]
    %v237 = vld [vmem:[%s1 + $0x680] sm:$0xff]
    %v238 = vld [vmem:[%s1 + $0x688] sm:$0xff]
    %v239 = vld [vmem:[%s1 + $0x690] sm:$0xff]
    %v240 = vld [vmem:[%s1 + $0x698] sm:$0xff]
    %v241 = vld [vmem:[%s1 + $0x6a0] sm:$0xff]
    %v242 = vld [vmem:[%s1 + $0x6a8] sm:$0xff]
    %v243 = vld [vmem:[%s1 + $0x6b0] sm:$0xff]
    %v244 = vld [vmem:[%s1 + $0x6b8] sm:$0xff]
    %v245 = vld [vmem:[%s1 + $0x6c0] sm:$0xff]
    %v246 = vld [vmem:[%s1 + $0x6c8] sm:$0xff]
    %v247 = vld [vmem:[%s1 + $0x6d0] sm:$0xff]
    %v248 = vld [vmem:[%s1 + $0x6d8] sm:$0xff]
    %v249 = vld [vmem:[%s1 + $0x6e0] sm:$0xff]
    %v250 = vld [vmem:[%s1 + $0x6e8] sm:$0xff]
    %v251 = vld [vmem:[%s1 + $0x6f0] sm:$0xff]
    %v252 = vld [vmem:[%s1 + $0x6f8] sm:$0xff]
    %v253 = vld [vmem:[%s1 + $0x700] sm:$0xff]
    %v254 = vld [vmem:[%s1 + $0x708] sm:$0xff]
    %v255 = vld [vmem:[%s1 + $0x710] sm:$0xff]
    %v256 = vld [vmem:[%s1 + $0x718] sm:$0xff]
    %v257 = vld [vmem:[%s1 + $0x720] sm:$0xff]
    %v258 = vld [vmem:[%s1 + $0x728] sm:$0xff]
    %v259 = vld [vmem:[%s1 + $0x730] sm:$0xff]
    %v260 = vld [vmem:[%s1 + $0x738] sm:$0xff]
    %v261 = vld [vmem:[%s1 + $0x740] sm:$0xff]
    %v262 = vld [vmem:[%s1 + $0x748] sm:$0xff]
    %v263 = vld [vmem:[%s1 + $0x750] sm:$0xff]
    %v264 = vld [vmem:[%s1 + $0x758] sm:$0xff]
    %v265 = vld [vmem:[%s1 + $0x760] sm:$0xff]
    %v266 = vld [vmem:[%s1 + $0x768] sm:$0xff]
    %v267 = vld [vmem:[%s1 + $0x770] sm:$0xff]
    %v268 = vld [vmem:[%s1 + $0x778] sm:$0xff]
    %v269 = vld [vmem:[%s1 + $0x780] sm:$0xff]
    %v270 = vld [vmem:[%s1 + $0x788] sm:$0xff]
    %v271 = vld [vmem:[%s1 + $0x790] sm:$0xff]
    %v272 = vld [vmem:[%s1 + $0x798] sm:$0xff]
    %v273 = vld [vmem:[%s1 + $0x7a0] sm:$0xff]
    %v274 = vld [vmem:[%s1 + $0x7a8] sm:$0xff]
    %v275 = vld [vmem:[%s1 + $0x7b0] sm:$0xff]
    %v276 = vld [vmem:[%s1 + $0x7b8] sm:$0xff]
    %v277 = vld [vmem:[%s1 + $0x7c0] sm:$0xff]
    %v278 = vld [vmem:[%s1 + $0x7c8] sm:$0xff]
    %v279 = vld [vmem:[%s1 + $0x7d0] sm:$0xff]
    %v280 = vld [vmem:[%s1 + $0x7d8] sm:$0xff]
    %v281 = vld [vmem:[%s1 + $0x7e0] sm:$0xff]
    %v282 = vld [vmem:[%s1 + $0x7e8] sm:$0xff]
    %v283 = vld [vmem:[%s1 + $0x7f0] sm:$0xff]
    %v284 = vld [vmem:[%s1 + $0x7f8] sm:$0xff]
    %v285 = vld [vmem:[%s2] sm:$0xf]
    %v287 = vlaneseq
    %v288 = vshrl.u32 %v287, 7
    %v289 = vsub.s32 0, %v288
    %v290 = vrot.slane %v285, %v289
    %v291 = vlaneseq
    %v292 = vshrl.u32 %v291, 7
    %v293 = vsub.s32 1, %v292
    %v294 = vrot.slane %v285, %v293
    %v295 = vlaneseq
    %v296 = vshrl.u32 %v295, 7
    %v297 = vsub.s32 2, %v296
    %v298 = vrot.slane %v285, %v297
    %v299 = vlaneseq
    %v300 = vshrl.u32 %v299, 7
    %v301 = vsub.s32 3, %v300
    %v302 = vrot.slane %v285, %v301
    %v308 = vcombine.high %v28, %v28
    %v310 = vunpack.c.l.s4 1966171168
    %v311 = vunpack.c.0.s8 %v310
    %v312 = vlaneseq
    %v313 = vshrl.u32 %v312, 7
    %v314 = vsub.s32 %v311, %v313
    %v315 = vrot.slane %v28, %v314
    %v317 = vunpack.c.l.s4 1966171168
    %v318 = vunpack.c.0.s8 %v317
    %v319 = vlaneseq
    %v320 = vshrl.u32 %v319, 7
    %v321 = vsub.s32 %v318, %v320
    %v322 = vrot.slane %v308, %v321
    %v323 = vcombine.high %v315, %v315
    %v324 = vcombine.high %v322, %v322
    %v326 = vunpack.c.l.s4 1966171168
    %v327 = vunpack.c.0.s8 %v326
    %v328 = vlaneseq
    %v329 = vshrl.u32 %v328, 7
    %v330 = vsub.s32 %v327, %v329
    %v331 = vrot.slane %v315, %v330
    %v333 = vunpack.c.l.s4 1966171168
    %v334 = vunpack.c.0.s8 %v333
    %v335 = vlaneseq
    %v336 = vshrl.u32 %v335, 7
    %v337 = vsub.s32 %v334, %v336
    %v338 = vrot.slane %v322, %v337
    %v340 = vunpack.c.l.s4 1966171168
    %v341 = vunpack.c.0.s8 %v340
    %v342 = vlaneseq
    %v343 = vshrl.u32 %v342, 7
    %v344 = vsub.s32 %v341, %v343
    %v345 = vrot.slane %v323, %v344
    %v347 = vunpack.c.l.s4 1966171168
    %v348 = vunpack.c.0.s8 %v347
    %v349 = vlaneseq
    %v350 = vshrl.u32 %v349, 7
    %v351 = vsub.s32 %v348, %v350
    %v352 = vrot.slane %v324, %v351
    %v353 = vcombine.high %v331, %v331
    %v354 = vcombine.high %v338, %v338
    %v355 = vcombine.high %v345, %v345
    %v356 = vcombine.high %v352, %v352
    %v621 = vunpack.c.l.b16 %v29
    %v622 = vunpack.c.h.b16 %v29
    %v623 = vunpack.c.l.b16 %v30
    %v624 = vunpack.c.h.b16 %v30
    %v625 = vunpack.c.l.b16 %v31
    %v626 = vunpack.c.h.b16 %v31
    %v627 = vunpack.c.l.b16 %v32
    %v628 = vunpack.c.h.b16 %v32
    %v629 = vunpack.c.l.b16 %v33
    %v630 = vunpack.c.h.b16 %v33
    %v631 = vunpack.c.l.b16 %v34
    %v632 = vunpack.c.h.b16 %v34
    %v633 = vunpack.c.l.b16 %v35
    %v634 = vunpack.c.h.b16 %v35
    %v635 = vunpack.c.l.b16 %v36
    %v636 = vunpack.c.h.b16 %v36
    %v637 = vunpack.c.l.b16 %v37
    %v638 = vunpack.c.h.b16 %v37
    %v639 = vunpack.c.l.b16 %v38
    %v640 = vunpack.c.h.b16 %v38
    %v641 = vunpack.c.l.b16 %v39
    %v642 = vunpack.c.h.b16 %v39
    %v643 = vunpack.c.l.b16 %v40
    %v644 = vunpack.c.h.b16 %v40
    %v645 = vunpack.c.l.b16 %v41
    %v646 = vunpack.c.h.b16 %v41
    %v647 = vunpack.c.l.b16 %v42
    %v648 = vunpack.c.h.b16 %v42
    %v649 = vunpack.c.l.b16 %v43
    %v650 = vunpack.c.h.b16 %v43
    %v651 = vunpack.c.l.b16 %v44
    %v652 = vunpack.c.h.b16 %v44
    %v653 = vunpack.c.l.b16 %v45
    %v654 = vunpack.c.h.b16 %v45
    %v655 = vunpack.c.l.b16 %v46
    %v656 = vunpack.c.h.b16 %v46
    %v657 = vunpack.c.l.b16 %v47
    %v658 = vunpack.c.h.b16 %v47
    %v659 = vunpack.c.l.b16 %v48
    %v660 = vunpack.c.h.b16 %v48
    %v661 = vunpack.c.l.b16 %v49
    %v662 = vunpack.c.h.b16 %v49
    %v663 = vunpack.c.l.b16 %v50
    %v664 = vunpack.c.h.b16 %v50
    %v665 = vunpack.c.l.b16 %v51
    %v666 = vunpack.c.h.b16 %v51
    %v667 = vunpack.c.l.b16 %v52
    %v668 = vunpack.c.h.b16 %v52
    %v669 = vunpack.c.l.b16 %v53
    %v670 = vunpack.c.h.b16 %v53
    %v671 = vunpack.c.l.b16 %v54
    %v672 = vunpack.c.h.b16 %v54
    %v673 = vunpack.c.l.b16 %v55
    %v674 = vunpack.c.h.b16 %v55
    %v675 = vunpack.c.l.b16 %v56
    %v676 = vunpack.c.h.b16 %v56
    %v677 = vunpack.c.l.b16 %v57
    %v678 = vunpack.c.h.b16 %v57
    %v679 = vunpack.c.l.b16 %v58
    %v680 = vunpack.c.h.b16 %v58
    %v681 = vunpack.c.l.b16 %v59
    %v682 = vunpack.c.h.b16 %v59
    %v683 = vunpack.c.l.b16 %v60
    %v684 = vunpack.c.h.b16 %v60
    %v685 = vunpack.c.l.b16 %v61
    %v686 = vunpack.c.h.b16 %v61
    %v687 = vunpack.c.l.b16 %v62
    %v688 = vunpack.c.h.b16 %v62
    %v689 = vunpack.c.l.b16 %v63
    %v690 = vunpack.c.h.b16 %v63
    %v691 = vunpack.c.l.b16 %v64
    %v692 = vunpack.c.h.b16 %v64
    %v693 = vunpack.c.l.b16 %v65
    %v694 = vunpack.c.h.b16 %v65
    %v695 = vunpack.c.l.b16 %v66
    %v696 = vunpack.c.h.b16 %v66
    %v697 = vunpack.c.l.b16 %v67
    %v698 = vunpack.c.h.b16 %v67
    %v699 = vunpack.c.l.b16 %v68
    %v700 = vunpack.c.h.b16 %v68
    %v701 = vunpack.c.l.b16 %v69
    %v702 = vunpack.c.h.b16 %v69
    %v703 = vunpack.c.l.b16 %v70
    %v704 = vunpack.c.h.b16 %v70
    %v705 = vunpack.c.l.b16 %v71
    %v706 = vunpack.c.h.b16 %v71
    %v707 = vunpack.c.l.b16 %v72
    %v708 = vunpack.c.h.b16 %v72
    %v709 = vunpack.c.l.b16 %v73
    %v710 = vunpack.c.h.b16 %v73
    %v711 = vunpack.c.l.b16 %v74
    %v712 = vunpack.c.h.b16 %v74
    %v713 = vunpack.c.l.b16 %v75
    %v714 = vunpack.c.h.b16 %v75
    %v715 = vunpack.c.l.b16 %v76
    %v716 = vunpack.c.h.b16 %v76
    %v717 = vunpack.c.l.b16 %v77
    %v718 = vunpack.c.h.b16 %v77
    %v719 = vunpack.c.l.b16 %v78
    %v720 = vunpack.c.h.b16 %v78
    %v721 = vunpack.c.l.b16 %v79
    %v722 = vunpack.c.h.b16 %v79
    %v723 = vunpack.c.l.b16 %v80
    %v724 = vunpack.c.h.b16 %v80
    %v725 = vunpack.c.l.b16 %v81
    %v726 = vunpack.c.h.b16 %v81
    %v727 = vunpack.c.l.b16 %v82
    %v728 = vunpack.c.h.b16 %v82
    %v729 = vunpack.c.l.b16 %v83
    %v730 = vunpack.c.h.b16 %v83
    %v731 = vunpack.c.l.b16 %v84
    %v732 = vunpack.c.h.b16 %v84
    %v733 = vunpack.c.l.b16 %v85
    %v734 = vunpack.c.h.b16 %v85
    %v735 = vunpack.c.l.b16 %v86
    %v736 = vunpack.c.h.b16 %v86
    %v737 = vunpack.c.l.b16 %v87
    %v738 = vunpack.c.h.b16 %v87
    %v739 = vunpack.c.l.b16 %v88
    %v740 = vunpack.c.h.b16 %v88
    %v741 = vunpack.c.l.b16 %v89
    %v742 = vunpack.c.h.b16 %v89
    %v743 = vunpack.c.l.b16 %v90
    %v744 = vunpack.c.h.b16 %v90
    %v745 = vunpack.c.l.b16 %v91
    %v746 = vunpack.c.h.b16 %v91
    %v747 = vunpack.c.l.b16 %v92
    %v748 = vunpack.c.h.b16 %v92
    %v749 = vunpack.c.l.b16 %v93
    %v750 = vunpack.c.h.b16 %v93
    %v751 = vunpack.c.l.b16 %v94
    %v752 = vunpack.c.h.b16 %v94
    %v753 = vunpack.c.l.b16 %v95
    %v754 = vunpack.c.h.b16 %v95
    %v755 = vunpack.c.l.b16 %v96
    %v756 = vunpack.c.h.b16 %v96
    %v757 = vunpack.c.l.b16 %v97
    %v758 = vunpack.c.h.b16 %v97
    %v759 = vunpack.c.l.b16 %v98
    %v760 = vunpack.c.h.b16 %v98
    %v761 = vunpack.c.l.b16 %v99
    %v762 = vunpack.c.h.b16 %v99
    %v763 = vunpack.c.l.b16 %v100
    %v764 = vunpack.c.h.b16 %v100
    %v765 = vunpack.c.l.b16 %v101
    %v766 = vunpack.c.h.b16 %v101
    %v767 = vunpack.c.l.b16 %v102
    %v768 = vunpack.c.h.b16 %v102
    %v769 = vunpack.c.l.b16 %v103
    %v770 = vunpack.c.h.b16 %v103
    %v771 = vunpack.c.l.b16 %v104
    %v772 = vunpack.c.h.b16 %v104
    %v773 = vunpack.c.l.b16 %v105
    %v774 = vunpack.c.h.b16 %v105
    %v775 = vunpack.c.l.b16 %v106
    %v776 = vunpack.c.h.b16 %v106
    %v777 = vunpack.c.l.b16 %v107
    %v778 = vunpack.c.h.b16 %v107
    %v779 = vunpack.c.l.b16 %v108
    %v780 = vunpack.c.h.b16 %v108
    %v781 = vunpack.c.l.b16 %v109
    %v782 = vunpack.c.h.b16 %v109
    %v783 = vunpack.c.l.b16 %v110
    %v784 = vunpack.c.h.b16 %v110
    %v785 = vunpack.c.l.b16 %v111
    %v786 = vunpack.c.h.b16 %v111
    %v787 = vunpack.c.l.b16 %v112
    %v788 = vunpack.c.h.b16 %v112
    %v789 = vunpack.c.l.b16 %v113
    %v790 = vunpack.c.h.b16 %v113
    %v791 = vunpack.c.l.b16 %v114
    %v792 = vunpack.c.h.b16 %v114
    %v793 = vunpack.c.l.b16 %v115
    %v794 = vunpack.c.h.b16 %v115
    %v795 = vunpack.c.l.b16 %v116
    %v796 = vunpack.c.h.b16 %v116
    %v797 = vunpack.c.l.b16 %v117
    %v798 = vunpack.c.h.b16 %v117
    %v799 = vunpack.c.l.b16 %v118
    %v800 = vunpack.c.h.b16 %v118
    %v801 = vunpack.c.l.b16 %v119
    %v802 = vunpack.c.h.b16 %v119
    %v803 = vunpack.c.l.b16 %v120
    %v804 = vunpack.c.h.b16 %v120
    %v805 = vunpack.c.l.b16 %v121
    %v806 = vunpack.c.h.b16 %v121
    %v807 = vunpack.c.l.b16 %v122
    %v808 = vunpack.c.h.b16 %v122
    %v809 = vunpack.c.l.b16 %v123
    %v810 = vunpack.c.h.b16 %v123
    %v811 = vunpack.c.l.b16 %v124
    %v812 = vunpack.c.h.b16 %v124
    %v813 = vunpack.c.l.b16 %v125
    %v814 = vunpack.c.h.b16 %v125
    %v815 = vunpack.c.l.b16 %v126
    %v816 = vunpack.c.h.b16 %v126
    %v817 = vunpack.c.l.b16 %v127
    %v818 = vunpack.c.h.b16 %v127
    %v819 = vunpack.c.l.b16 %v128
    %v820 = vunpack.c.h.b16 %v128
    %v821 = vunpack.c.l.b16 %v129
    %v822 = vunpack.c.h.b16 %v129
    %v823 = vunpack.c.l.b16 %v130
    %v824 = vunpack.c.h.b16 %v130
    %v825 = vunpack.c.l.b16 %v131
    %v826 = vunpack.c.h.b16 %v131
    %v827 = vunpack.c.l.b16 %v132
    %v828 = vunpack.c.h.b16 %v132
    %v829 = vunpack.c.l.b16 %v133
    %v830 = vunpack.c.h.b16 %v133
    %v831 = vunpack.c.l.b16 %v134
    %v832 = vunpack.c.h.b16 %v134
    %v833 = vunpack.c.l.b16 %v135
    %v834 = vunpack.c.h.b16 %v135
    %v835 = vunpack.c.l.b16 %v136
    %v836 = vunpack.c.h.b16 %v136
    %v837 = vunpack.c.l.b16 %v137
    %v838 = vunpack.c.h.b16 %v137
    %v839 = vunpack.c.l.b16 %v138
    %v840 = vunpack.c.h.b16 %v138
    %v841 = vunpack.c.l.b16 %v139
    %v842 = vunpack.c.h.b16 %v139
    %v843 = vunpack.c.l.b16 %v140
    %v844 = vunpack.c.h.b16 %v140
    %v845 = vunpack.c.l.b16 %v141
    %v846 = vunpack.c.h.b16 %v141
    %v847 = vunpack.c.l.b16 %v142
    %v848 = vunpack.c.h.b16 %v142
    %v849 = vunpack.c.l.b16 %v143
    %v850 = vunpack.c.h.b16 %v143
    %v851 = vunpack.c.l.b16 %v144
    %v852 = vunpack.c.h.b16 %v144
    %v853 = vunpack.c.l.b16 %v145
    %v854 = vunpack.c.h.b16 %v145
    %v855 = vunpack.c.l.b16 %v146
    %v856 = vunpack.c.h.b16 %v146
    %v857 = vunpack.c.l.b16 %v147
    %v858 = vunpack.c.h.b16 %v147
    %v859 = vunpack.c.l.b16 %v148
    %v860 = vunpack.c.h.b16 %v148
    %v861 = vunpack.c.l.b16 %v149
    %v862 = vunpack.c.h.b16 %v149
    %v863 = vunpack.c.l.b16 %v150
    %v864 = vunpack.c.h.b16 %v150
    %v865 = vunpack.c.l.b16 %v151
    %v866 = vunpack.c.h.b16 %v151
    %v867 = vunpack.c.l.b16 %v152
    %v868 = vunpack.c.h.b16 %v152
    %v869 = vunpack.c.l.b16 %v153
    %v870 = vunpack.c.h.b16 %v153
    %v871 = vunpack.c.l.b16 %v154
    %v872 = vunpack.c.h.b16 %v154
    %v873 = vunpack.c.l.b16 %v155
    %v874 = vunpack.c.h.b16 %v155
    %v875 = vunpack.c.l.b16 %v156
    %v876 = vunpack.c.h.b16 %v156
    %v877 = vunpack.c.l.b16 %v157
    %v878 = vunpack.c.h.b16 %v157
    %v879 = vunpack.c.l.b16 %v158
    %v880 = vunpack.c.h.b16 %v158
    %v881 = vunpack.c.l.b16 %v159
    %v882 = vunpack.c.h.b16 %v159
    %v883 = vunpack.c.l.b16 %v160
    %v884 = vunpack.c.h.b16 %v160
    %v885 = vunpack.c.l.b16 %v161
    %v886 = vunpack.c.h.b16 %v161
    %v887 = vunpack.c.l.b16 %v162
    %v888 = vunpack.c.h.b16 %v162
    %v889 = vunpack.c.l.b16 %v163
    %v890 = vunpack.c.h.b16 %v163
    %v891 = vunpack.c.l.b16 %v164
    %v892 = vunpack.c.h.b16 %v164
    %v893 = vunpack.c.l.b16 %v165
    %v894 = vunpack.c.h.b16 %v165
    %v895 = vunpack.c.l.b16 %v166
    %v896 = vunpack.c.h.b16 %v166
    %v897 = vunpack.c.l.b16 %v167
    %v898 = vunpack.c.h.b16 %v167
    %v899 = vunpack.c.l.b16 %v168
    %v900 = vunpack.c.h.b16 %v168
    %v901 = vunpack.c.l.b16 %v169
    %v902 = vunpack.c.h.b16 %v169
    %v903 = vunpack.c.l.b16 %v170
    %v904 = vunpack.c.h.b16 %v170
    %v905 = vunpack.c.l.b16 %v171
    %v906 = vunpack.c.h.b16 %v171
    %v907 = vunpack.c.l.b16 %v172
    %v908 = vunpack.c.h.b16 %v172
    %v909 = vunpack.c.l.b16 %v173
    %v910 = vunpack.c.h.b16 %v173
    %v911 = vunpack.c.l.b16 %v174
    %v912 = vunpack.c.h.b16 %v174
    %v913 = vunpack.c.l.b16 %v175
    %v914 = vunpack.c.h.b16 %v175
    %v915 = vunpack.c.l.b16 %v176
    %v916 = vunpack.c.h.b16 %v176
    %v917 = vunpack.c.l.b16 %v177
    %v918 = vunpack.c.h.b16 %v177
    %v919 = vunpack.c.l.b16 %v178
    %v920 = vunpack.c.h.b16 %v178
    %v921 = vunpack.c.l.b16 %v179
    %v922 = vunpack.c.h.b16 %v179
    %v923 = vunpack.c.l.b16 %v180
    %v924 = vunpack.c.h.b16 %v180
    %v925 = vunpack.c.l.b16 %v181
    %v926 = vunpack.c.h.b16 %v181
    %v927 = vunpack.c.l.b16 %v182
    %v928 = vunpack.c.h.b16 %v182
    %v929 = vunpack.c.l.b16 %v183
    %v930 = vunpack.c.h.b16 %v183
    %v931 = vunpack.c.l.b16 %v184
    %v932 = vunpack.c.h.b16 %v184
    %v933 = vunpack.c.l.b16 %v185
    %v934 = vunpack.c.h.b16 %v185
    %v935 = vunpack.c.l.b16 %v186
    %v936 = vunpack.c.h.b16 %v186
    %v937 = vunpack.c.l.b16 %v187
    %v938 = vunpack.c.h.b16 %v187
    %v939 = vunpack.c.l.b16 %v188
    %v940 = vunpack.c.h.b16 %v188
    %v941 = vunpack.c.l.b16 %v189
    %v942 = vunpack.c.h.b16 %v189
    %v943 = vunpack.c.l.b16 %v190
    %v944 = vunpack.c.h.b16 %v190
    %v945 = vunpack.c.l.b16 %v191
    %v946 = vunpack.c.h.b16 %v191
    %v947 = vunpack.c.l.b16 %v192
    %v948 = vunpack.c.h.b16 %v192
    %v949 = vunpack.c.l.b16 %v193
    %v950 = vunpack.c.h.b16 %v193
    %v951 = vunpack.c.l.b16 %v194
    %v952 = vunpack.c.h.b16 %v194
    %v953 = vunpack.c.l.b16 %v195
    %v954 = vunpack.c.h.b16 %v195
    %v955 = vunpack.c.l.b16 %v196
    %v956 = vunpack.c.h.b16 %v196
    %v957 = vunpack.c.l.b16 %v197
    %v958 = vunpack.c.h.b16 %v197
    %v959 = vunpack.c.l.b16 %v198
    %v960 = vunpack.c.h.b16 %v198
    %v961 = vunpack.c.l.b16 %v199
    %v962 = vunpack.c.h.b16 %v199
    %v963 = vunpack.c.l.b16 %v200
    %v964 = vunpack.c.h.b16 %v200
    %v965 = vunpack.c.l.b16 %v201
    %v966 = vunpack.c.h.b16 %v201
    %v967 = vunpack.c.l.b16 %v202
    %v968 = vunpack.c.h.b16 %v202
    %v969 = vunpack.c.l.b16 %v203
    %v970 = vunpack.c.h.b16 %v203
    %v971 = vunpack.c.l.b16 %v204
    %v972 = vunpack.c.h.b16 %v204
    %v973 = vunpack.c.l.b16 %v205
    %v974 = vunpack.c.h.b16 %v205
    %v975 = vunpack.c.l.b16 %v206
    %v976 = vunpack.c.h.b16 %v206
    %v977 = vunpack.c.l.b16 %v207
    %v978 = vunpack.c.h.b16 %v207
    %v979 = vunpack.c.l.b16 %v208
    %v980 = vunpack.c.h.b16 %v208
    %v981 = vunpack.c.l.b16 %v209
    %v982 = vunpack.c.h.b16 %v209
    %v983 = vunpack.c.l.b16 %v210
    %v984 = vunpack.c.h.b16 %v210
    %v985 = vunpack.c.l.b16 %v211
    %v986 = vunpack.c.h.b16 %v211
    %v987 = vunpack.c.l.b16 %v212
    %v988 = vunpack.c.h.b16 %v212
    %v989 = vunpack.c.l.b16 %v213
    %v990 = vunpack.c.h.b16 %v213
    %v991 = vunpack.c.l.b16 %v214
    %v992 = vunpack.c.h.b16 %v214
    %v993 = vunpack.c.l.b16 %v215
    %v994 = vunpack.c.h.b16 %v215
    %v995 = vunpack.c.l.b16 %v216
    %v996 = vunpack.c.h.b16 %v216
    %v997 = vunpack.c.l.b16 %v217
    %v998 = vunpack.c.h.b16 %v217
    %v999 = vunpack.c.l.b16 %v218
    %v1000 = vunpack.c.h.b16 %v218
    %v1001 = vunpack.c.l.b16 %v219
    %v1002 = vunpack.c.h.b16 %v219
    %v1003 = vunpack.c.l.b16 %v220
    %v1004 = vunpack.c.h.b16 %v220
    %v1005 = vunpack.c.l.b16 %v221
    %v1006 = vunpack.c.h.b16 %v221
    %v1007 = vunpack.c.l.b16 %v222
    %v1008 = vunpack.c.h.b16 %v222
    %v1009 = vunpack.c.l.b16 %v223
    %v1010 = vunpack.c.h.b16 %v223
    %v1011 = vunpack.c.l.b16 %v224
    %v1012 = vunpack.c.h.b16 %v224
    %v1013 = vunpack.c.l.b16 %v225
    %v1014 = vunpack.c.h.b16 %v225
    %v1015 = vunpack.c.l.b16 %v226
    %v1016 = vunpack.c.h.b16 %v226
    %v1017 = vunpack.c.l.b16 %v227
    %v1018 = vunpack.c.h.b16 %v227
    %v1019 = vunpack.c.l.b16 %v228
    %v1020 = vunpack.c.h.b16 %v228
    %v1021 = vunpack.c.l.b16 %v229
    %v1022 = vunpack.c.h.b16 %v229
    %v1023 = vunpack.c.l.b16 %v230
    %v1024 = vunpack.c.h.b16 %v230
    %v1025 = vunpack.c.l.b16 %v231
    %v1026 = vunpack.c.h.b16 %v231
    %v1027 = vunpack.c.l.b16 %v232
    %v1028 = vunpack.c.h.b16 %v232
    %v1029 = vunpack.c.l.b16 %v233
    %v1030 = vunpack.c.h.b16 %v233
    %v1031 = vunpack.c.l.b16 %v234
    %v1032 = vunpack.c.h.b16 %v234
    %v1033 = vunpack.c.l.b16 %v235
    %v1034 = vunpack.c.h.b16 %v235
    %v1035 = vunpack.c.l.b16 %v236
    %v1036 = vunpack.c.h.b16 %v236
    %v1037 = vunpack.c.l.b16 %v237
    %v1038 = vunpack.c.h.b16 %v237
    %v1039 = vunpack.c.l.b16 %v238
    %v1040 = vunpack.c.h.b16 %v238
    %v1041 = vunpack.c.l.b16 %v239
    %v1042 = vunpack.c.h.b16 %v239
    %v1043 = vunpack.c.l.b16 %v240
    %v1044 = vunpack.c.h.b16 %v240
    %v1045 = vunpack.c.l.b16 %v241
    %v1046 = vunpack.c.h.b16 %v241
    %v1047 = vunpack.c.l.b16 %v242
    %v1048 = vunpack.c.h.b16 %v242
    %v1049 = vunpack.c.l.b16 %v243
    %v1050 = vunpack.c.h.b16 %v243
    %v1051 = vunpack.c.l.b16 %v244
    %v1052 = vunpack.c.h.b16 %v244
    %v1053 = vunpack.c.l.b16 %v245
    %v1054 = vunpack.c.h.b16 %v245
    %v1055 = vunpack.c.l.b16 %v246
    %v1056 = vunpack.c.h.b16 %v246
    %v1057 = vunpack.c.l.b16 %v247
    %v1058 = vunpack.c.h.b16 %v247
    %v1059 = vunpack.c.l.b16 %v248
    %v1060 = vunpack.c.h.b16 %v248
    %v1061 = vunpack.c.l.b16 %v249
    %v1062 = vunpack.c.h.b16 %v249
    %v1063 = vunpack.c.l.b16 %v250
    %v1064 = vunpack.c.h.b16 %v250
    %v1065 = vunpack.c.l.b16 %v251
    %v1066 = vunpack.c.h.b16 %v251
    %v1067 = vunpack.c.l.b16 %v252
    %v1068 = vunpack.c.h.b16 %v252
    %v1069 = vunpack.c.l.b16 %v253
    %v1070 = vunpack.c.h.b16 %v253
    %v1071 = vunpack.c.l.b16 %v254
    %v1072 = vunpack.c.h.b16 %v254
    %v1073 = vunpack.c.l.b16 %v255
    %v1074 = vunpack.c.h.b16 %v255
    %v1075 = vunpack.c.l.b16 %v256
    %v1076 = vunpack.c.h.b16 %v256
    %v1077 = vunpack.c.l.b16 %v257
    %v1078 = vunpack.c.h.b16 %v257
    %v1079 = vunpack.c.l.b16 %v258
    %v1080 = vunpack.c.h.b16 %v258
    %v1081 = vunpack.c.l.b16 %v259
    %v1082 = vunpack.c.h.b16 %v259
    %v1083 = vunpack.c.l.b16 %v260
    %v1084 = vunpack.c.h.b16 %v260
    %v1085 = vunpack.c.l.b16 %v261
    %v1086 = vunpack.c.h.b16 %v261
    %v1087 = vunpack.c.l.b16 %v262
    %v1088 = vunpack.c.h.b16 %v262
    %v1089 = vunpack.c.l.b16 %v263
    %v1090 = vunpack.c.h.b16 %v263
    %v1091 = vunpack.c.l.b16 %v264
    %v1092 = vunpack.c.h.b16 %v264
    %v1093 = vunpack.c.l.b16 %v265
    %v1094 = vunpack.c.h.b16 %v265
    %v1095 = vunpack.c.l.b16 %v266
    %v1096 = vunpack.c.h.b16 %v266
    %v1097 = vunpack.c.l.b16 %v267
    %v1098 = vunpack.c.h.b16 %v267
    %v1099 = vunpack.c.l.b16 %v268
    %v1100 = vunpack.c.h.b16 %v268
    %v1101 = vunpack.c.l.b16 %v269
    %v1102 = vunpack.c.h.b16 %v269
    %v1103 = vunpack.c.l.b16 %v270
    %v1104 = vunpack.c.h.b16 %v270
    %v1105 = vunpack.c.l.b16 %v271
    %v1106 = vunpack.c.h.b16 %v271
    %v1107 = vunpack.c.l.b16 %v272
    %v1108 = vunpack.c.h.b16 %v272
    %v1109 = vunpack.c.l.b16 %v273
    %v1110 = vunpack.c.h.b16 %v273
    %v1111 = vunpack.c.l.b16 %v274
    %v1112 = vunpack.c.h.b16 %v274
    %v1113 = vunpack.c.l.b16 %v275
    %v1114 = vunpack.c.h.b16 %v275
    %v1115 = vunpack.c.l.b16 %v276
    %v1116 = vunpack.c.h.b16 %v276
    %v1117 = vunpack.c.l.b16 %v277
    %v1118 = vunpack.c.h.b16 %v277
    %v1119 = vunpack.c.l.b16 %v278
    %v1120 = vunpack.c.h.b16 %v278
    %v1121 = vunpack.c.l.b16 %v279
    %v1122 = vunpack.c.h.b16 %v279
    %v1123 = vunpack.c.l.b16 %v280
    %v1124 = vunpack.c.h.b16 %v280
    %v1125 = vunpack.c.l.b16 %v281
    %v1126 = vunpack.c.h.b16 %v281
    %v1127 = vunpack.c.l.b16 %v282
    %v1128 = vunpack.c.h.b16 %v282
    %v1129 = vunpack.c.l.b16 %v283
    %v1130 = vunpack.c.h.b16 %v283
    %v1131 = vunpack.c.l.b16 %v284
    %v1132 = vunpack.c.h.b16 %v284
    %v1133 = vpack.c.b16 %v625, %v621
    %v1134 = vpack.c.b16 %v626, %v622
    %v1135 = vpack.c.b16 %v627, %v623
    %v1136 = vpack.c.b16 %v628, %v624
    %v1137 = vpack.c.b16 %v633, %v629
    %v1138 = vpack.c.b16 %v634, %v630
    %v1139 = vpack.c.b16 %v635, %v631
    %v1140 = vpack.c.b16 %v636, %v632
    %v1141 = vpack.c.b16 %v641, %v637
    %v1142 = vpack.c.b16 %v642, %v638
    %v1143 = vpack.c.b16 %v643, %v639
    %v1144 = vpack.c.b16 %v644, %v640
    %v1145 = vpack.c.b16 %v649, %v645
    %v1146 = vpack.c.b16 %v650, %v646
    %v1147 = vpack.c.b16 %v651, %v647
    %v1148 = vpack.c.b16 %v652, %v648
    %v1149 = vpack.c.b16 %v657, %v653
    %v1150 = vpack.c.b16 %v658, %v654
    %v1151 = vpack.c.b16 %v659, %v655
    %v1152 = vpack.c.b16 %v660, %v656
    %v1153 = vpack.c.b16 %v665, %v661
    %v1154 = vpack.c.b16 %v666, %v662
    %v1155 = vpack.c.b16 %v667, %v663
    %v1156 = vpack.c.b16 %v668, %v664
    %v1157 = vpack.c.b16 %v673, %v669
    %v1158 = vpack.c.b16 %v674, %v670
    %v1159 = vpack.c.b16 %v675, %v671
    %v1160 = vpack.c.b16 %v676, %v672
    %v1161 = vpack.c.b16 %v681, %v677
    %v1162 = vpack.c.b16 %v682, %v678
    %v1163 = vpack.c.b16 %v683, %v679
    %v1164 = vpack.c.b16 %v684, %v680
    %v1165 = vpack.c.b16 %v689, %v685
    %v1166 = vpack.c.b16 %v690, %v686
    %v1167 = vpack.c.b16 %v691, %v687
    %v1168 = vpack.c.b16 %v692, %v688
    %v1169 = vpack.c.b16 %v697, %v693
    %v1170 = vpack.c.b16 %v698, %v694
    %v1171 = vpack.c.b16 %v699, %v695
    %v1172 = vpack.c.b16 %v700, %v696
    %v1173 = vpack.c.b16 %v705, %v701
    %v1174 = vpack.c.b16 %v706, %v702
    %v1175 = vpack.c.b16 %v707, %v703
    %v1176 = vpack.c.b16 %v708, %v704
    %v1177 = vpack.c.b16 %v713, %v709
    %v1178 = vpack.c.b16 %v714, %v710
    %v1179 = vpack.c.b16 %v715, %v711
    %v1180 = vpack.c.b16 %v716, %v712
    %v1181 = vpack.c.b16 %v721, %v717
    %v1182 = vpack.c.b16 %v722, %v718
    %v1183 = vpack.c.b16 %v723, %v719
    %v1184 = vpack.c.b16 %v724, %v720
    %v1185 = vpack.c.b16 %v729, %v725
    %v1186 = vpack.c.b16 %v730, %v726
    %v1187 = vpack.c.b16 %v731, %v727
    %v1188 = vpack.c.b16 %v732, %v728
    %v1189 = vpack.c.b16 %v737, %v733
    %v1190 = vpack.c.b16 %v738, %v734
    %v1191 = vpack.c.b16 %v739, %v735
    %v1192 = vpack.c.b16 %v740, %v736
    %v1193 = vpack.c.b16 %v745, %v741
    %v1194 = vpack.c.b16 %v746, %v742
    %v1195 = vpack.c.b16 %v747, %v743
    %v1196 = vpack.c.b16 %v748, %v744
    %v1197 = vpack.c.b16 %v753, %v749
    %v1198 = vpack.c.b16 %v754, %v750
    %v1199 = vpack.c.b16 %v755, %v751
    %v1200 = vpack.c.b16 %v756, %v752
    %v1201 = vpack.c.b16 %v761, %v757
    %v1202 = vpack.c.b16 %v762, %v758
    %v1203 = vpack.c.b16 %v763, %v759
    %v1204 = vpack.c.b16 %v764, %v760
    %v1205 = vpack.c.b16 %v769, %v765
    %v1206 = vpack.c.b16 %v770, %v766
    %v1207 = vpack.c.b16 %v771, %v767
    %v1208 = vpack.c.b16 %v772, %v768
    %v1209 = vpack.c.b16 %v777, %v773
    %v1210 = vpack.c.b16 %v778, %v774
    %v1211 = vpack.c.b16 %v779, %v775
    %v1212 = vpack.c.b16 %v780, %v776
    %v1213 = vpack.c.b16 %v785, %v781
    %v1214 = vpack.c.b16 %v786, %v782
    %v1215 = vpack.c.b16 %v787, %v783
    %v1216 = vpack.c.b16 %v788, %v784
    %v1217 = vpack.c.b16 %v793, %v789
    %v1218 = vpack.c.b16 %v794, %v790
    %v1219 = vpack.c.b16 %v795, %v791
    %v1220 = vpack.c.b16 %v796, %v792
    %v1221 = vpack.c.b16 %v801, %v797
    %v1222 = vpack.c.b16 %v802, %v798
    %v1223 = vpack.c.b16 %v803, %v799
    %v1224 = vpack.c.b16 %v804, %v800
    %v1225 = vpack.c.b16 %v809, %v805
    %v1226 = vpack.c.b16 %v810, %v806
    %v1227 = vpack.c.b16 %v811, %v807
    %v1228 = vpack.c.b16 %v812, %v808
    %v1229 = vpack.c.b16 %v817, %v813
    %v1230 = vpack.c.b16 %v818, %v814
    %v1231 = vpack.c.b16 %v819, %v815
    %v1232 = vpack.c.b16 %v820, %v816
    %v1233 = vpack.c.b16 %v825, %v821
    %v1234 = vpack.c.b16 %v826, %v822
    %v1235 = vpack.c.b16 %v827, %v823
    %v1236 = vpack.c.b16 %v828, %v824
    %v1237 = vpack.c.b16 %v833, %v829
    %v1238 = vpack.c.b16 %v834, %v830
    %v1239 = vpack.c.b16 %v835, %v831
    %v1240 = vpack.c.b16 %v836, %v832
    %v1241 = vpack.c.b16 %v841, %v837
    %v1242 = vpack.c.b16 %v842, %v838
    %v1243 = vpack.c.b16 %v843, %v839
    %v1244 = vpack.c.b16 %v844, %v840
    %v1245 = vpack.c.b16 %v849, %v845
    %v1246 = vpack.c.b16 %v850, %v846
    %v1247 = vpack.c.b16 %v851, %v847
    %v1248 = vpack.c.b16 %v852, %v848
    %v1249 = vpack.c.b16 %v857, %v853
    %v1250 = vpack.c.b16 %v858, %v854
    %v1251 = vpack.c.b16 %v859, %v855
    %v1252 = vpack.c.b16 %v860, %v856
    %v1253 = vpack.c.b16 %v865, %v861
    %v1254 = vpack.c.b16 %v866, %v862
    %v1255 = vpack.c.b16 %v867, %v863
    %v1256 = vpack.c.b16 %v868, %v864
    %v1257 = vpack.c.b16 %v873, %v869
    %v1258 = vpack.c.b16 %v874, %v870
    %v1259 = vpack.c.b16 %v875, %v871
    %v1260 = vpack.c.b16 %v876, %v872
    %v1261 = vpack.c.b16 %v881, %v877
    %v1262 = vpack.c.b16 %v882, %v878
    %v1263 = vpack.c.b16 %v883, %v879
    %v1264 = vpack.c.b16 %v884, %v880
    %v1265 = vpack.c.b16 %v889, %v885
    %v1266 = vpack.c.b16 %v890, %v886
    %v1267 = vpack.c.b16 %v891, %v887
    %v1268 = vpack.c.b16 %v892, %v888
    %v1269 = vpack.c.b16 %v897, %v893
    %v1270 = vpack.c.b16 %v898, %v894
    %v1271 = vpack.c.b16 %v899, %v895
    %v1272 = vpack.c.b16 %v900, %v896
    %v1273 = vpack.c.b16 %v905, %v901
    %v1274 = vpack.c.b16 %v906, %v902
    %v1275 = vpack.c.b16 %v907, %v903
    %v1276 = vpack.c.b16 %v908, %v904
    %v1277 = vpack.c.b16 %v913, %v909
    %v1278 = vpack.c.b16 %v914, %v910
    %v1279 = vpack.c.b16 %v915, %v911
    %v1280 = vpack.c.b16 %v916, %v912
    %v1281 = vpack.c.b16 %v921, %v917
    %v1282 = vpack.c.b16 %v922, %v918
    %v1283 = vpack.c.b16 %v923, %v919
    %v1284 = vpack.c.b16 %v924, %v920
    %v1285 = vpack.c.b16 %v929, %v925
    %v1286 = vpack.c.b16 %v930, %v926
    %v1287 = vpack.c.b16 %v931, %v927
    %v1288 = vpack.c.b16 %v932, %v928
    %v1289 = vpack.c.b16 %v937, %v933
    %v1290 = vpack.c.b16 %v938, %v934
    %v1291 = vpack.c.b16 %v939, %v935
    %v1292 = vpack.c.b16 %v940, %v936
    %v1293 = vpack.c.b16 %v945, %v941
    %v1294 = vpack.c.b16 %v946, %v942
    %v1295 = vpack.c.b16 %v947, %v943
    %v1296 = vpack.c.b16 %v948, %v944
    %v1297 = vpack.c.b16 %v953, %v949
    %v1298 = vpack.c.b16 %v954, %v950
    %v1299 = vpack.c.b16 %v955, %v951
    %v1300 = vpack.c.b16 %v956, %v952
    %v1301 = vpack.c.b16 %v961, %v957
    %v1302 = vpack.c.b16 %v962, %v958
    %v1303 = vpack.c.b16 %v963, %v959
    %v1304 = vpack.c.b16 %v964, %v960
    %v1305 = vpack.c.b16 %v969, %v965
    %v1306 = vpack.c.b16 %v970, %v966
    %v1307 = vpack.c.b16 %v971, %v967
    %v1308 = vpack.c.b16 %v972, %v968
    %v1309 = vpack.c.b16 %v977, %v973
    %v1310 = vpack.c.b16 %v978, %v974
    %v1311 = vpack.c.b16 %v979, %v975
    %v1312 = vpack.c.b16 %v980, %v976
    %v1313 = vpack.c.b16 %v985, %v981
    %v1314 = vpack.c.b16 %v986, %v982
    %v1315 = vpack.c.b16 %v987, %v983
    %v1316 = vpack.c.b16 %v988, %v984
    %v1317 = vpack.c.b16 %v993, %v989
    %v1318 = vpack.c.b16 %v994, %v990
    %v1319 = vpack.c.b16 %v995, %v991
    %v1320 = vpack.c.b16 %v996, %v992
    %v1321 = vpack.c.b16 %v1001, %v997
    %v1322 = vpack.c.b16 %v1002, %v998
    %v1323 = vpack.c.b16 %v1003, %v999
    %v1324 = vpack.c.b16 %v1004, %v1000
    %v1325 = vpack.c.b16 %v1009, %v1005
    %v1326 = vpack.c.b16 %v1010, %v1006
    %v1327 = vpack.c.b16 %v1011, %v1007
    %v1328 = vpack.c.b16 %v1012, %v1008
    %v1329 = vpack.c.b16 %v1017, %v1013
    %v1330 = vpack.c.b16 %v1018, %v1014
    %v1331 = vpack.c.b16 %v1019, %v1015
    %v1332 = vpack.c.b16 %v1020, %v1016
    %v1333 = vpack.c.b16 %v1025, %v1021
    %v1334 = vpack.c.b16 %v1026, %v1022
    %v1335 = vpack.c.b16 %v1027, %v1023
    %v1336 = vpack.c.b16 %v1028, %v1024
    %v1337 = vpack.c.b16 %v1033, %v1029
    %v1338 = vpack.c.b16 %v1034, %v1030
    %v1339 = vpack.c.b16 %v1035, %v1031
    %v1340 = vpack.c.b16 %v1036, %v1032
    %v1341 = vpack.c.b16 %v1041, %v1037
    %v1342 = vpack.c.b16 %v1042, %v1038
    %v1343 = vpack.c.b16 %v1043, %v1039
    %v1344 = vpack.c.b16 %v1044, %v1040
    %v1345 = vpack.c.b16 %v1049, %v1045
    %v1346 = vpack.c.b16 %v1050, %v1046
    %v1347 = vpack.c.b16 %v1051, %v1047
    %v1348 = vpack.c.b16 %v1052, %v1048
    %v1349 = vpack.c.b16 %v1057, %v1053
    %v1350 = vpack.c.b16 %v1058, %v1054
    %v1351 = vpack.c.b16 %v1059, %v1055
    %v1352 = vpack.c.b16 %v1060, %v1056
    %v1353 = vpack.c.b16 %v1065, %v1061
    %v1354 = vpack.c.b16 %v1066, %v1062
    %v1355 = vpack.c.b16 %v1067, %v1063
    %v1356 = vpack.c.b16 %v1068, %v1064
    %v1357 = vpack.c.b16 %v1073, %v1069
    %v1358 = vpack.c.b16 %v1074, %v1070
    %v1359 = vpack.c.b16 %v1075, %v1071
    %v1360 = vpack.c.b16 %v1076, %v1072
    %v1361 = vpack.c.b16 %v1081, %v1077
    %v1362 = vpack.c.b16 %v1082, %v1078
    %v1363 = vpack.c.b16 %v1083, %v1079
    %v1364 = vpack.c.b16 %v1084, %v1080
    %v1365 = vpack.c.b16 %v1089, %v1085
    %v1366 = vpack.c.b16 %v1090, %v1086
    %v1367 = vpack.c.b16 %v1091, %v1087
    %v1368 = vpack.c.b16 %v1092, %v1088
    %v1369 = vpack.c.b16 %v1097, %v1093
    %v1370 = vpack.c.b16 %v1098, %v1094
    %v1371 = vpack.c.b16 %v1099, %v1095
    %v1372 = vpack.c.b16 %v1100, %v1096
    %v1373 = vpack.c.b16 %v1105, %v1101
    %v1374 = vpack.c.b16 %v1106, %v1102
    %v1375 = vpack.c.b16 %v1107, %v1103
    %v1376 = vpack.c.b16 %v1108, %v1104
    %v1377 = vpack.c.b16 %v1113, %v1109
    %v1378 = vpack.c.b16 %v1114, %v1110
    %v1379 = vpack.c.b16 %v1115, %v1111
    %v1380 = vpack.c.b16 %v1116, %v1112
    %v1381 = vpack.c.b16 %v1121, %v1117
    %v1382 = vpack.c.b16 %v1122, %v1118
    %v1383 = vpack.c.b16 %v1123, %v1119
    %v1384 = vpack.c.b16 %v1124, %v1120
    %v1385 = vpack.c.b16 %v1129, %v1125
    %v1386 = vpack.c.b16 %v1130, %v1126
    %v1387 = vpack.c.b16 %v1131, %v1127
    %v1388 = vpack.c.b16 %v1132, %v1128
    %1645 = vmatprep.subr.bf16.mxu0 %v1134
    %1646 = vmatpush1.bf16.msra.mxu0 %v1133
    %1647 = vmatprep.subr.bf16.mxu0 %v1138
    %1648 = vmatpush1.bf16.msra.mxu0 %v1137
    %1649 = vmatprep.subr.bf16.mxu0 %v1142
    %1650 = vmatpush1.bf16.msra.mxu0 %v1141
    %1651 = vmatprep.subr.bf16.mxu0 %v1146
    %1652 = vmatpush1.bf16.msra.mxu0 %v1145
    %1653 = vmatprep.subr.bf16.mxu0 %v1150
    %1654 = vmatpush1.bf16.msra.mxu0 %v1149
    %1655 = vmatprep.subr.bf16.mxu0 %v1154
    %1656 = vmatpush1.bf16.msra.mxu0 %v1153
    %1657 = vmatprep.subr.bf16.mxu0 %v1158
    %1658 = vmatpush1.bf16.msra.mxu0 %v1157
    %1659 = vmatprep.subr.bf16.mxu0 %v1162
    %1660 = vmatpush1.bf16.msra.mxu0 %v1161
    %1661 = vmatprep.subr.bf16.mxu0 %v1166
    %1662 = vmatpush1.bf16.msra.mxu0 %v1165
    %1663 = vmatprep.subr.bf16.mxu0 %v1170
    %1664 = vmatpush1.bf16.msra.mxu0 %v1169
    %1665 = vmatprep.subr.bf16.mxu0 %v1174
    %1666 = vmatpush1.bf16.msra.mxu0 %v1173
    %1667 = vmatprep.subr.bf16.mxu0 %v1178
    %1668 = vmatpush1.bf16.msra.mxu0 %v1177
    %1669 = vmatprep.subr.bf16.mxu0 %v1182
    %1670 = vmatpush1.bf16.msra.mxu0 %v1181
    %1671 = vmatprep.subr.bf16.mxu0 %v1186
    %1672 = vmatpush1.bf16.msra.mxu0 %v1185
    %1673 = vmatprep.subr.bf16.mxu0 %v1190
    %1674 = vmatpush1.bf16.msra.mxu0 %v1189
    %1675 = vmatprep.subr.bf16.mxu0 %v1194
    %1676 = vmatpush1.bf16.msra.mxu0 %v1193
    %1677 = vmatprep.mubr.bf16.mxu0 %v345
    %1678 = vmatmul.mubr.bf16.gmra.mrb[0].mxu0 %v331
    %v1679 = vpop.f32.mrb[0].mxu0
    %v1680 = vadd.f32 %v290, %v1679
    %v1681 = vpop.f32.mrb[0].mxu0
    %v1682 = vadd.f32 %v294, %v1681
    %v1683 = vpop.f32.mrb[0].mxu0
    %v1684 = vpop.f32.mrb[0].mxu0
    %1685 = vdwg.mxu0
    %1686 = vmatprep.subr.bf16.mxu0 %v1198
    %1687 = vmatpush1.bf16.msra.mxu0 %v1197
    %1688 = vmatprep.subr.bf16.mxu0 %v1202
    %1689 = vmatpush1.bf16.msra.mxu0 %v1201
    %1690 = vmatprep.subr.bf16.mxu0 %v1206
    %1691 = vmatpush1.bf16.msra.mxu0 %v1205
    %1692 = vmatprep.subr.bf16.mxu0 %v1210
    %1693 = vmatpush1.bf16.msra.mxu0 %v1209
    %1694 = vmatprep.subr.bf16.mxu0 %v1214
    %1695 = vmatpush1.bf16.msra.mxu0 %v1213
    %1696 = vmatprep.subr.bf16.mxu0 %v1218
    %1697 = vmatpush1.bf16.msra.mxu0 %v1217
    %1698 = vmatprep.subr.bf16.mxu0 %v1222
    %1699 = vmatpush1.bf16.msra.mxu0 %v1221
    %1700 = vmatprep.subr.bf16.mxu0 %v1226
    %1701 = vmatpush1.bf16.msra.mxu0 %v1225
    %1702 = vmatprep.subr.bf16.mxu0 %v1230
    %1703 = vmatpush1.bf16.msra.mxu0 %v1229
    %1704 = vmatprep.subr.bf16.mxu0 %v1234
    %1705 = vmatpush1.bf16.msra.mxu0 %v1233
    %1706 = vmatprep.subr.bf16.mxu0 %v1238
    %1707 = vmatpush1.bf16.msra.mxu0 %v1237
    %1708 = vmatprep.subr.bf16.mxu0 %v1242
    %1709 = vmatpush1.bf16.msra.mxu0 %v1241
    %1710 = vmatprep.subr.bf16.mxu0 %v1246
    %1711 = vmatpush1.bf16.msra.mxu0 %v1245
    %1712 = vmatprep.subr.bf16.mxu0 %v1250
    %1713 = vmatpush1.bf16.msra.mxu0 %v1249
    %1714 = vmatprep.subr.bf16.mxu0 %v1254
    %1715 = vmatpush1.bf16.msra.mxu0 %v1253
    %1716 = vmatprep.subr.bf16.mxu0 %v1258
    %1717 = vmatpush1.bf16.msra.mxu0 %v1257
    %1718 = vmatprep.mubr.bf16.mxu0 %v355
    %1719 = vmatmul.mubr.bf16.gmra.mrb[0].mxu0 %v353
    %v1720 = vpop.f32.mrb[0].mxu0
    %v1721 = vadd.f32 %v1680, %v1720
    %v1722 = vpop.f32.mrb[0].mxu0
    %v1723 = vadd.f32 %v1682, %v1722
    %v1724 = vpop.f32.mrb[0].mxu0
    %v1725 = vpop.f32.mrb[0].mxu0
    %1726 = vdwg.mxu0
    %1727 = vmatprep.subr.bf16.mxu0 %v1262
    %1728 = vmatpush1.bf16.msra.mxu0 %v1261
    %1729 = vmatprep.subr.bf16.mxu0 %v1266
    %1730 = vmatpush1.bf16.msra.mxu0 %v1265
    %1731 = vmatprep.subr.bf16.mxu0 %v1270
    %1732 = vmatpush1.bf16.msra.mxu0 %v1269
    %1733 = vmatprep.subr.bf16.mxu0 %v1274
    %1734 = vmatpush1.bf16.msra.mxu0 %v1273
    %1735 = vmatprep.subr.bf16.mxu0 %v1278
    %1736 = vmatpush1.bf16.msra.mxu0 %v1277
    %1737 = vmatprep.subr.bf16.mxu0 %v1282
    %1738 = vmatpush1.bf16.msra.mxu0 %v1281
    %1739 = vmatprep.subr.bf16.mxu0 %v1286
    %1740 = vmatpush1.bf16.msra.mxu0 %v1285
    %1741 = vmatprep.subr.bf16.mxu0 %v1290
    %1742 = vmatpush1.bf16.msra.mxu0 %v1289
    %1743 = vmatprep.subr.bf16.mxu0 %v1294
    %1744 = vmatpush1.bf16.msra.mxu0 %v1293
    %1745 = vmatprep.subr.bf16.mxu0 %v1298
    %1746 = vmatpush1.bf16.msra.mxu0 %v1297
    %1747 = vmatprep.subr.bf16.mxu0 %v1302
    %1748 = vmatpush1.bf16.msra.mxu0 %v1301
    %1749 = vmatprep.subr.bf16.mxu0 %v1306
    %1750 = vmatpush1.bf16.msra.mxu0 %v1305
    %1751 = vmatprep.subr.bf16.mxu0 %v1310
    %1752 = vmatpush1.bf16.msra.mxu0 %v1309
    %1753 = vmatprep.subr.bf16.mxu0 %v1314
    %1754 = vmatpush1.bf16.msra.mxu0 %v1313
    %1755 = vmatprep.subr.bf16.mxu0 %v1318
    %1756 = vmatpush1.bf16.msra.mxu0 %v1317
    %1757 = vmatprep.subr.bf16.mxu0 %v1322
    %1758 = vmatpush1.bf16.msra.mxu0 %v1321
    %1759 = vmatprep.mubr.bf16.mxu0 %v352
    %1760 = vmatmul.mubr.bf16.gmra.mrb[0].mxu0 %v338
    %v1761 = vpop.f32.mrb[0].mxu0
    %v1762 = vadd.f32 %v1721, %v1761
    %v1763 = vpop.f32.mrb[0].mxu0
    %v1764 = vadd.f32 %v1723, %v1763
    %v1765 = vpop.f32.mrb[0].mxu0
    %v1766 = vpop.f32.mrb[0].mxu0
    %1767 = vdwg.mxu0
    %1768 = vmatprep.subr.bf16.mxu0 %v1326
    %1769 = vmatpush1.bf16.msra.mxu0 %v1325
    %1770 = vmatprep.subr.bf16.mxu0 %v1330
    %1771 = vmatpush1.bf16.msra.mxu0 %v1329
    %1772 = vmatprep.subr.bf16.mxu0 %v1334
    %1773 = vmatpush1.bf16.msra.mxu0 %v1333
    %1774 = vmatprep.subr.bf16.mxu0 %v1338
    %1775 = vmatpush1.bf16.msra.mxu0 %v1337
    %1776 = vmatprep.subr.bf16.mxu0 %v1342
    %1777 = vmatpush1.bf16.msra.mxu0 %v1341
    %1778 = vmatprep.subr.bf16.mxu0 %v1346
    %1779 = vmatpush1.bf16.msra.mxu0 %v1345
    %1780 = vmatprep.subr.bf16.mxu0 %v1350
    %1781 = vmatpush1.bf16.msra.mxu0 %v1349
    %1782 = vmatprep.subr.bf16.mxu0 %v1354
    %1783 = vmatpush1.bf16.msra.mxu0 %v1353
    %1784 = vmatprep.subr.bf16.mxu0 %v1358
    %1785 = vmatpush1.bf16.msra.mxu0 %v1357
    %1786 = vmatprep.subr.bf16.mxu0 %v1362
    %1787 = vmatpush1.bf16.msra.mxu0 %v1361
    %1788 = vmatprep.subr.bf16.mxu0 %v1366
    %1789 = vmatpush1.bf16.msra.mxu0 %v1365
    %1790 = vmatprep.subr.bf16.mxu0 %v1370
    %1791 = vmatpush1.bf16.msra.mxu0 %v1369
    %1792 = vmatprep.subr.bf16.mxu0 %v1374
    %1793 = vmatpush1.bf16.msra.mxu0 %v1373
    %1794 = vmatprep.subr.bf16.mxu0 %v1378
    %1795 = vmatpush1.bf16.msra.mxu0 %v1377
    %1796 = vmatprep.subr.bf16.mxu0 %v1382
    %1797 = vmatpush1.bf16.msra.mxu0 %v1381
    %1798 = vmatprep.subr.bf16.mxu0 %v1386
    %1799 = vmatpush1.bf16.msra.mxu0 %v1385
    %1800 = vmatprep.mubr.bf16.mxu0 %v356
    %1801 = vmatmul.mubr.bf16.gmra.mrb[0].mxu0 %v354
    %v1802 = vpop.f32.mrb[0].mxu0
    %v1803 = vadd.f32 %v1762, %v1802
    %v1804 = vpop.f32.mrb[0].mxu0
    %v1805 = vadd.f32 %v1764, %v1804
    %v1806 = vpop.f32.mrb[0].mxu0
    %v1807 = vpop.f32.mrb[0].mxu0
    %1808 = vdwg.mxu0
    %1809 = vmatprep.subr.bf16.mxu0 %v1136
    %1810 = vmatpush1.bf16.msra.mxu0 %v1135
    %1811 = vmatprep.subr.bf16.mxu0 %v1140
    %1812 = vmatpush1.bf16.msra.mxu0 %v1139
    %1813 = vmatprep.subr.bf16.mxu0 %v1144
    %1814 = vmatpush1.bf16.msra.mxu0 %v1143
    %1815 = vmatprep.subr.bf16.mxu0 %v1148
    %1816 = vmatpush1.bf16.msra.mxu0 %v1147
    %1817 = vmatprep.subr.bf16.mxu0 %v1152
    %1818 = vmatpush1.bf16.msra.mxu0 %v1151
    %1819 = vmatprep.subr.bf16.mxu0 %v1156
    %1820 = vmatpush1.bf16.msra.mxu0 %v1155
    %1821 = vmatprep.subr.bf16.mxu0 %v1160
    %1822 = vmatpush1.bf16.msra.mxu0 %v1159
    %1823 = vmatprep.subr.bf16.mxu0 %v1164
    %1824 = vmatpush1.bf16.msra.mxu0 %v1163
    %1825 = vmatprep.subr.bf16.mxu0 %v1168
    %1826 = vmatpush1.bf16.msra.mxu0 %v1167
    %1827 = vmatprep.subr.bf16.mxu0 %v1172
    %1828 = vmatpush1.bf16.msra.mxu0 %v1171
    %1829 = vmatprep.subr.bf16.mxu0 %v1176
    %1830 = vmatpush1.bf16.msra.mxu0 %v1175
    %1831 = vmatprep.subr.bf16.mxu0 %v1180
    %1832 = vmatpush1.bf16.msra.mxu0 %v1179
    %1833 = vmatprep.subr.bf16.mxu0 %v1184
    %1834 = vmatpush1.bf16.msra.mxu0 %v1183
    %1835 = vmatprep.subr.bf16.mxu0 %v1188
    %1836 = vmatpush1.bf16.msra.mxu0 %v1187
    %1837 = vmatprep.subr.bf16.mxu0 %v1192
    %1838 = vmatpush1.bf16.msra.mxu0 %v1191
    %1839 = vmatprep.subr.bf16.mxu0 %v1196
    %1840 = vmatpush1.bf16.msra.mxu0 %v1195
    %1841 = vmatprep.mubr.bf16.mxu0 %v345
    %1842 = vmatmul.mubr.bf16.gmra.mrb[0].mxu0 %v331
    %v1843 = vpop.f32.mrb[0].mxu0
    %v1844 = vadd.f32 %v298, %v1843
    %v1845 = vpop.f32.mrb[0].mxu0
    %v1846 = vadd.f32 %v302, %v1845
    %v1847 = vpop.f32.mrb[0].mxu0
    %v1848 = vpop.f32.mrb[0].mxu0
    %1849 = vdwg.mxu0
    %1850 = vmatprep.subr.bf16.mxu0 %v1200
    %1851 = vmatpush1.bf16.msra.mxu0 %v1199
    %1852 = vmatprep.subr.bf16.mxu0 %v1204
    %1853 = vmatpush1.bf16.msra.mxu0 %v1203
    %1854 = vmatprep.subr.bf16.mxu0 %v1208
    %1855 = vmatpush1.bf16.msra.mxu0 %v1207
    %1856 = vmatprep.subr.bf16.mxu0 %v1212
    %1857 = vmatpush1.bf16.msra.mxu0 %v1211
    %1858 = vmatprep.subr.bf16.mxu0 %v1216
    %1859 = vmatpush1.bf16.msra.mxu0 %v1215
    %1860 = vmatprep.subr.bf16.mxu0 %v1220
    %1861 = vmatpush1.bf16.msra.mxu0 %v1219
    %1862 = vmatprep.subr.bf16.mxu0 %v1224
    %1863 = vmatpush1.bf16.msra.mxu0 %v1223
    %1864 = vmatprep.subr.bf16.mxu0 %v1228
    %1865 = vmatpush1.bf16.msra.mxu0 %v1227
    %1866 = vmatprep.subr.bf16.mxu0 %v1232
    %1867 = vmatpush1.bf16.msra.mxu0 %v1231
    %1868 = vmatprep.subr.bf16.mxu0 %v1236
    %1869 = vmatpush1.bf16.msra.mxu0 %v1235
    %1870 = vmatprep.subr.bf16.mxu0 %v1240
    %1871 = vmatpush1.bf16.msra.mxu0 %v1239
    %1872 = vmatprep.subr.bf16.mxu0 %v1244
    %1873 = vmatpush1.bf16.msra.mxu0 %v1243
    %1874 = vmatprep.subr.bf16.mxu0 %v1248
    %1875 = vmatpush1.bf16.msra.mxu0 %v1247
    %1876 = vmatprep.subr.bf16.mxu0 %v1252
    %1877 = vmatpush1.bf16.msra.mxu0 %v1251
    %1878 = vmatprep.subr.bf16.mxu0 %v1256
    %1879 = vmatpush1.bf16.msra.mxu0 %v1255
    %1880 = vmatprep.subr.bf16.mxu0 %v1260
    %1881 = vmatpush1.bf16.msra.mxu0 %v1259
    %1882 = vmatprep.mubr.bf16.mxu0 %v355
    %1883 = vmatmul.mubr.bf16.gmra.mrb[0].mxu0 %v353
    %v1884 = vpop.f32.mrb[0].mxu0
    %v1885 = vadd.f32 %v1844, %v1884
    %v1886 = vpop.f32.mrb[0].mxu0
    %v1887 = vadd.f32 %v1846, %v1886
    %v1888 = vpop.f32.mrb[0].mxu0
    %v1889 = vpop.f32.mrb[0].mxu0
    %1890 = vdwg.mxu0
    %1891 = vmatprep.subr.bf16.mxu0 %v1264
    %1892 = vmatpush1.bf16.msra.mxu0 %v1263
    %1893 = vmatprep.subr.bf16.mxu0 %v1268
    %1894 = vmatpush1.bf16.msra.mxu0 %v1267
    %1895 = vmatprep.subr.bf16.mxu0 %v1272
    %1896 = vmatpush1.bf16.msra.mxu0 %v1271
    %1897 = vmatprep.subr.bf16.mxu0 %v1276
    %1898 = vmatpush1.bf16.msra.mxu0 %v1275
    %1899 = vmatprep.subr.bf16.mxu0 %v1280
    %1900 = vmatpush1.bf16.msra.mxu0 %v1279
    %1901 = vmatprep.subr.bf16.mxu0 %v1284
    %1902 = vmatpush1.bf16.msra.mxu0 %v1283
    %1903 = vmatprep.subr.bf16.mxu0 %v1288
    %1904 = vmatpush1.bf16.msra.mxu0 %v1287
    %1905 = vmatprep.subr.bf16.mxu0 %v1292
    %1906 = vmatpush1.bf16.msra.mxu0 %v1291
    %1907 = vmatprep.subr.bf16.mxu0 %v1296
    %1908 = vmatpush1.bf16.msra.mxu0 %v1295
    %1909 = vmatprep.subr.bf16.mxu0 %v1300
    %1910 = vmatpush1.bf16.msra.mxu0 %v1299
    %1911 = vmatprep.subr.bf16.mxu0 %v1304
    %1912 = vmatpush1.bf16.msra.mxu0 %v1303
    %1913 = vmatprep.subr.bf16.mxu0 %v1308
    %1914 = vmatpush1.bf16.msra.mxu0 %v1307
    %1915 = vmatprep.subr.bf16.mxu0 %v1312
    %1916 = vmatpush1.bf16.msra.mxu0 %v1311
    %1917 = vmatprep.subr.bf16.mxu0 %v1316
    %1918 = vmatpush1.bf16.msra.mxu0 %v1315
    %1919 = vmatprep.subr.bf16.mxu0 %v1320
    %1920 = vmatpush1.bf16.msra.mxu0 %v1319
    %1921 = vmatprep.subr.bf16.mxu0 %v1324
    %1922 = vmatpush1.bf16.msra.mxu0 %v1323
    %1923 = vmatprep.mubr.bf16.mxu0 %v352
    %1924 = vmatmul.mubr.bf16.gmra.mrb[0].mxu0 %v338
    %v1925 = vpop.f32.mrb[0].mxu0
    %v1926 = vadd.f32 %v1885, %v1925
    %v1927 = vpop.f32.mrb[0].mxu0
    %v1928 = vadd.f32 %v1887, %v1927
    %v1929 = vpop.f32.mrb[0].mxu0
    %v1930 = vpop.f32.mrb[0].mxu0
    %1931 = vdwg.mxu0
    %1932 = vmatprep.subr.bf16.mxu0 %v1328
    %1933 = vmatpush1.bf16.msra.mxu0 %v1327
    %1934 = vmatprep.subr.bf16.mxu0 %v1332
    %1935 = vmatpush1.bf16.msra.mxu0 %v1331
    %1936 = vmatprep.subr.bf16.mxu0 %v1336
    %1937 = vmatpush1.bf16.msra.mxu0 %v1335
    %1938 = vmatprep.subr.bf16.mxu0 %v1340
    %1939 = vmatpush1.bf16.msra.mxu0 %v1339
    %1940 = vmatprep.subr.bf16.mxu0 %v1344
    %1941 = vmatpush1.bf16.msra.mxu0 %v1343
    %1942 = vmatprep.subr.bf16.mxu0 %v1348
    %1943 = vmatpush1.bf16.msra.mxu0 %v1347
    %1944 = vmatprep.subr.bf16.mxu0 %v1352
    %1945 = vmatpush1.bf16.msra.mxu0 %v1351
    %1946 = vmatprep.subr.bf16.mxu0 %v1356
    %1947 = vmatpush1.bf16.msra.mxu0 %v1355
    %1948 = vmatprep.subr.bf16.mxu0 %v1360
    %1949 = vmatpush1.bf16.msra.mxu0 %v1359
    %1950 = vmatprep.subr.bf16.mxu0 %v1364
    %1951 = vmatpush1.bf16.msra.mxu0 %v1363
    %1952 = vmatprep.subr.bf16.mxu0 %v1368
    %1953 = vmatpush1.bf16.msra.mxu0 %v1367
    %1954 = vmatprep.subr.bf16.mxu0 %v1372
    %1955 = vmatpush1.bf16.msra.mxu0 %v1371
    %1956 = vmatprep.subr.bf16.mxu0 %v1376
    %1957 = vmatpush1.bf16.msra.mxu0 %v1375
    %1958 = vmatprep.subr.bf16.mxu0 %v1380
    %1959 = vmatpush1.bf16.msra.mxu0 %v1379
    %1960 = vmatprep.subr.bf16.mxu0 %v1384
    %1961 = vmatpush1.bf16.msra.mxu0 %v1383
    %1962 = vmatprep.subr.bf16.mxu0 %v1388
    %1963 = vmatpush1.bf16.msra.mxu0 %v1387
    %1964 = vmatprep.mubr.bf16.mxu0 %v356
    %1965 = vmatmul.mubr.bf16.gmra.mrb[0].mxu0 %v354
    %v1966 = vpop.f32.mrb[0].mxu0
    %v1967 = vadd.f32 %v1926, %v1966
    %v1968 = vpop.f32.mrb[0].mxu0
    %v1969 = vadd.f32 %v1928, %v1968
    %v1970 = vpop.f32.mrb[0].mxu0
    %v1971 = vpop.f32.mrb[0].mxu0
    %1972 = vdwg.mxu0
    %v1973 = vmax.f32 %v1803, 0.0
    %v1974 = vmax.f32 %v1805, 0.0
    %v1975 = vmax.f32 %v1967, 0.0
    %v1976 = vmax.f32 %v1969, 0.0
    %v1977 = vpack.c.bf16 %v1973, %v1973
    %v1978 = vpack.c.bf16 %v1974, %v1974
    %v1979 = vpack.c.bf16 %v1975, %v1975
    %v1980 = vpack.c.bf16 %v1976, %v1976
    %v1981 = vld [vmem:[%s3] sm:$0xff]
    %v1982 = vld [vmem:[%s3 + $0x8] sm:$0xff]
    %v1983 = vld [vmem:[%s3 + $0x10] sm:$0xff]
    %v1984 = vld [vmem:[%s3 + $0x18] sm:$0xff]
    %v1985 = vld [vmem:[%s3 + $0x20] sm:$0xff]
    %v1986 = vld [vmem:[%s3 + $0x28] sm:$0xff]
    %v1987 = vld [vmem:[%s3 + $0x30] sm:$0xff]
    %v1988 = vld [vmem:[%s3 + $0x38] sm:$0xff]
    %v1989 = vld [vmem:[%s3 + $0x40] sm:$0xff]
    %v1990 = vld [vmem:[%s3 + $0x48] sm:$0xff]
    %v1991 = vld [vmem:[%s3 + $0x50] sm:$0xff]
    %v1992 = vld [vmem:[%s3 + $0x58] sm:$0xff]
    %v1993 = vld [vmem:[%s3 + $0x60] sm:$0xff]
    %v1994 = vld [vmem:[%s3 + $0x68] sm:$0xff]
    %v1995 = vld [vmem:[%s3 + $0x70] sm:$0xff]
    %v1996 = vld [vmem:[%s3 + $0x78] sm:$0xff]
    %v1997 = vld [vmem:[%s3 + $0x80] sm:$0xff]
    %v1998 = vld [vmem:[%s3 + $0x88] sm:$0xff]
    %v1999 = vld [vmem:[%s3 + $0x90] sm:$0xff]
    %v2000 = vld [vmem:[%s3 + $0x98] sm:$0xff]
    %v2001 = vld [vmem:[%s3 + $0xa0] sm:$0xff]
    %v2002 = vld [vmem:[%s3 + $0xa8] sm:$0xff]
    %v2003 = vld [vmem:[%s3 + $0xb0] sm:$0xff]
    %v2004 = vld [vmem:[%s3 + $0xb8] sm:$0xff]
    %v2005 = vld [vmem:[%s3 + $0xc0] sm:$0xff]
    %v2006 = vld [vmem:[%s3 + $0xc8] sm:$0xff]
    %v2007 = vld [vmem:[%s3 + $0xd0] sm:$0xff]
    %v2008 = vld [vmem:[%s3 + $0xd8] sm:$0xff]
    %v2009 = vld [vmem:[%s3 + $0xe0] sm:$0xff]
    %v2010 = vld [vmem:[%s3 + $0xe8] sm:$0xff]
    %v2011 = vld [vmem:[%s3 + $0xf0] sm:$0xff]
    %v2012 = vld [vmem:[%s3 + $0xf8] sm:$0xff]
    %v2013 = vld [vmem:[%s3 + $0x100] sm:$0xff]
    %v2014 = vld [vmem:[%s3 + $0x108] sm:$0xff]
    %v2015 = vld [vmem:[%s3 + $0x110] sm:$0xff]
    %v2016 = vld [vmem:[%s3 + $0x118] sm:$0xff]
    %v2017 = vld [vmem:[%s3 + $0x120] sm:$0xff]
    %v2018 = vld [vmem:[%s3 + $0x128] sm:$0xff]
    %v2019 = vld [vmem:[%s3 + $0x130] sm:$0xff]
    %v2020 = vld [vmem:[%s3 + $0x138] sm:$0xff]
    %v2021 = vld [vmem:[%s3 + $0x140] sm:$0xff]
    %v2022 = vld [vmem:[%s3 + $0x148] sm:$0xff]
    %v2023 = vld [vmem:[%s3 + $0x150] sm:$0xff]
    %v2024 = vld [vmem:[%s3 + $0x158] sm:$0xff]
    %v2025 = vld [vmem:[%s3 + $0x160] sm:$0xff]
    %v2026 = vld [vmem:[%s3 + $0x168] sm:$0xff]
    %v2027 = vld [vmem:[%s3 + $0x170] sm:$0xff]
    %v2028 = vld [vmem:[%s3 + $0x178] sm:$0xff]
    %v2029 = vld [vmem:[%s3 + $0x180] sm:$0xff]
    %v2030 = vld [vmem:[%s3 + $0x188] sm:$0xff]
    %v2031 = vld [vmem:[%s3 + $0x190] sm:$0xff]
    %v2032 = vld [vmem:[%s3 + $0x198] sm:$0xff]
    %v2033 = vld [vmem:[%s3 + $0x1a0] sm:$0xff]
    %v2034 = vld [vmem:[%s3 + $0x1a8] sm:$0xff]
    %v2035 = vld [vmem:[%s3 + $0x1b0] sm:$0xff]
    %v2036 = vld [vmem:[%s3 + $0x1b8] sm:$0xff]
    %v2037 = vld [vmem:[%s3 + $0x1c0] sm:$0xff]
    %v2038 = vld [vmem:[%s3 + $0x1c8] sm:$0xff]
    %v2039 = vld [vmem:[%s3 + $0x1d0] sm:$0xff]
    %v2040 = vld [vmem:[%s3 + $0x1d8] sm:$0xff]
    %v2041 = vld [vmem:[%s3 + $0x1e0] sm:$0xff]
    %v2042 = vld [vmem:[%s3 + $0x1e8] sm:$0xff]
    %v2043 = vld [vmem:[%s3 + $0x1f0] sm:$0xff]
    %v2044 = vld [vmem:[%s3 + $0x1f8] sm:$0xff]
    %v2045 = vld [vmem:[%s4] sm:$0x3]
    %v2047 = vlaneseq
    %v2048 = vshrl.u32 %v2047, 7
    %v2049 = vsub.s32 0, %v2048
    %v2050 = vrot.slane %v2045, %v2049
    %v2051 = vlaneseq
    %v2052 = vshrl.u32 %v2051, 7
    %v2053 = vsub.s32 1, %v2052
    %v2054 = vrot.slane %v2045, %v2053
    %v2121 = vunpack.c.l.b16 %v1981
    %v2122 = vunpack.c.h.b16 %v1981
    %v2123 = vunpack.c.l.b16 %v1982
    %v2124 = vunpack.c.h.b16 %v1982
    %v2125 = vunpack.c.l.b16 %v1983
    %v2126 = vunpack.c.h.b16 %v1983
    %v2127 = vunpack.c.l.b16 %v1984
    %v2128 = vunpack.c.h.b16 %v1984
    %v2129 = vunpack.c.l.b16 %v1985
    %v2130 = vunpack.c.h.b16 %v1985
    %v2131 = vunpack.c.l.b16 %v1986
    %v2132 = vunpack.c.h.b16 %v1986
    %v2133 = vunpack.c.l.b16 %v1987
    %v2134 = vunpack.c.h.b16 %v1987
    %v2135 = vunpack.c.l.b16 %v1988
    %v2136 = vunpack.c.h.b16 %v1988
    %v2137 = vunpack.c.l.b16 %v1989
    %v2138 = vunpack.c.h.b16 %v1989
    %v2139 = vunpack.c.l.b16 %v1990
    %v2140 = vunpack.c.h.b16 %v1990
    %v2141 = vunpack.c.l.b16 %v1991
    %v2142 = vunpack.c.h.b16 %v1991
    %v2143 = vunpack.c.l.b16 %v1992
    %v2144 = vunpack.c.h.b16 %v1992
    %v2145 = vunpack.c.l.b16 %v1993
    %v2146 = vunpack.c.h.b16 %v1993
    %v2147 = vunpack.c.l.b16 %v1994
    %v2148 = vunpack.c.h.b16 %v1994
    %v2149 = vunpack.c.l.b16 %v1995
    %v2150 = vunpack.c.h.b16 %v1995
    %v2151 = vunpack.c.l.b16 %v1996
    %v2152 = vunpack.c.h.b16 %v1996
    %v2153 = vunpack.c.l.b16 %v1997
    %v2154 = vunpack.c.h.b16 %v1997
    %v2155 = vunpack.c.l.b16 %v1998
    %v2156 = vunpack.c.h.b16 %v1998
    %v2157 = vunpack.c.l.b16 %v1999
    %v2158 = vunpack.c.h.b16 %v1999
    %v2159 = vunpack.c.l.b16 %v2000
    %v2160 = vunpack.c.h.b16 %v2000
    %v2161 = vunpack.c.l.b16 %v2001
    %v2162 = vunpack.c.h.b16 %v2001
    %v2163 = vunpack.c.l.b16 %v2002
    %v2164 = vunpack.c.h.b16 %v2002
    %v2165 = vunpack.c.l.b16 %v2003
    %v2166 = vunpack.c.h.b16 %v2003
    %v2167 = vunpack.c.l.b16 %v2004
    %v2168 = vunpack.c.h.b16 %v2004
    %v2169 = vunpack.c.l.b16 %v2005
    %v2170 = vunpack.c.h.b16 %v2005
    %v2171 = vunpack.c.l.b16 %v2006
    %v2172 = vunpack.c.h.b16 %v2006
    %v2173 = vunpack.c.l.b16 %v2007
    %v2174 = vunpack.c.h.b16 %v2007
    %v2175 = vunpack.c.l.b16 %v2008
    %v2176 = vunpack.c.h.b16 %v2008
    %v2177 = vunpack.c.l.b16 %v2009
    %v2178 = vunpack.c.h.b16 %v2009
    %v2179 = vunpack.c.l.b16 %v2010
    %v2180 = vunpack.c.h.b16 %v2010
    %v2181 = vunpack.c.l.b16 %v2011
    %v2182 = vunpack.c.h.b16 %v2011
    %v2183 = vunpack.c.l.b16 %v2012
    %v2184 = vunpack.c.h.b16 %v2012
    %v2185 = vunpack.c.l.b16 %v2013
    %v2186 = vunpack.c.h.b16 %v2013
    %v2187 = vunpack.c.l.b16 %v2014
    %v2188 = vunpack.c.h.b16 %v2014
    %v2189 = vunpack.c.l.b16 %v2015
    %v2190 = vunpack.c.h.b16 %v2015
    %v2191 = vunpack.c.l.b16 %v2016
    %v2192 = vunpack.c.h.b16 %v2016
    %v2193 = vunpack.c.l.b16 %v2017
    %v2194 = vunpack.c.h.b16 %v2017
    %v2195 = vunpack.c.l.b16 %v2018
    %v2196 = vunpack.c.h.b16 %v2018
    %v2197 = vunpack.c.l.b16 %v2019
    %v2198 = vunpack.c.h.b16 %v2019
    %v2199 = vunpack.c.l.b16 %v2020
    %v2200 = vunpack.c.h.b16 %v2020
    %v2201 = vunpack.c.l.b16 %v2021
    %v2202 = vunpack.c.h.b16 %v2021
    %v2203 = vunpack.c.l.b16 %v2022
    %v2204 = vunpack.c.h.b16 %v2022
    %v2205 = vunpack.c.l.b16 %v2023
    %v2206 = vunpack.c.h.b16 %v2023
    %v2207 = vunpack.c.l.b16 %v2024
    %v2208 = vunpack.c.h.b16 %v2024
    %v2209 = vunpack.c.l.b16 %v2025
    %v2210 = vunpack.c.h.b16 %v2025
    %v2211 = vunpack.c.l.b16 %v2026
    %v2212 = vunpack.c.h.b16 %v2026
    %v2213 = vunpack.c.l.b16 %v2027
    %v2214 = vunpack.c.h.b16 %v2027
    %v2215 = vunpack.c.l.b16 %v2028
    %v2216 = vunpack.c.h.b16 %v2028
    %v2217 = vunpack.c.l.b16 %v2029
    %v2218 = vunpack.c.h.b16 %v2029
    %v2219 = vunpack.c.l.b16 %v2030
    %v2220 = vunpack.c.h.b16 %v2030
    %v2221 = vunpack.c.l.b16 %v2031
    %v2222 = vunpack.c.h.b16 %v2031
    %v2223 = vunpack.c.l.b16 %v2032
    %v2224 = vunpack.c.h.b16 %v2032
    %v2225 = vunpack.c.l.b16 %v2033
    %v2226 = vunpack.c.h.b16 %v2033
    %v2227 = vunpack.c.l.b16 %v2034
    %v2228 = vunpack.c.h.b16 %v2034
    %v2229 = vunpack.c.l.b16 %v2035
    %v2230 = vunpack.c.h.b16 %v2035
    %v2231 = vunpack.c.l.b16 %v2036
    %v2232 = vunpack.c.h.b16 %v2036
    %v2233 = vunpack.c.l.b16 %v2037
    %v2234 = vunpack.c.h.b16 %v2037
    %v2235 = vunpack.c.l.b16 %v2038
    %v2236 = vunpack.c.h.b16 %v2038
    %v2237 = vunpack.c.l.b16 %v2039
    %v2238 = vunpack.c.h.b16 %v2039
    %v2239 = vunpack.c.l.b16 %v2040
    %v2240 = vunpack.c.h.b16 %v2040
    %v2241 = vunpack.c.l.b16 %v2041
    %v2242 = vunpack.c.h.b16 %v2041
    %v2243 = vunpack.c.l.b16 %v2042
    %v2244 = vunpack.c.h.b16 %v2042
    %v2245 = vunpack.c.l.b16 %v2043
    %v2246 = vunpack.c.h.b16 %v2043
    %v2247 = vunpack.c.l.b16 %v2044
    %v2248 = vunpack.c.h.b16 %v2044
    %v2249 = vpack.c.b16 %v2123, %v2121
    %v2250 = vpack.c.b16 %v2124, %v2122
    %v2251 = vpack.c.b16 %v2127, %v2125
    %v2252 = vpack.c.b16 %v2128, %v2126
    %v2253 = vpack.c.b16 %v2131, %v2129
    %v2254 = vpack.c.b16 %v2132, %v2130
    %v2255 = vpack.c.b16 %v2135, %v2133
    %v2256 = vpack.c.b16 %v2136, %v2134
    %v2257 = vpack.c.b16 %v2139, %v2137
    %v2258 = vpack.c.b16 %v2140, %v2138
    %v2259 = vpack.c.b16 %v2143, %v2141
    %v2260 = vpack.c.b16 %v2144, %v2142
    %v2261 = vpack.c.b16 %v2147, %v2145
    %v2262 = vpack.c.b16 %v2148, %v2146
    %v2263 = vpack.c.b16 %v2151, %v2149
    %v2264 = vpack.c.b16 %v2152, %v2150
    %v2265 = vpack.c.b16 %v2155, %v2153
    %v2266 = vpack.c.b16 %v2156, %v2154
    %v2267 = vpack.c.b16 %v2159, %v2157
    %v2268 = vpack.c.b16 %v2160, %v2158
    %v2269 = vpack.c.b16 %v2163, %v2161
    %v2270 = vpack.c.b16 %v2164, %v2162
    %v2271 = vpack.c.b16 %v2167, %v2165
    %v2272 = vpack.c.b16 %v2168, %v2166
    %v2273 = vpack.c.b16 %v2171, %v2169
    %v2274 = vpack.c.b16 %v2172, %v2170
    %v2275 = vpack.c.b16 %v2175, %v2173
    %v2276 = vpack.c.b16 %v2176, %v2174
    %v2277 = vpack.c.b16 %v2179, %v2177
    %v2278 = vpack.c.b16 %v2180, %v2178
    %v2279 = vpack.c.b16 %v2183, %v2181
    %v2280 = vpack.c.b16 %v2184, %v2182
    %v2281 = vpack.c.b16 %v2187, %v2185
    %v2282 = vpack.c.b16 %v2188, %v2186
    %v2283 = vpack.c.b16 %v2191, %v2189
    %v2284 = vpack.c.b16 %v2192, %v2190
    %v2285 = vpack.c.b16 %v2195, %v2193
    %v2286 = vpack.c.b16 %v2196, %v2194
    %v2287 = vpack.c.b16 %v2199, %v2197
    %v2288 = vpack.c.b16 %v2200, %v2198
    %v2289 = vpack.c.b16 %v2203, %v2201
    %v2290 = vpack.c.b16 %v2204, %v2202
    %v2291 = vpack.c.b16 %v2207, %v2205
    %v2292 = vpack.c.b16 %v2208, %v2206
    %v2293 = vpack.c.b16 %v2211, %v2209
    %v2294 = vpack.c.b16 %v2212, %v2210
    %v2295 = vpack.c.b16 %v2215, %v2213
    %v2296 = vpack.c.b16 %v2216, %v2214
    %v2297 = vpack.c.b16 %v2219, %v2217
    %v2298 = vpack.c.b16 %v2220, %v2218
    %v2299 = vpack.c.b16 %v2223, %v2221
    %v2300 = vpack.c.b16 %v2224, %v2222
    %v2301 = vpack.c.b16 %v2227, %v2225
    %v2302 = vpack.c.b16 %v2228, %v2226
    %v2303 = vpack.c.b16 %v2231, %v2229
    %v2304 = vpack.c.b16 %v2232, %v2230
    %v2305 = vpack.c.b16 %v2235, %v2233
    %v2306 = vpack.c.b16 %v2236, %v2234
    %v2307 = vpack.c.b16 %v2239, %v2237
    %v2308 = vpack.c.b16 %v2240, %v2238
    %v2309 = vpack.c.b16 %v2243, %v2241
    %v2310 = vpack.c.b16 %v2244, %v2242
    %v2311 = vpack.c.b16 %v2247, %v2245
    %v2312 = vpack.c.b16 %v2248, %v2246
    %2377 = vmatprep.subr.bf16.mxu0 %v2250
    %2378 = vmatpush1.bf16.msra.mxu0 %v2249
    %2379 = vmatprep.subr.bf16.mxu0 %v2252
    %2380 = vmatpush1.bf16.msra.mxu0 %v2251
    %2381 = vmatprep.subr.bf16.mxu0 %v2254
    %2382 = vmatpush1.bf16.msra.mxu0 %v2253
    %2383 = vmatprep.subr.bf16.mxu0 %v2256
    %2384 = vmatpush1.bf16.msra.mxu0 %v2255
    %2385 = vmatprep.subr.bf16.mxu0 %v2258
    %2386 = vmatpush1.bf16.msra.mxu0 %v2257
    %2387 = vmatprep.subr.bf16.mxu0 %v2260
    %2388 = vmatpush1.bf16.msra.mxu0 %v2259
    %2389 = vmatprep.subr.bf16.mxu0 %v2262
    %2390 = vmatpush1.bf16.msra.mxu0 %v2261
    %2391 = vmatprep.subr.bf16.mxu0 %v2264
    %2392 = vmatpush1.bf16.msra.mxu0 %v2263
    %2393 = vmatprep.subr.bf16.mxu0 %v2266
    %2394 = vmatpush1.bf16.msra.mxu0 %v2265
    %2395 = vmatprep.subr.bf16.mxu0 %v2268
    %2396 = vmatpush1.bf16.msra.mxu0 %v2267
    %2397 = vmatprep.subr.bf16.mxu0 %v2270
    %2398 = vmatpush1.bf16.msra.mxu0 %v2269
    %2399 = vmatprep.subr.bf16.mxu0 %v2272
    %2400 = vmatpush1.bf16.msra.mxu0 %v2271
    %2401 = vmatprep.subr.bf16.mxu0 %v2274
    %2402 = vmatpush1.bf16.msra.mxu0 %v2273
    %2403 = vmatprep.subr.bf16.mxu0 %v2276
    %2404 = vmatpush1.bf16.msra.mxu0 %v2275
    %2405 = vmatprep.subr.bf16.mxu0 %v2278
    %2406 = vmatpush1.bf16.msra.mxu0 %v2277
    %2407 = vmatprep.subr.bf16.mxu0 %v2280
    %2408 = vmatpush1.bf16.msra.mxu0 %v2279
    %2409 = vmatprep.mubr.bf16.mxu0 %v1978
    %2410 = vmatmul.mubr.bf16.gmra.mrb[0].mxu0 %v1977
    %v2411 = vpop.f32.mrb[0].mxu0
    %v2412 = vadd.f32 %v2050, %v2411
    %v2413 = vpop.f32.mrb[0].mxu0
    %v2414 = vadd.f32 %v2054, %v2413
    %v2415 = vpop.f32.mrb[0].mxu0
    %v2416 = vpop.f32.mrb[0].mxu0
    %2417 = vdwg.mxu0
    %2418 = vmatprep.subr.bf16.mxu0 %v2282
    %2419 = vmatpush1.bf16.msra.mxu0 %v2281
    %2420 = vmatprep.subr.bf16.mxu0 %v2284
    %2421 = vmatpush1.bf16.msra.mxu0 %v2283
    %2422 = vmatprep.subr.bf16.mxu0 %v2286
    %2423 = vmatpush1.bf16.msra.mxu0 %v2285
    %2424 = vmatprep.subr.bf16.mxu0 %v2288
    %2425 = vmatpush1.bf16.msra.mxu0 %v2287
    %2426 = vmatprep.subr.bf16.mxu0 %v2290
    %2427 = vmatpush1.bf16.msra.mxu0 %v2289
    %2428 = vmatprep.subr.bf16.mxu0 %v2292
    %2429 = vmatpush1.bf16.msra.mxu0 %v2291
    %2430 = vmatprep.subr.bf16.mxu0 %v2294
    %2431 = vmatpush1.bf16.msra.mxu0 %v2293
    %2432 = vmatprep.subr.bf16.mxu0 %v2296
    %2433 = vmatpush1.bf16.msra.mxu0 %v2295
    %2434 = vmatprep.subr.bf16.mxu0 %v2298
    %2435 = vmatpush1.bf16.msra.mxu0 %v2297
    %2436 = vmatprep.subr.bf16.mxu0 %v2300
    %2437 = vmatpush1.bf16.msra.mxu0 %v2299
    %2438 = vmatprep.subr.bf16.mxu0 %v2302
    %2439 = vmatpush1.bf16.msra.mxu0 %v2301
    %2440 = vmatprep.subr.bf16.mxu0 %v2304
    %2441 = vmatpush1.bf16.msra.mxu0 %v2303
    %2442 = vmatprep.subr.bf16.mxu0 %v2306
    %2443 = vmatpush1.bf16.msra.mxu0 %v2305
    %2444 = vmatprep.subr.bf16.mxu0 %v2308
    %2445 = vmatpush1.bf16.msra.mxu0 %v2307
    %2446 = vmatprep.subr.bf16.mxu0 %v2310
    %2447 = vmatpush1.bf16.msra.mxu0 %v2309
    %2448 = vmatprep.subr.bf16.mxu0 %v2312
    %2449 = vmatpush1.bf16.msra.mxu0 %v2311
    %2450 = vmatprep.mubr.bf16.mxu0 %v1980
    %2451 = vmatmul.mubr.bf16.gmra.mrb[0].mxu0 %v1979
    %v2452 = vpop.f32.mrb[0].mxu0
    %v2453 = vadd.f32 %v2412, %v2452
    %v2454 = vpop.f32.mrb[0].mxu0
    %v2455 = vadd.f32 %v2414, %v2454
    %v2456 = vpop.f32.mrb[0].mxu0
    %v2457 = vpop.f32.mrb[0].mxu0
    %2458 = vdwg.mxu0
    %v2459 = vmax.f32 %v2453, 0.0
    %v2460 = vmax.f32 %v2455, 0.0
    %v2461 = vpack.c.bf16 %v2459, %v2459
    %v2462 = vpack.c.bf16 %v2460, %v2460
    %v2463 = vld [vmem:[%s5] sm:$0xf]
    %v2464 = vld [vmem:[%s5 + $0x4] sm:$0xf]
    %v2465 = vld [vmem:[%s5 + $0x8] sm:$0xf]
    %v2466 = vld [vmem:[%s5 + $0xc] sm:$0xf]
    %v2467 = vld [vmem:[%s5 + $0x10] sm:$0xf]
    %v2468 = vld [vmem:[%s5 + $0x14] sm:$0xf]
    %v2469 = vld [vmem:[%s5 + $0x18] sm:$0xf]
    %v2470 = vld [vmem:[%s5 + $0x1c] sm:$0xf]
    %v2471 = vld [vmem:[%s5 + $0x20] sm:$0xf]
    %v2472 = vld [vmem:[%s5 + $0x24] sm:$0xf]
    %v2473 = vld [vmem:[%s5 + $0x28] sm:$0xf]
    %v2474 = vld [vmem:[%s5 + $0x2c] sm:$0xf]
    %v2475 = vld [vmem:[%s5 + $0x30] sm:$0xf]
    %v2476 = vld [vmem:[%s5 + $0x34] sm:$0xf]
    %v2477 = vld [vmem:[%s5 + $0x38] sm:$0xf]
    %v2478 = vld [vmem:[%s5 + $0x3c] sm:$0xf]
    %v2479 = vld [vmem:[%s5 + $0x40] sm:$0xf]
    %v2480 = vld [vmem:[%s5 + $0x44] sm:$0xf]
    %v2481 = vld [vmem:[%s5 + $0x48] sm:$0xf]
    %v2482 = vld [vmem:[%s5 + $0x4c] sm:$0xf]
    %v2483 = vld [vmem:[%s5 + $0x50] sm:$0xf]
    %v2484 = vld [vmem:[%s5 + $0x54] sm:$0xf]
    %v2485 = vld [vmem:[%s5 + $0x58] sm:$0xf]
    %v2486 = vld [vmem:[%s5 + $0x5c] sm:$0xf]
    %v2487 = vld [vmem:[%s5 + $0x60] sm:$0xf]
    %v2488 = vld [vmem:[%s5 + $0x64] sm:$0xf]
    %v2489 = vld [vmem:[%s5 + $0x68] sm:$0xf]
    %v2490 = vld [vmem:[%s5 + $0x6c] sm:$0xf]
    %v2491 = vld [vmem:[%s5 + $0x70] sm:$0xf]
    %v2492 = vld [vmem:[%s5 + $0x74] sm:$0xf]
    %v2493 = vld [vmem:[%s5 + $0x78] sm:$0xf]
    %v2494 = vld [vmem:[%s5 + $0x7c] sm:$0xf]
    %v2495 = vld [vmem:[%s6] sm:$0x1]
    %v2497 = vlaneseq
    %v2498 = vshrl.u32 %v2497, 7
    %v2499 = vsub.s32 0, %v2498
    %v2500 = vrot.slane %v2495, %v2499
    %v2534 = vunpack.c.l.b16 %v2463
    %v2535 = vunpack.c.l.b16 %v2464
    %v2536 = vunpack.c.l.b16 %v2465
    %v2537 = vunpack.c.l.b16 %v2466
    %v2538 = vunpack.c.l.b16 %v2467
    %v2539 = vunpack.c.l.b16 %v2468
    %v2540 = vunpack.c.l.b16 %v2469
    %v2541 = vunpack.c.l.b16 %v2470
    %v2542 = vunpack.c.l.b16 %v2471
    %v2543 = vunpack.c.l.b16 %v2472
    %v2544 = vunpack.c.l.b16 %v2473
    %v2545 = vunpack.c.l.b16 %v2474
    %v2546 = vunpack.c.l.b16 %v2475
    %v2547 = vunpack.c.l.b16 %v2476
    %v2548 = vunpack.c.l.b16 %v2477
    %v2549 = vunpack.c.l.b16 %v2478
    %v2550 = vunpack.c.l.b16 %v2479
    %v2551 = vunpack.c.l.b16 %v2480
    %v2552 = vunpack.c.l.b16 %v2481
    %v2553 = vunpack.c.l.b16 %v2482
    %v2554 = vunpack.c.l.b16 %v2483
    %v2555 = vunpack.c.l.b16 %v2484
    %v2556 = vunpack.c.l.b16 %v2485
    %v2557 = vunpack.c.l.b16 %v2486
    %v2558 = vunpack.c.l.b16 %v2487
    %v2559 = vunpack.c.l.b16 %v2488
    %v2560 = vunpack.c.l.b16 %v2489
    %v2561 = vunpack.c.l.b16 %v2490
    %v2562 = vunpack.c.l.b16 %v2491
    %v2563 = vunpack.c.l.b16 %v2492
    %v2564 = vunpack.c.l.b16 %v2493
    %v2565 = vunpack.c.l.b16 %v2494
    %v2566 = vpack.c.b16 %v2535, %v2534
    %v2567 = vpack.c.b16 %v2537, %v2536
    %v2568 = vpack.c.b16 %v2539, %v2538
    %v2569 = vpack.c.b16 %v2541, %v2540
    %v2570 = vpack.c.b16 %v2543, %v2542
    %v2571 = vpack.c.b16 %v2545, %v2544
    %v2572 = vpack.c.b16 %v2547, %v2546
    %v2573 = vpack.c.b16 %v2549, %v2548
    %v2574 = vpack.c.b16 %v2551, %v2550
    %v2575 = vpack.c.b16 %v2553, %v2552
    %v2576 = vpack.c.b16 %v2555, %v2554
    %v2577 = vpack.c.b16 %v2557, %v2556
    %v2578 = vpack.c.b16 %v2559, %v2558
    %v2579 = vpack.c.b16 %v2561, %v2560
    %v2580 = vpack.c.b16 %v2563, %v2562
    %v2581 = vpack.c.b16 %v2565, %v2564
    %2598 = vmatprep.subr.bf16.mxu0 0
    %2599 = vmatpush1.bf16.msra.mxu0 %v2566
    %2600 = vmatprep.subr.bf16.mxu0 0
    %2601 = vmatpush1.bf16.msra.mxu0 %v2567
    %2602 = vmatprep.subr.bf16.mxu0 0
    %2603 = vmatpush1.bf16.msra.mxu0 %v2568
    %2604 = vmatprep.subr.bf16.mxu0 0
    %2605 = vmatpush1.bf16.msra.mxu0 %v2569
    %2606 = vmatprep.subr.bf16.mxu0 0
    %2607 = vmatpush1.bf16.msra.mxu0 %v2570
    %2608 = vmatprep.subr.bf16.mxu0 0
    %2609 = vmatpush1.bf16.msra.mxu0 %v2571
    %2610 = vmatprep.subr.bf16.mxu0 0
    %2611 = vmatpush1.bf16.msra.mxu0 %v2572
    %2612 = vmatprep.subr.bf16.mxu0 0
    %2613 = vmatpush1.bf16.msra.mxu0 %v2573
    %2614 = vmatprep.subr.bf16.mxu0 0
    %2615 = vmatpush1.bf16.msra.mxu0 %v2574
    %2616 = vmatprep.subr.bf16.mxu0 0
    %2617 = vmatpush1.bf16.msra.mxu0 %v2575
    %2618 = vmatprep.subr.bf16.mxu0 0
    %2619 = vmatpush1.bf16.msra.mxu0 %v2576
    %2620 = vmatprep.subr.bf16.mxu0 0
    %2621 = vmatpush1.bf16.msra.mxu0 %v2577
    %2622 = vmatprep.subr.bf16.mxu0 0
    %2623 = vmatpush1.bf16.msra.mxu0 %v2578
    %2624 = vmatprep.subr.bf16.mxu0 0
    %2625 = vmatpush1.bf16.msra.mxu0 %v2579
    %2626 = vmatprep.subr.bf16.mxu0 0
    %2627 = vmatpush1.bf16.msra.mxu0 %v2580
    %2628 = vmatprep.subr.bf16.mxu0 0
    %2629 = vmatpush1.bf16.msra.mxu0 %v2581
    %2630 = vmatprep.mubr.bf16.mxu0 %v2462
    %2631 = vmatmul.mubr.bf16.gmra.mrb[0].mxu0 %v2461
    %v2632 = vpop.f32.mrb[0].mxu0
    %v2633 = vadd.f32 %v2500, %v2632
    %v2634 = vpop.f32.mrb[0].mxu0
    %v2635 = vpop.f32.mrb[0].mxu0
    %v2636 = vpop.f32.mrb[0].mxu0
    %2637 = vdwg.mxu0
    %vm2638 = vcmask 74752
    %v2639 = vsel %vm2638, %v2633, -inf
    %2640 = vmax.xlane.f32.xlu0 %v2639
    %v2641 = vpop.xlane.xlu0 %2640
    %v2642 = vsub.f32 %v2633, %v2641
    %v2643 = vmul.f32 %v2642, 1.442695
    %v2644 = vpow.pop %v2643
    %v2645 = vsel %vm2638, %v2644, 0.0
    %2646 = vadd.xlane.f32.xlu0 %v2645
    %v2647 = vpop.xlane.xlu0 %2646
    %v2648 = vlog2.pop %v2647
    %v2649 = vmul.f32 %v2648, 0.6931472
    %v2650 = vsub.f32 %v2642, %v2649
    %2651 = vst.msk [vmem:[#allocation2] sm:$0x3] %vm2638, %v2650
    // Predicated region
    $region30: #{pointnet2_forward.7} parent=1 // pred_check
      _
    $region31: #{pointnet2_forward.7} parent=1 // pred_check_branch
      %2653 = sbr.rel (0) target = $region33
    $region32: #{pointnet2_forward.7} parent=1 // pred_region
      %s2655 = ssub.s32 32, 32
      %2656 = vsyncadd [#allocation3], %s2655
      %s2658 = sshll.u32 [#allocation2], 4
      %s2659 = int_to_ptr.vmem [resolvable:$true] %s2658
      %2661 = dma.vmem_to_hbm [thread:$0]  %s2659, 32, %s7, [#allocation3]
    $region33: #{pointnet2_forward.7} parent=1 // pred_fallthru
      _
    // Predicated region
    $region34: #{pointnet2_forward.7} parent=1 // pred_check
      _
    $region35: #{pointnet2_forward.7} parent=1 // pred_check_branch
      %2663 = sbr.rel (0) target = $region37
    $region36: #{pointnet2_forward.7} parent=1 // pred_region
      %2664 = dma.done [#allocation3], 32
    $region37: #{pointnet2_forward.7} parent=1 // pred_fallthru
      _
    %2665 = vsyncpa [#allocation3], 1

</llo_original>
